<compile_context>
chip_gen: v7x
topology: tpu7x:2x2x1
jax: 0.10.0
libtpu: 0.0.40
codegen_flags: <defaults>
</compile_context>

<pallas_src>
import functools

import jax
import jax.numpy as jnp
from jax import lax
from jax.experimental import pallas as pl
from jax.experimental.pallas import tpu as pltpu


CP = 128  # lane-tile channel padding for every branch output / intermediate

_COMPILER_PARAMS = pltpu.CompilerParams(
    dimension_semantics=("parallel",),
    vmem_limit_bytes=32 * 1024 * 1024,
)


# ---------------------------------------------------------------------------
# Fused Inception kernel (one image per grid step)
# ---------------------------------------------------------------------------
def _tree_max(vals):
    """Balanced max tree (shorter VALU dependency chain than a serial fold)."""
    while len(vals) > 1:
        nxt = [jnp.maximum(vals[i], vals[i + 1]) for i in range(0, len(vals) - 1, 2)]
        if len(vals) % 2:
            nxt.append(vals[-1])
        vals = nxt
    return vals[0]


def _inception_kernel(x_ref, wf_ref, bf_ref, w3_ref, b3_ref, w5_ref, b5_ref,
                      w4_ref, b4_ref, o_ref, pool_scr, p2_scr, p3_scr,
                      *, H, W, CIN):
    HW = H * W
    x_img = x_ref[...]                                   # (H, W, CIN) bf16
    x2d = x_img.reshape(HW, CIN)

    # ---- fused input 1x1 convs: p1_1 | p2_1 | p3_1 in one MXU matmul -------
    first = jnp.dot(x2d, wf_ref[...], preferred_element_type=jnp.float32)
    first = jnp.maximum(first + bf_ref[...], 0.0)        # (HW, 3*CP) f32
    p1_out = first[:, 0:CP]                              # p1 at cols [0:c1], 0 elsewhere
    p2a = first[:, CP:2 * CP].astype(jnp.bfloat16)       # (HW, CP), zeros beyond c2[0]
    p3a = first[:, 2 * CP:3 * CP].astype(jnp.bfloat16)   # (HW, CP), zeros beyond c3[0]

    # ---- branch 4: 3x3 max-pool (f32 balanced tree) + 1x1 conv -------------
    pool_scr[...] = jnp.full(pool_scr.shape, -jnp.inf, dtype=pool_scr.dtype)
    pool_scr[1:H + 1, 1:W + 1, :] = x_img.astype(jnp.float32)
    xpool = pool_scr[...]
    pooled = _tree_max([xpool[kh:kh + H, kw:kw + W, :]
                        for kh in range(3) for kw in range(3)])
    p4_out = jnp.dot(pooled.reshape(HW, CIN).astype(jnp.bfloat16), w4_ref[...],
                     preferred_element_type=jnp.float32)
    p4_out = jnp.maximum(p4_out + b4_ref[...], 0.0)      # p4 at cols [28:36]

    # ---- branch 2: 3x3 conv as one stacked-tap (im2col) MXU matmul ---------
    p2_scr[...] = jnp.zeros(p2_scr.shape, dtype=p2_scr.dtype)
    p2_scr[1:H + 1, 1:W + 1, :] = p2a.reshape(H, W, CP)
    xp2 = p2_scr[...]
    col3 = jnp.concatenate(
        [xp2[kh:kh + H, kw:kw + W, :].reshape(HW, CP)
         for kh in range(3) for kw in range(3)], axis=-1)        # (HW, 9*CP)
    p2_out = jnp.dot(col3, w3_ref[...], preferred_element_type=jnp.float32)
    p2_out = jnp.maximum(p2_out + b3_ref[...], 0.0)      # p2 at cols [8:20]

    # ---- branch 3: 5x5 conv as one stacked-tap (im2col) MXU matmul ---------
    p3_scr[...] = jnp.zeros(p3_scr.shape, dtype=p3_scr.dtype)
    p3_scr[2:H + 2, 2:W + 2, :] = p3a.reshape(H, W, CP)
    xp3 = p3_scr[...]
    col5 = jnp.concatenate(
        [xp3[kh:kh + H, kw:kw + W, :].reshape(HW, CP)
         for kh in range(5) for kw in range(5)], axis=-1)        # (HW, 25*CP)
    p3_out = jnp.dot(col5, w5_ref[...], preferred_element_type=jnp.float32)
    p3_out = jnp.maximum(p3_out + b5_ref[...], 0.0)      # p3 at cols [20:28]

    # ---- concat-by-sum (disjoint non-zero columns) -> lane-dense bf16 store -
    out = p1_out + p2_out + p3_out + p4_out              # (HW, CP) f32
    o_ref[...] = out.astype(jnp.bfloat16).reshape(H, W, CP)


def inception_pallas(x_nhwc, kp):
    N, H, W, CIN = x_nhwc.shape
    kernel = functools.partial(_inception_kernel, H=H, W=W, CIN=CIN)
    return pl.pallas_call(
        kernel,
        out_shape=jax.ShapeDtypeStruct((N, H, W, CP), jnp.bfloat16),
        grid=(N,),
        in_specs=[
            pl.BlockSpec((None, H, W, CIN), lambda n: (n, 0, 0, 0)),
            pl.BlockSpec((CIN, 3 * CP), lambda n: (0, 0)),
            pl.BlockSpec((1, 3 * CP), lambda n: (0, 0)),
            pl.BlockSpec((9 * CP, CP), lambda n: (0, 0)),
            pl.BlockSpec((1, CP), lambda n: (0, 0)),
            pl.BlockSpec((25 * CP, CP), lambda n: (0, 0)),
            pl.BlockSpec((1, CP), lambda n: (0, 0)),
            pl.BlockSpec((CIN, CP), lambda n: (0, 0)),
            pl.BlockSpec((1, CP), lambda n: (0, 0)),
        ],
        out_specs=pl.BlockSpec((None, H, W, CP), lambda n: (n, 0, 0, 0)),
        scratch_shapes=[
            pltpu.VMEM((H + 2, W + 2, CIN), jnp.float32),   # -inf padded x (pool)
            pltpu.VMEM((H + 2, W + 2, CP), jnp.bfloat16),   # zero-padded p2a
            pltpu.VMEM((H + 4, W + 4, CP), jnp.bfloat16),   # zero-padded p3a
        ],
        compiler_params=_COMPILER_PARAMS,
    )(x_nhwc, kp["w_first"], kp["b_first"], kp["w3"], kp["b3"],
      kp["w5"], kp["b5"], kp["w4"], kp["b4"])


@functools.partial(jax.jit, static_argnums=(2,))
def inception_forward(x_nchw, kp, c_total):
    x = jnp.transpose(x_nchw, (0, 2, 3, 1)).astype(jnp.bfloat16)   # NHWC bf16
    y = inception_pallas(x, kp)                                    # (N,H,W,128) bf16
    y = y[..., :c_total]                                           # drop lane padding
    return jnp.transpose(y, (0, 3, 1, 2)).astype(jnp.float32)      # NCHW f32


# ---------------------------------------------------------------------------
# Parameter preparation (fusion + lane padding, done ONCE outside the forward)
# ---------------------------------------------------------------------------
def prepare_params(pt, in_channels, c1, c2, c3, c4):
    c20, c21 = c2
    c30, c31 = c3
    off2, off3, off4 = c1, c1 + c21, c1 + c21 + c31
    c_total = c1 + c21 + c31 + c4
    assert c_total <= CP

    def w1x1(w):                      # (Cout, Cin, 1, 1) -> (Cin, Cout)
        return jnp.transpose(w[:, :, 0, 0], (1, 0))

    # Fused first-layer 1x1s: each branch in its own 128-wide column block;
    # p1 is already placed at its final concat offset (0).
    wf = jnp.zeros((in_channels, 3 * CP), jnp.float32)
    wf = wf.at[:, 0:c1].set(w1x1(pt["p1_1_w"]))
    wf = wf.at[:, CP:CP + c20].set(w1x1(pt["p2_1_w"]))
    wf = wf.at[:, 2 * CP:2 * CP + c30].set(w1x1(pt["p3_1_w"]))
    bf = jnp.zeros((1, 3 * CP), jnp.float32)
    bf = bf.at[:, 0:c1].set(pt["p1_1_b"])
    bf = bf.at[:, CP:CP + c20].set(pt["p2_1_b"])
    bf = bf.at[:, 2 * CP:2 * CP + c30].set(pt["p3_1_b"])

    def wkxk(w, b, k, cin_b, cout_b, col_off):
        # (Cout, Cin, K, K) -> (K*K*CP, CP); rows ordered kh-major (matching the
        # in-kernel tap order), output columns placed at the final concat offset.
        wt = jnp.transpose(w, (2, 3, 1, 0)).reshape(k * k, cin_b, cout_b)
        wk = jnp.zeros((k * k, CP, CP), jnp.float32)
        wk = wk.at[:, :cin_b, col_off:col_off + cout_b].set(wt)
        bk = jnp.zeros((1, CP), jnp.float32)
        bk = bk.at[:, col_off:col_off + cout_b].set(b)
        return wk.reshape(k * k * CP, CP).astype(jnp.bfloat16), bk

    w3, b3 = wkxk(pt["p2_2_w"], pt["p2_2_b"], 3, c20, c21, off2)
    w5, b5 = wkxk(pt["p3_2_w"], pt["p3_2_b"], 5, c30, c31, off3)

    w4 = jnp.zeros((in_channels, CP), jnp.float32)
    w4 = w4.at[:, off4:off4 + c4].set(w1x1(pt["p4_2_w"]))
    b4 = jnp.zeros((1, CP), jnp.float32)
    b4 = b4.at[:, off4:off4 + c4].set(pt["p4_2_b"])

    kp = {
        "w_first": wf.astype(jnp.bfloat16), "b_first": bf,
        "w3": w3, "b3": b3,
        "w5": w5, "b5": b5,
        "w4": w4.astype(jnp.bfloat16), "b4": b4,
    }
    return kp, c_total


# ---------------------------------------------------------------------------
# Pure-JAX f32 reference (PyTorch semantics) for verification
# ---------------------------------------------------------------------------
def _ref_conv(x, w, b, pad):
    y = lax.conv_general_dilated(
        x, w, window_strides=(1, 1), padding=((pad, pad), (pad, pad)),
        dimension_numbers=("NCHW", "OIHW", "NCHW"),
        precision=lax.Precision.HIGHEST,
    )
    return y + b.reshape(1, -1, 1, 1)


def reference_forward(x, pt):
    relu = lambda v: jnp.maximum(v, 0.0)
    p1 = relu(_ref_conv(x, pt["p1_1_w"], pt["p1_1_b"], 0))
    p2 = relu(_ref_conv(relu(_ref_conv(x, pt["p2_1_w"], pt["p2_1_b"], 0)),
                        pt["p2_2_w"], pt["p2_2_b"], 1))
    p3 = relu(_ref_conv(relu(_ref_conv(x, pt["p3_1_w"], pt["p3_1_b"], 0)),
                        pt["p3_2_w"], pt["p3_2_b"], 2))
    pooled = lax.reduce_window(
        x, -jnp.inf, lax.max,
        window_dimensions=(1, 1, 3, 3), window_strides=(1, 1, 1, 1),
        padding=((0, 0), (0, 0), (1, 1), (1, 1)),
    )
    p4 = relu(_ref_conv(pooled, pt["p4_2_w"], pt["p4_2_b"], 0))
    return jnp.concatenate([p1, p2, p3, p4], axis=1)


# ---------------------------------------------------------------------------
# Parameter setup (PyTorch Conv2d shapes: (Cout, Cin, KH, KW))
# ---------------------------------------------------------------------------
def _make_conv(key, cout, cin, k):
    kw, kb = jax.random.split(key)
    w = jax.random.normal(kw, (cout, cin, k, k), jnp.float32) * 0.1
    b = jax.random.normal(kb, (cout,), jnp.float32) * 0.1
    return w, b


if __name__ == "__main__":
    key = jax.random.PRNGKey(0)
    N, Cin, H, W = 2, 4, 16, 16
    c1, c2, c3, c4 = 8, (8, 12), (4, 8), 8

    keys = jax.random.split(key, 8)
    x = jax.random.normal(keys[0], (N, Cin, H, W), jnp.float32)

    pt = {}
    pt["p1_1_w"], pt["p1_1_b"] = _make_conv(keys[1], c1, Cin, 1)
    pt["p2_1_w"], pt["p2_1_b"] = _make_conv(keys[2], c2[0], Cin, 1)
    pt["p2_2_w"], pt["p2_2_b"] = _make_conv(keys[3], c2[1], c2[0], 3)
    pt["p3_1_w"], pt["p3_1_b"] = _make_conv(keys[4], c3[0], Cin, 1)
    pt["p3_2_w"], pt["p3_2_b"] = _make_conv(keys[5], c3[1], c3[0], 5)
    pt["p4_2_w"], pt["p4_2_b"] = _make_conv(keys[6], c4, Cin, 1)

    kp, c_total = prepare_params(pt, Cin, c1, c2, c3, c4)

    out = jax.block_until_ready(inception_forward(x, kp, c_total))
    assert out.shape == (N, c_total, H, W), out.shape

    ref = jax.block_until_ready(reference_forward(x, pt))
    # bf16 activations/weights on the MXU vs f32 HIGHEST reference -> relaxed tol.
    if not jnp.allclose(out, ref, rtol=2e-2, atol=2e-2):
        max_err = jnp.max(jnp.abs(out - ref))
        raise AssertionError(f"Pallas output mismatch, max abs err = {max_err}")

    print("KERNEL_OK")
</pallas_src>

<mosaic_0001>
module attributes {stable_mosaic.version = 11 : i64} {
  func.func @_inception_kernel(%arg0: i32, %arg1: memref<1x16x16x4xbf16, #tpu.memory_space<vmem>>, %arg2: memref<4x384xbf16, #tpu.memory_space<vmem>>, %arg3: memref<1x384xf32, #tpu.memory_space<vmem>>, %arg4: memref<1152x128xbf16, #tpu.memory_space<vmem>>, %arg5: memref<1x128xf32, #tpu.memory_space<vmem>>, %arg6: memref<3200x128xbf16, #tpu.memory_space<vmem>>, %arg7: memref<1x128xf32, #tpu.memory_space<vmem>>, %arg8: memref<4x128xbf16, #tpu.memory_space<vmem>>, %arg9: memref<1x128xf32, #tpu.memory_space<vmem>>, %arg10: memref<1x16x16x128xbf16, #tpu.memory_space<vmem>>, %arg11: memref<18x18x4xf32, #tpu.memory_space<vmem>>, %arg12: memref<18x18x128xbf16, #tpu.memory_space<vmem>>, %arg13: memref<20x20x128xbf16, #tpu.memory_space<vmem>>) attributes {dimension_semantics = [#tpu.dimension_semantics<parallel>], iteration_bounds = array<i64: 2>, scalar_prefetch = 0 : i64, scratch_operands = 3 : i64, tpu.core_type = #tpu.core_type<tc>, window_params = [{transform_indices = @transform_0, window_bounds = array<i64: 1, 16, 16, 4>}, {pipeline_mode = #tpu.pipeline_mode<synchronous>, transform_indices = @transform_1, window_bounds = array<i64: 4, 384>}, {pipeline_mode = #tpu.pipeline_mode<synchronous>, transform_indices = @transform_2, window_bounds = array<i64: 1, 384>}, {pipeline_mode = #tpu.pipeline_mode<synchronous>, transform_indices = @transform_3, window_bounds = array<i64: 1152, 128>}, {pipeline_mode = #tpu.pipeline_mode<synchronous>, transform_indices = @transform_4, window_bounds = array<i64: 1, 128>}, {pipeline_mode = #tpu.pipeline_mode<synchronous>, transform_indices = @transform_5, window_bounds = array<i64: 3200, 128>}, {pipeline_mode = #tpu.pipeline_mode<synchronous>, transform_indices = @transform_6, window_bounds = array<i64: 1, 128>}, {pipeline_mode = #tpu.pipeline_mode<synchronous>, transform_indices = @transform_7, window_bounds = array<i64: 4, 128>}, {pipeline_mode = #tpu.pipeline_mode<synchronous>, transform_indices = @transform_8, window_bounds = array<i64: 1, 128>}, {transform_indices = @transform_9, window_bounds = array<i64: 1, 16, 16, 128>}]} {
    %c0 = arith.constant 0 : index
    %c0_0 = arith.constant 0 : index
    %c0_1 = arith.constant 0 : index
    %c0_2 = arith.constant 0 : index
    %0 = vector.load %arg1[%c0, %c0_0, %c0_1, %c0_2] : memref<1x16x16x4xbf16, #tpu.memory_space<vmem>>, vector<1x16x16x4xbf16>
    %1 = vector.shape_cast %0 : vector<1x16x16x4xbf16> to vector<16x16x4xbf16>
    %2 = vector.shape_cast %1 : vector<16x16x4xbf16> to vector<256x4xbf16>
    %c0_3 = arith.constant 0 : index
    %c0_4 = arith.constant 0 : index
    %3 = vector.load %arg2[%c0_3, %c0_4] : memref<4x384xbf16, #tpu.memory_space<vmem>>, vector<4x384xbf16>
    %cst = arith.constant dense<0.000000e+00> : vector<256x384xf32>
    %4 = tpu.matmul %2, %3, %cst {dimension_numbers = #tpu.dot_dimension_numbers<[1], [0], [0], [1], [0, 0, 1, 1], [], []>} : vector<256x4xbf16>, vector<4x384xbf16>, vector<256x384xf32> -> vector<256x384xf32>
    %c0_5 = arith.constant 0 : index
    %c0_6 = arith.constant 0 : index
    %5 = vector.load %arg3[%c0_5, %c0_6] : memref<1x384xf32, #tpu.memory_space<vmem>>, vector<1x384xf32>
    %6 = vector.broadcast %5 : vector<1x384xf32> to vector<256x384xf32>
    %7 = arith.addf %4, %6 : vector<256x384xf32>
    %cst_7 = arith.constant 0.000000e+00 : f32
    %8 = vector.broadcast %cst_7 : f32 to vector<256x384xf32>
    %9 = arith.maximumf %7, %8 : vector<256x384xf32>
    %10 = vector.extract_strided_slice %9 {offsets = [0, 0], sizes = [256, 128], strides = [1, 1]} : vector<256x384xf32> to vector<256x128xf32>
    %11 = vector.extract_strided_slice %9 {offsets = [0, 128], sizes = [256, 128], strides = [1, 1]} : vector<256x384xf32> to vector<256x128xf32>
    %12 = arith.truncf %11 : vector<256x128xf32> to vector<256x128xbf16>
    %13 = vector.extract_strided_slice %9 {offsets = [0, 256], sizes = [256, 128], strides = [1, 1]} : vector<256x384xf32> to vector<256x128xf32>
    %14 = arith.truncf %13 : vector<256x128xf32> to vector<256x128xbf16>
    %cst_8 = arith.constant 0xFF800000 : f32
    %15 = vector.broadcast %cst_8 : f32 to vector<18x18x4xf32>
    %c0_9 = arith.constant 0 : index
    %c0_10 = arith.constant 0 : index
    %c0_11 = arith.constant 0 : index
    %16 = vector.load %arg11[%c0_9, %c0_10, %c0_11] : memref<18x18x4xf32, #tpu.memory_space<vmem>>, vector<18x18x4xf32>
    tpu.vector_store %arg11[%c0_9, %c0_10, %c0_11], %15 {strides = array<i32>} : memref<18x18x4xf32, #tpu.memory_space<vmem>>, vector<18x18x4xf32>,
    %17 = arith.extf %1 : vector<16x16x4xbf16> to vector<16x16x4xf32>
    %c1 = arith.constant 1 : index
    %c1_12 = arith.constant 1 : index
    %c0_13 = arith.constant 0 : index
    %18 = vector.load %arg11[%c1, %c1_12, %c0_13] : memref<18x18x4xf32, #tpu.memory_space<vmem>>, vector<16x16x4xf32>
    tpu.vector_store %arg11[%c1, %c1_12, %c0_13], %17 {strides = array<i32>} : memref<18x18x4xf32, #tpu.memory_space<vmem>>, vector<16x16x4xf32>,
    %c0_14 = arith.constant 0 : index
    %c0_15 = arith.constant 0 : index
    %c0_16 = arith.constant 0 : index
    %19 = vector.load %arg11[%c0_14, %c0_15, %c0_16] : memref<18x18x4xf32, #tpu.memory_space<vmem>>, vector<18x18x4xf32>
    %20 = vector.extract_strided_slice %19 {offsets = [0, 0, 0], sizes = [16, 16, 4], strides = [1, 1, 1]} : vector<18x18x4xf32> to vector<16x16x4xf32>
    %21 = vector.extract_strided_slice %19 {offsets = [0, 1, 0], sizes = [16, 16, 4], strides = [1, 1, 1]} : vector<18x18x4xf32> to vector<16x16x4xf32>
    %22 = vector.extract_strided_slice %19 {offsets = [0, 2, 0], sizes = [16, 16, 4], strides = [1, 1, 1]} : vector<18x18x4xf32> to vector<16x16x4xf32>
    %23 = vector.extract_strided_slice %19 {offsets = [1, 0, 0], sizes = [16, 16, 4], strides = [1, 1, 1]} : vector<18x18x4xf32> to vector<16x16x4xf32>
    %24 = vector.extract_strided_slice %19 {offsets = [1, 1, 0], sizes = [16, 16, 4], strides = [1, 1, 1]} : vector<18x18x4xf32> to vector<16x16x4xf32>
    %25 = vector.extract_strided_slice %19 {offsets = [1, 2, 0], sizes = [16, 16, 4], strides = [1, 1, 1]} : vector<18x18x4xf32> to vector<16x16x4xf32>
    %26 = vector.extract_strided_slice %19 {offsets = [2, 0, 0], sizes = [16, 16, 4], strides = [1, 1, 1]} : vector<18x18x4xf32> to vector<16x16x4xf32>
    %27 = vector.extract_strided_slice %19 {offsets = [2, 1, 0], sizes = [16, 16, 4], strides = [1, 1, 1]} : vector<18x18x4xf32> to vector<16x16x4xf32>
    %28 = vector.extract_strided_slice %19 {offsets = [2, 2, 0], sizes = [16, 16, 4], strides = [1, 1, 1]} : vector<18x18x4xf32> to vector<16x16x4xf32>
    %29 = arith.maximumf %20, %21 : vector<16x16x4xf32>
    %30 = arith.maximumf %22, %23 : vector<16x16x4xf32>
    %31 = arith.maximumf %24, %25 : vector<16x16x4xf32>
    %32 = arith.maximumf %26, %27 : vector<16x16x4xf32>
    %33 = arith.maximumf %29, %30 : vector<16x16x4xf32>
    %34 = arith.maximumf %31, %32 : vector<16x16x4xf32>
    %35 = arith.maximumf %33, %34 : vector<16x16x4xf32>
    %36 = arith.maximumf %35, %28 : vector<16x16x4xf32>
    %37 = vector.shape_cast %36 : vector<16x16x4xf32> to vector<256x4xf32>
    %38 = arith.truncf %37 : vector<256x4xf32> to vector<256x4xbf16>
    %c0_17 = arith.constant 0 : index
    %c0_18 = arith.constant 0 : index
    %39 = vector.load %arg8[%c0_17, %c0_18] : memref<4x128xbf16, #tpu.memory_space<vmem>>, vector<4x128xbf16>
    %cst_19 = arith.constant dense<0.000000e+00> : vector<256x128xf32>
    %40 = tpu.matmul %38, %39, %cst_19 {dimension_numbers = #tpu.dot_dimension_numbers<[1], [0], [0], [1], [0, 0, 1, 1], [], []>} : vector<256x4xbf16>, vector<4x128xbf16>, vector<256x128xf32> -> vector<256x128xf32>
    %c0_20 = arith.constant 0 : index
    %c0_21 = arith.constant 0 : index
    %41 = vector.load %arg9[%c0_20, %c0_21] : memref<1x128xf32, #tpu.memory_space<vmem>>, vector<1x128xf32>
    %42 = vector.broadcast %41 : vector<1x128xf32> to vector<256x128xf32>
    %43 = arith.addf %40, %42 : vector<256x128xf32>
    %cst_22 = arith.constant 0.000000e+00 : f32
    %44 = vector.broadcast %cst_22 : f32 to vector<256x128xf32>
    %45 = arith.maximumf %43, %44 : vector<256x128xf32>
    %cst_23 = arith.constant 0.000000e+00 : bf16
    %46 = vector.broadcast %cst_23 : bf16 to vector<18x18x128xbf16>
    %c0_24 = arith.constant 0 : index
    %c0_25 = arith.constant 0 : index
    %c0_26 = arith.constant 0 : index
    %47 = vector.load %arg12[%c0_24, %c0_25, %c0_26] : memref<18x18x128xbf16, #tpu.memory_space<vmem>>, vector<18x18x128xbf16>
    tpu.vector_store %arg12[%c0_24, %c0_25, %c0_26], %46 {strides = array<i32>} : memref<18x18x128xbf16, #tpu.memory_space<vmem>>, vector<18x18x128xbf16>,
    %48 = vector.shape_cast %12 : vector<256x128xbf16> to vector<16x16x128xbf16>
    %c1_27 = arith.constant 1 : index
    %c1_28 = arith.constant 1 : index
    %c0_29 = arith.constant 0 : index
    %49 = vector.load %arg12[%c1_27, %c1_28, %c0_29] : memref<18x18x128xbf16, #tpu.memory_space<vmem>>, vector<16x16x128xbf16>
    tpu.vector_store %arg12[%c1_27, %c1_28, %c0_29], %48 {strides = array<i32>} : memref<18x18x128xbf16, #tpu.memory_space<vmem>>, vector<16x16x128xbf16>,
    %c0_30 = arith.constant 0 : index
    %c0_31 = arith.constant 0 : index
    %c0_32 = arith.constant 0 : index
    %50 = vector.load %arg12[%c0_30, %c0_31, %c0_32] : memref<18x18x128xbf16, #tpu.memory_space<vmem>>, vector<18x18x128xbf16>
    %51 = vector.extract_strided_slice %50 {offsets = [0, 0, 0], sizes = [16, 16, 128], strides = [1, 1, 1]} : vector<18x18x128xbf16> to vector<16x16x128xbf16>
    %52 = vector.shape_cast %51 : vector<16x16x128xbf16> to vector<256x128xbf16>
    %53 = vector.extract_strided_slice %50 {offsets = [0, 1, 0], sizes = [16, 16, 128], strides = [1, 1, 1]} : vector<18x18x128xbf16> to vector<16x16x128xbf16>
    %54 = vector.shape_cast %53 : vector<16x16x128xbf16> to vector<256x128xbf16>
    %55 = vector.extract_strided_slice %50 {offsets = [0, 2, 0], sizes = [16, 16, 128], strides = [1, 1, 1]} : vector<18x18x128xbf16> to vector<16x16x128xbf16>
    %56 = vector.shape_cast %55 : vector<16x16x128xbf16> to vector<256x128xbf16>
    %57 = vector.extract_strided_slice %50 {offsets = [1, 0, 0], sizes = [16, 16, 128], strides = [1, 1, 1]} : vector<18x18x128xbf16> to vector<16x16x128xbf16>
    %58 = vector.shape_cast %57 : vector<16x16x128xbf16> to vector<256x128xbf16>
    %59 = vector.extract_strided_slice %50 {offsets = [1, 1, 0], sizes = [16, 16, 128], strides = [1, 1, 1]} : vector<18x18x128xbf16> to vector<16x16x128xbf16>
    %60 = vector.shape_cast %59 : vector<16x16x128xbf16> to vector<256x128xbf16>
    %61 = vector.extract_strided_slice %50 {offsets = [1, 2, 0], sizes = [16, 16, 128], strides = [1, 1, 1]} : vector<18x18x128xbf16> to vector<16x16x128xbf16>
    %62 = vector.shape_cast %61 : vector<16x16x128xbf16> to vector<256x128xbf16>
    %63 = vector.extract_strided_slice %50 {offsets = [2, 0, 0], sizes = [16, 16, 128], strides = [1, 1, 1]} : vector<18x18x128xbf16> to vector<16x16x128xbf16>
    %64 = vector.shape_cast %63 : vector<16x16x128xbf16> to vector<256x128xbf16>
    %65 = vector.extract_strided_slice %50 {offsets = [2, 1, 0], sizes = [16, 16, 128], strides = [1, 1, 1]} : vector<18x18x128xbf16> to vector<16x16x128xbf16>
    %66 = vector.shape_cast %65 : vector<16x16x128xbf16> to vector<256x128xbf16>
    %67 = vector.extract_strided_slice %50 {offsets = [2, 2, 0], sizes = [16, 16, 128], strides = [1, 1, 1]} : vector<18x18x128xbf16> to vector<16x16x128xbf16>
    %68 = vector.shape_cast %67 : vector<16x16x128xbf16> to vector<256x128xbf16>
    %69 = tpu.concatenate %52, %54, %56, %58, %60, %62, %64, %66, %68 in 1 : vector<256x128xbf16>, vector<256x128xbf16>, vector<256x128xbf16>, vector<256x128xbf16>, vector<256x128xbf16>, vector<256x128xbf16>, vector<256x128xbf16>, vector<256x128xbf16>, vector<256x128xbf16> -> vector<256x1152xbf16>
    %c0_33 = arith.constant 0 : index
    %c0_34 = arith.constant 0 : index
    %70 = vector.load %arg4[%c0_33, %c0_34] : memref<1152x128xbf16, #tpu.memory_space<vmem>>, vector<1152x128xbf16>
    %cst_35 = arith.constant dense<0.000000e+00> : vector<256x128xf32>
    %71 = tpu.matmul %69, %70, %cst_35 {dimension_numbers = #tpu.dot_dimension_numbers<[1], [0], [0], [1], [0, 0, 1, 1], [], []>} : vector<256x1152xbf16>, vector<1152x128xbf16>, vector<256x128xf32> -> vector<256x128xf32>
    %c0_36 = arith.constant 0 : index
    %c0_37 = arith.constant 0 : index
    %72 = vector.load %arg5[%c0_36, %c0_37] : memref<1x128xf32, #tpu.memory_space<vmem>>, vector<1x128xf32>
    %73 = vector.broadcast %72 : vector<1x128xf32> to vector<256x128xf32>
    %74 = arith.addf %71, %73 : vector<256x128xf32>
    %cst_38 = arith.constant 0.000000e+00 : f32
    %75 = vector.broadcast %cst_38 : f32 to vector<256x128xf32>
    %76 = arith.maximumf %74, %75 : vector<256x128xf32>
    %cst_39 = arith.constant 0.000000e+00 : bf16
    %77 = vector.broadcast %cst_39 : bf16 to vector<20x20x128xbf16>
    %c0_40 = arith.constant 0 : index
    %c0_41 = arith.constant 0 : index
    %c0_42 = arith.constant 0 : index
    %78 = vector.load %arg13[%c0_40, %c0_41, %c0_42] : memref<20x20x128xbf16, #tpu.memory_space<vmem>>, vector<20x20x128xbf16>
    tpu.vector_store %arg13[%c0_40, %c0_41, %c0_42], %77 {strides = array<i32>} : memref<20x20x128xbf16, #tpu.memory_space<vmem>>, vector<20x20x128xbf16>,
    %79 = vector.shape_cast %14 : vector<256x128xbf16> to vector<16x16x128xbf16>
    %c2 = arith.constant 2 : index
    %c2_43 = arith.constant 2 : index
    %c0_44 = arith.constant 0 : index
    %80 = vector.load %arg13[%c2, %c2_43, %c0_44] : memref<20x20x128xbf16, #tpu.memory_space<vmem>>, vector<16x16x128xbf16>
    tpu.vector_store %arg13[%c2, %c2_43, %c0_44], %79 {strides = array<i32>} : memref<20x20x128xbf16, #tpu.memory_space<vmem>>, vector<16x16x128xbf16>,
    %c0_45 = arith.constant 0 : index
    %c0_46 = arith.constant 0 : index
    %c0_47 = arith.constant 0 : index
    %81 = vector.load %arg13[%c0_45, %c0_46, %c0_47] : memref<20x20x128xbf16, #tpu.memory_space<vmem>>, vector<20x20x128xbf16>
    %82 = vector.extract_strided_slice %81 {offsets = [0, 0, 0], sizes = [16, 16, 128], strides = [1, 1, 1]} : vector<20x20x128xbf16> to vector<16x16x128xbf16>
    %83 = vector.shape_cast %82 : vector<16x16x128xbf16> to vector<256x128xbf16>
    %84 = vector.extract_strided_slice %81 {offsets = [0, 1, 0], sizes = [16, 16, 128], strides = [1, 1, 1]} : vector<20x20x128xbf16> to vector<16x16x128xbf16>
    %85 = vector.shape_cast %84 : vector<16x16x128xbf16> to vector<256x128xbf16>
    %86 = vector.extract_strided_slice %81 {offsets = [0, 2, 0], sizes = [16, 16, 128], strides = [1, 1, 1]} : vector<20x20x128xbf16> to vector<16x16x128xbf16>
    %87 = vector.shape_cast %86 : vector<16x16x128xbf16> to vector<256x128xbf16>
    %88 = vector.extract_strided_slice %81 {offsets = [0, 3, 0], sizes = [16, 16, 128], strides = [1, 1, 1]} : vector<20x20x128xbf16> to vector<16x16x128xbf16>
    %89 = vector.shape_cast %88 : vector<16x16x128xbf16> to vector<256x128xbf16>
    %90 = vector.extract_strided_slice %81 {offsets = [0, 4, 0], sizes = [16, 16, 128], strides = [1, 1, 1]} : vector<20x20x128xbf16> to vector<16x16x128xbf16>
    %91 = vector.shape_cast %90 : vector<16x16x128xbf16> to vector<256x128xbf16>
    %92 = vector.extract_strided_slice %81 {offsets = [1, 0, 0], sizes = [16, 16, 128], strides = [1, 1, 1]} : vector<20x20x128xbf16> to vector<16x16x128xbf16>
    %93 = vector.shape_cast %92 : vector<16x16x128xbf16> to vector<256x128xbf16>
    %94 = vector.extract_strided_slice %81 {offsets = [1, 1, 0], sizes = [16, 16, 128], strides = [1, 1, 1]} : vector<20x20x128xbf16> to vector<16x16x128xbf16>
    %95 = vector.shape_cast %94 : vector<16x16x128xbf16> to vector<256x128xbf16>
    %96 = vector.extract_strided_slice %81 {offsets = [1, 2, 0], sizes = [16, 16, 128], strides = [1, 1, 1]} : vector<20x20x128xbf16> to vector<16x16x128xbf16>
    %97 = vector.shape_cast %96 : vector<16x16x128xbf16> to vector<256x128xbf16>
    %98 = vector.extract_strided_slice %81 {offsets = [1, 3, 0], sizes = [16, 16, 128], strides = [1, 1, 1]} : vector<20x20x128xbf16> to vector<16x16x128xbf16>
    %99 = vector.shape_cast %98 : vector<16x16x128xbf16> to vector<256x128xbf16>
    %100 = vector.extract_strided_slice %81 {offsets = [1, 4, 0], sizes = [16, 16, 128], strides = [1, 1, 1]} : vector<20x20x128xbf16> to vector<16x16x128xbf16>
    %101 = vector.shape_cast %100 : vector<16x16x128xbf16> to vector<256x128xbf16>
    %102 = vector.extract_strided_slice %81 {offsets = [2, 0, 0], sizes = [16, 16, 128], strides = [1, 1, 1]} : vector<20x20x128xbf16> to vector<16x16x128xbf16>
    %103 = vector.shape_cast %102 : vector<16x16x128xbf16> to vector<256x128xbf16>
    %104 = vector.extract_strided_slice %81 {offsets = [2, 1, 0], sizes = [16, 16, 128], strides = [1, 1, 1]} : vector<20x20x128xbf16> to vector<16x16x128xbf16>
    %105 = vector.shape_cast %104 : vector<16x16x128xbf16> to vector<256x128xbf16>
    %106 = vector.extract_strided_slice %81 {offsets = [2, 2, 0], sizes = [16, 16, 128], strides = [1, 1, 1]} : vector<20x20x128xbf16> to vector<16x16x128xbf16>
    %107 = vector.shape_cast %106 : vector<16x16x128xbf16> to vector<256x128xbf16>
    %108 = vector.extract_strided_slice %81 {offsets = [2, 3, 0], sizes = [16, 16, 128], strides = [1, 1, 1]} : vector<20x20x128xbf16> to vector<16x16x128xbf16>
    %109 = vector.shape_cast %108 : vector<16x16x128xbf16> to vector<256x128xbf16>
    %110 = vector.extract_strided_slice %81 {offsets = [2, 4, 0], sizes = [16, 16, 128], strides = [1, 1, 1]} : vector<20x20x128xbf16> to vector<16x16x128xbf16>
    %111 = vector.shape_cast %110 : vector<16x16x128xbf16> to vector<256x128xbf16>
    %112 = vector.extract_strided_slice %81 {offsets = [3, 0, 0], sizes = [16, 16, 128], strides = [1, 1, 1]} : vector<20x20x128xbf16> to vector<16x16x128xbf16>
    %113 = vector.shape_cast %112 : vector<16x16x128xbf16> to vector<256x128xbf16>
    %114 = vector.extract_strided_slice %81 {offsets = [3, 1, 0], sizes = [16, 16, 128], strides = [1, 1, 1]} : vector<20x20x128xbf16> to vector<16x16x128xbf16>
    %115 = vector.shape_cast %114 : vector<16x16x128xbf16> to vector<256x128xbf16>
    %116 = vector.extract_strided_slice %81 {offsets = [3, 2, 0], sizes = [16, 16, 128], strides = [1, 1, 1]} : vector<20x20x128xbf16> to vector<16x16x128xbf16>
    %117 = vector.shape_cast %116 : vector<16x16x128xbf16> to vector<256x128xbf16>
    %118 = vector.extract_strided_slice %81 {offsets = [3, 3, 0], sizes = [16, 16, 128], strides = [1, 1, 1]} : vector<20x20x128xbf16> to vector<16x16x128xbf16>
    %119 = vector.shape_cast %118 : vector<16x16x128xbf16> to vector<256x128xbf16>
    %120 = vector.extract_strided_slice %81 {offsets = [3, 4, 0], sizes = [16, 16, 128], strides = [1, 1, 1]} : vector<20x20x128xbf16> to vector<16x16x128xbf16>
    %121 = vector.shape_cast %120 : vector<16x16x128xbf16> to vector<256x128xbf16>
    %122 = vector.extract_strided_slice %81 {offsets = [4, 0, 0], sizes = [16, 16, 128], strides = [1, 1, 1]} : vector<20x20x128xbf16> to vector<16x16x128xbf16>
    %123 = vector.shape_cast %122 : vector<16x16x128xbf16> to vector<256x128xbf16>
    %124 = vector.extract_strided_slice %81 {offsets = [4, 1, 0], sizes = [16, 16, 128], strides = [1, 1, 1]} : vector<20x20x128xbf16> to vector<16x16x128xbf16>
    %125 = vector.shape_cast %124 : vector<16x16x128xbf16> to vector<256x128xbf16>
    %126 = vector.extract_strided_slice %81 {offsets = [4, 2, 0], sizes = [16, 16, 128], strides = [1, 1, 1]} : vector<20x20x128xbf16> to vector<16x16x128xbf16>
    %127 = vector.shape_cast %126 : vector<16x16x128xbf16> to vector<256x128xbf16>
    %128 = vector.extract_strided_slice %81 {offsets = [4, 3, 0], sizes = [16, 16, 128], strides = [1, 1, 1]} : vector<20x20x128xbf16> to vector<16x16x128xbf16>
    %129 = vector.shape_cast %128 : vector<16x16x128xbf16> to vector<256x128xbf16>
    %130 = vector.extract_strided_slice %81 {offsets = [4, 4, 0], sizes = [16, 16, 128], strides = [1, 1, 1]} : vector<20x20x128xbf16> to vector<16x16x128xbf16>
    %131 = vector.shape_cast %130 : vector<16x16x128xbf16> to vector<256x128xbf16>
    %132 = tpu.concatenate %83, %85, %87, %89, %91, %93, %95, %97, %99, %101, %103, %105, %107, %109, %111, %113 in 1 : vector<256x128xbf16>, vector<256x128xbf16>, vector<256x128xbf16>, vector<256x128xbf16>, vector<256x128xbf16>, vector<256x128xbf16>, vector<256x128xbf16>, vector<256x128xbf16>, vector<256x128xbf16>, vector<256x128xbf16>, vector<256x128xbf16>, vector<256x128xbf16>, vector<256x128xbf16>, vector<256x128xbf16>, vector<256x128xbf16>, vector<256x128xbf16> -> vector<256x2048xbf16>
    %133 = tpu.concatenate %115, %117, %119, %121, %123, %125, %127, %129, %131 in 1 : vector<256x128xbf16>, vector<256x128xbf16>, vector<256x128xbf16>, vector<256x128xbf16>, vector<256x128xbf16>, vector<256x128xbf16>, vector<256x128xbf16>, vector<256x128xbf16>, vector<256x128xbf16> -> vector<256x1152xbf16>
    %134 = tpu.concatenate %132, %133 in 1 : vector<256x2048xbf16>, vector<256x1152xbf16> -> vector<256x3200xbf16>
    %c0_48 = arith.constant 0 : index
    %c0_49 = arith.constant 0 : index
    %135 = vector.load %arg6[%c0_48, %c0_49] : memref<3200x128xbf16, #tpu.memory_space<vmem>>, vector<3200x128xbf16>
    %cst_50 = arith.constant dense<0.000000e+00> : vector<256x128xf32>
    %136 = tpu.matmul %134, %135, %cst_50 {dimension_numbers = #tpu.dot_dimension_numbers<[1], [0], [0], [1], [0, 0, 1, 1], [], []>} : vector<256x3200xbf16>, vector<3200x128xbf16>, vector<256x128xf32> -> vector<256x128xf32>
    %c0_51 = arith.constant 0 : index
    %c0_52 = arith.constant 0 : index
    %137 = vector.load %arg7[%c0_51, %c0_52] : memref<1x128xf32, #tpu.memory_space<vmem>>, vector<1x128xf32>
    %138 = vector.broadcast %137 : vector<1x128xf32> to vector<256x128xf32>
    %139 = arith.addf %136, %138 : vector<256x128xf32>
    %cst_53 = arith.constant 0.000000e+00 : f32
    %140 = vector.broadcast %cst_53 : f32 to vector<256x128xf32>
    %141 = arith.maximumf %139, %140 : vector<256x128xf32>
    %142 = arith.addf %10, %76 : vector<256x128xf32>
    %143 = arith.addf %142, %141 : vector<256x128xf32>
    %144 = arith.addf %143, %45 : vector<256x128xf32>
    %145 = arith.truncf %144 : vector<256x128xf32> to vector<256x128xbf16>
    %146 = vector.shape_cast %145 : vector<256x128xbf16> to vector<16x16x128xbf16>
    %c0_54 = arith.constant 0 : index
    %c0_55 = arith.constant 0 : index
    %c0_56 = arith.constant 0 : index
    %c0_57 = arith.constant 0 : index
    %147 = vector.load %arg10[%c0_54, %c0_55, %c0_56, %c0_57] : memref<1x16x16x128xbf16, #tpu.memory_space<vmem>>, vector<1x16x16x128xbf16>
    %148 = vector.shape_cast %147 : vector<1x16x16x128xbf16> to vector<16x16x128xbf16>
    %149 = vector.shape_cast %146 : vector<16x16x128xbf16> to vector<1x16x16x128xbf16>
    tpu.vector_store %arg10[%c0_54, %c0_55, %c0_56, %c0_57], %149 {strides = array<i32>} : memref<1x16x16x128xbf16, #tpu.memory_space<vmem>>, vector<1x16x16x128xbf16>,
    return
  }
  func.func @transform_0(%arg0: i32) -> (i32, i32, i32, i32) {
    %c0_i32 = arith.constant 0 : i32
    %c0_i32_0 = arith.constant 0 : i32
    %c0_i32_1 = arith.constant 0 : i32
    %c0_i32_2 = arith.constant 0 : i32
    return %arg0, %c0_i32, %c0_i32_0, %c0_i32_1 : i32, i32, i32, i32
  }
  func.func @transform_1(%arg0: i32) -> (i32, i32) {
    %c0_i32 = arith.constant 0 : i32
    %c0_i32_0 = arith.constant 0 : i32
    %c0_i32_1 = arith.constant 0 : i32
    return %c0_i32, %c0_i32_0 : i32, i32
  }
  func.func @transform_2(%arg0: i32) -> (i32, i32) {
    %c0_i32 = arith.constant 0 : i32
    %c0_i32_0 = arith.constant 0 : i32
    %c0_i32_1 = arith.constant 0 : i32
    return %c0_i32, %c0_i32_0 : i32, i32
  }
  func.func @transform_3(%arg0: i32) -> (i32, i32) {
    %c0_i32 = arith.constant 0 : i32
    %c0_i32_0 = arith.constant 0 : i32
    %c0_i32_1 = arith.constant 0 : i32
    return %c0_i32, %c0_i32_0 : i32, i32
  }
  func.func @transform_4(%arg0: i32) -> (i32, i32) {
    %c0_i32 = arith.constant 0 : i32
    %c0_i32_0 = arith.constant 0 : i32
    %c0_i32_1 = arith.constant 0 : i32
    return %c0_i32, %c0_i32_0 : i32, i32
  }
  func.func @transform_5(%arg0: i32) -> (i32, i32) {
    %c0_i32 = arith.constant 0 : i32
    %c0_i32_0 = arith.constant 0 : i32
    %c0_i32_1 = arith.constant 0 : i32
    return %c0_i32, %c0_i32_0 : i32, i32
  }
  func.func @transform_6(%arg0: i32) -> (i32, i32) {
    %c0_i32 = arith.constant 0 : i32
    %c0_i32_0 = arith.constant 0 : i32
    %c0_i32_1 = arith.constant 0 : i32
    return %c0_i32, %c0_i32_0 : i32, i32
  }
  func.func @transform_7(%arg0: i32) -> (i32, i32) {
    %c0_i32 = arith.constant 0 : i32
    %c0_i32_0 = arith.constant 0 : i32
    %c0_i32_1 = arith.constant 0 : i32
    return %c0_i32, %c0_i32_0 : i32, i32
  }
  func.func @transform_8(%arg0: i32) -> (i32, i32) {
    %c0_i32 = arith.constant 0 : i32
    %c0_i32_0 = arith.constant 0 : i32
    %c0_i32_1 = arith.constant 0 : i32
    return %c0_i32, %c0_i32_0 : i32, i32
  }
  func.func @transform_9(%arg0: i32) -> (i32, i32, i32, i32) {
    %c0_i32 = arith.constant 0 : i32
    %c0_i32_0 = arith.constant 0 : i32
    %c0_i32_1 = arith.constant 0 : i32
    %c0_i32_2 = arith.constant 0 : i32
    return %arg0, %c0_i32, %c0_i32_0, %c0_i32_1 : i32, i32, i32, i32
  }
}

</mosaic_0001>

<llo_original>
// kernel: inception_forward.1
$region0: #{inception_forward.1}
  #allocation0 [shape = 'u32[]', space=smem, size = 0x4, offset = 0x4, fixed_abs, tag = 'smem constant byte address 0x4 - core index']
  #allocation1 [shape = 'u32[144,128]{1,0:T(1,128)}', space=vmem, size = 0x12000, scoped, tag = 'internal scratch']
  #allocation2 [shape = 'f32[18,18,4]{2,1,0:T(8,128)}', space=vmem, size = 0x36000, scoped, tag = 'scratch operand']
  #allocation3 [shape = 'bf16[18,18,128]{2,1,0:T(8,128)(2,1)}', space=vmem, size = 0x1b000, scoped, tag = 'scratch operand']
  #allocation4 [shape = 'bf16[20,20,128]{2,1,0:T(8,128)(2,1)}', space=vmem, size = 0x1e000, scoped, tag = 'scratch operand']
  %s0 = inlined_call_operand.vmem [shape: bf16[2,16,16,4], index: 0, kind: input, shape index: {}]
  %s1 = inlined_call_operand.vmem [shape: bf16[4,384], index: 1, kind: input, shape index: {}]
  %s2 = inlined_call_operand.vmem [shape: f32[1,384], index: 2, kind: input, shape index: {}]
  %s3 = inlined_call_operand.hbm [shape: bf16[1152,128], index: 3, kind: input, shape index: {}]
  %s4 = inlined_call_operand.vmem [shape: f32[1,128], index: 4, kind: input, shape index: {}]
  %s5 = inlined_call_operand.hbm [shape: bf16[3200,128], index: 5, kind: input, shape index: {}]
  %s6 = inlined_call_operand.vmem [shape: f32[1,128], index: 6, kind: input, shape index: {}]
  %s7 = inlined_call_operand.vmem [shape: bf16[4,128], index: 7, kind: input, shape index: {}]
  %s8 = inlined_call_operand.vmem [shape: f32[1,128], index: 8, kind: input, shape index: {}]
  %s9 = inlined_call_operand.vmem [shape: bf16[2,16,16,128], index: 9, kind: output, shape index: {}]
  %s10 = sld [smem:[#allocation0]]
  $region77: #{inception_forward.1} parent=0
    _
  %s12 = ssub.s32 1, %s10
  %s13 = scalar_select 0, %s12, %s10
  $region1: #{inception_forward.1} parent=0
    #allocation5 [shape = 'u8[294912]{0}', space=vmem, size = 0x48000, scoped, tag = 'input window, operand 3, single buffered']
    #allocation6 [shape = 's32[2]{0}', space=sflag, size = 0x8, scoped, tag = 'scoped memory for inception_forward.1']
    #allocation7 [shape = 'u8[819200]{0}', space=vmem, size = 0xc8000, scoped, tag = 'input window, operand 5, single buffered']
    #allocation8 [shape = 's32[1]{0}', space=sflag, size = 0x4, scoped, tag = 'scoped memory for inception_forward.1']
    %14 = vsyncpa [#allocation6], 0
    %15 = vsyncpa [#allocation8], 0
    loop: start=0, step=1, limit=4
    $region2: #{inception_forward.1} parent=1 // loop_pre_header
      _
    $region3: #{inception_forward.1} parent=1 // loop_header
      %s17 = sphi 0, %s21
      %p18 = scmp.ge.s32.totalorder %s17, 4
      %s27 = sphi 0, %s29
      %s30 = sphi 0, %s27
      %s31 = sphi 0, %s30
      %s47 = sphi 0, %s31
      %s51 = sphi 0, %s51
      %s53 = sphi 0, %s51
      %s54 = sphi 0, %s53
      %s68 = sphi 0, %s54
      %s72 = sphi 0, %s72
      %s74 = sphi 0, %s72
      %s75 = sphi 0, %s74
      %s89 = sphi 0, %s75
      %s93 = sphi 0, %s93
      %s95 = sphi 0, %s93
      %s96 = sphi 0, %s95
      %s110 = sphi 0, %s96
      %s114 = sphi 0, %s114
      %s116 = sphi 0, %s114
      %s117 = sphi 0, %s116
      %s131 = sphi 0, %s117
      %s135 = sphi 0, %s135
      %s137 = sphi 0, %s135
      %s138 = sphi 0, %s137
      %s152 = sphi 0, %s138
      %s156 = sphi 0, %s156
      %s158 = sphi 0, %s156
      %s159 = sphi 0, %s158
      %s173 = sphi 0, %s159
      %s177 = sphi 0, %s177
      %s179 = sphi 0, %s177
      %s180 = sphi 0, %s179
      %s194 = sphi 0, %s180
      %s198 = sphi 0, %s198
      %s200 = sphi 0, %s198
      %s201 = sphi 0, %s200
      %s215 = sphi 0, %s201
      %s221 = sphi 0, %s223
      %s224 = sphi 0, %s221
      %s225 = sphi 0, %s224
      %s241 = sphi 0, %s225
    $region4: #{inception_forward.1} parent=1 // loop_header_branch
      %20 = sbr.rel (%p18) target = $region8
    $region5: #{inception_forward.1} parent=1 // loop_body
      %s22 = ssub.s32 %s17, 1
      %s23 = ssub.s32 %s17, 2
      %s24 = sadd.s32 %s17, 1
      %s25 = ssub.s32 %s17, %s24
      %p26 = scmp.eq.s32.totalorder %s25, 0
      %s28 = sadd.s32 %s27, 1
      %s29 = scalar_select %p26, %s27, %s28
      %p32 = pneg %p26
      %p33 = scmp.eq.s32.totalorder %s17, 1
      %p34 = por %p32, %p33
      %p35 = scmp.ne.s32.totalorder %s27, %s30
      %p36 = scmp.eq.s32.totalorder %s17, 0
      %p37 = por %p35, %p36
      %p38 = scmp.ne.s32.totalorder %s27, %s30
      %p39 = scmp.eq.s32.totalorder %s22, 1
      %p40 = por %p38, %p39
      %p41 = scmp.ne.s32.totalorder %s30, %s31
      %p42 = scmp.eq.s32.totalorder %s22, 0
      %p43 = por %p41, %p42
      %p44 = scmp.ne.s32.totalorder %s30, %s31
      %p45 = scmp.eq.s32.totalorder %s23, 1
      %p46 = por %p44, %p45
      %p48 = scmp.ne.s32.totalorder %s31, %s47
      %p49 = scmp.eq.s32.totalorder %s23, 0
      %p50 = por %p48, %p49
      %s52 = sadd.s32 %s51, 1
      %p55 = scmp.eq.s32.totalorder %s17, 1
      %p56 = scmp.ne.s32.totalorder %s51, %s53
      %p57 = scmp.eq.s32.totalorder %s17, 0
      %p58 = por %p56, %p57
      %p59 = scmp.ne.s32.totalorder %s51, %s53
      %p60 = scmp.eq.s32.totalorder %s22, 1
      %p61 = por %p59, %p60
      %p62 = scmp.ne.s32.totalorder %s53, %s54
      %p63 = scmp.eq.s32.totalorder %s22, 0
      %p64 = por %p62, %p63
      %p65 = scmp.ne.s32.totalorder %s53, %s54
      %p66 = scmp.eq.s32.totalorder %s23, 1
      %p67 = por %p65, %p66
      %p69 = scmp.ne.s32.totalorder %s54, %s68
      %p70 = scmp.eq.s32.totalorder %s23, 0
      %p71 = por %p69, %p70
      %s73 = sadd.s32 %s72, 1
      %p76 = scmp.eq.s32.totalorder %s17, 1
      %p77 = scmp.ne.s32.totalorder %s72, %s74
      %p78 = scmp.eq.s32.totalorder %s17, 0
      %p79 = por %p77, %p78
      %p80 = scmp.ne.s32.totalorder %s72, %s74
      %p81 = scmp.eq.s32.totalorder %s22, 1
      %p82 = por %p80, %p81
      %p83 = scmp.ne.s32.totalorder %s74, %s75
      %p84 = scmp.eq.s32.totalorder %s22, 0
      %p85 = por %p83, %p84
      %p86 = scmp.ne.s32.totalorder %s74, %s75
      %p87 = scmp.eq.s32.totalorder %s23, 1
      %p88 = por %p86, %p87
      %p90 = scmp.ne.s32.totalorder %s75, %s89
      %p91 = scmp.eq.s32.totalorder %s23, 0
      %p92 = por %p90, %p91
      %s94 = sadd.s32 %s93, 1
      %p97 = scmp.eq.s32.totalorder %s17, 1
      %p98 = scmp.ne.s32.totalorder %s93, %s95
      %p99 = scmp.eq.s32.totalorder %s17, 0
      %p100 = por %p98, %p99
      %p101 = scmp.ne.s32.totalorder %s93, %s95
      %p102 = scmp.eq.s32.totalorder %s22, 1
      %p103 = por %p101, %p102
      %p104 = scmp.ne.s32.totalorder %s95, %s96
      %p105 = scmp.eq.s32.totalorder %s22, 0
      %p106 = por %p104, %p105
      %p107 = scmp.ne.s32.totalorder %s95, %s96
      %p108 = scmp.eq.s32.totalorder %s23, 1
      %p109 = por %p107, %p108
      %p111 = scmp.ne.s32.totalorder %s96, %s110
      %p112 = scmp.eq.s32.totalorder %s23, 0
      %p113 = por %p111, %p112
      %s115 = sadd.s32 %s114, 1
      %p118 = scmp.eq.s32.totalorder %s17, 1
      %p119 = scmp.ne.s32.totalorder %s114, %s116
      %p120 = scmp.eq.s32.totalorder %s17, 0
      %p121 = por %p119, %p120
      %p122 = scmp.ne.s32.totalorder %s114, %s116
      %p123 = scmp.eq.s32.totalorder %s22, 1
      %p124 = por %p122, %p123
      %p125 = scmp.ne.s32.totalorder %s116, %s117
      %p126 = scmp.eq.s32.totalorder %s22, 0
      %p127 = por %p125, %p126
      %p128 = scmp.ne.s32.totalorder %s116, %s117
      %p129 = scmp.eq.s32.totalorder %s23, 1
      %p130 = por %p128, %p129
      %p132 = scmp.ne.s32.totalorder %s117, %s131
      %p133 = scmp.eq.s32.totalorder %s23, 0
      %p134 = por %p132, %p133
      %s136 = sadd.s32 %s135, 1
      %p139 = scmp.eq.s32.totalorder %s17, 1
      %p140 = scmp.ne.s32.totalorder %s135, %s137
      %p141 = scmp.eq.s32.totalorder %s17, 0
      %p142 = por %p140, %p141
      %p143 = scmp.ne.s32.totalorder %s135, %s137
      %p144 = scmp.eq.s32.totalorder %s22, 1
      %p145 = por %p143, %p144
      %p146 = scmp.ne.s32.totalorder %s137, %s138
      %p147 = scmp.eq.s32.totalorder %s22, 0
      %p148 = por %p146, %p147
      %p149 = scmp.ne.s32.totalorder %s137, %s138
      %p150 = scmp.eq.s32.totalorder %s23, 1
      %p151 = por %p149, %p150
      %p153 = scmp.ne.s32.totalorder %s138, %s152
      %p154 = scmp.eq.s32.totalorder %s23, 0
      %p155 = por %p153, %p154
      %s157 = sadd.s32 %s156, 1
      %p160 = scmp.eq.s32.totalorder %s17, 1
      %p161 = scmp.ne.s32.totalorder %s156, %s158
      %p162 = scmp.eq.s32.totalorder %s17, 0
      %p163 = por %p161, %p162
      %p164 = scmp.ne.s32.totalorder %s156, %s158
      %p165 = scmp.eq.s32.totalorder %s22, 1
      %p166 = por %p164, %p165
      %p167 = scmp.ne.s32.totalorder %s158, %s159
      %p168 = scmp.eq.s32.totalorder %s22, 0
      %p169 = por %p167, %p168
      %p170 = scmp.ne.s32.totalorder %s158, %s159
      %p171 = scmp.eq.s32.totalorder %s23, 1
      %p172 = por %p170, %p171
      %p174 = scmp.ne.s32.totalorder %s159, %s173
      %p175 = scmp.eq.s32.totalorder %s23, 0
      %p176 = por %p174, %p175
      %s178 = sadd.s32 %s177, 1
      %p181 = scmp.eq.s32.totalorder %s17, 1
      %p182 = scmp.ne.s32.totalorder %s177, %s179
      %p183 = scmp.eq.s32.totalorder %s17, 0
      %p184 = por %p182, %p183
      %p185 = scmp.ne.s32.totalorder %s177, %s179
      %p186 = scmp.eq.s32.totalorder %s22, 1
      %p187 = por %p185, %p186
      %p188 = scmp.ne.s32.totalorder %s179, %s180
      %p189 = scmp.eq.s32.totalorder %s22, 0
      %p190 = por %p188, %p189
      %p191 = scmp.ne.s32.totalorder %s179, %s180
      %p192 = scmp.eq.s32.totalorder %s23, 1
      %p193 = por %p191, %p192
      %p195 = scmp.ne.s32.totalorder %s180, %s194
      %p196 = scmp.eq.s32.totalorder %s23, 0
      %p197 = por %p195, %p196
      %s199 = sadd.s32 %s198, 1
      %p202 = scmp.eq.s32.totalorder %s17, 1
      %p203 = scmp.ne.s32.totalorder %s198, %s200
      %p204 = scmp.eq.s32.totalorder %s17, 0
      %p205 = por %p203, %p204
      %p206 = scmp.ne.s32.totalorder %s198, %s200
      %p207 = scmp.eq.s32.totalorder %s22, 1
      %p208 = por %p206, %p207
      %p209 = scmp.ne.s32.totalorder %s200, %s201
      %p210 = scmp.eq.s32.totalorder %s22, 0
      %p211 = por %p209, %p210
      %p212 = scmp.ne.s32.totalorder %s200, %s201
      %p213 = scmp.eq.s32.totalorder %s23, 1
      %p214 = por %p212, %p213
      %p216 = scmp.ne.s32.totalorder %s201, %s215
      %p217 = scmp.eq.s32.totalorder %s23, 0
      %p218 = por %p216, %p217
      %s219 = ssub.s32 %s17, %s24
      %p220 = scmp.eq.s32.totalorder %s219, 0
      %s222 = sadd.s32 %s221, 1
      %s223 = scalar_select %p220, %s221, %s222
      %p226 = pneg %p220
      %p227 = scmp.eq.s32.totalorder %s17, 1
      %p228 = por %p226, %p227
      %p229 = scmp.ne.s32.totalorder %s221, %s224
      %p230 = scmp.eq.s32.totalorder %s17, 0
      %p231 = por %p229, %p230
      %p232 = scmp.ne.s32.totalorder %s221, %s224
      %p233 = scmp.eq.s32.totalorder %s22, 1
      %p234 = por %p232, %p233
      %p235 = scmp.ne.s32.totalorder %s224, %s225
      %p236 = scmp.eq.s32.totalorder %s22, 0
      %p237 = por %p235, %p236
      %p238 = scmp.ne.s32.totalorder %s224, %s225
      %p239 = scmp.eq.s32.totalorder %s23, 1
      %p240 = por %p238, %p239
      %p242 = scmp.ne.s32.totalorder %s225, %s241
      %p243 = scmp.eq.s32.totalorder %s23, 0
      %p244 = por %p242, %p243
      %p245 = scmp.le.s32.totalorder 1, %s17
      %p246 = scmp.lt.s32.totalorder %s17, 3
      %p247 = pnand %p245, %p246
      %p248 = pneg %p247
      // Predicated region
      $region9: #{inception_forward.1} parent=5 // pred_check
        _
      $region10: #{inception_forward.1} parent=5 // pred_check_branch
        %250 = sbr.rel (%p247) target = $region12
      $region11: #{inception_forward.1} parent=5 // pred_region
        %s251 = ssub.s32 %s17, 1
        // Predicated region
        $region13: #{inception_forward.1} parent=11 // pred_check
          %p252 = pneg %p64
        $region14: #{inception_forward.1} parent=11 // pred_check_branch
          %254 = sbr.rel (%p252) target = $region16
        $region15: #{inception_forward.1} parent=11 // pred_region
          _
        $region16: #{inception_forward.1} parent=11 // pred_fallthru
          _
        // Predicated region
        $region17: #{inception_forward.1} parent=11 // pred_check
          %p255 = pneg %p85
        $region18: #{inception_forward.1} parent=11 // pred_check_branch
          %257 = sbr.rel (%p255) target = $region20
        $region19: #{inception_forward.1} parent=11 // pred_region
          _
        $region20: #{inception_forward.1} parent=11 // pred_fallthru
          _
        // Predicated region
        $region21: #{inception_forward.1} parent=11 // pred_check
          %p258 = pneg %p106
        $region22: #{inception_forward.1} parent=11 // pred_check_branch
          %260 = sbr.rel (%p258) target = $region24
        $region23: #{inception_forward.1} parent=11 // pred_region
          %s262 = ssub.s32 9216, 9216
          %263 = vsyncadd [#allocation6], %s262
          %s264 = sshll.u32 [#allocation5], 4
          %s265 = int_to_ptr.vmem [resolvable:$true] %s264
          %270 = dma.hbm_to_vmem [thread:$0]  %s3, 9216, %s265, [#allocation6], 64, 64, 4
        $region24: #{inception_forward.1} parent=11 // pred_fallthru
          _
        // Predicated region
        $region25: #{inception_forward.1} parent=11 // pred_check
          %p271 = pneg %p127
        $region26: #{inception_forward.1} parent=11 // pred_check_branch
          %273 = sbr.rel (%p271) target = $region28
        $region27: #{inception_forward.1} parent=11 // pred_region
          _
        $region28: #{inception_forward.1} parent=11 // pred_fallthru
          _
        // Predicated region
        $region29: #{inception_forward.1} parent=11 // pred_check
          %p274 = pneg %p148
        $region30: #{inception_forward.1} parent=11 // pred_check_branch
          %276 = sbr.rel (%p274) target = $region32
        $region31: #{inception_forward.1} parent=11 // pred_region
          %s278 = ssub.s32 25600, 25600
          %279 = vsyncadd [#allocation8], %s278
          %s280 = sshll.u32 [#allocation7], 4
          %s281 = int_to_ptr.vmem [resolvable:$true] %s280
          %286 = dma.hbm_to_vmem [thread:$0]  %s5, 25600, %s281, [#allocation8], 64, 64, 4
        $region32: #{inception_forward.1} parent=11 // pred_fallthru
          _
        // Predicated region
        $region33: #{inception_forward.1} parent=11 // pred_check
          %p287 = pneg %p169
        $region34: #{inception_forward.1} parent=11 // pred_check_branch
          %289 = sbr.rel (%p287) target = $region36
        $region35: #{inception_forward.1} parent=11 // pred_region
          _
        $region36: #{inception_forward.1} parent=11 // pred_fallthru
          _
        // Predicated region
        $region37: #{inception_forward.1} parent=11 // pred_check
          %p290 = pneg %p190
        $region38: #{inception_forward.1} parent=11 // pred_check_branch
          %292 = sbr.rel (%p290) target = $region40
        $region39: #{inception_forward.1} parent=11 // pred_region
          _
        $region40: #{inception_forward.1} parent=11 // pred_fallthru
          _
        // Predicated region
        $region41: #{inception_forward.1} parent=11 // pred_check
          %p293 = pneg %p211
        $region42: #{inception_forward.1} parent=11 // pred_check_branch
          %295 = sbr.rel (%p293) target = $region44
        $region43: #{inception_forward.1} parent=11 // pred_region
          _
        $region44: #{inception_forward.1} parent=11 // pred_fallthru
          _
      $region12: #{inception_forward.1} parent=5 // pred_fallthru
        _
      %p296 = scmp.lt.s32.totalorder %s17, 2
      // Predicated region
      $region45: #{inception_forward.1} parent=5 // pred_check
        %p297 = pneg %p296
      $region46: #{inception_forward.1} parent=5 // pred_check_branch
        %299 = sbr.rel (%p297) target = $region48
      $region47: #{inception_forward.1} parent=5 // pred_region
        // Predicated region
        $region49: #{inception_forward.1} parent=47 // pred_check
          %p300 = pneg %p37
        $region50: #{inception_forward.1} parent=47 // pred_check_branch
          %302 = sbr.rel (%p300) target = $region52
        $region51: #{inception_forward.1} parent=47 // pred_region
          %p303 = scmp.lt.s32.totalorder %s17, 1
          %s304 = scalar_select %p303, %s17, 1
          %s305 = smul.addr %s304, 32
          %s306 = smul.addr %s305, 4
          %s307 = scalar_lea.vmem %s0, %s306
        $region52: #{inception_forward.1} parent=47 // pred_fallthru
          _
      $region48: #{inception_forward.1} parent=5 // pred_fallthru
        _
      %p308 = scmp.le.s32.totalorder 1, %s17
      %p309 = scmp.lt.s32.totalorder %s17, 3
      %p310 = pnand %p308, %p309
      %p311 = pneg %p310
      // Predicated region
      $region53: #{inception_forward.1} parent=5 // pred_check
        _
      $region54: #{inception_forward.1} parent=5 // pred_check_branch
        %313 = sbr.rel (%p310) target = $region56
      $region55: #{inception_forward.1} parent=5 // pred_region
        %s314 = ssub.s32 %s17, 1
        // Predicated region
        $region57: #{inception_forward.1} parent=55 // pred_check
          %p315 = pneg %p106
        $region58: #{inception_forward.1} parent=55 // pred_check_branch
          %317 = sbr.rel (%p315) target = $region60
        $region59: #{inception_forward.1} parent=55 // pred_region
          %318 = dma.done [#allocation6], 9216
        $region60: #{inception_forward.1} parent=55 // pred_fallthru
          _
        // Predicated region
        $region61: #{inception_forward.1} parent=55 // pred_check
          %p319 = pneg %p148
        $region62: #{inception_forward.1} parent=55 // pred_check_branch
          %321 = sbr.rel (%p319) target = $region64
        $region63: #{inception_forward.1} parent=55 // pred_region
          %322 = dma.done [#allocation8], 25600
        $region64: #{inception_forward.1} parent=55 // pred_fallthru
          _
        %p323 = scmp.lt.s32.totalorder %s22, 1
        %s324 = scalar_select %p323, %s22, 1
        %s325 = smul.addr %s324, 32
        %s326 = smul.addr %s325, 4
        %s327 = scalar_lea.vmem %s0, %s326
        %p328 = pneg %p43
        %p329 = pneg %p40
        %p330 = pneg %p64
        %p331 = pneg %p61
        %p332 = pneg %p85
        %p333 = pneg %p82
        %p334 = pneg %p106
        %p335 = pneg %p103
        %p336 = pneg %p127
        %p337 = pneg %p124
        %p338 = pneg %p148
        %p339 = pneg %p145
        %p340 = pneg %p169
        %p341 = pneg %p166
        %p342 = pneg %p190
        %p343 = pneg %p187
        %p344 = pneg %p211
        %p345 = pneg %p208
        %p346 = pneg %p237
        %p347 = pneg %p234
        %p348 = scmp.lt.s32.totalorder %s22, 1
        %s349 = scalar_select %p348, %s22, 1
        %s350 = smul.addr %s349, 32
        %s351 = smul.addr %s350, 4
        %s352 = scalar_lea.vmem %s9, %s351
        %p353 = scmp.lt.s32.totalorder %s22, 1
        %s354 = scalar_select %p353, %s22, 1
        %s355 = smul.addr %s354, 32
        %s356 = smul.addr %s355, 4
        %s357 = scalar_lea.vmem %s0, %s356
        %p358 = scmp.lt.s32.totalorder %s22, 1
        %s359 = scalar_select %p358, %s22, 1
        %s360 = smul.addr %s359, 32
        %s361 = smul.addr %s360, 4
        %s362 = scalar_lea.vmem %s9, %s361
        %v364 = vld [vmem:[%s357] sm:$0xf]
        %v365 = vld [vmem:[%s357 + $0x4] sm:$0xf]
        %v366 = vld [vmem:[%s357 + $0x8] sm:$0xf]
        %v367 = vld [vmem:[%s357 + $0xc] sm:$0xf]
        %v368 = vld [vmem:[%s357 + $0x10] sm:$0xf]
        %v369 = vld [vmem:[%s357 + $0x14] sm:$0xf]
        %v370 = vld [vmem:[%s357 + $0x18] sm:$0xf]
        %v371 = vld [vmem:[%s357 + $0x1c] sm:$0xf]
        %v372 = vld [vmem:[%s357 + $0x20] sm:$0xf]
        %v373 = vld [vmem:[%s357 + $0x24] sm:$0xf]
        %v374 = vld [vmem:[%s357 + $0x28] sm:$0xf]
        %v375 = vld [vmem:[%s357 + $0x2c] sm:$0xf]
        %v376 = vld [vmem:[%s357 + $0x30] sm:$0xf]
        %v377 = vld [vmem:[%s357 + $0x34] sm:$0xf]
        %v378 = vld [vmem:[%s357 + $0x38] sm:$0xf]
        %v379 = vld [vmem:[%s357 + $0x3c] sm:$0xf]
        %v380 = vld [vmem:[%s357 + $0x40] sm:$0xf]
        %v381 = vld [vmem:[%s357 + $0x44] sm:$0xf]
        %v382 = vld [vmem:[%s357 + $0x48] sm:$0xf]
        %v383 = vld [vmem:[%s357 + $0x4c] sm:$0xf]
        %v384 = vld [vmem:[%s357 + $0x50] sm:$0xf]
        %v385 = vld [vmem:[%s357 + $0x54] sm:$0xf]
        %v386 = vld [vmem:[%s357 + $0x58] sm:$0xf]
        %v387 = vld [vmem:[%s357 + $0x5c] sm:$0xf]
        %v388 = vld [vmem:[%s357 + $0x60] sm:$0xf]
        %v389 = vld [vmem:[%s357 + $0x64] sm:$0xf]
        %v390 = vld [vmem:[%s357 + $0x68] sm:$0xf]
        %v391 = vld [vmem:[%s357 + $0x6c] sm:$0xf]
        %v392 = vld [vmem:[%s357 + $0x70] sm:$0xf]
        %v393 = vld [vmem:[%s357 + $0x74] sm:$0xf]
        %v394 = vld [vmem:[%s357 + $0x78] sm:$0xf]
        %v395 = vld [vmem:[%s357 + $0x7c] sm:$0xf]
        %v396 = vld [vmem:[%s1] sm:$0x3f]
        %v397 = vld [vmem:[%s2] sm:$0x7]
        %v399 = vlaneseq
        %v400 = vshrl.u32 %v399, 7
        %v401 = vsub.s32 0, %v400
        %v402 = vrot.slane %v397, %v401
        %v403 = vlaneseq
        %v404 = vshrl.u32 %v403, 7
        %v405 = vsub.s32 1, %v404
        %v406 = vrot.slane %v397, %v405
        %v407 = vlaneseq
        %v408 = vshrl.u32 %v407, 7
        %v409 = vsub.s32 2, %v408
        %v410 = vrot.slane %v397, %v409
        %v446 = vunpack.c.l.b16 %v364
        %v447 = vunpack.c.l.b16 %v365
        %v448 = vunpack.c.l.b16 %v366
        %v449 = vunpack.c.l.b16 %v367
        %v450 = vunpack.c.l.b16 %v368
        %v451 = vunpack.c.l.b16 %v369
        %v452 = vunpack.c.l.b16 %v370
        %v453 = vunpack.c.l.b16 %v371
        %v454 = vunpack.c.l.b16 %v372
        %v455 = vunpack.c.l.b16 %v373
        %v456 = vunpack.c.l.b16 %v374
        %v457 = vunpack.c.l.b16 %v375
        %v458 = vunpack.c.l.b16 %v376
        %v459 = vunpack.c.l.b16 %v377
        %v460 = vunpack.c.l.b16 %v378
        %v461 = vunpack.c.l.b16 %v379
        %v462 = vunpack.c.l.b16 %v380
        %v463 = vunpack.c.l.b16 %v381
        %v464 = vunpack.c.l.b16 %v382
        %v465 = vunpack.c.l.b16 %v383
        %v466 = vunpack.c.l.b16 %v384
        %v467 = vunpack.c.l.b16 %v385
        %v468 = vunpack.c.l.b16 %v386
        %v469 = vunpack.c.l.b16 %v387
        %v470 = vunpack.c.l.b16 %v388
        %v471 = vunpack.c.l.b16 %v389
        %v472 = vunpack.c.l.b16 %v390
        %v473 = vunpack.c.l.b16 %v391
        %v474 = vunpack.c.l.b16 %v392
        %v475 = vunpack.c.l.b16 %v393
        %v476 = vunpack.c.l.b16 %v394
        %v477 = vunpack.c.l.b16 %v395
        %v478 = vpack.c.b16 %v447, %v446
        %v479 = vpack.c.b16 %v449, %v448
        %v480 = vpack.c.b16 %v451, %v450
        %v481 = vpack.c.b16 %v453, %v452
        %v482 = vpack.c.b16 %v455, %v454
        %v483 = vpack.c.b16 %v457, %v456
        %v484 = vpack.c.b16 %v459, %v458
        %v485 = vpack.c.b16 %v461, %v460
        %v486 = vpack.c.b16 %v463, %v462
        %v487 = vpack.c.b16 %v465, %v464
        %v488 = vpack.c.b16 %v467, %v466
        %v489 = vpack.c.b16 %v469, %v468
        %v490 = vpack.c.b16 %v471, %v470
        %v491 = vpack.c.b16 %v473, %v472
        %v492 = vpack.c.b16 %v475, %v474
        %v493 = vpack.c.b16 %v477, %v476
        %v495 = vcombine.high %v396, %v396
        %v497 = vunpack.c.l.s4 1983009808
        %v498 = vunpack.c.0.s8 %v497
        %v499 = vlaneseq
        %v500 = vshrl.u32 %v499, 7
        %v501 = vsub.s32 %v498, %v500
        %v502 = vrot.slane %v396, %v501
        %v504 = vunpack.c.l.s4 1983009808
        %v505 = vunpack.c.0.s8 %v504
        %v506 = vlaneseq
        %v507 = vshrl.u32 %v506, 7
        %v508 = vsub.s32 %v505, %v507
        %v509 = vrot.slane %v495, %v508
        %v510 = vcombine.high %v502, %v502
        %vm511 = vcmask 31744
        %v513 = vsel %vm511, %v478, 0
        %v516 = vsel %vm511, %v479, 0
        %v519 = vsel %vm511, %v480, 0
        %v522 = vsel %vm511, %v481, 0
        %v525 = vsel %vm511, %v482, 0
        %v528 = vsel %vm511, %v483, 0
        %v531 = vsel %vm511, %v484, 0
        %v534 = vsel %vm511, %v485, 0
        %v537 = vsel %vm511, %v486, 0
        %v540 = vsel %vm511, %v487, 0
        %v543 = vsel %vm511, %v488, 0
        %v546 = vsel %vm511, %v489, 0
        %v549 = vsel %vm511, %v490, 0
        %v552 = vsel %vm511, %v491, 0
        %v555 = vsel %vm511, %v492, 0
        %v558 = vsel %vm511, %v493, 0
        %vm560 = vcmask 1041408
        %v562 = vsel %vm560, %v502, 0
        %v565 = vsel %vm560, %v510, 0
        %v568 = vsel %vm560, %v509, 0
        %570 = vmatprep.subr.bf16.mxu0 %v565
        %571 = vmatpush1.bf16.msra.mxu0 %v562
        %572 = vmatprep.subr.bf16.mxu0 0
        %573 = vmatpush1.bf16.msra.mxu0 0
        %574 = vmatprep.subr.bf16.mxu0 0
        %575 = vmatpush1.bf16.msra.mxu0 0
        %576 = vmatprep.subr.bf16.mxu0 0
        %577 = vmatpush1.bf16.msra.mxu0 0
        %578 = vmatprep.subr.bf16.mxu0 0
        %579 = vmatpush1.bf16.msra.mxu0 0
        %580 = vmatprep.subr.bf16.mxu0 0
        %581 = vmatpush1.bf16.msra.mxu0 0
        %582 = vmatprep.subr.bf16.mxu0 0
        %583 = vmatpush1.bf16.msra.mxu0 0
        %584 = vmatprep.subr.bf16.mxu0 0
        %585 = vmatpush1.bf16.msra.mxu0 0
        %586 = vmatprep.subr.bf16.mxu0 0
        %587 = vmatpush1.bf16.msra.mxu0 0
        %588 = vmatprep.subr.bf16.mxu0 0
        %589 = vmatpush1.bf16.msra.mxu0 0
        %590 = vmatprep.subr.bf16.mxu0 0
        %591 = vmatpush1.bf16.msra.mxu0 0
        %592 = vmatprep.subr.bf16.mxu0 0
        %593 = vmatpush1.bf16.msra.mxu0 0
        %594 = vmatprep.subr.bf16.mxu0 0
        %595 = vmatpush1.bf16.msra.mxu0 0
        %596 = vmatprep.subr.bf16.mxu0 0
        %597 = vmatpush1.bf16.msra.mxu0 0
        %598 = vmatprep.subr.bf16.mxu0 0
        %599 = vmatpush1.bf16.msra.mxu0 0
        %600 = vmatprep.subr.bf16.mxu0 0
        %601 = vmatpush1.bf16.msra.mxu0 0
        %602 = vmatprep.mubr.bf16.mxu0 0
        %603 = vmatmul.mubr.bf16.gmra.mrb[0].mxu0 %v513
        %v604 = vpop.f32.mrb[0].mxu0
        %v605 = vadd.f32 %v402, %v604
        %v606 = vpop.f32.mrb[0].mxu0
        %v607 = vadd.f32 %v406, %v606
        %v608 = vpop.f32.mrb[0].mxu0
        %v609 = vadd.f32 %v402, %v608
        %v610 = vpop.f32.mrb[0].mxu0
        %v611 = vadd.f32 %v406, %v610
        %612 = vmatprep.mubr.bf16.mxu0 0
        %613 = vmatmul.mubr.bf16.gmra.mrb[0].mxu0 %v516
        %v614 = vpop.f32.mrb[0].mxu0
        %v615 = vadd.f32 %v402, %v614
        %v616 = vpop.f32.mrb[0].mxu0
        %v617 = vadd.f32 %v406, %v616
        %v618 = vpop.f32.mrb[0].mxu0
        %v619 = vadd.f32 %v402, %v618
        %v620 = vpop.f32.mrb[0].mxu0
        %v621 = vadd.f32 %v406, %v620
        %622 = vmatprep.mubr.bf16.mxu0 0
        %623 = vmatmul.mubr.bf16.gmra.mrb[0].mxu0 %v519
        %v624 = vpop.f32.mrb[0].mxu0
        %v625 = vadd.f32 %v402, %v624
        %v626 = vpop.f32.mrb[0].mxu0
        %v627 = vadd.f32 %v406, %v626
        %v628 = vpop.f32.mrb[0].mxu0
        %v629 = vadd.f32 %v402, %v628
        %v630 = vpop.f32.mrb[0].mxu0
        %v631 = vadd.f32 %v406, %v630
        %632 = vmatprep.mubr.bf16.mxu0 0
        %633 = vmatmul.mubr.bf16.gmra.mrb[0].mxu0 %v522
        %v634 = vpop.f32.mrb[0].mxu0
        %v635 = vadd.f32 %v402, %v634
        %v636 = vpop.f32.mrb[0].mxu0
        %v637 = vadd.f32 %v406, %v636
        %v638 = vpop.f32.mrb[0].mxu0
        %v639 = vadd.f32 %v402, %v638
        %v640 = vpop.f32.mrb[0].mxu0
        %v641 = vadd.f32 %v406, %v640
        %642 = vmatprep.mubr.bf16.mxu0 0
        %643 = vmatmul.mubr.bf16.gmra.mrb[0].mxu0 %v525
        %v644 = vpop.f32.mrb[0].mxu0
        %v645 = vadd.f32 %v402, %v644
        %v646 = vpop.f32.mrb[0].mxu0
        %v647 = vadd.f32 %v406, %v646
        %v648 = vpop.f32.mrb[0].mxu0
        %v649 = vadd.f32 %v402, %v648
        %v650 = vpop.f32.mrb[0].mxu0
        %v651 = vadd.f32 %v406, %v650
        %652 = vmatprep.mubr.bf16.mxu0 0
        %653 = vmatmul.mubr.bf16.gmra.mrb[0].mxu0 %v528
        %v654 = vpop.f32.mrb[0].mxu0
        %v655 = vadd.f32 %v402, %v654
        %v656 = vpop.f32.mrb[0].mxu0
        %v657 = vadd.f32 %v406, %v656
        %v658 = vpop.f32.mrb[0].mxu0
        %v659 = vadd.f32 %v402, %v658
        %v660 = vpop.f32.mrb[0].mxu0
        %v661 = vadd.f32 %v406, %v660
        %662 = vmatprep.mubr.bf16.mxu0 0
        %663 = vmatmul.mubr.bf16.gmra.mrb[0].mxu0 %v531
        %v664 = vpop.f32.mrb[0].mxu0
        %v665 = vadd.f32 %v402, %v664
        %v666 = vpop.f32.mrb[0].mxu0
        %v667 = vadd.f32 %v406, %v666
        %v668 = vpop.f32.mrb[0].mxu0
        %v669 = vadd.f32 %v402, %v668
        %v670 = vpop.f32.mrb[0].mxu0
        %v671 = vadd.f32 %v406, %v670
        %672 = vmatprep.mubr.bf16.mxu0 0
        %673 = vmatmul.mubr.bf16.gmra.mrb[0].mxu0 %v534
        %v674 = vpop.f32.mrb[0].mxu0
        %v675 = vadd.f32 %v402, %v674
        %v676 = vpop.f32.mrb[0].mxu0
        %v677 = vadd.f32 %v406, %v676
        %v678 = vpop.f32.mrb[0].mxu0
        %v679 = vadd.f32 %v402, %v678
        %v680 = vpop.f32.mrb[0].mxu0
        %v681 = vadd.f32 %v406, %v680
        %682 = vmatprep.mubr.bf16.mxu0 0
        %683 = vmatmul.mubr.bf16.gmra.mrb[0].mxu0 %v537
        %v684 = vpop.f32.mrb[0].mxu0
        %v685 = vadd.f32 %v402, %v684
        %v686 = vpop.f32.mrb[0].mxu0
        %v687 = vadd.f32 %v406, %v686
        %v688 = vpop.f32.mrb[0].mxu0
        %v689 = vadd.f32 %v402, %v688
        %v690 = vpop.f32.mrb[0].mxu0
        %v691 = vadd.f32 %v406, %v690
        %692 = vmatprep.mubr.bf16.mxu0 0
        %693 = vmatmul.mubr.bf16.gmra.mrb[0].mxu0 %v540
        %v694 = vpop.f32.mrb[0].mxu0
        %v695 = vadd.f32 %v402, %v694
        %v696 = vpop.f32.mrb[0].mxu0
        %v697 = vadd.f32 %v406, %v696
        %v698 = vpop.f32.mrb[0].mxu0
        %v699 = vadd.f32 %v402, %v698
        %v700 = vpop.f32.mrb[0].mxu0
        %v701 = vadd.f32 %v406, %v700
        %702 = vmatprep.mubr.bf16.mxu0 0
        %703 = vmatmul.mubr.bf16.gmra.mrb[0].mxu0 %v543
        %v704 = vpop.f32.mrb[0].mxu0
        %v705 = vadd.f32 %v402, %v704
        %v706 = vpop.f32.mrb[0].mxu0
        %v707 = vadd.f32 %v406, %v706
        %v708 = vpop.f32.mrb[0].mxu0
        %v709 = vadd.f32 %v402, %v708
        %v710 = vpop.f32.mrb[0].mxu0
        %v711 = vadd.f32 %v406, %v710
        %712 = vmatprep.mubr.bf16.mxu0 0
        %713 = vmatmul.mubr.bf16.gmra.mrb[0].mxu0 %v546
        %v714 = vpop.f32.mrb[0].mxu0
        %v715 = vadd.f32 %v402, %v714
        %v716 = vpop.f32.mrb[0].mxu0
        %v717 = vadd.f32 %v406, %v716
        %v718 = vpop.f32.mrb[0].mxu0
        %v719 = vadd.f32 %v402, %v718
        %v720 = vpop.f32.mrb[0].mxu0
        %v721 = vadd.f32 %v406, %v720
        %722 = vmatprep.mubr.bf16.mxu0 0
        %723 = vmatmul.mubr.bf16.gmra.mrb[0].mxu0 %v549
        %v724 = vpop.f32.mrb[0].mxu0
        %v725 = vadd.f32 %v402, %v724
        %v726 = vpop.f32.mrb[0].mxu0
        %v727 = vadd.f32 %v406, %v726
        %v728 = vpop.f32.mrb[0].mxu0
        %v729 = vadd.f32 %v402, %v728
        %v730 = vpop.f32.mrb[0].mxu0
        %v731 = vadd.f32 %v406, %v730
        %732 = vmatprep.mubr.bf16.mxu0 0
        %733 = vmatmul.mubr.bf16.gmra.mrb[0].mxu0 %v552
        %v734 = vpop.f32.mrb[0].mxu0
        %v735 = vadd.f32 %v402, %v734
        %v736 = vpop.f32.mrb[0].mxu0
        %v737 = vadd.f32 %v406, %v736
        %v738 = vpop.f32.mrb[0].mxu0
        %v739 = vadd.f32 %v402, %v738
        %v740 = vpop.f32.mrb[0].mxu0
        %v741 = vadd.f32 %v406, %v740
        %742 = vmatprep.mubr.bf16.mxu0 0
        %743 = vmatmul.mubr.bf16.gmra.mrb[0].mxu0 %v555
        %v744 = vpop.f32.mrb[0].mxu0
        %v745 = vadd.f32 %v402, %v744
        %v746 = vpop.f32.mrb[0].mxu0
        %v747 = vadd.f32 %v406, %v746
        %v748 = vpop.f32.mrb[0].mxu0
        %v749 = vadd.f32 %v402, %v748
        %v750 = vpop.f32.mrb[0].mxu0
        %v751 = vadd.f32 %v406, %v750
        %752 = vmatprep.mubr.bf16.mxu0 0
        %753 = vmatmul.mubr.bf16.gmra.mrb[0].mxu0 %v558
        %v754 = vpop.f32.mrb[0].mxu0
        %v755 = vadd.f32 %v402, %v754
        %v756 = vpop.f32.mrb[0].mxu0
        %v757 = vadd.f32 %v406, %v756
        %v758 = vpop.f32.mrb[0].mxu0
        %v759 = vadd.f32 %v402, %v758
        %v760 = vpop.f32.mrb[0].mxu0
        %v761 = vadd.f32 %v406, %v760
        %762 = vdwg.mxu0
        %763 = vmatprep.subr.bf16.mxu0 0
        %764 = vmatpush1.bf16.msra.mxu0 %v568
        %765 = vmatprep.subr.bf16.mxu0 0
        %766 = vmatpush1.bf16.msra.mxu0 0
        %767 = vmatprep.subr.bf16.mxu0 0
        %768 = vmatpush1.bf16.msra.mxu0 0
        %769 = vmatprep.subr.bf16.mxu0 0
        %770 = vmatpush1.bf16.msra.mxu0 0
        %771 = vmatprep.subr.bf16.mxu0 0
        %772 = vmatpush1.bf16.msra.mxu0 0
        %773 = vmatprep.subr.bf16.mxu0 0
        %774 = vmatpush1.bf16.msra.mxu0 0
        %775 = vmatprep.subr.bf16.mxu0 0
        %776 = vmatpush1.bf16.msra.mxu0 0
        %777 = vmatprep.subr.bf16.mxu0 0
        %778 = vmatpush1.bf16.msra.mxu0 0
        %779 = vmatprep.subr.bf16.mxu0 0
        %780 = vmatpush1.bf16.msra.mxu0 0
        %781 = vmatprep.subr.bf16.mxu0 0
        %782 = vmatpush1.bf16.msra.mxu0 0
        %783 = vmatprep.subr.bf16.mxu0 0
        %784 = vmatpush1.bf16.msra.mxu0 0
        %785 = vmatprep.subr.bf16.mxu0 0
        %786 = vmatpush1.bf16.msra.mxu0 0
        %787 = vmatprep.subr.bf16.mxu0 0
        %788 = vmatpush1.bf16.msra.mxu0 0
        %789 = vmatprep.subr.bf16.mxu0 0
        %790 = vmatpush1.bf16.msra.mxu0 0
        %791 = vmatprep.subr.bf16.mxu0 0
        %792 = vmatpush1.bf16.msra.mxu0 0
        %793 = vmatprep.subr.bf16.mxu0 0
        %794 = vmatpush1.bf16.msra.mxu0 0
        %795 = vmatprep.mubr.bf16.mxu0 0
        %796 = vmatmul.mubr.bf16.gmra.mrb[0].mxu0 %v513
        %v797 = vpop.f32.mrb[0].mxu0
        %v798 = vadd.f32 %v410, %v797
        %v799 = vpop.f32.mrb[0].mxu0
        %v800 = vpop.f32.mrb[0].mxu0
        %v801 = vadd.f32 %v410, %v800
        %v802 = vpop.f32.mrb[0].mxu0
        %803 = vmatprep.mubr.bf16.mxu0 0
        %804 = vmatmul.mubr.bf16.gmra.mrb[0].mxu0 %v516
        %v805 = vpop.f32.mrb[0].mxu0
        %v806 = vadd.f32 %v410, %v805
        %v807 = vpop.f32.mrb[0].mxu0
        %v808 = vpop.f32.mrb[0].mxu0
        %v809 = vadd.f32 %v410, %v808
        %v810 = vpop.f32.mrb[0].mxu0
        %811 = vmatprep.mubr.bf16.mxu0 0
        %812 = vmatmul.mubr.bf16.gmra.mrb[0].mxu0 %v519
        %v813 = vpop.f32.mrb[0].mxu0
        %v814 = vadd.f32 %v410, %v813
        %v815 = vpop.f32.mrb[0].mxu0
        %v816 = vpop.f32.mrb[0].mxu0
        %v817 = vadd.f32 %v410, %v816
        %v818 = vpop.f32.mrb[0].mxu0
        %819 = vmatprep.mubr.bf16.mxu0 0
        %820 = vmatmul.mubr.bf16.gmra.mrb[0].mxu0 %v522
        %v821 = vpop.f32.mrb[0].mxu0
        %v822 = vadd.f32 %v410, %v821
        %v823 = vpop.f32.mrb[0].mxu0
        %v824 = vpop.f32.mrb[0].mxu0
        %v825 = vadd.f32 %v410, %v824
        %v826 = vpop.f32.mrb[0].mxu0
        %827 = vmatprep.mubr.bf16.mxu0 0
        %828 = vmatmul.mubr.bf16.gmra.mrb[0].mxu0 %v525
        %v829 = vpop.f32.mrb[0].mxu0
        %v830 = vadd.f32 %v410, %v829
        %v831 = vpop.f32.mrb[0].mxu0
        %v832 = vpop.f32.mrb[0].mxu0
        %v833 = vadd.f32 %v410, %v832
        %v834 = vpop.f32.mrb[0].mxu0
        %835 = vmatprep.mubr.bf16.mxu0 0
        %836 = vmatmul.mubr.bf16.gmra.mrb[0].mxu0 %v528
        %v837 = vpop.f32.mrb[0].mxu0
        %v838 = vadd.f32 %v410, %v837
        %v839 = vpop.f32.mrb[0].mxu0
        %v840 = vpop.f32.mrb[0].mxu0
        %v841 = vadd.f32 %v410, %v840
        %v842 = vpop.f32.mrb[0].mxu0
        %843 = vmatprep.mubr.bf16.mxu0 0
        %844 = vmatmul.mubr.bf16.gmra.mrb[0].mxu0 %v531
        %v845 = vpop.f32.mrb[0].mxu0
        %v846 = vadd.f32 %v410, %v845
        %v847 = vpop.f32.mrb[0].mxu0
        %v848 = vpop.f32.mrb[0].mxu0
        %v849 = vadd.f32 %v410, %v848
        %v850 = vpop.f32.mrb[0].mxu0
        %851 = vmatprep.mubr.bf16.mxu0 0
        %852 = vmatmul.mubr.bf16.gmra.mrb[0].mxu0 %v534
        %v853 = vpop.f32.mrb[0].mxu0
        %v854 = vadd.f32 %v410, %v853
        %v855 = vpop.f32.mrb[0].mxu0
        %v856 = vpop.f32.mrb[0].mxu0
        %v857 = vadd.f32 %v410, %v856
        %v858 = vpop.f32.mrb[0].mxu0
        %859 = vmatprep.mubr.bf16.mxu0 0
        %860 = vmatmul.mubr.bf16.gmra.mrb[0].mxu0 %v537
        %v861 = vpop.f32.mrb[0].mxu0
        %v862 = vadd.f32 %v410, %v861
        %v863 = vpop.f32.mrb[0].mxu0
        %v864 = vpop.f32.mrb[0].mxu0
        %v865 = vadd.f32 %v410, %v864
        %v866 = vpop.f32.mrb[0].mxu0
        %867 = vmatprep.mubr.bf16.mxu0 0
        %868 = vmatmul.mubr.bf16.gmra.mrb[0].mxu0 %v540
        %v869 = vpop.f32.mrb[0].mxu0
        %v870 = vadd.f32 %v410, %v869
        %v871 = vpop.f32.mrb[0].mxu0
        %v872 = vpop.f32.mrb[0].mxu0
        %v873 = vadd.f32 %v410, %v872
        %v874 = vpop.f32.mrb[0].mxu0
        %875 = vmatprep.mubr.bf16.mxu0 0
        %876 = vmatmul.mubr.bf16.gmra.mrb[0].mxu0 %v543
        %v877 = vpop.f32.mrb[0].mxu0
        %v878 = vadd.f32 %v410, %v877
        %v879 = vpop.f32.mrb[0].mxu0
        %v880 = vpop.f32.mrb[0].mxu0
        %v881 = vadd.f32 %v410, %v880
        %v882 = vpop.f32.mrb[0].mxu0
        %883 = vmatprep.mubr.bf16.mxu0 0
        %884 = vmatmul.mubr.bf16.gmra.mrb[0].mxu0 %v546
        %v885 = vpop.f32.mrb[0].mxu0
        %v886 = vadd.f32 %v410, %v885
        %v887 = vpop.f32.mrb[0].mxu0
        %v888 = vpop.f32.mrb[0].mxu0
        %v889 = vadd.f32 %v410, %v888
        %v890 = vpop.f32.mrb[0].mxu0
        %891 = vmatprep.mubr.bf16.mxu0 0
        %892 = vmatmul.mubr.bf16.gmra.mrb[0].mxu0 %v549
        %v893 = vpop.f32.mrb[0].mxu0
        %v894 = vadd.f32 %v410, %v893
        %v895 = vpop.f32.mrb[0].mxu0
        %v896 = vpop.f32.mrb[0].mxu0
        %v897 = vadd.f32 %v410, %v896
        %v898 = vpop.f32.mrb[0].mxu0
        %899 = vmatprep.mubr.bf16.mxu0 0
        %900 = vmatmul.mubr.bf16.gmra.mrb[0].mxu0 %v552
        %v901 = vpop.f32.mrb[0].mxu0
        %v902 = vadd.f32 %v410, %v901
        %v903 = vpop.f32.mrb[0].mxu0
        %v904 = vpop.f32.mrb[0].mxu0
        %v905 = vadd.f32 %v410, %v904
        %v906 = vpop.f32.mrb[0].mxu0
        %907 = vmatprep.mubr.bf16.mxu0 0
        %908 = vmatmul.mubr.bf16.gmra.mrb[0].mxu0 %v555
        %v909 = vpop.f32.mrb[0].mxu0
        %v910 = vadd.f32 %v410, %v909
        %v911 = vpop.f32.mrb[0].mxu0
        %v912 = vpop.f32.mrb[0].mxu0
        %v913 = vadd.f32 %v410, %v912
        %v914 = vpop.f32.mrb[0].mxu0
        %915 = vmatprep.mubr.bf16.mxu0 0
        %916 = vmatmul.mubr.bf16.gmra.mrb[0].mxu0 %v558
        %v917 = vpop.f32.mrb[0].mxu0
        %v918 = vadd.f32 %v410, %v917
        %v919 = vpop.f32.mrb[0].mxu0
        %v920 = vpop.f32.mrb[0].mxu0
        %v921 = vadd.f32 %v410, %v920
        %v922 = vpop.f32.mrb[0].mxu0
        %923 = vdwg.mxu0
        %v924 = vmax.f32 %v605, 0.0
        %v925 = vmax.f32 %v607, 0.0
        %v926 = vmax.f32 %v798, 0.0
        %v927 = vmax.f32 %v609, 0.0
        %v928 = vmax.f32 %v611, 0.0
        %v929 = vmax.f32 %v801, 0.0
        %v930 = vmax.f32 %v615, 0.0
        %v931 = vmax.f32 %v617, 0.0
        %v932 = vmax.f32 %v806, 0.0
        %v933 = vmax.f32 %v619, 0.0
        %v934 = vmax.f32 %v621, 0.0
        %v935 = vmax.f32 %v809, 0.0
        %v936 = vmax.f32 %v625, 0.0
        %v937 = vmax.f32 %v627, 0.0
        %v938 = vmax.f32 %v814, 0.0
        %v939 = vmax.f32 %v629, 0.0
        %v940 = vmax.f32 %v631, 0.0
        %v941 = vmax.f32 %v817, 0.0
        %v942 = vmax.f32 %v635, 0.0
        %v943 = vmax.f32 %v637, 0.0
        %v944 = vmax.f32 %v822, 0.0
        %v945 = vmax.f32 %v639, 0.0
        %v946 = vmax.f32 %v641, 0.0
        %v947 = vmax.f32 %v825, 0.0
        %v948 = vmax.f32 %v645, 0.0
        %v949 = vmax.f32 %v647, 0.0
        %v950 = vmax.f32 %v830, 0.0
        %v951 = vmax.f32 %v649, 0.0
        %v952 = vmax.f32 %v651, 0.0
        %v953 = vmax.f32 %v833, 0.0
        %v954 = vmax.f32 %v655, 0.0
        %v955 = vmax.f32 %v657, 0.0
        %v956 = vmax.f32 %v838, 0.0
        %v957 = vmax.f32 %v659, 0.0
        %v958 = vmax.f32 %v661, 0.0
        %v959 = vmax.f32 %v841, 0.0
        %v960 = vmax.f32 %v665, 0.0
        %v961 = vmax.f32 %v667, 0.0
        %v962 = vmax.f32 %v846, 0.0
        %v963 = vmax.f32 %v669, 0.0
        %v964 = vmax.f32 %v671, 0.0
        %v965 = vmax.f32 %v849, 0.0
        %v966 = vmax.f32 %v675, 0.0
        %v967 = vmax.f32 %v677, 0.0
        %v968 = vmax.f32 %v854, 0.0
        %v969 = vmax.f32 %v679, 0.0
        %v970 = vmax.f32 %v681, 0.0
        %v971 = vmax.f32 %v857, 0.0
        %v972 = vmax.f32 %v685, 0.0
        %v973 = vmax.f32 %v687, 0.0
        %v974 = vmax.f32 %v862, 0.0
        %v975 = vmax.f32 %v689, 0.0
        %v976 = vmax.f32 %v691, 0.0
        %v977 = vmax.f32 %v865, 0.0
        %v978 = vmax.f32 %v695, 0.0
        %v979 = vmax.f32 %v697, 0.0
        %v980 = vmax.f32 %v870, 0.0
        %v981 = vmax.f32 %v699, 0.0
        %v982 = vmax.f32 %v701, 0.0
        %v983 = vmax.f32 %v873, 0.0
        %v984 = vmax.f32 %v705, 0.0
        %v985 = vmax.f32 %v707, 0.0
        %v986 = vmax.f32 %v878, 0.0
        %v987 = vmax.f32 %v709, 0.0
        %v988 = vmax.f32 %v711, 0.0
        %v989 = vmax.f32 %v881, 0.0
        %v990 = vmax.f32 %v715, 0.0
        %v991 = vmax.f32 %v717, 0.0
        %v992 = vmax.f32 %v886, 0.0
        %v993 = vmax.f32 %v719, 0.0
        %v994 = vmax.f32 %v721, 0.0
        %v995 = vmax.f32 %v889, 0.0
        %v996 = vmax.f32 %v725, 0.0
        %v997 = vmax.f32 %v727, 0.0
        %v998 = vmax.f32 %v894, 0.0
        %v999 = vmax.f32 %v729, 0.0
        %v1000 = vmax.f32 %v731, 0.0
        %v1001 = vmax.f32 %v897, 0.0
        %v1002 = vmax.f32 %v735, 0.0
        %v1003 = vmax.f32 %v737, 0.0
        %v1004 = vmax.f32 %v902, 0.0
        %v1005 = vmax.f32 %v739, 0.0
        %v1006 = vmax.f32 %v741, 0.0
        %v1007 = vmax.f32 %v905, 0.0
        %v1008 = vmax.f32 %v745, 0.0
        %v1009 = vmax.f32 %v747, 0.0
        %v1010 = vmax.f32 %v910, 0.0
        %v1011 = vmax.f32 %v749, 0.0
        %v1012 = vmax.f32 %v751, 0.0
        %v1013 = vmax.f32 %v913, 0.0
        %v1014 = vmax.f32 %v755, 0.0
        %v1015 = vmax.f32 %v757, 0.0
        %v1016 = vmax.f32 %v918, 0.0
        %v1017 = vmax.f32 %v759, 0.0
        %v1018 = vmax.f32 %v761, 0.0
        %v1019 = vmax.f32 %v921, 0.0
        %v1020 = vpack.c.bf16 %v928, %v925
        %v1021 = vpack.c.bf16 %v934, %v931
        %v1022 = vpack.c.bf16 %v940, %v937
        %v1023 = vpack.c.bf16 %v946, %v943
        %v1024 = vpack.c.bf16 %v952, %v949
        %v1025 = vpack.c.bf16 %v958, %v955
        %v1026 = vpack.c.bf16 %v964, %v961
        %v1027 = vpack.c.bf16 %v970, %v967
        %v1028 = vpack.c.bf16 %v976, %v973
        %v1029 = vpack.c.bf16 %v982, %v979
        %v1030 = vpack.c.bf16 %v988, %v985
        %v1031 = vpack.c.bf16 %v994, %v991
        %v1032 = vpack.c.bf16 %v1000, %v997
        %v1033 = vpack.c.bf16 %v1006, %v1003
        %v1034 = vpack.c.bf16 %v1012, %v1009
        %v1035 = vpack.c.bf16 %v1018, %v1015
        %v1036 = vpack.c.bf16 %v929, %v926
        %v1037 = vpack.c.bf16 %v935, %v932
        %v1038 = vpack.c.bf16 %v941, %v938
        %v1039 = vpack.c.bf16 %v947, %v944
        %v1040 = vpack.c.bf16 %v953, %v950
        %v1041 = vpack.c.bf16 %v959, %v956
        %v1042 = vpack.c.bf16 %v965, %v962
        %v1043 = vpack.c.bf16 %v971, %v968
        %v1044 = vpack.c.bf16 %v977, %v974
        %v1045 = vpack.c.bf16 %v983, %v980
        %v1046 = vpack.c.bf16 %v989, %v986
        %v1047 = vpack.c.bf16 %v995, %v992
        %v1048 = vpack.c.bf16 %v1001, %v998
        %v1049 = vpack.c.bf16 %v1007, %v1004
        %v1050 = vpack.c.bf16 %v1013, %v1010
        %v1051 = vpack.c.bf16 %v1019, %v1016
        %1052 = vst.msk [vmem:[#allocation2] sm:$0xff] %vm511, -inf
        %1053 = vst.msk [vmem:[#allocation2 + $0x8] sm:$0xff] %vm511, -inf
        %vm1054 = vcmask 25600
        %1055 = vst.msk [vmem:[#allocation2 + $0x10] sm:$0x3] %vm1054, -inf
        %1056 = vst.msk [vmem:[#allocation2 + $0x18] sm:$0xff] %vm511, -inf
        %1057 = vst.msk [vmem:[#allocation2 + $0x20] sm:$0xff] %vm511, -inf
        %1058 = vst.msk [vmem:[#allocation2 + $0x28] sm:$0x3] %vm1054, -inf
        %1059 = vst.msk [vmem:[#allocation2 + $0x30] sm:$0xff] %vm511, -inf
        %1060 = vst.msk [vmem:[#allocation2 + $0x38] sm:$0xff] %vm511, -inf
        %1061 = vst.msk [vmem:[#allocation2 + $0x40] sm:$0x3] %vm1054, -inf
        %1062 = vst.msk [vmem:[#allocation2 + $0x48] sm:$0xff] %vm511, -inf
        %1063 = vst.msk [vmem:[#allocation2 + $0x50] sm:$0xff] %vm511, -inf
        %1064 = vst.msk [vmem:[#allocation2 + $0x58] sm:$0x3] %vm1054, -inf
        %1065 = vst.msk [vmem:[#allocation2 + $0x60] sm:$0xff] %vm511, -inf
        %1066 = vst.msk [vmem:[#allocation2 + $0x68] sm:$0xff] %vm511, -inf
        %1067 = vst.msk [vmem:[#allocation2 + $0x70] sm:$0x3] %vm1054, -inf
        %1068 = vst.msk [vmem:[#allocation2 + $0x78] sm:$0xff] %vm511, -inf
        %1069 = vst.msk [vmem:[#allocation2 + $0x80] sm:$0xff] %vm511, -inf
        %1070 = vst.msk [vmem:[#allocation2 + $0x88] sm:$0x3] %vm1054, -inf
        %1071 = vst.msk [vmem:[#allocation2 + $0x90] sm:$0xff] %vm511, -inf
        %1072 = vst.msk [vmem:[#allocation2 + $0x98] sm:$0xff] %vm511, -inf
        %1073 = vst.msk [vmem:[#allocation2 + $0xa0] sm:$0x3] %vm1054, -inf
        %1074 = vst.msk [vmem:[#allocation2 + $0xa8] sm:$0xff] %vm511, -inf
        %1075 = vst.msk [vmem:[#allocation2 + $0xb0] sm:$0xff] %vm511, -inf
        %1076 = vst.msk [vmem:[#allocation2 + $0xb8] sm:$0x3] %vm1054, -inf
        %1077 = vst.msk [vmem:[#allocation2 + $0xc0] sm:$0xff] %vm511, -inf
        %1078 = vst.msk [vmem:[#allocation2 + $0xc8] sm:$0xff] %vm511, -inf
        %1079 = vst.msk [vmem:[#allocation2 + $0xd0] sm:$0x3] %vm1054, -inf
        %1080 = vst.msk [vmem:[#allocation2 + $0xd8] sm:$0xff] %vm511, -inf
        %1081 = vst.msk [vmem:[#allocation2 + $0xe0] sm:$0xff] %vm511, -inf
        %1082 = vst.msk [vmem:[#allocation2 + $0xe8] sm:$0x3] %vm1054, -inf
        %1083 = vst.msk [vmem:[#allocation2 + $0xf0] sm:$0xff] %vm511, -inf
        %1084 = vst.msk [vmem:[#allocation2 + $0xf8] sm:$0xff] %vm511, -inf
        %1085 = vst.msk [vmem:[#allocation2 + $0x100] sm:$0x3] %vm1054, -inf
        %1086 = vst.msk [vmem:[#allocation2 + $0x108] sm:$0xff] %vm511, -inf
        %1087 = vst.msk [vmem:[#allocation2 + $0x110] sm:$0xff] %vm511, -inf
        %1088 = vst.msk [vmem:[#allocation2 + $0x118] sm:$0x3] %vm1054, -inf
        %1089 = vst.msk [vmem:[#allocation2 + $0x120] sm:$0xff] %vm511, -inf
        %1090 = vst.msk [vmem:[#allocation2 + $0x128] sm:$0xff] %vm511, -inf
        %1091 = vst.msk [vmem:[#allocation2 + $0x130] sm:$0x3] %vm1054, -inf
        %1092 = vst.msk [vmem:[#allocation2 + $0x138] sm:$0xff] %vm511, -inf
        %1093 = vst.msk [vmem:[#allocation2 + $0x140] sm:$0xff] %vm511, -inf
        %1094 = vst.msk [vmem:[#allocation2 + $0x148] sm:$0x3] %vm1054, -inf
        %1095 = vst.msk [vmem:[#allocation2 + $0x150] sm:$0xff] %vm511, -inf
        %1096 = vst.msk [vmem:[#allocation2 + $0x158] sm:$0xff] %vm511, -inf
        %1097 = vst.msk [vmem:[#allocation2 + $0x160] sm:$0x3] %vm1054, -inf
        %1098 = vst.msk [vmem:[#allocation2 + $0x168] sm:$0xff] %vm511, -inf
        %1099 = vst.msk [vmem:[#allocation2 + $0x170] sm:$0xff] %vm511, -inf
        %1100 = vst.msk [vmem:[#allocation2 + $0x178] sm:$0x3] %vm1054, -inf
        %1101 = vst.msk [vmem:[#allocation2 + $0x180] sm:$0xff] %vm511, -inf
        %1102 = vst.msk [vmem:[#allocation2 + $0x188] sm:$0xff] %vm511, -inf
        %1103 = vst.msk [vmem:[#allocation2 + $0x190] sm:$0x3] %vm1054, -inf
        %1104 = vst.msk [vmem:[#allocation2 + $0x198] sm:$0xff] %vm511, -inf
        %1105 = vst.msk [vmem:[#allocation2 + $0x1a0] sm:$0xff] %vm511, -inf
        %1106 = vst.msk [vmem:[#allocation2 + $0x1a8] sm:$0x3] %vm1054, -inf
        %v1107 = vunpack.c.l.bf16 %v364
        %v1108 = vunpack.c.l.bf16 %v365
        %v1109 = vunpack.c.l.bf16 %v366
        %v1110 = vunpack.c.l.bf16 %v367
        %v1111 = vunpack.c.l.bf16 %v368
        %v1112 = vunpack.c.l.bf16 %v369
        %v1113 = vunpack.c.l.bf16 %v370
        %v1114 = vunpack.c.l.bf16 %v371
        %v1115 = vunpack.c.l.bf16 %v372
        %v1116 = vunpack.c.l.bf16 %v373
        %v1117 = vunpack.c.l.bf16 %v374
        %v1118 = vunpack.c.l.bf16 %v375
        %v1119 = vunpack.c.l.bf16 %v376
        %v1120 = vunpack.c.l.bf16 %v377
        %v1121 = vunpack.c.l.bf16 %v378
        %v1122 = vunpack.c.l.bf16 %v379
        %v1123 = vunpack.c.l.bf16 %v380
        %v1124 = vunpack.c.l.bf16 %v381
        %v1125 = vunpack.c.l.bf16 %v382
        %v1126 = vunpack.c.l.bf16 %v383
        %v1127 = vunpack.c.l.bf16 %v384
        %v1128 = vunpack.c.l.bf16 %v385
        %v1129 = vunpack.c.l.bf16 %v386
        %v1130 = vunpack.c.l.bf16 %v387
        %v1131 = vunpack.c.l.bf16 %v388
        %v1132 = vunpack.c.l.bf16 %v389
        %v1133 = vunpack.c.l.bf16 %v390
        %v1134 = vunpack.c.l.bf16 %v391
        %v1135 = vunpack.c.l.bf16 %v392
        %v1136 = vunpack.c.l.bf16 %v393
        %v1137 = vunpack.c.l.bf16 %v394
        %v1138 = vunpack.c.l.bf16 %v395
        %s1139 = scalar_lea.vmem [#allocation2], 24
        %1140 = vst.msk [vmem:[%s1139 + $0x1] sm:$0xff] %vm511, %v1107
        %1141 = vst.msk [vmem:[%s1139 + $0x9] sm:$0xff] %vm511, %v1108
        %1142 = vst.msk [vmem:[%s1139 + $0x19] sm:$0xff] %vm511, %v1109
        %1143 = vst.msk [vmem:[%s1139 + $0x21] sm:$0xff] %vm511, %v1110
        %1144 = vst.msk [vmem:[%s1139 + $0x31] sm:$0xff] %vm511, %v1111
        %1145 = vst.msk [vmem:[%s1139 + $0x39] sm:$0xff] %vm511, %v1112
        %1146 = vst.msk [vmem:[%s1139 + $0x49] sm:$0xff] %vm511, %v1113
        %1147 = vst.msk [vmem:[%s1139 + $0x51] sm:$0xff] %vm511, %v1114
        %1148 = vst.msk [vmem:[%s1139 + $0x61] sm:$0xff] %vm511, %v1115
        %1149 = vst.msk [vmem:[%s1139 + $0x69] sm:$0xff] %vm511, %v1116
        %1150 = vst.msk [vmem:[%s1139 + $0x79] sm:$0xff] %vm511, %v1117
        %1151 = vst.msk [vmem:[%s1139 + $0x81] sm:$0xff] %vm511, %v1118
        %1152 = vst.msk [vmem:[%s1139 + $0x91] sm:$0xff] %vm511, %v1119
        %1153 = vst.msk [vmem:[%s1139 + $0x99] sm:$0xff] %vm511, %v1120
        %1154 = vst.msk [vmem:[%s1139 + $0xa9] sm:$0xff] %vm511, %v1121
        %1155 = vst.msk [vmem:[%s1139 + $0xb1] sm:$0xff] %vm511, %v1122
        %1156 = vst.msk [vmem:[%s1139 + $0xc1] sm:$0xff] %vm511, %v1123
        %1157 = vst.msk [vmem:[%s1139 + $0xc9] sm:$0xff] %vm511, %v1124
        %1158 = vst.msk [vmem:[%s1139 + $0xd9] sm:$0xff] %vm511, %v1125
        %1159 = vst.msk [vmem:[%s1139 + $0xe1] sm:$0xff] %vm511, %v1126
        %1160 = vst.msk [vmem:[%s1139 + $0xf1] sm:$0xff] %vm511, %v1127
        %1161 = vst.msk [vmem:[%s1139 + $0xf9] sm:$0xff] %vm511, %v1128
        %1162 = vst.msk [vmem:[%s1139 + $0x109] sm:$0xff] %vm511, %v1129
        %1163 = vst.msk [vmem:[%s1139 + $0x111] sm:$0xff] %vm511, %v1130
        %1164 = vst.msk [vmem:[%s1139 + $0x121] sm:$0xff] %vm511, %v1131
        %1165 = vst.msk [vmem:[%s1139 + $0x129] sm:$0xff] %vm511, %v1132
        %1166 = vst.msk [vmem:[%s1139 + $0x139] sm:$0xff] %vm511, %v1133
        %1167 = vst.msk [vmem:[%s1139 + $0x141] sm:$0xff] %vm511, %v1134
        %1168 = vst.msk [vmem:[%s1139 + $0x151] sm:$0xff] %vm511, %v1135
        %1169 = vst.msk [vmem:[%s1139 + $0x159] sm:$0xff] %vm511, %v1136
        %1170 = vst.msk [vmem:[%s1139 + $0x169] sm:$0xff] %vm511, %v1137
        %1171 = vst.msk [vmem:[%s1139 + $0x171] sm:$0xff] %vm511, %v1138
        %v1172 = vld [vmem:[#allocation2] sm:$0xff]
        %v1173 = vld [vmem:[#allocation2 + $0x8] sm:$0xff]
        %v1174 = vld [vmem:[#allocation2 + $0x10] sm:$0x3]
        %v1175 = vld [vmem:[#allocation2 + $0x18] sm:$0xff]
        %v1176 = vld [vmem:[#allocation2 + $0x20] sm:$0xff]
        %v1177 = vld [vmem:[#allocation2 + $0x28] sm:$0x3]
        %v1178 = vld [vmem:[#allocation2 + $0x30] sm:$0xff]
        %v1179 = vld [vmem:[#allocation2 + $0x38] sm:$0xff]
        %v1180 = vld [vmem:[#allocation2 + $0x40] sm:$0x3]
        %v1181 = vld [vmem:[#allocation2 + $0x48] sm:$0xff]
        %v1182 = vld [vmem:[#allocation2 + $0x50] sm:$0xff]
        %v1183 = vld [vmem:[#allocation2 + $0x58] sm:$0x3]
        %v1184 = vld [vmem:[#allocation2 + $0x60] sm:$0xff]
        %v1185 = vld [vmem:[#allocation2 + $0x68] sm:$0xff]
        %v1186 = vld [vmem:[#allocation2 + $0x70] sm:$0x3]
        %v1187 = vld [vmem:[#allocation2 + $0x78] sm:$0xff]
        %v1188 = vld [vmem:[#allocation2 + $0x80] sm:$0xff]
        %v1189 = vld [vmem:[#allocation2 + $0x88] sm:$0x3]
        %v1190 = vld [vmem:[#allocation2 + $0x90] sm:$0xff]
        %v1191 = vld [vmem:[#allocation2 + $0x98] sm:$0xff]
        %v1192 = vld [vmem:[#allocation2 + $0xa0] sm:$0x3]
        %v1193 = vld [vmem:[#allocation2 + $0xa8] sm:$0xff]
        %v1194 = vld [vmem:[#allocation2 + $0xb0] sm:$0xff]
        %v1195 = vld [vmem:[#allocation2 + $0xb8] sm:$0x3]
        %v1196 = vld [vmem:[#allocation2 + $0xc0] sm:$0xff]
        %v1197 = vld [vmem:[#allocation2 + $0xc8] sm:$0xff]
        %v1198 = vld [vmem:[#allocation2 + $0xd0] sm:$0x3]
        %v1199 = vld [vmem:[#allocation2 + $0xd8] sm:$0xff]
        %v1200 = vld [vmem:[#allocation2 + $0xe0] sm:$0xff]
        %v1201 = vld [vmem:[#allocation2 + $0xe8] sm:$0x3]
        %v1202 = vld [vmem:[#allocation2 + $0xf0] sm:$0xff]
        %v1203 = vld [vmem:[#allocation2 + $0xf8] sm:$0xff]
        %v1204 = vld [vmem:[#allocation2 + $0x100] sm:$0x3]
        %v1205 = vld [vmem:[#allocation2 + $0x108] sm:$0xff]
        %v1206 = vld [vmem:[#allocation2 + $0x110] sm:$0xff]
        %v1207 = vld [vmem:[#allocation2 + $0x118] sm:$0x3]
        %v1208 = vld [vmem:[#allocation2 + $0x120] sm:$0xff]
        %v1209 = vld [vmem:[#allocation2 + $0x128] sm:$0xff]
        %v1210 = vld [vmem:[#allocation2 + $0x130] sm:$0x3]
        %v1211 = vld [vmem:[#allocation2 + $0x138] sm:$0xff]
        %v1212 = vld [vmem:[#allocation2 + $0x140] sm:$0xff]
        %v1213 = vld [vmem:[#allocation2 + $0x148] sm:$0x3]
        %v1214 = vld [vmem:[#allocation2 + $0x150] sm:$0xff]
        %v1215 = vld [vmem:[#allocation2 + $0x158] sm:$0xff]
        %v1216 = vld [vmem:[#allocation2 + $0x160] sm:$0x3]
        %v1217 = vld [vmem:[#allocation2 + $0x168] sm:$0xff]
        %v1218 = vld [vmem:[#allocation2 + $0x170] sm:$0xff]
        %v1219 = vld [vmem:[#allocation2 + $0x178] sm:$0x3]
        %v1220 = vld [vmem:[#allocation2 + $0x180] sm:$0xff]
        %v1221 = vld [vmem:[#allocation2 + $0x188] sm:$0xff]
        %v1222 = vld [vmem:[#allocation2 + $0x190] sm:$0x3]
        %v1223 = vld [vmem:[#allocation2 + $0x198] sm:$0xff]
        %v1224 = vld [vmem:[#allocation2 + $0x1a0] sm:$0xff]
        %v1225 = vld [vmem:[#allocation2 + $0x1a8] sm:$0x3]
        %vm1274 = vcmask 1046528
        %v1275 = vrot.slane %v1172, 1
        %v1276 = vrot.slane %v1173, 1
        %v1277 = vsel %vm1274, %v1275, %v1276
        %v1278 = vrot.slane %v1174, 1
        %v1279 = vsel %vm1274, %v1276, %v1278
        %v1280 = vrot.slane %v1175, 1
        %v1281 = vrot.slane %v1176, 1
        %v1282 = vsel %vm1274, %v1280, %v1281
        %v1283 = vrot.slane %v1177, 1
        %v1284 = vsel %vm1274, %v1281, %v1283
        %v1285 = vrot.slane %v1178, 1
        %v1286 = vrot.slane %v1179, 1
        %v1287 = vsel %vm1274, %v1285, %v1286
        %v1288 = vrot.slane %v1180, 1
        %v1289 = vsel %vm1274, %v1286, %v1288
        %v1290 = vrot.slane %v1181, 1
        %v1291 = vrot.slane %v1182, 1
        %v1292 = vsel %vm1274, %v1290, %v1291
        %v1293 = vrot.slane %v1183, 1
        %v1294 = vsel %vm1274, %v1291, %v1293
        %v1295 = vrot.slane %v1184, 1
        %v1296 = vrot.slane %v1185, 1
        %v1297 = vsel %vm1274, %v1295, %v1296
        %v1298 = vrot.slane %v1186, 1
        %v1299 = vsel %vm1274, %v1296, %v1298
        %v1300 = vrot.slane %v1187, 1
        %v1301 = vrot.slane %v1188, 1
        %v1302 = vsel %vm1274, %v1300, %v1301
        %v1303 = vrot.slane %v1189, 1
        %v1304 = vsel %vm1274, %v1301, %v1303
        %v1305 = vrot.slane %v1190, 1
        %v1306 = vrot.slane %v1191, 1
        %v1307 = vsel %vm1274, %v1305, %v1306
        %v1308 = vrot.slane %v1192, 1
        %v1309 = vsel %vm1274, %v1306, %v1308
        %v1310 = vrot.slane %v1193, 1
        %v1311 = vrot.slane %v1194, 1
        %v1312 = vsel %vm1274, %v1310, %v1311
        %v1313 = vrot.slane %v1195, 1
        %v1314 = vsel %vm1274, %v1311, %v1313
        %v1315 = vrot.slane %v1196, 1
        %v1316 = vrot.slane %v1197, 1
        %v1317 = vsel %vm1274, %v1315, %v1316
        %v1318 = vrot.slane %v1198, 1
        %v1319 = vsel %vm1274, %v1316, %v1318
        %v1320 = vrot.slane %v1199, 1
        %v1321 = vrot.slane %v1200, 1
        %v1322 = vsel %vm1274, %v1320, %v1321
        %v1323 = vrot.slane %v1201, 1
        %v1324 = vsel %vm1274, %v1321, %v1323
        %v1325 = vrot.slane %v1202, 1
        %v1326 = vrot.slane %v1203, 1
        %v1327 = vsel %vm1274, %v1325, %v1326
        %v1328 = vrot.slane %v1204, 1
        %v1329 = vsel %vm1274, %v1326, %v1328
        %v1330 = vrot.slane %v1205, 1
        %v1331 = vrot.slane %v1206, 1
        %v1332 = vsel %vm1274, %v1330, %v1331
        %v1333 = vrot.slane %v1207, 1
        %v1334 = vsel %vm1274, %v1331, %v1333
        %v1335 = vrot.slane %v1208, 1
        %v1336 = vrot.slane %v1209, 1
        %v1337 = vsel %vm1274, %v1335, %v1336
        %v1338 = vrot.slane %v1210, 1
        %v1339 = vsel %vm1274, %v1336, %v1338
        %v1340 = vrot.slane %v1211, 1
        %v1341 = vrot.slane %v1212, 1
        %v1342 = vsel %vm1274, %v1340, %v1341
        %v1343 = vrot.slane %v1213, 1
        %v1344 = vsel %vm1274, %v1341, %v1343
        %v1345 = vrot.slane %v1214, 1
        %v1346 = vrot.slane %v1215, 1
        %v1347 = vsel %vm1274, %v1345, %v1346
        %v1348 = vrot.slane %v1216, 1
        %v1349 = vsel %vm1274, %v1346, %v1348
        %v1350 = vrot.slane %v1217, 1
        %v1351 = vrot.slane %v1218, 1
        %v1352 = vsel %vm1274, %v1350, %v1351
        %v1353 = vrot.slane %v1219, 1
        %v1354 = vsel %vm1274, %v1351, %v1353
        %v1387 = vmax.f32 %v1172, %v1277
        %v1388 = vmax.f32 %v1173, %v1279
        %v1389 = vmax.f32 %v1175, %v1282
        %v1390 = vmax.f32 %v1176, %v1284
        %v1391 = vmax.f32 %v1178, %v1287
        %v1392 = vmax.f32 %v1179, %v1289
        %v1393 = vmax.f32 %v1181, %v1292
        %v1394 = vmax.f32 %v1182, %v1294
        %v1395 = vmax.f32 %v1184, %v1297
        %v1396 = vmax.f32 %v1185, %v1299
        %v1397 = vmax.f32 %v1187, %v1302
        %v1398 = vmax.f32 %v1188, %v1304
        %v1399 = vmax.f32 %v1190, %v1307
        %v1400 = vmax.f32 %v1191, %v1309
        %v1401 = vmax.f32 %v1193, %v1312
        %v1402 = vmax.f32 %v1194, %v1314
        %v1403 = vmax.f32 %v1196, %v1317
        %v1404 = vmax.f32 %v1197, %v1319
        %v1405 = vmax.f32 %v1199, %v1322
        %v1406 = vmax.f32 %v1200, %v1324
        %v1407 = vmax.f32 %v1202, %v1327
        %v1408 = vmax.f32 %v1203, %v1329
        %v1409 = vmax.f32 %v1205, %v1332
        %v1410 = vmax.f32 %v1206, %v1334
        %v1411 = vmax.f32 %v1208, %v1337
        %v1412 = vmax.f32 %v1209, %v1339
        %v1413 = vmax.f32 %v1211, %v1342
        %v1414 = vmax.f32 %v1212, %v1344
        %v1415 = vmax.f32 %v1214, %v1347
        %v1416 = vmax.f32 %v1215, %v1349
        %v1417 = vmax.f32 %v1217, %v1352
        %v1418 = vmax.f32 %v1218, %v1354
        %v1421 = vrot.slane %v1175, 6
        %v1422 = vrot.slane %v1176, 6
        %v1423 = vsel %vm560, %v1421, %v1422
        %v1424 = vrot.slane %v1178, 6
        %v1425 = vrot.slane %v1179, 6
        %v1426 = vsel %vm560, %v1424, %v1425
        %v1427 = vrot.slane %v1181, 6
        %v1428 = vrot.slane %v1182, 6
        %v1429 = vsel %vm560, %v1427, %v1428
        %v1430 = vrot.slane %v1184, 6
        %v1431 = vrot.slane %v1185, 6
        %v1432 = vsel %vm560, %v1430, %v1431
        %v1433 = vrot.slane %v1187, 6
        %v1434 = vrot.slane %v1188, 6
        %v1435 = vsel %vm560, %v1433, %v1434
        %v1436 = vrot.slane %v1190, 6
        %v1437 = vrot.slane %v1191, 6
        %v1438 = vsel %vm560, %v1436, %v1437
        %v1439 = vrot.slane %v1193, 6
        %v1440 = vrot.slane %v1194, 6
        %v1441 = vsel %vm560, %v1439, %v1440
        %v1442 = vrot.slane %v1196, 6
        %v1443 = vrot.slane %v1197, 6
        %v1444 = vsel %vm560, %v1442, %v1443
        %v1445 = vrot.slane %v1199, 6
        %v1446 = vrot.slane %v1200, 6
        %v1447 = vsel %vm560, %v1445, %v1446
        %v1448 = vrot.slane %v1202, 6
        %v1449 = vrot.slane %v1203, 6
        %v1450 = vsel %vm560, %v1448, %v1449
        %v1451 = vrot.slane %v1205, 6
        %v1452 = vrot.slane %v1206, 6
        %v1453 = vsel %vm560, %v1451, %v1452
        %v1454 = vrot.slane %v1208, 6
        %v1455 = vrot.slane %v1209, 6
        %v1456 = vsel %vm560, %v1454, %v1455
        %v1457 = vrot.slane %v1211, 6
        %v1458 = vrot.slane %v1212, 6
        %v1459 = vsel %vm560, %v1457, %v1458
        %v1460 = vrot.slane %v1214, 6
        %v1461 = vrot.slane %v1215, 6
        %v1462 = vsel %vm560, %v1460, %v1461
        %v1463 = vrot.slane %v1217, 6
        %v1464 = vrot.slane %v1218, 6
        %v1465 = vsel %vm560, %v1463, %v1464
        %v1466 = vrot.slane %v1220, 6
        %v1467 = vrot.slane %v1221, 6
        %v1468 = vsel %vm560, %v1466, %v1467
        %v1517 = vmax.f32 %v1172, %v1421
        %v1518 = vmax.f32 %v1173, %v1423
        %v1519 = vmax.f32 %v1174, %v1422
        %v1520 = vmax.f32 %v1175, %v1424
        %v1521 = vmax.f32 %v1176, %v1426
        %v1522 = vmax.f32 %v1177, %v1425
        %v1523 = vmax.f32 %v1178, %v1427
        %v1524 = vmax.f32 %v1179, %v1429
        %v1525 = vmax.f32 %v1180, %v1428
        %v1526 = vmax.f32 %v1181, %v1430
        %v1527 = vmax.f32 %v1182, %v1432
        %v1528 = vmax.f32 %v1183, %v1431
        %v1529 = vmax.f32 %v1184, %v1433
        %v1530 = vmax.f32 %v1185, %v1435
        %v1531 = vmax.f32 %v1186, %v1434
        %v1532 = vmax.f32 %v1187, %v1436
        %v1533 = vmax.f32 %v1188, %v1438
        %v1534 = vmax.f32 %v1189, %v1437
        %v1535 = vmax.f32 %v1190, %v1439
        %v1536 = vmax.f32 %v1191, %v1441
        %v1537 = vmax.f32 %v1192, %v1440
        %v1538 = vmax.f32 %v1193, %v1442
        %v1539 = vmax.f32 %v1194, %v1444
        %v1540 = vmax.f32 %v1195, %v1443
        %v1541 = vmax.f32 %v1196, %v1445
        %v1542 = vmax.f32 %v1197, %v1447
        %v1543 = vmax.f32 %v1198, %v1446
        %v1544 = vmax.f32 %v1199, %v1448
        %v1545 = vmax.f32 %v1200, %v1450
        %v1546 = vmax.f32 %v1201, %v1449
        %v1547 = vmax.f32 %v1202, %v1451
        %v1548 = vmax.f32 %v1203, %v1453
        %v1549 = vmax.f32 %v1204, %v1452
        %v1550 = vmax.f32 %v1205, %v1454
        %v1551 = vmax.f32 %v1206, %v1456
        %v1552 = vmax.f32 %v1207, %v1455
        %v1553 = vmax.f32 %v1208, %v1457
        %v1554 = vmax.f32 %v1209, %v1459
        %v1555 = vmax.f32 %v1210, %v1458
        %v1556 = vmax.f32 %v1211, %v1460
        %v1557 = vmax.f32 %v1212, %v1462
        %v1558 = vmax.f32 %v1213, %v1461
        %v1559 = vmax.f32 %v1214, %v1463
        %v1560 = vmax.f32 %v1215, %v1465
        %v1561 = vmax.f32 %v1216, %v1464
        %v1562 = vmax.f32 %v1217, %v1466
        %v1563 = vmax.f32 %v1218, %v1468
        %v1564 = vmax.f32 %v1219, %v1467
        %v1566 = vrot.slane %v1220, 1
        %v1567 = vrot.slane %v1221, 1
        %v1568 = vsel %vm1274, %v1566, %v1567
        %v1569 = vrot.slane %v1222, 1
        %v1570 = vsel %vm1274, %v1567, %v1569
        %v1589 = vmax.f32 %v1177, %v1283
        %v1590 = vmax.f32 %v1180, %v1288
        %v1591 = vmax.f32 %v1183, %v1293
        %v1592 = vmax.f32 %v1186, %v1298
        %v1593 = vmax.f32 %v1189, %v1303
        %v1594 = vmax.f32 %v1192, %v1308
        %v1595 = vmax.f32 %v1195, %v1313
        %v1596 = vmax.f32 %v1198, %v1318
        %v1597 = vmax.f32 %v1201, %v1323
        %v1598 = vmax.f32 %v1204, %v1328
        %v1599 = vmax.f32 %v1207, %v1333
        %v1600 = vmax.f32 %v1210, %v1338
        %v1601 = vmax.f32 %v1213, %v1343
        %v1602 = vmax.f32 %v1216, %v1348
        %v1603 = vmax.f32 %v1219, %v1353
        %v1604 = vmax.f32 %v1220, %v1568
        %v1605 = vmax.f32 %v1221, %v1570
        %v1606 = vmax.f32 %v1222, %v1569
        %v1610 = vrot.slane %v1223, 1
        %v1611 = vrot.slane %v1224, 1
        %v1612 = vsel %vm1274, %v1610, %v1611
        %v1613 = vrot.slane %v1225, 1
        %v1614 = vsel %vm1274, %v1611, %v1613
        %v1617 = vmax.f32 %v1223, %v1612
        %v1618 = vmax.f32 %v1224, %v1614
        %vm1667 = vcmask 1045504
        %v1668 = vrot.slane %v1517, 2
        %v1669 = vrot.slane %v1518, 2
        %v1670 = vsel %vm1667, %v1668, %v1669
        %v1671 = vrot.slane %v1519, 2
        %v1672 = vsel %vm1667, %v1669, %v1671
        %v1673 = vrot.slane %v1520, 2
        %v1674 = vrot.slane %v1521, 2
        %v1675 = vsel %vm1667, %v1673, %v1674
        %v1676 = vrot.slane %v1522, 2
        %v1677 = vsel %vm1667, %v1674, %v1676
        %v1678 = vrot.slane %v1523, 2
        %v1679 = vrot.slane %v1524, 2
        %v1680 = vsel %vm1667, %v1678, %v1679
        %v1681 = vrot.slane %v1525, 2
        %v1682 = vsel %vm1667, %v1679, %v1681
        %v1683 = vrot.slane %v1526, 2
        %v1684 = vrot.slane %v1527, 2
        %v1685 = vsel %vm1667, %v1683, %v1684
        %v1686 = vrot.slane %v1528, 2
        %v1687 = vsel %vm1667, %v1684, %v1686
        %v1688 = vrot.slane %v1529, 2
        %v1689 = vrot.slane %v1530, 2
        %v1690 = vsel %vm1667, %v1688, %v1689
        %v1691 = vrot.slane %v1531, 2
        %v1692 = vsel %vm1667, %v1689, %v1691
        %v1693 = vrot.slane %v1532, 2
        %v1694 = vrot.slane %v1533, 2
        %v1695 = vsel %vm1667, %v1693, %v1694
        %v1696 = vrot.slane %v1534, 2
        %v1697 = vsel %vm1667, %v1694, %v1696
        %v1698 = vrot.slane %v1535, 2
        %v1699 = vrot.slane %v1536, 2
        %v1700 = vsel %vm1667, %v1698, %v1699
        %v1701 = vrot.slane %v1537, 2
        %v1702 = vsel %vm1667, %v1699, %v1701
        %v1703 = vrot.slane %v1538, 2
        %v1704 = vrot.slane %v1539, 2
        %v1705 = vsel %vm1667, %v1703, %v1704
        %v1706 = vrot.slane %v1540, 2
        %v1707 = vsel %vm1667, %v1704, %v1706
        %v1708 = vrot.slane %v1541, 2
        %v1709 = vrot.slane %v1542, 2
        %v1710 = vsel %vm1667, %v1708, %v1709
        %v1711 = vrot.slane %v1543, 2
        %v1712 = vsel %vm1667, %v1709, %v1711
        %v1713 = vrot.slane %v1544, 2
        %v1714 = vrot.slane %v1545, 2
        %v1715 = vsel %vm1667, %v1713, %v1714
        %v1716 = vrot.slane %v1546, 2
        %v1717 = vsel %vm1667, %v1714, %v1716
        %v1718 = vrot.slane %v1547, 2
        %v1719 = vrot.slane %v1548, 2
        %v1720 = vsel %vm1667, %v1718, %v1719
        %v1721 = vrot.slane %v1549, 2
        %v1722 = vsel %vm1667, %v1719, %v1721
        %v1723 = vrot.slane %v1550, 2
        %v1724 = vrot.slane %v1551, 2
        %v1725 = vsel %vm1667, %v1723, %v1724
        %v1726 = vrot.slane %v1552, 2
        %v1727 = vsel %vm1667, %v1724, %v1726
        %v1728 = vrot.slane %v1553, 2
        %v1729 = vrot.slane %v1554, 2
        %v1730 = vsel %vm1667, %v1728, %v1729
        %v1731 = vrot.slane %v1555, 2
        %v1732 = vsel %vm1667, %v1729, %v1731
        %v1733 = vrot.slane %v1556, 2
        %v1734 = vrot.slane %v1557, 2
        %v1735 = vsel %vm1667, %v1733, %v1734
        %v1736 = vrot.slane %v1558, 2
        %v1737 = vsel %vm1667, %v1734, %v1736
        %v1738 = vrot.slane %v1559, 2
        %v1739 = vrot.slane %v1560, 2
        %v1740 = vsel %vm1667, %v1738, %v1739
        %v1741 = vrot.slane %v1561, 2
        %v1742 = vsel %vm1667, %v1739, %v1741
        %v1743 = vrot.slane %v1562, 2
        %v1744 = vrot.slane %v1563, 2
        %v1745 = vsel %vm1667, %v1743, %v1744
        %v1746 = vrot.slane %v1564, 2
        %v1747 = vsel %vm1667, %v1744, %v1746
        %v1780 = vmax.f32 %v1387, %v1670
        %v1781 = vmax.f32 %v1388, %v1672
        %v1782 = vmax.f32 %v1389, %v1675
        %v1783 = vmax.f32 %v1390, %v1677
        %v1784 = vmax.f32 %v1391, %v1680
        %v1785 = vmax.f32 %v1392, %v1682
        %v1786 = vmax.f32 %v1393, %v1685
        %v1787 = vmax.f32 %v1394, %v1687
        %v1788 = vmax.f32 %v1395, %v1690
        %v1789 = vmax.f32 %v1396, %v1692
        %v1790 = vmax.f32 %v1397, %v1695
        %v1791 = vmax.f32 %v1398, %v1697
        %v1792 = vmax.f32 %v1399, %v1700
        %v1793 = vmax.f32 %v1400, %v1702
        %v1794 = vmax.f32 %v1401, %v1705
        %v1795 = vmax.f32 %v1402, %v1707
        %v1796 = vmax.f32 %v1403, %v1710
        %v1797 = vmax.f32 %v1404, %v1712
        %v1798 = vmax.f32 %v1405, %v1715
        %v1799 = vmax.f32 %v1406, %v1717
        %v1800 = vmax.f32 %v1407, %v1720
        %v1801 = vmax.f32 %v1408, %v1722
        %v1802 = vmax.f32 %v1409, %v1725
        %v1803 = vmax.f32 %v1410, %v1727
        %v1804 = vmax.f32 %v1411, %v1730
        %v1805 = vmax.f32 %v1412, %v1732
        %v1806 = vmax.f32 %v1413, %v1735
        %v1807 = vmax.f32 %v1414, %v1737
        %v1808 = vmax.f32 %v1415, %v1740
        %v1809 = vmax.f32 %v1416, %v1742
        %v1810 = vmax.f32 %v1417, %v1745
        %v1811 = vmax.f32 %v1418, %v1747
        %vm1844 = vcmask 1040384
        %v1845 = vrot.slane %v1391, 7
        %v1846 = vrot.slane %v1392, 7
        %v1847 = vsel %vm1844, %v1845, %v1846
        %v1848 = vrot.slane %v1393, 7
        %v1849 = vrot.slane %v1394, 7
        %v1850 = vsel %vm1844, %v1848, %v1849
        %v1851 = vrot.slane %v1395, 7
        %v1852 = vrot.slane %v1396, 7
        %v1853 = vsel %vm1844, %v1851, %v1852
        %v1854 = vrot.slane %v1397, 7
        %v1855 = vrot.slane %v1398, 7
        %v1856 = vsel %vm1844, %v1854, %v1855
        %v1857 = vrot.slane %v1399, 7
        %v1858 = vrot.slane %v1400, 7
        %v1859 = vsel %vm1844, %v1857, %v1858
        %v1860 = vrot.slane %v1401, 7
        %v1861 = vrot.slane %v1402, 7
        %v1862 = vsel %vm1844, %v1860, %v1861
        %v1863 = vrot.slane %v1403, 7
        %v1864 = vrot.slane %v1404, 7
        %v1865 = vsel %vm1844, %v1863, %v1864
        %v1866 = vrot.slane %v1405, 7
        %v1867 = vrot.slane %v1406, 7
        %v1868 = vsel %vm1844, %v1866, %v1867
        %v1869 = vrot.slane %v1407, 7
        %v1870 = vrot.slane %v1408, 7
        %v1871 = vsel %vm1844, %v1869, %v1870
        %v1872 = vrot.slane %v1409, 7
        %v1873 = vrot.slane %v1410, 7
        %v1874 = vsel %vm1844, %v1872, %v1873
        %v1875 = vrot.slane %v1411, 7
        %v1876 = vrot.slane %v1412, 7
        %v1877 = vsel %vm1844, %v1875, %v1876
        %v1878 = vrot.slane %v1413, 7
        %v1879 = vrot.slane %v1414, 7
        %v1880 = vsel %vm1844, %v1878, %v1879
        %v1881 = vrot.slane %v1415, 7
        %v1882 = vrot.slane %v1416, 7
        %v1883 = vsel %vm1844, %v1881, %v1882
        %v1884 = vrot.slane %v1417, 7
        %v1885 = vrot.slane %v1418, 7
        %v1886 = vsel %vm1844, %v1884, %v1885
        %v1887 = vrot.slane %v1604, 7
        %v1888 = vrot.slane %v1605, 7
        %v1889 = vsel %vm1844, %v1887, %v1888
        %v1890 = vrot.slane %v1617, 7
        %v1891 = vrot.slane %v1618, 7
        %v1892 = vsel %vm1844, %v1890, %v1891
        %v1941 = vmax.f32 %v1389, %v1845
        %v1942 = vmax.f32 %v1390, %v1847
        %v1943 = vmax.f32 %v1589, %v1846
        %v1944 = vmax.f32 %v1391, %v1848
        %v1945 = vmax.f32 %v1392, %v1850
        %v1946 = vmax.f32 %v1590, %v1849
        %v1947 = vmax.f32 %v1393, %v1851
        %v1948 = vmax.f32 %v1394, %v1853
        %v1949 = vmax.f32 %v1591, %v1852
        %v1950 = vmax.f32 %v1395, %v1854
        %v1951 = vmax.f32 %v1396, %v1856
        %v1952 = vmax.f32 %v1592, %v1855
        %v1953 = vmax.f32 %v1397, %v1857
        %v1954 = vmax.f32 %v1398, %v1859
        %v1955 = vmax.f32 %v1593, %v1858
        %v1956 = vmax.f32 %v1399, %v1860
        %v1957 = vmax.f32 %v1400, %v1862
        %v1958 = vmax.f32 %v1594, %v1861
        %v1959 = vmax.f32 %v1401, %v1863
        %v1960 = vmax.f32 %v1402, %v1865
        %v1961 = vmax.f32 %v1595, %v1864
        %v1962 = vmax.f32 %v1403, %v1866
        %v1963 = vmax.f32 %v1404, %v1868
        %v1964 = vmax.f32 %v1596, %v1867
        %v1965 = vmax.f32 %v1405, %v1869
        %v1966 = vmax.f32 %v1406, %v1871
        %v1967 = vmax.f32 %v1597, %v1870
        %v1968 = vmax.f32 %v1407, %v1872
        %v1969 = vmax.f32 %v1408, %v1874
        %v1970 = vmax.f32 %v1598, %v1873
        %v1971 = vmax.f32 %v1409, %v1875
        %v1972 = vmax.f32 %v1410, %v1877
        %v1973 = vmax.f32 %v1599, %v1876
        %v1974 = vmax.f32 %v1411, %v1878
        %v1975 = vmax.f32 %v1412, %v1880
        %v1976 = vmax.f32 %v1600, %v1879
        %v1977 = vmax.f32 %v1413, %v1881
        %v1978 = vmax.f32 %v1414, %v1883
        %v1979 = vmax.f32 %v1601, %v1882
        %v1980 = vmax.f32 %v1415, %v1884
        %v1981 = vmax.f32 %v1416, %v1886
        %v1982 = vmax.f32 %v1602, %v1885
        %v1983 = vmax.f32 %v1417, %v1887
        %v1984 = vmax.f32 %v1418, %v1889
        %v1985 = vmax.f32 %v1603, %v1888
        %v1986 = vmax.f32 %v1604, %v1890
        %v1987 = vmax.f32 %v1605, %v1892
        %v1988 = vmax.f32 %v1606, %v1891
        %v2037 = vrot.slane %v1941, 1
        %v2038 = vrot.slane %v1942, 1
        %v2039 = vsel %vm1274, %v2037, %v2038
        %v2040 = vrot.slane %v1943, 1
        %v2041 = vsel %vm1274, %v2038, %v2040
        %v2042 = vrot.slane %v1944, 1
        %v2043 = vrot.slane %v1945, 1
        %v2044 = vsel %vm1274, %v2042, %v2043
        %v2045 = vrot.slane %v1946, 1
        %v2046 = vsel %vm1274, %v2043, %v2045
        %v2047 = vrot.slane %v1947, 1
        %v2048 = vrot.slane %v1948, 1
        %v2049 = vsel %vm1274, %v2047, %v2048
        %v2050 = vrot.slane %v1949, 1
        %v2051 = vsel %vm1274, %v2048, %v2050
        %v2052 = vrot.slane %v1950, 1
        %v2053 = vrot.slane %v1951, 1
        %v2054 = vsel %vm1274, %v2052, %v2053
        %v2055 = vrot.slane %v1952, 1
        %v2056 = vsel %vm1274, %v2053, %v2055
        %v2057 = vrot.slane %v1953, 1
        %v2058 = vrot.slane %v1954, 1
        %v2059 = vsel %vm1274, %v2057, %v2058
        %v2060 = vrot.slane %v1955, 1
        %v2061 = vsel %vm1274, %v2058, %v2060
        %v2062 = vrot.slane %v1956, 1
        %v2063 = vrot.slane %v1957, 1
        %v2064 = vsel %vm1274, %v2062, %v2063
        %v2065 = vrot.slane %v1958, 1
        %v2066 = vsel %vm1274, %v2063, %v2065
        %v2067 = vrot.slane %v1959, 1
        %v2068 = vrot.slane %v1960, 1
        %v2069 = vsel %vm1274, %v2067, %v2068
        %v2070 = vrot.slane %v1961, 1
        %v2071 = vsel %vm1274, %v2068, %v2070
        %v2072 = vrot.slane %v1962, 1
        %v2073 = vrot.slane %v1963, 1
        %v2074 = vsel %vm1274, %v2072, %v2073
        %v2075 = vrot.slane %v1964, 1
        %v2076 = vsel %vm1274, %v2073, %v2075
        %v2077 = vrot.slane %v1965, 1
        %v2078 = vrot.slane %v1966, 1
        %v2079 = vsel %vm1274, %v2077, %v2078
        %v2080 = vrot.slane %v1967, 1
        %v2081 = vsel %vm1274, %v2078, %v2080
        %v2082 = vrot.slane %v1968, 1
        %v2083 = vrot.slane %v1969, 1
        %v2084 = vsel %vm1274, %v2082, %v2083
        %v2085 = vrot.slane %v1970, 1
        %v2086 = vsel %vm1274, %v2083, %v2085
        %v2087 = vrot.slane %v1971, 1
        %v2088 = vrot.slane %v1972, 1
        %v2089 = vsel %vm1274, %v2087, %v2088
        %v2090 = vrot.slane %v1973, 1
        %v2091 = vsel %vm1274, %v2088, %v2090
        %v2092 = vrot.slane %v1974, 1
        %v2093 = vrot.slane %v1975, 1
        %v2094 = vsel %vm1274, %v2092, %v2093
        %v2095 = vrot.slane %v1976, 1
        %v2096 = vsel %vm1274, %v2093, %v2095
        %v2097 = vrot.slane %v1977, 1
        %v2098 = vrot.slane %v1978, 1
        %v2099 = vsel %vm1274, %v2097, %v2098
        %v2100 = vrot.slane %v1979, 1
        %v2101 = vsel %vm1274, %v2098, %v2100
        %v2102 = vrot.slane %v1980, 1
        %v2103 = vrot.slane %v1981, 1
        %v2104 = vsel %vm1274, %v2102, %v2103
        %v2105 = vrot.slane %v1982, 1
        %v2106 = vsel %vm1274, %v2103, %v2105
        %v2107 = vrot.slane %v1983, 1
        %v2108 = vrot.slane %v1984, 1
        %v2109 = vsel %vm1274, %v2107, %v2108
        %v2110 = vrot.slane %v1985, 1
        %v2111 = vsel %vm1274, %v2108, %v2110
        %v2112 = vrot.slane %v1986, 1
        %v2113 = vrot.slane %v1987, 1
        %v2114 = vsel %vm1274, %v2112, %v2113
        %v2115 = vrot.slane %v1988, 1
        %v2116 = vsel %vm1274, %v2113, %v2115
        %v2149 = vmax.f32 %v1780, %v2039
        %v2150 = vmax.f32 %v1781, %v2041
        %v2151 = vmax.f32 %v1782, %v2044
        %v2152 = vmax.f32 %v1783, %v2046
        %v2153 = vmax.f32 %v1784, %v2049
        %v2154 = vmax.f32 %v1785, %v2051
        %v2155 = vmax.f32 %v1786, %v2054
        %v2156 = vmax.f32 %v1787, %v2056
        %v2157 = vmax.f32 %v1788, %v2059
        %v2158 = vmax.f32 %v1789, %v2061
        %v2159 = vmax.f32 %v1790, %v2064
        %v2160 = vmax.f32 %v1791, %v2066
        %v2161 = vmax.f32 %v1792, %v2069
        %v2162 = vmax.f32 %v1793, %v2071
        %v2163 = vmax.f32 %v1794, %v2074
        %v2164 = vmax.f32 %v1795, %v2076
        %v2165 = vmax.f32 %v1796, %v2079
        %v2166 = vmax.f32 %v1797, %v2081
        %v2167 = vmax.f32 %v1798, %v2084
        %v2168 = vmax.f32 %v1799, %v2086
        %v2169 = vmax.f32 %v1800, %v2089
        %v2170 = vmax.f32 %v1801, %v2091
        %v2171 = vmax.f32 %v1802, %v2094
        %v2172 = vmax.f32 %v1803, %v2096
        %v2173 = vmax.f32 %v1804, %v2099
        %v2174 = vmax.f32 %v1805, %v2101
        %v2175 = vmax.f32 %v1806, %v2104
        %v2176 = vmax.f32 %v1807, %v2106
        %v2177 = vmax.f32 %v1808, %v2109
        %v2178 = vmax.f32 %v1809, %v2111
        %v2179 = vmax.f32 %v1810, %v2114
        %v2180 = vmax.f32 %v1811, %v2116
        %v2181 = vrot.slane %v1178, 2
        %v2182 = vrot.slane %v1179, 2
        %v2183 = vsel %vm1667, %v2181, %v2182
        %v2184 = vrot.slane %v1180, 2
        %v2185 = vsel %vm1667, %v2182, %v2184
        %v2186 = vrot.slane %v1181, 2
        %v2187 = vrot.slane %v1182, 2
        %v2188 = vsel %vm1667, %v2186, %v2187
        %v2189 = vrot.slane %v1183, 2
        %v2190 = vsel %vm1667, %v2187, %v2189
        %v2191 = vrot.slane %v1184, 2
        %v2192 = vrot.slane %v1185, 2
        %v2193 = vsel %vm1667, %v2191, %v2192
        %v2194 = vrot.slane %v1186, 2
        %v2195 = vsel %vm1667, %v2192, %v2194
        %v2196 = vrot.slane %v1187, 2
        %v2197 = vrot.slane %v1188, 2
        %v2198 = vsel %vm1667, %v2196, %v2197
        %v2199 = vrot.slane %v1189, 2
        %v2200 = vsel %vm1667, %v2197, %v2199
        %v2201 = vrot.slane %v1190, 2
        %v2202 = vrot.slane %v1191, 2
        %v2203 = vsel %vm1667, %v2201, %v2202
        %v2204 = vrot.slane %v1192, 2
        %v2205 = vsel %vm1667, %v2202, %v2204
        %v2206 = vrot.slane %v1193, 2
        %v2207 = vrot.slane %v1194, 2
        %v2208 = vsel %vm1667, %v2206, %v2207
        %v2209 = vrot.slane %v1195, 2
        %v2210 = vsel %vm1667, %v2207, %v2209
        %v2211 = vrot.slane %v1196, 2
        %v2212 = vrot.slane %v1197, 2
        %v2213 = vsel %vm1667, %v2211, %v2212
        %v2214 = vrot.slane %v1198, 2
        %v2215 = vsel %vm1667, %v2212, %v2214
        %v2216 = vrot.slane %v1199, 2
        %v2217 = vrot.slane %v1200, 2
        %v2218 = vsel %vm1667, %v2216, %v2217
        %v2219 = vrot.slane %v1201, 2
        %v2220 = vsel %vm1667, %v2217, %v2219
        %v2221 = vrot.slane %v1202, 2
        %v2222 = vrot.slane %v1203, 2
        %v2223 = vsel %vm1667, %v2221, %v2222
        %v2224 = vrot.slane %v1204, 2
        %v2225 = vsel %vm1667, %v2222, %v2224
        %v2226 = vrot.slane %v1205, 2
        %v2227 = vrot.slane %v1206, 2
        %v2228 = vsel %vm1667, %v2226, %v2227
        %v2229 = vrot.slane %v1207, 2
        %v2230 = vsel %vm1667, %v2227, %v2229
        %v2231 = vrot.slane %v1208, 2
        %v2232 = vrot.slane %v1209, 2
        %v2233 = vsel %vm1667, %v2231, %v2232
        %v2234 = vrot.slane %v1210, 2
        %v2235 = vsel %vm1667, %v2232, %v2234
        %v2236 = vrot.slane %v1211, 2
        %v2237 = vrot.slane %v1212, 2
        %v2238 = vsel %vm1667, %v2236, %v2237
        %v2239 = vrot.slane %v1213, 2
        %v2240 = vsel %vm1667, %v2237, %v2239
        %v2241 = vrot.slane %v1214, 2
        %v2242 = vrot.slane %v1215, 2
        %v2243 = vsel %vm1667, %v2241, %v2242
        %v2244 = vrot.slane %v1216, 2
        %v2245 = vsel %vm1667, %v2242, %v2244
        %v2246 = vrot.slane %v1217, 2
        %v2247 = vrot.slane %v1218, 2
        %v2248 = vsel %vm1667, %v2246, %v2247
        %v2249 = vrot.slane %v1219, 2
        %v2250 = vsel %vm1667, %v2247, %v2249
        %v2251 = vrot.slane %v1220, 2
        %v2252 = vrot.slane %v1221, 2
        %v2253 = vsel %vm1667, %v2251, %v2252
        %v2254 = vrot.slane %v1222, 2
        %v2255 = vsel %vm1667, %v2252, %v2254
        %v2256 = vrot.slane %v1223, 2
        %v2257 = vrot.slane %v1224, 2
        %v2258 = vsel %vm1667, %v2256, %v2257
        %v2259 = vrot.slane %v1225, 2
        %v2260 = vsel %vm1667, %v2257, %v2259
        %v2293 = vmax.f32 %v2149, %v2183
        %v2294 = vmax.f32 %v2150, %v2185
        %v2295 = vmax.f32 %v2151, %v2188
        %v2296 = vmax.f32 %v2152, %v2190
        %v2297 = vmax.f32 %v2153, %v2193
        %v2298 = vmax.f32 %v2154, %v2195
        %v2299 = vmax.f32 %v2155, %v2198
        %v2300 = vmax.f32 %v2156, %v2200
        %v2301 = vmax.f32 %v2157, %v2203
        %v2302 = vmax.f32 %v2158, %v2205
        %v2303 = vmax.f32 %v2159, %v2208
        %v2304 = vmax.f32 %v2160, %v2210
        %v2305 = vmax.f32 %v2161, %v2213
        %v2306 = vmax.f32 %v2162, %v2215
        %v2307 = vmax.f32 %v2163, %v2218
        %v2308 = vmax.f32 %v2164, %v2220
        %v2309 = vmax.f32 %v2165, %v2223
        %v2310 = vmax.f32 %v2166, %v2225
        %v2311 = vmax.f32 %v2167, %v2228
        %v2312 = vmax.f32 %v2168, %v2230
        %v2313 = vmax.f32 %v2169, %v2233
        %v2314 = vmax.f32 %v2170, %v2235
        %v2315 = vmax.f32 %v2171, %v2238
        %v2316 = vmax.f32 %v2172, %v2240
        %v2317 = vmax.f32 %v2173, %v2243
        %v2318 = vmax.f32 %v2174, %v2245
        %v2319 = vmax.f32 %v2175, %v2248
        %v2320 = vmax.f32 %v2176, %v2250
        %v2321 = vmax.f32 %v2177, %v2253
        %v2322 = vmax.f32 %v2178, %v2255
        %v2323 = vmax.f32 %v2179, %v2258
        %v2324 = vmax.f32 %v2180, %v2260
        %v2325 = vpack.c.bf16 %v2294, %v2293
        %v2326 = vpack.c.bf16 %v2296, %v2295
        %v2327 = vpack.c.bf16 %v2298, %v2297
        %v2328 = vpack.c.bf16 %v2300, %v2299
        %v2329 = vpack.c.bf16 %v2302, %v2301
        %v2330 = vpack.c.bf16 %v2304, %v2303
        %v2331 = vpack.c.bf16 %v2306, %v2305
        %v2332 = vpack.c.bf16 %v2308, %v2307
        %v2333 = vpack.c.bf16 %v2310, %v2309
        %v2334 = vpack.c.bf16 %v2312, %v2311
        %v2335 = vpack.c.bf16 %v2314, %v2313
        %v2336 = vpack.c.bf16 %v2316, %v2315
        %v2337 = vpack.c.bf16 %v2318, %v2317
        %v2338 = vpack.c.bf16 %v2320, %v2319
        %v2339 = vpack.c.bf16 %v2322, %v2321
        %v2340 = vpack.c.bf16 %v2324, %v2323
        %v2341 = vld [vmem:[%s7] sm:$0x3]
        %v2342 = vld [vmem:[%s8] sm:$0x1]
        %v2344 = vlaneseq
        %v2345 = vshrl.u32 %v2344, 7
        %v2346 = vsub.s32 0, %v2345
        %v2347 = vrot.slane %v2342, %v2346
        %v2350 = vsel %vm511, %v2325, 0
        %v2353 = vsel %vm511, %v2326, 0
        %v2356 = vsel %vm511, %v2327, 0
        %v2359 = vsel %vm511, %v2328, 0
        %v2362 = vsel %vm511, %v2329, 0
        %v2365 = vsel %vm511, %v2330, 0
        %v2368 = vsel %vm511, %v2331, 0
        %v2371 = vsel %vm511, %v2332, 0
        %v2374 = vsel %vm511, %v2333, 0
        %v2377 = vsel %vm511, %v2334, 0
        %v2380 = vsel %vm511, %v2335, 0
        %v2383 = vsel %vm511, %v2336, 0
        %v2386 = vsel %vm511, %v2337, 0
        %v2389 = vsel %vm511, %v2338, 0
        %v2392 = vsel %vm511, %v2339, 0
        %v2395 = vsel %vm511, %v2340, 0
        %v2398 = vsel %vm560, %v2341, 0
        %2400 = vmatprep.subr.bf16.mxu0 0
        %2401 = vmatpush1.bf16.msra.mxu0 %v2398
        %2402 = vmatprep.subr.bf16.mxu0 0
        %2403 = vmatpush1.bf16.msra.mxu0 0
        %2404 = vmatprep.subr.bf16.mxu0 0
        %2405 = vmatpush1.bf16.msra.mxu0 0
        %2406 = vmatprep.subr.bf16.mxu0 0
        %2407 = vmatpush1.bf16.msra.mxu0 0
        %2408 = vmatprep.subr.bf16.mxu0 0
        %2409 = vmatpush1.bf16.msra.mxu0 0
        %2410 = vmatprep.subr.bf16.mxu0 0
        %2411 = vmatpush1.bf16.msra.mxu0 0
        %2412 = vmatprep.subr.bf16.mxu0 0
        %2413 = vmatpush1.bf16.msra.mxu0 0
        %2414 = vmatprep.subr.bf16.mxu0 0
        %2415 = vmatpush1.bf16.msra.mxu0 0
        %2416 = vmatprep.subr.bf16.mxu0 0
        %2417 = vmatpush1.bf16.msra.mxu0 0
        %2418 = vmatprep.subr.bf16.mxu0 0
        %2419 = vmatpush1.bf16.msra.mxu0 0
        %2420 = vmatprep.subr.bf16.mxu0 0
        %2421 = vmatpush1.bf16.msra.mxu0 0
        %2422 = vmatprep.subr.bf16.mxu0 0
        %2423 = vmatpush1.bf16.msra.mxu0 0
        %2424 = vmatprep.subr.bf16.mxu0 0
        %2425 = vmatpush1.bf16.msra.mxu0 0
        %2426 = vmatprep.subr.bf16.mxu0 0
        %2427 = vmatpush1.bf16.msra.mxu0 0
        %2428 = vmatprep.subr.bf16.mxu0 0
        %2429 = vmatpush1.bf16.msra.mxu0 0
        %2430 = vmatprep.subr.bf16.mxu0 0
        %2431 = vmatpush1.bf16.msra.mxu0 0
        %2432 = vmatprep.mubr.bf16.mxu0 0
        %2433 = vmatmul.mubr.bf16.gmra.mrb[0].mxu0 %v2350
        %v2434 = vpop.f32.mrb[0].mxu0
        %v2435 = vadd.f32 %v2347, %v2434
        %v2436 = vpop.f32.mrb[0].mxu0
        %v2437 = vpop.f32.mrb[0].mxu0
        %v2438 = vadd.f32 %v2347, %v2437
        %v2439 = vpop.f32.mrb[0].mxu0
        %2440 = vmatprep.mubr.bf16.mxu0 0
        %2441 = vmatmul.mubr.bf16.gmra.mrb[0].mxu0 %v2353
        %v2442 = vpop.f32.mrb[0].mxu0
        %v2443 = vadd.f32 %v2347, %v2442
        %v2444 = vpop.f32.mrb[0].mxu0
        %v2445 = vpop.f32.mrb[0].mxu0
        %v2446 = vadd.f32 %v2347, %v2445
        %v2447 = vpop.f32.mrb[0].mxu0
        %2448 = vmatprep.mubr.bf16.mxu0 0
        %2449 = vmatmul.mubr.bf16.gmra.mrb[0].mxu0 %v2356
        %v2450 = vpop.f32.mrb[0].mxu0
        %v2451 = vadd.f32 %v2347, %v2450
        %v2452 = vpop.f32.mrb[0].mxu0
        %v2453 = vpop.f32.mrb[0].mxu0
        %v2454 = vadd.f32 %v2347, %v2453
        %v2455 = vpop.f32.mrb[0].mxu0
        %2456 = vmatprep.mubr.bf16.mxu0 0
        %2457 = vmatmul.mubr.bf16.gmra.mrb[0].mxu0 %v2359
        %v2458 = vpop.f32.mrb[0].mxu0
        %v2459 = vadd.f32 %v2347, %v2458
        %v2460 = vpop.f32.mrb[0].mxu0
        %v2461 = vpop.f32.mrb[0].mxu0
        %v2462 = vadd.f32 %v2347, %v2461
        %v2463 = vpop.f32.mrb[0].mxu0
        %2464 = vmatprep.mubr.bf16.mxu0 0
        %2465 = vmatmul.mubr.bf16.gmra.mrb[0].mxu0 %v2362
        %v2466 = vpop.f32.mrb[0].mxu0
        %v2467 = vadd.f32 %v2347, %v2466
        %v2468 = vpop.f32.mrb[0].mxu0
        %v2469 = vpop.f32.mrb[0].mxu0
        %v2470 = vadd.f32 %v2347, %v2469
        %v2471 = vpop.f32.mrb[0].mxu0
        %2472 = vmatprep.mubr.bf16.mxu0 0
        %2473 = vmatmul.mubr.bf16.gmra.mrb[0].mxu0 %v2365
        %v2474 = vpop.f32.mrb[0].mxu0
        %v2475 = vadd.f32 %v2347, %v2474
        %v2476 = vpop.f32.mrb[0].mxu0
        %v2477 = vpop.f32.mrb[0].mxu0
        %v2478 = vadd.f32 %v2347, %v2477
        %v2479 = vpop.f32.mrb[0].mxu0
        %2480 = vmatprep.mubr.bf16.mxu0 0
        %2481 = vmatmul.mubr.bf16.gmra.mrb[0].mxu0 %v2368
        %v2482 = vpop.f32.mrb[0].mxu0
        %v2483 = vadd.f32 %v2347, %v2482
        %v2484 = vpop.f32.mrb[0].mxu0
        %v2485 = vpop.f32.mrb[0].mxu0
        %v2486 = vadd.f32 %v2347, %v2485
        %v2487 = vpop.f32.mrb[0].mxu0
        %2488 = vmatprep.mubr.bf16.mxu0 0
        %2489 = vmatmul.mubr.bf16.gmra.mrb[0].mxu0 %v2371
        %v2490 = vpop.f32.mrb[0].mxu0
        %v2491 = vadd.f32 %v2347, %v2490
        %v2492 = vpop.f32.mrb[0].mxu0
        %v2493 = vpop.f32.mrb[0].mxu0
        %v2494 = vadd.f32 %v2347, %v2493
        %v2495 = vpop.f32.mrb[0].mxu0
        %2496 = vmatprep.mubr.bf16.mxu0 0
        %2497 = vmatmul.mubr.bf16.gmra.mrb[0].mxu0 %v2374
        %v2498 = vpop.f32.mrb[0].mxu0
        %v2499 = vadd.f32 %v2347, %v2498
        %v2500 = vpop.f32.mrb[0].mxu0
        %v2501 = vpop.f32.mrb[0].mxu0
        %v2502 = vadd.f32 %v2347, %v2501
        %v2503 = vpop.f32.mrb[0].mxu0
        %2504 = vmatprep.mubr.bf16.mxu0 0
        %2505 = vmatmul.mubr.bf16.gmra.mrb[0].mxu0 %v2377
        %v2506 = vpop.f32.mrb[0].mxu0
        %v2507 = vadd.f32 %v2347, %v2506
        %v2508 = vpop.f32.mrb[0].mxu0
        %v2509 = vpop.f32.mrb[0].mxu0
        %v2510 = vadd.f32 %v2347, %v2509
        %v2511 = vpop.f32.mrb[0].mxu0
        %2512 = vmatprep.mubr.bf16.mxu0 0
        %2513 = vmatmul.mubr.bf16.gmra.mrb[0].mxu0 %v2380
        %v2514 = vpop.f32.mrb[0].mxu0
        %v2515 = vadd.f32 %v2347, %v2514
        %v2516 = vpop.f32.mrb[0].mxu0
        %v2517 = vpop.f32.mrb[0].mxu0
        %v2518 = vadd.f32 %v2347, %v2517
        %v2519 = vpop.f32.mrb[0].mxu0
        %2520 = vmatprep.mubr.bf16.mxu0 0
        %2521 = vmatmul.mubr.bf16.gmra.mrb[0].mxu0 %v2383
        %v2522 = vpop.f32.mrb[0].mxu0
        %v2523 = vadd.f32 %v2347, %v2522
        %v2524 = vpop.f32.mrb[0].mxu0
        %v2525 = vpop.f32.mrb[0].mxu0
        %v2526 = vadd.f32 %v2347, %v2525
        %v2527 = vpop.f32.mrb[0].mxu0
        %2528 = vmatprep.mubr.bf16.mxu0 0
        %2529 = vmatmul.mubr.bf16.gmra.mrb[0].mxu0 %v2386
        %v2530 = vpop.f32.mrb[0].mxu0
        %v2531 = vadd.f32 %v2347, %v2530
        %v2532 = vpop.f32.mrb[0].mxu0
        %v2533 = vpop.f32.mrb[0].mxu0
        %v2534 = vadd.f32 %v2347, %v2533
        %v2535 = vpop.f32.mrb[0].mxu0
        %2536 = vmatprep.mubr.bf16.mxu0 0
        %2537 = vmatmul.mubr.bf16.gmra.mrb[0].mxu0 %v2389
        %v2538 = vpop.f32.mrb[0].mxu0
        %v2539 = vadd.f32 %v2347, %v2538
        %v2540 = vpop.f32.mrb[0].mxu0
        %v2541 = vpop.f32.mrb[0].mxu0
        %v2542 = vadd.f32 %v2347, %v2541
        %v2543 = vpop.f32.mrb[0].mxu0
        %2544 = vmatprep.mubr.bf16.mxu0 0
        %2545 = vmatmul.mubr.bf16.gmra.mrb[0].mxu0 %v2392
        %v2546 = vpop.f32.mrb[0].mxu0
        %v2547 = vadd.f32 %v2347, %v2546
        %v2548 = vpop.f32.mrb[0].mxu0
        %v2549 = vpop.f32.mrb[0].mxu0
        %v2550 = vadd.f32 %v2347, %v2549
        %v2551 = vpop.f32.mrb[0].mxu0
        %2552 = vmatprep.mubr.bf16.mxu0 0
        %2553 = vmatmul.mubr.bf16.gmra.mrb[0].mxu0 %v2395
        %v2554 = vpop.f32.mrb[0].mxu0
        %v2555 = vadd.f32 %v2347, %v2554
        %v2556 = vpop.f32.mrb[0].mxu0
        %v2557 = vpop.f32.mrb[0].mxu0
        %v2558 = vadd.f32 %v2347, %v2557
        %v2559 = vpop.f32.mrb[0].mxu0
        %2560 = vdwg.mxu0
        %v2561 = vmax.f32 %v2435, 0.0
        %v2562 = vmax.f32 %v2438, 0.0
        %v2563 = vmax.f32 %v2443, 0.0
        %v2564 = vmax.f32 %v2446, 0.0
        %v2565 = vmax.f32 %v2451, 0.0
        %v2566 = vmax.f32 %v2454, 0.0
        %v2567 = vmax.f32 %v2459, 0.0
        %v2568 = vmax.f32 %v2462, 0.0
        %v2569 = vmax.f32 %v2467, 0.0
        %v2570 = vmax.f32 %v2470, 0.0
        %v2571 = vmax.f32 %v2475, 0.0
        %v2572 = vmax.f32 %v2478, 0.0
        %v2573 = vmax.f32 %v2483, 0.0
        %v2574 = vmax.f32 %v2486, 0.0
        %v2575 = vmax.f32 %v2491, 0.0
        %v2576 = vmax.f32 %v2494, 0.0
        %v2577 = vmax.f32 %v2499, 0.0
        %v2578 = vmax.f32 %v2502, 0.0
        %v2579 = vmax.f32 %v2507, 0.0
        %v2580 = vmax.f32 %v2510, 0.0
        %v2581 = vmax.f32 %v2515, 0.0
        %v2582 = vmax.f32 %v2518, 0.0
        %v2583 = vmax.f32 %v2523, 0.0
        %v2584 = vmax.f32 %v2526, 0.0
        %v2585 = vmax.f32 %v2531, 0.0
        %v2586 = vmax.f32 %v2534, 0.0
        %v2587 = vmax.f32 %v2539, 0.0
        %v2588 = vmax.f32 %v2542, 0.0
        %v2589 = vmax.f32 %v2547, 0.0
        %v2590 = vmax.f32 %v2550, 0.0
        %v2591 = vmax.f32 %v2555, 0.0
        %v2592 = vmax.f32 %v2558, 0.0
        %2593 = vst [vmem:[#allocation3] sm:$0xf] 0
        %2594 = vst [vmem:[#allocation3 + $0x4] sm:$0xf] 0
        %2595 = vst [vmem:[#allocation3 + $0x8] sm:$0x1] 0
        %2596 = vst [vmem:[#allocation3 + $0xc] sm:$0xf] 0
        %2597 = vst [vmem:[#allocation3 + $0x10] sm:$0xf] 0
        %2598 = vst [vmem:[#allocation3 + $0x14] sm:$0x1] 0
        %2599 = vst [vmem:[#allocation3 + $0x18] sm:$0xf] 0
        %2600 = vst [vmem:[#allocation3 + $0x1c] sm:$0xf] 0
        %2601 = vst [vmem:[#allocation3 + $0x20] sm:$0x1] 0
        %2602 = vst [vmem:[#allocation3 + $0x24] sm:$0xf] 0
        %2603 = vst [vmem:[#allocation3 + $0x28] sm:$0xf] 0
        %2604 = vst [vmem:[#allocation3 + $0x2c] sm:$0x1] 0
        %2605 = vst [vmem:[#allocation3 + $0x30] sm:$0xf] 0
        %2606 = vst [vmem:[#allocation3 + $0x34] sm:$0xf] 0
        %2607 = vst [vmem:[#allocation3 + $0x38] sm:$0x1] 0
        %2608 = vst [vmem:[#allocation3 + $0x3c] sm:$0xf] 0
        %2609 = vst [vmem:[#allocation3 + $0x40] sm:$0xf] 0
        %2610 = vst [vmem:[#allocation3 + $0x44] sm:$0x1] 0
        %2611 = vst [vmem:[#allocation3 + $0x48] sm:$0xf] 0
        %2612 = vst [vmem:[#allocation3 + $0x4c] sm:$0xf] 0
        %2613 = vst [vmem:[#allocation3 + $0x50] sm:$0x1] 0
        %2614 = vst [vmem:[#allocation3 + $0x54] sm:$0xf] 0
        %2615 = vst [vmem:[#allocation3 + $0x58] sm:$0xf] 0
        %2616 = vst [vmem:[#allocation3 + $0x5c] sm:$0x1] 0
        %2617 = vst [vmem:[#allocation3 + $0x60] sm:$0xf] 0
        %2618 = vst [vmem:[#allocation3 + $0x64] sm:$0xf] 0
        %2619 = vst [vmem:[#allocation3 + $0x68] sm:$0x1] 0
        %2620 = vst [vmem:[#allocation3 + $0x6c] sm:$0xf] 0
        %2621 = vst [vmem:[#allocation3 + $0x70] sm:$0xf] 0
        %2622 = vst [vmem:[#allocation3 + $0x74] sm:$0x1] 0
        %2623 = vst [vmem:[#allocation3 + $0x78] sm:$0xf] 0
        %2624 = vst [vmem:[#allocation3 + $0x7c] sm:$0xf] 0
        %2625 = vst [vmem:[#allocation3 + $0x80] sm:$0x1] 0
        %2626 = vst [vmem:[#allocation3 + $0x84] sm:$0xf] 0
        %2627 = vst [vmem:[#allocation3 + $0x88] sm:$0xf] 0
        %2628 = vst [vmem:[#allocation3 + $0x8c] sm:$0x1] 0
        %2629 = vst [vmem:[#allocation3 + $0x90] sm:$0xf] 0
        %2630 = vst [vmem:[#allocation3 + $0x94] sm:$0xf] 0
        %2631 = vst [vmem:[#allocation3 + $0x98] sm:$0x1] 0
        %2632 = vst [vmem:[#allocation3 + $0x9c] sm:$0xf] 0
        %2633 = vst [vmem:[#allocation3 + $0xa0] sm:$0xf] 0
        %2634 = vst [vmem:[#allocation3 + $0xa4] sm:$0x1] 0
        %2635 = vst [vmem:[#allocation3 + $0xa8] sm:$0xf] 0
        %2636 = vst [vmem:[#allocation3 + $0xac] sm:$0xf] 0
        %2637 = vst [vmem:[#allocation3 + $0xb0] sm:$0x1] 0
        %2638 = vst [vmem:[#allocation3 + $0xb4] sm:$0xf] 0
        %2639 = vst [vmem:[#allocation3 + $0xb8] sm:$0xf] 0
        %2640 = vst [vmem:[#allocation3 + $0xbc] sm:$0x1] 0
        %2641 = vst [vmem:[#allocation3 + $0xc0] sm:$0xf] 0
        %2642 = vst [vmem:[#allocation3 + $0xc4] sm:$0xf] 0
        %2643 = vst [vmem:[#allocation3 + $0xc8] sm:$0x1] 0
        %2644 = vst [vmem:[#allocation3 + $0xcc] sm:$0xf] 0
        %2645 = vst [vmem:[#allocation3 + $0xd0] sm:$0xf] 0
        %2646 = vst [vmem:[#allocation3 + $0xd4] sm:$0x1] 0
        %v2663 = vunpack.c.l.b16 %v1020
        %v2664 = vunpack.c.h.b16 %v1020
        %v2665 = vunpack.c.l.b16 %v1021
        %v2666 = vunpack.c.h.b16 %v1021
        %v2667 = vunpack.c.l.b16 %v1022
        %v2668 = vunpack.c.h.b16 %v1022
        %v2669 = vunpack.c.l.b16 %v1023
        %v2670 = vunpack.c.h.b16 %v1023
        %v2671 = vunpack.c.l.b16 %v1024
        %v2672 = vunpack.c.h.b16 %v1024
        %v2673 = vunpack.c.l.b16 %v1025
        %v2674 = vunpack.c.h.b16 %v1025
        %v2675 = vunpack.c.l.b16 %v1026
        %v2676 = vunpack.c.h.b16 %v1026
        %v2677 = vunpack.c.l.b16 %v1027
        %v2678 = vunpack.c.h.b16 %v1027
        %v2679 = vunpack.c.l.b16 %v1028
        %v2680 = vunpack.c.h.b16 %v1028
        %v2681 = vunpack.c.l.b16 %v1029
        %v2682 = vunpack.c.h.b16 %v1029
        %v2683 = vunpack.c.l.b16 %v1030
        %v2684 = vunpack.c.h.b16 %v1030
        %v2685 = vunpack.c.l.b16 %v1031
        %v2686 = vunpack.c.h.b16 %v1031
        %v2687 = vunpack.c.l.b16 %v1032
        %v2688 = vunpack.c.h.b16 %v1032
        %v2689 = vunpack.c.l.b16 %v1033
        %v2690 = vunpack.c.h.b16 %v1033
        %v2691 = vunpack.c.l.b16 %v1034
        %v2692 = vunpack.c.h.b16 %v1034
        %v2693 = vunpack.c.l.b16 %v1035
        %v2694 = vunpack.c.h.b16 %v1035
        %v2695 = vpack.c.b16 %v2663, %v2663
        %v2696 = vpack.c.b16 %v2664, %v2664
        %v2697 = vpack.c.b16 %v2665, %v2665
        %v2698 = vpack.c.b16 %v2666, %v2666
        %v2699 = vpack.c.b16 %v2667, %v2667
        %v2700 = vpack.c.b16 %v2668, %v2668
        %v2701 = vpack.c.b16 %v2669, %v2669
        %v2702 = vpack.c.b16 %v2670, %v2670
        %v2703 = vpack.c.b16 %v2671, %v2671
        %v2704 = vpack.c.b16 %v2672, %v2672
        %v2705 = vpack.c.b16 %v2673, %v2673
        %v2706 = vpack.c.b16 %v2674, %v2674
        %v2707 = vpack.c.b16 %v2675, %v2675
        %v2708 = vpack.c.b16 %v2676, %v2676
        %v2709 = vpack.c.b16 %v2677, %v2677
        %v2710 = vpack.c.b16 %v2678, %v2678
        %v2711 = vpack.c.b16 %v2679, %v2679
        %v2712 = vpack.c.b16 %v2680, %v2680
        %v2713 = vpack.c.b16 %v2681, %v2681
        %v2714 = vpack.c.b16 %v2682, %v2682
        %v2715 = vpack.c.b16 %v2683, %v2683
        %v2716 = vpack.c.b16 %v2684, %v2684
        %v2717 = vpack.c.b16 %v2685, %v2685
        %v2718 = vpack.c.b16 %v2686, %v2686
        %v2719 = vpack.c.b16 %v2687, %v2687
        %v2720 = vpack.c.b16 %v2688, %v2688
        %v2721 = vpack.c.b16 %v2689, %v2689
        %v2722 = vpack.c.b16 %v2690, %v2690
        %v2723 = vpack.c.b16 %v2691, %v2691
        %v2724 = vpack.c.b16 %v2692, %v2692
        %v2725 = vpack.c.b16 %v2693, %v2693
        %v2726 = vpack.c.b16 %v2694, %v2694
        %vm2727 = vsmask.f32 256
        %vm2728 = vsmask.f32 4368
        %vm2729 = vmor %vm2727, %vm2728
        %v2731 = vshrl.u32 %v2695, 16
        %v2733 = vrot.slane %v2731, 7
        %v2734 = vshll.u32 %v2695, 16
        %v2736 = vor.u32 %v2733, %v2734
        %v2737 = vrot.slane %v2733, 4
        %v2739 = vshrl.u32 %v2696, 16
        %v2741 = vrot.slane %v2739, 7
        %v2742 = vshll.u32 %v2696, 16
        %v2744 = vor.u32 %v2741, %v2742
        %v2745 = vsel %vm2729, %v2737, %v2744
        %v2746 = vrot.slane %v2741, 4
        %v2748 = vshrl.u32 %v2697, 16
        %v2750 = vrot.slane %v2748, 7
        %v2751 = vshll.u32 %v2697, 16
        %v2753 = vor.u32 %v2750, %v2751
        %v2754 = vrot.slane %v2750, 4
        %v2756 = vshrl.u32 %v2698, 16
        %v2758 = vrot.slane %v2756, 7
        %v2759 = vshll.u32 %v2698, 16
        %v2761 = vor.u32 %v2758, %v2759
        %v2762 = vsel %vm2729, %v2754, %v2761
        %v2763 = vrot.slane %v2758, 4
        %v2765 = vshrl.u32 %v2699, 16
        %v2767 = vrot.slane %v2765, 7
        %v2768 = vshll.u32 %v2699, 16
        %v2770 = vor.u32 %v2767, %v2768
        %v2771 = vrot.slane %v2767, 4
        %v2773 = vshrl.u32 %v2700, 16
        %v2775 = vrot.slane %v2773, 7
        %v2776 = vshll.u32 %v2700, 16
        %v2778 = vor.u32 %v2775, %v2776
        %v2779 = vsel %vm2729, %v2771, %v2778
        %v2780 = vrot.slane %v2775, 4
        %v2782 = vshrl.u32 %v2701, 16
        %v2784 = vrot.slane %v2782, 7
        %v2785 = vshll.u32 %v2701, 16
        %v2787 = vor.u32 %v2784, %v2785
        %v2788 = vrot.slane %v2784, 4
        %v2790 = vshrl.u32 %v2702, 16
        %v2792 = vrot.slane %v2790, 7
        %v2793 = vshll.u32 %v2702, 16
        %v2795 = vor.u32 %v2792, %v2793
        %v2796 = vsel %vm2729, %v2788, %v2795
        %v2797 = vrot.slane %v2792, 4
        %v2799 = vshrl.u32 %v2703, 16
        %v2801 = vrot.slane %v2799, 7
        %v2802 = vshll.u32 %v2703, 16
        %v2804 = vor.u32 %v2801, %v2802
        %v2805 = vrot.slane %v2801, 4
        %v2807 = vshrl.u32 %v2704, 16
        %v2809 = vrot.slane %v2807, 7
        %v2810 = vshll.u32 %v2704, 16
        %v2812 = vor.u32 %v2809, %v2810
        %v2813 = vsel %vm2729, %v2805, %v2812
        %v2814 = vrot.slane %v2809, 4
        %v2816 = vshrl.u32 %v2705, 16
        %v2818 = vrot.slane %v2816, 7
        %v2819 = vshll.u32 %v2705, 16
        %v2821 = vor.u32 %v2818, %v2819
        %v2822 = vrot.slane %v2818, 4
        %v2824 = vshrl.u32 %v2706, 16
        %v2826 = vrot.slane %v2824, 7
        %v2827 = vshll.u32 %v2706, 16
        %v2829 = vor.u32 %v2826, %v2827
        %v2830 = vsel %vm2729, %v2822, %v2829
        %v2831 = vrot.slane %v2826, 4
        %v2833 = vshrl.u32 %v2707, 16
        %v2835 = vrot.slane %v2833, 7
        %v2836 = vshll.u32 %v2707, 16
        %v2838 = vor.u32 %v2835, %v2836
        %v2839 = vrot.slane %v2835, 4
        %v2841 = vshrl.u32 %v2708, 16
        %v2843 = vrot.slane %v2841, 7
        %v2844 = vshll.u32 %v2708, 16
        %v2846 = vor.u32 %v2843, %v2844
        %v2847 = vsel %vm2729, %v2839, %v2846
        %v2848 = vrot.slane %v2843, 4
        %v2850 = vshrl.u32 %v2709, 16
        %v2852 = vrot.slane %v2850, 7
        %v2853 = vshll.u32 %v2709, 16
        %v2855 = vor.u32 %v2852, %v2853
        %v2856 = vrot.slane %v2852, 4
        %v2858 = vshrl.u32 %v2710, 16
        %v2860 = vrot.slane %v2858, 7
        %v2861 = vshll.u32 %v2710, 16
        %v2863 = vor.u32 %v2860, %v2861
        %v2864 = vsel %vm2729, %v2856, %v2863
        %v2865 = vrot.slane %v2860, 4
        %v2867 = vshrl.u32 %v2711, 16
        %v2869 = vrot.slane %v2867, 7
        %v2870 = vshll.u32 %v2711, 16
        %v2872 = vor.u32 %v2869, %v2870
        %v2873 = vrot.slane %v2869, 4
        %v2875 = vshrl.u32 %v2712, 16
        %v2877 = vrot.slane %v2875, 7
        %v2878 = vshll.u32 %v2712, 16
        %v2880 = vor.u32 %v2877, %v2878
        %v2881 = vsel %vm2729, %v2873, %v2880
        %v2882 = vrot.slane %v2877, 4
        %v2884 = vshrl.u32 %v2713, 16
        %v2886 = vrot.slane %v2884, 7
        %v2887 = vshll.u32 %v2713, 16
        %v2889 = vor.u32 %v2886, %v2887
        %v2890 = vrot.slane %v2886, 4
        %v2892 = vshrl.u32 %v2714, 16
        %v2894 = vrot.slane %v2892, 7
        %v2895 = vshll.u32 %v2714, 16
        %v2897 = vor.u32 %v2894, %v2895
        %v2898 = vsel %vm2729, %v2890, %v2897
        %v2899 = vrot.slane %v2894, 4
        %v2901 = vshrl.u32 %v2715, 16
        %v2903 = vrot.slane %v2901, 7
        %v2904 = vshll.u32 %v2715, 16
        %v2906 = vor.u32 %v2903, %v2904
        %v2907 = vrot.slane %v2903, 4
        %v2909 = vshrl.u32 %v2716, 16
        %v2911 = vrot.slane %v2909, 7
        %v2912 = vshll.u32 %v2716, 16
        %v2914 = vor.u32 %v2911, %v2912
        %v2915 = vsel %vm2729, %v2907, %v2914
        %v2916 = vrot.slane %v2911, 4
        %v2918 = vshrl.u32 %v2717, 16
        %v2920 = vrot.slane %v2918, 7
        %v2921 = vshll.u32 %v2717, 16
        %v2923 = vor.u32 %v2920, %v2921
        %v2924 = vrot.slane %v2920, 4
        %v2926 = vshrl.u32 %v2718, 16
        %v2928 = vrot.slane %v2926, 7
        %v2929 = vshll.u32 %v2718, 16
        %v2931 = vor.u32 %v2928, %v2929
        %v2932 = vsel %vm2729, %v2924, %v2931
        %v2933 = vrot.slane %v2928, 4
        %v2935 = vshrl.u32 %v2719, 16
        %v2937 = vrot.slane %v2935, 7
        %v2938 = vshll.u32 %v2719, 16
        %v2940 = vor.u32 %v2937, %v2938
        %v2941 = vrot.slane %v2937, 4
        %v2943 = vshrl.u32 %v2720, 16
        %v2945 = vrot.slane %v2943, 7
        %v2946 = vshll.u32 %v2720, 16
        %v2948 = vor.u32 %v2945, %v2946
        %v2949 = vsel %vm2729, %v2941, %v2948
        %v2950 = vrot.slane %v2945, 4
        %v2952 = vshrl.u32 %v2721, 16
        %v2954 = vrot.slane %v2952, 7
        %v2955 = vshll.u32 %v2721, 16
        %v2957 = vor.u32 %v2954, %v2955
        %v2958 = vrot.slane %v2954, 4
        %v2960 = vshrl.u32 %v2722, 16
        %v2962 = vrot.slane %v2960, 7
        %v2963 = vshll.u32 %v2722, 16
        %v2965 = vor.u32 %v2962, %v2963
        %v2966 = vsel %vm2729, %v2958, %v2965
        %v2967 = vrot.slane %v2962, 4
        %v2969 = vshrl.u32 %v2723, 16
        %v2971 = vrot.slane %v2969, 7
        %v2972 = vshll.u32 %v2723, 16
        %v2974 = vor.u32 %v2971, %v2972
        %v2975 = vrot.slane %v2971, 4
        %v2977 = vshrl.u32 %v2724, 16
        %v2979 = vrot.slane %v2977, 7
        %v2980 = vshll.u32 %v2724, 16
        %v2982 = vor.u32 %v2979, %v2980
        %v2983 = vsel %vm2729, %v2975, %v2982
        %v2984 = vrot.slane %v2979, 4
        %v2986 = vshrl.u32 %v2725, 16
        %v2988 = vrot.slane %v2986, 7
        %v2989 = vshll.u32 %v2725, 16
        %v2991 = vor.u32 %v2988, %v2989
        %v2992 = vrot.slane %v2988, 4
        %v2994 = vshrl.u32 %v2726, 16
        %v2996 = vrot.slane %v2994, 7
        %v2997 = vshll.u32 %v2726, 16
        %v2999 = vor.u32 %v2996, %v2997
        %v3000 = vsel %vm2729, %v2992, %v2999
        %v3001 = vrot.slane %v2996, 4
        %s3050 = scalar_lea.vmem [#allocation3], 12
        %vm3051 = vcmask 1043456
        %vm3052 = vsmask.f32 7938
        %vm3053 = vmand %vm3051, %vm3052
        %v3054 = vld [vmem:[%s3050] sm:$0xf]
        %v3055 = vsel %vm3053, %v2736, %v3054
        %3056 = vst [vmem:[%s3050] sm:$0xf] %v3055
        %3057 = vst [vmem:[%s3050 + $0x4] sm:$0xf] %v2745
        %vm3058 = vcmask 1040384
        %vm3059 = vmand %vm3058, %vm2727
        %v3060 = vld [vmem:[%s3050 + $0x8] sm:$0x1]
        %v3061 = vsel %vm3059, %v2746, %v3060
        %3062 = vst [vmem:[%s3050 + $0x8] sm:$0x1] %v3061
        %v3063 = vld [vmem:[%s3050 + $0xc] sm:$0xf]
        %v3064 = vsel %vm3053, %v2753, %v3063
        %3065 = vst [vmem:[%s3050 + $0xc] sm:$0xf] %v3064
        %3066 = vst [vmem:[%s3050 + $0x10] sm:$0xf] %v2762
        %v3067 = vld [vmem:[%s3050 + $0x14] sm:$0x1]
        %v3068 = vsel %vm3059, %v2763, %v3067
        %3069 = vst [vmem:[%s3050 + $0x14] sm:$0x1] %v3068
        %v3070 = vld [vmem:[%s3050 + $0x18] sm:$0xf]
        %v3071 = vsel %vm3053, %v2770, %v3070
        %3072 = vst [vmem:[%s3050 + $0x18] sm:$0xf] %v3071
        %3073 = vst [vmem:[%s3050 + $0x1c] sm:$0xf] %v2779
        %v3074 = vld [vmem:[%s3050 + $0x20] sm:$0x1]
        %v3075 = vsel %vm3059, %v2780, %v3074
        %3076 = vst [vmem:[%s3050 + $0x20] sm:$0x1] %v3075
        %v3077 = vld [vmem:[%s3050 + $0x24] sm:$0xf]
        %v3078 = vsel %vm3053, %v2787, %v3077
        %3079 = vst [vmem:[%s3050 + $0x24] sm:$0xf] %v3078
        %3080 = vst [vmem:[%s3050 + $0x28] sm:$0xf] %v2796
        %v3081 = vld [vmem:[%s3050 + $0x2c] sm:$0x1]
        %v3082 = vsel %vm3059, %v2797, %v3081
        %3083 = vst [vmem:[%s3050 + $0x2c] sm:$0x1] %v3082
        %v3084 = vld [vmem:[%s3050 + $0x30] sm:$0xf]
        %v3085 = vsel %vm3053, %v2804, %v3084
        %3086 = vst [vmem:[%s3050 + $0x30] sm:$0xf] %v3085
        %3087 = vst [vmem:[%s3050 + $0x34] sm:$0xf] %v2813
        %v3088 = vld [vmem:[%s3050 + $0x38] sm:$0x1]
        %v3089 = vsel %vm3059, %v2814, %v3088
        %3090 = vst [vmem:[%s3050 + $0x38] sm:$0x1] %v3089
        %v3091 = vld [vmem:[%s3050 + $0x3c] sm:$0xf]
        %v3092 = vsel %vm3053, %v2821, %v3091
        %3093 = vst [vmem:[%s3050 + $0x3c] sm:$0xf] %v3092
        %3094 = vst [vmem:[%s3050 + $0x40] sm:$0xf] %v2830
        %v3095 = vld [vmem:[%s3050 + $0x44] sm:$0x1]
        %v3096 = vsel %vm3059, %v2831, %v3095
        %3097 = vst [vmem:[%s3050 + $0x44] sm:$0x1] %v3096
        %v3098 = vld [vmem:[%s3050 + $0x48] sm:$0xf]
        %v3099 = vsel %vm3053, %v2838, %v3098
        %3100 = vst [vmem:[%s3050 + $0x48] sm:$0xf] %v3099
        %3101 = vst [vmem:[%s3050 + $0x4c] sm:$0xf] %v2847
        %v3102 = vld [vmem:[%s3050 + $0x50] sm:$0x1]
        %v3103 = vsel %vm3059, %v2848, %v3102
        %3104 = vst [vmem:[%s3050 + $0x50] sm:$0x1] %v3103
        %v3105 = vld [vmem:[%s3050 + $0x54] sm:$0xf]
        %v3106 = vsel %vm3053, %v2855, %v3105
        %3107 = vst [vmem:[%s3050 + $0x54] sm:$0xf] %v3106
        %3108 = vst [vmem:[%s3050 + $0x58] sm:$0xf] %v2864
        %v3109 = vld [vmem:[%s3050 + $0x5c] sm:$0x1]
        %v3110 = vsel %vm3059, %v2865, %v3109
        %3111 = vst [vmem:[%s3050 + $0x5c] sm:$0x1] %v3110
        %v3112 = vld [vmem:[%s3050 + $0x60] sm:$0xf]
        %v3113 = vsel %vm3053, %v2872, %v3112
        %3114 = vst [vmem:[%s3050 + $0x60] sm:$0xf] %v3113
        %3115 = vst [vmem:[%s3050 + $0x64] sm:$0xf] %v2881
        %v3116 = vld [vmem:[%s3050 + $0x68] sm:$0x1]
        %v3117 = vsel %vm3059, %v2882, %v3116
        %3118 = vst [vmem:[%s3050 + $0x68] sm:$0x1] %v3117
        %v3119 = vld [vmem:[%s3050 + $0x6c] sm:$0xf]
        %v3120 = vsel %vm3053, %v2889, %v3119
        %3121 = vst [vmem:[%s3050 + $0x6c] sm:$0xf] %v3120
        %3122 = vst [vmem:[%s3050 + $0x70] sm:$0xf] %v2898
        %v3123 = vld [vmem:[%s3050 + $0x74] sm:$0x1]
        %v3124 = vsel %vm3059, %v2899, %v3123
        %3125 = vst [vmem:[%s3050 + $0x74] sm:$0x1] %v3124
        %v3126 = vld [vmem:[%s3050 + $0x78] sm:$0xf]
        %v3127 = vsel %vm3053, %v2906, %v3126
        %3128 = vst [vmem:[%s3050 + $0x78] sm:$0xf] %v3127
        %3129 = vst [vmem:[%s3050 + $0x7c] sm:$0xf] %v2915
        %v3130 = vld [vmem:[%s3050 + $0x80] sm:$0x1]
        %v3131 = vsel %vm3059, %v2916, %v3130
        %3132 = vst [vmem:[%s3050 + $0x80] sm:$0x1] %v3131
        %v3133 = vld [vmem:[%s3050 + $0x84] sm:$0xf]
        %v3134 = vsel %vm3053, %v2923, %v3133
        %3135 = vst [vmem:[%s3050 + $0x84] sm:$0xf] %v3134
        %3136 = vst [vmem:[%s3050 + $0x88] sm:$0xf] %v2932
        %v3137 = vld [vmem:[%s3050 + $0x8c] sm:$0x1]
        %v3138 = vsel %vm3059, %v2933, %v3137
        %3139 = vst [vmem:[%s3050 + $0x8c] sm:$0x1] %v3138
        %v3140 = vld [vmem:[%s3050 + $0x90] sm:$0xf]
        %v3141 = vsel %vm3053, %v2940, %v3140
        %3142 = vst [vmem:[%s3050 + $0x90] sm:$0xf] %v3141
        %3143 = vst [vmem:[%s3050 + $0x94] sm:$0xf] %v2949
        %v3144 = vld [vmem:[%s3050 + $0x98] sm:$0x1]
        %v3145 = vsel %vm3059, %v2950, %v3144
        %3146 = vst [vmem:[%s3050 + $0x98] sm:$0x1] %v3145
        %v3147 = vld [vmem:[%s3050 + $0x9c] sm:$0xf]
        %v3148 = vsel %vm3053, %v2957, %v3147
        %3149 = vst [vmem:[%s3050 + $0x9c] sm:$0xf] %v3148
        %3150 = vst [vmem:[%s3050 + $0xa0] sm:$0xf] %v2966
        %v3151 = vld [vmem:[%s3050 + $0xa4] sm:$0x1]
        %v3152 = vsel %vm3059, %v2967, %v3151
        %3153 = vst [vmem:[%s3050 + $0xa4] sm:$0x1] %v3152
        %v3154 = vld [vmem:[%s3050 + $0xa8] sm:$0xf]
        %v3155 = vsel %vm3053, %v2974, %v3154
        %3156 = vst [vmem:[%s3050 + $0xa8] sm:$0xf] %v3155
        %3157 = vst [vmem:[%s3050 + $0xac] sm:$0xf] %v2983
        %v3158 = vld [vmem:[%s3050 + $0xb0] sm:$0x1]
        %v3159 = vsel %vm3059, %v2984, %v3158
        %3160 = vst [vmem:[%s3050 + $0xb0] sm:$0x1] %v3159
        %v3161 = vld [vmem:[%s3050 + $0xb4] sm:$0xf]
        %v3162 = vsel %vm3053, %v2991, %v3161
        %3163 = vst [vmem:[%s3050 + $0xb4] sm:$0xf] %v3162
        %3164 = vst [vmem:[%s3050 + $0xb8] sm:$0xf] %v3000
        %v3165 = vld [vmem:[%s3050 + $0xbc] sm:$0x1]
        %v3166 = vsel %vm3059, %v3001, %v3165
        %3167 = vst [vmem:[%s3050 + $0xbc] sm:$0x1] %v3166
        %v3168 = vld [vmem:[#allocation3] sm:$0xf]
        %v3169 = vld [vmem:[#allocation3 + $0x4] sm:$0xf]
        %v3170 = vld [vmem:[#allocation3 + $0x8] sm:$0x1]
        %v3171 = vld [vmem:[#allocation3 + $0xc] sm:$0xf]
        %v3172 = vld [vmem:[#allocation3 + $0x10] sm:$0xf]
        %v3173 = vld [vmem:[#allocation3 + $0x14] sm:$0x1]
        %v3174 = vld [vmem:[#allocation3 + $0x18] sm:$0xf]
        %v3175 = vld [vmem:[#allocation3 + $0x1c] sm:$0xf]
        %v3176 = vld [vmem:[#allocation3 + $0x20] sm:$0x1]
        %v3177 = vld [vmem:[#allocation3 + $0x24] sm:$0xf]
        %v3178 = vld [vmem:[#allocation3 + $0x28] sm:$0xf]
        %v3179 = vld [vmem:[#allocation3 + $0x2c] sm:$0x1]
        %v3180 = vld [vmem:[#allocation3 + $0x30] sm:$0xf]
        %v3181 = vld [vmem:[#allocation3 + $0x34] sm:$0xf]
        %v3182 = vld [vmem:[#allocation3 + $0x38] sm:$0x1]
        %v3183 = vld [vmem:[#allocation3 + $0x3c] sm:$0xf]
        %v3184 = vld [vmem:[#allocation3 + $0x40] sm:$0xf]
        %v3185 = vld [vmem:[#allocation3 + $0x44] sm:$0x1]
        %v3186 = vld [vmem:[#allocation3 + $0x48] sm:$0xf]
        %v3187 = vld [vmem:[#allocation3 + $0x4c] sm:$0xf]
        %v3188 = vld [vmem:[#allocation3 + $0x50] sm:$0x1]
        %v3189 = vld [vmem:[#allocation3 + $0x54] sm:$0xf]
        %v3190 = vld [vmem:[#allocation3 + $0x58] sm:$0xf]
        %v3191 = vld [vmem:[#allocation3 + $0x5c] sm:$0x1]
        %v3192 = vld [vmem:[#allocation3 + $0x60] sm:$0xf]
        %v3193 = vld [vmem:[#allocation3 + $0x64] sm:$0xf]
        %v3194 = vld [vmem:[#allocation3 + $0x68] sm:$0x1]
        %v3195 = vld [vmem:[#allocation3 + $0x6c] sm:$0xf]
        %v3196 = vld [vmem:[#allocation3 + $0x70] sm:$0xf]
        %v3197 = vld [vmem:[#allocation3 + $0x74] sm:$0x1]
        %v3198 = vld [vmem:[#allocation3 + $0x78] sm:$0xf]
        %v3199 = vld [vmem:[#allocation3 + $0x7c] sm:$0xf]
        %v3200 = vld [vmem:[#allocation3 + $0x80] sm:$0x1]
        %v3201 = vld [vmem:[#allocation3 + $0x84] sm:$0xf]
        %v3202 = vld [vmem:[#allocation3 + $0x88] sm:$0xf]
        %v3203 = vld [vmem:[#allocation3 + $0x8c] sm:$0x1]
        %v3204 = vld [vmem:[#allocation3 + $0x90] sm:$0xf]
        %v3205 = vld [vmem:[#allocation3 + $0x94] sm:$0xf]
        %v3206 = vld [vmem:[#allocation3 + $0x98] sm:$0x1]
        %v3207 = vld [vmem:[#allocation3 + $0x9c] sm:$0xf]
        %v3208 = vld [vmem:[#allocation3 + $0xa0] sm:$0xf]
        %v3209 = vld [vmem:[#allocation3 + $0xa4] sm:$0x1]
        %v3210 = vld [vmem:[#allocation3 + $0xa8] sm:$0xf]
        %v3211 = vld [vmem:[#allocation3 + $0xac] sm:$0xf]
        %v3212 = vld [vmem:[#allocation3 + $0xb0] sm:$0x1]
        %v3213 = vld [vmem:[#allocation3 + $0xb4] sm:$0xf]
        %v3214 = vld [vmem:[#allocation3 + $0xb8] sm:$0xf]
        %v3215 = vld [vmem:[#allocation3 + $0xbc] sm:$0x1]
        %v3216 = vld [vmem:[#allocation3 + $0xc0] sm:$0xf]
        %v3217 = vld [vmem:[#allocation3 + $0xc4] sm:$0xf]
        %v3218 = vld [vmem:[#allocation3 + $0xc8] sm:$0x1]
        %v3219 = vld [vmem:[#allocation3 + $0xcc] sm:$0xf]
        %v3220 = vld [vmem:[#allocation3 + $0xd0] sm:$0xf]
        %v3221 = vld [vmem:[#allocation3 + $0xd4] sm:$0x1]
        %vm3222 = vsmask.f32 3328
        %vm3223 = vsmask.f32 7440
        %vm3224 = vmor %vm3222, %vm3223
        %v3226 = vshrl.u32 %v3168, 16
        %v3228 = vrot.slane %v3226, 4
        %v3229 = vshll.u32 %v3168, 16
        %v3231 = vrot.slane %v3229, 5
        %v3232 = vor.u32 %v3228, %v3231
        %v3233 = vrot.slane %v3232, 4
        %v3235 = vshll.u32 %v3169, 16
        %v3237 = vrot.slane %v3235, 5
        %v3238 = vsel %vm3224, %v3233, %v3237
        %v3239 = vshrl.u32 %v3169, 16
        %v3241 = vrot.slane %v3239, 4
        %v3242 = vor.u32 %v3241, %v3237
        %v3243 = vrot.slane %v3242, 4
        %v3245 = vshll.u32 %v3170, 16
        %v3247 = vrot.slane %v3245, 5
        %v3248 = vsel %vm3224, %v3243, %v3247
        %v3250 = vshrl.u32 %v3171, 16
        %v3252 = vrot.slane %v3250, 4
        %v3253 = vshll.u32 %v3171, 16
        %v3255 = vrot.slane %v3253, 5
        %v3256 = vor.u32 %v3252, %v3255
        %v3257 = vrot.slane %v3256, 4
        %v3259 = vshll.u32 %v3172, 16
        %v3261 = vrot.slane %v3259, 5
        %v3262 = vsel %vm3224, %v3257, %v3261
        %v3263 = vshrl.u32 %v3172, 16
        %v3265 = vrot.slane %v3263, 4
        %v3266 = vor.u32 %v3265, %v3261
        %v3267 = vrot.slane %v3266, 4
        %v3269 = vshll.u32 %v3173, 16
        %v3271 = vrot.slane %v3269, 5
        %v3272 = vsel %vm3224, %v3267, %v3271
        %v3274 = vshrl.u32 %v3174, 16
        %v3276 = vrot.slane %v3274, 4
        %v3277 = vshll.u32 %v3174, 16
        %v3279 = vrot.slane %v3277, 5
        %v3280 = vor.u32 %v3276, %v3279
        %v3281 = vrot.slane %v3280, 4
        %v3283 = vshll.u32 %v3175, 16
        %v3285 = vrot.slane %v3283, 5
        %v3286 = vsel %vm3224, %v3281, %v3285
        %v3287 = vshrl.u32 %v3175, 16
        %v3289 = vrot.slane %v3287, 4
        %v3290 = vor.u32 %v3289, %v3285
        %v3291 = vrot.slane %v3290, 4
        %v3293 = vshll.u32 %v3176, 16
        %v3295 = vrot.slane %v3293, 5
        %v3296 = vsel %vm3224, %v3291, %v3295
        %v3298 = vshrl.u32 %v3177, 16
        %v3300 = vrot.slane %v3298, 4
        %v3301 = vshll.u32 %v3177, 16
        %v3303 = vrot.slane %v3301, 5
        %v3304 = vor.u32 %v3300, %v3303
        %v3305 = vrot.slane %v3304, 4
        %v3307 = vshll.u32 %v3178, 16
        %v3309 = vrot.slane %v3307, 5
        %v3310 = vsel %vm3224, %v3305, %v3309
        %v3311 = vshrl.u32 %v3178, 16
        %v3313 = vrot.slane %v3311, 4
        %v3314 = vor.u32 %v3313, %v3309
        %v3315 = vrot.slane %v3314, 4
        %v3317 = vshll.u32 %v3179, 16
        %v3319 = vrot.slane %v3317, 5
        %v3320 = vsel %vm3224, %v3315, %v3319
        %v3322 = vshrl.u32 %v3180, 16
        %v3324 = vrot.slane %v3322, 4
        %v3325 = vshll.u32 %v3180, 16
        %v3327 = vrot.slane %v3325, 5
        %v3328 = vor.u32 %v3324, %v3327
        %v3329 = vrot.slane %v3328, 4
        %v3331 = vshll.u32 %v3181, 16
        %v3333 = vrot.slane %v3331, 5
        %v3334 = vsel %vm3224, %v3329, %v3333
        %v3335 = vshrl.u32 %v3181, 16
        %v3337 = vrot.slane %v3335, 4
        %v3338 = vor.u32 %v3337, %v3333
        %v3339 = vrot.slane %v3338, 4
        %v3341 = vshll.u32 %v3182, 16
        %v3343 = vrot.slane %v3341, 5
        %v3344 = vsel %vm3224, %v3339, %v3343
        %v3346 = vshrl.u32 %v3183, 16
        %v3348 = vrot.slane %v3346, 4
        %v3349 = vshll.u32 %v3183, 16
        %v3351 = vrot.slane %v3349, 5
        %v3352 = vor.u32 %v3348, %v3351
        %v3353 = vrot.slane %v3352, 4
        %v3355 = vshll.u32 %v3184, 16
        %v3357 = vrot.slane %v3355, 5
        %v3358 = vsel %vm3224, %v3353, %v3357
        %v3359 = vshrl.u32 %v3184, 16
        %v3361 = vrot.slane %v3359, 4
        %v3362 = vor.u32 %v3361, %v3357
        %v3363 = vrot.slane %v3362, 4
        %v3365 = vshll.u32 %v3185, 16
        %v3367 = vrot.slane %v3365, 5
        %v3368 = vsel %vm3224, %v3363, %v3367
        %v3370 = vshrl.u32 %v3186, 16
        %v3372 = vrot.slane %v3370, 4
        %v3373 = vshll.u32 %v3186, 16
        %v3375 = vrot.slane %v3373, 5
        %v3376 = vor.u32 %v3372, %v3375
        %v3377 = vrot.slane %v3376, 4
        %v3379 = vshll.u32 %v3187, 16
        %v3381 = vrot.slane %v3379, 5
        %v3382 = vsel %vm3224, %v3377, %v3381
        %v3383 = vshrl.u32 %v3187, 16
        %v3385 = vrot.slane %v3383, 4
        %v3386 = vor.u32 %v3385, %v3381
        %v3387 = vrot.slane %v3386, 4
        %v3389 = vshll.u32 %v3188, 16
        %v3391 = vrot.slane %v3389, 5
        %v3392 = vsel %vm3224, %v3387, %v3391
        %v3394 = vshrl.u32 %v3189, 16
        %v3396 = vrot.slane %v3394, 4
        %v3397 = vshll.u32 %v3189, 16
        %v3399 = vrot.slane %v3397, 5
        %v3400 = vor.u32 %v3396, %v3399
        %v3401 = vrot.slane %v3400, 4
        %v3403 = vshll.u32 %v3190, 16
        %v3405 = vrot.slane %v3403, 5
        %v3406 = vsel %vm3224, %v3401, %v3405
        %v3407 = vshrl.u32 %v3190, 16
        %v3409 = vrot.slane %v3407, 4
        %v3410 = vor.u32 %v3409, %v3405
        %v3411 = vrot.slane %v3410, 4
        %v3413 = vshll.u32 %v3191, 16
        %v3415 = vrot.slane %v3413, 5
        %v3416 = vsel %vm3224, %v3411, %v3415
        %v3418 = vshrl.u32 %v3192, 16
        %v3420 = vrot.slane %v3418, 4
        %v3421 = vshll.u32 %v3192, 16
        %v3423 = vrot.slane %v3421, 5
        %v3424 = vor.u32 %v3420, %v3423
        %v3425 = vrot.slane %v3424, 4
        %v3427 = vshll.u32 %v3193, 16
        %v3429 = vrot.slane %v3427, 5
        %v3430 = vsel %vm3224, %v3425, %v3429
        %v3431 = vshrl.u32 %v3193, 16
        %v3433 = vrot.slane %v3431, 4
        %v3434 = vor.u32 %v3433, %v3429
        %v3435 = vrot.slane %v3434, 4
        %v3437 = vshll.u32 %v3194, 16
        %v3439 = vrot.slane %v3437, 5
        %v3440 = vsel %vm3224, %v3435, %v3439
        %v3442 = vshrl.u32 %v3195, 16
        %v3444 = vrot.slane %v3442, 4
        %v3445 = vshll.u32 %v3195, 16
        %v3447 = vrot.slane %v3445, 5
        %v3448 = vor.u32 %v3444, %v3447
        %v3449 = vrot.slane %v3448, 4
        %v3451 = vshll.u32 %v3196, 16
        %v3453 = vrot.slane %v3451, 5
        %v3454 = vsel %vm3224, %v3449, %v3453
        %v3455 = vshrl.u32 %v3196, 16
        %v3457 = vrot.slane %v3455, 4
        %v3458 = vor.u32 %v3457, %v3453
        %v3459 = vrot.slane %v3458, 4
        %v3461 = vshll.u32 %v3197, 16
        %v3463 = vrot.slane %v3461, 5
        %v3464 = vsel %vm3224, %v3459, %v3463
        %v3466 = vshrl.u32 %v3198, 16
        %v3468 = vrot.slane %v3466, 4
        %v3469 = vshll.u32 %v3198, 16
        %v3471 = vrot.slane %v3469, 5
        %v3472 = vor.u32 %v3468, %v3471
        %v3473 = vrot.slane %v3472, 4
        %v3475 = vshll.u32 %v3199, 16
        %v3477 = vrot.slane %v3475, 5
        %v3478 = vsel %vm3224, %v3473, %v3477
        %v3479 = vshrl.u32 %v3199, 16
        %v3481 = vrot.slane %v3479, 4
        %v3482 = vor.u32 %v3481, %v3477
        %v3483 = vrot.slane %v3482, 4
        %v3485 = vshll.u32 %v3200, 16
        %v3487 = vrot.slane %v3485, 5
        %v3488 = vsel %vm3224, %v3483, %v3487
        %v3490 = vshrl.u32 %v3201, 16
        %v3492 = vrot.slane %v3490, 4
        %v3493 = vshll.u32 %v3201, 16
        %v3495 = vrot.slane %v3493, 5
        %v3496 = vor.u32 %v3492, %v3495
        %v3497 = vrot.slane %v3496, 4
        %v3499 = vshll.u32 %v3202, 16
        %v3501 = vrot.slane %v3499, 5
        %v3502 = vsel %vm3224, %v3497, %v3501
        %v3503 = vshrl.u32 %v3202, 16
        %v3505 = vrot.slane %v3503, 4
        %v3506 = vor.u32 %v3505, %v3501
        %v3507 = vrot.slane %v3506, 4
        %v3509 = vshll.u32 %v3203, 16
        %v3511 = vrot.slane %v3509, 5
        %v3512 = vsel %vm3224, %v3507, %v3511
        %v3514 = vshrl.u32 %v3204, 16
        %v3516 = vrot.slane %v3514, 4
        %v3517 = vshll.u32 %v3204, 16
        %v3519 = vrot.slane %v3517, 5
        %v3520 = vor.u32 %v3516, %v3519
        %v3521 = vrot.slane %v3520, 4
        %v3523 = vshll.u32 %v3205, 16
        %v3525 = vrot.slane %v3523, 5
        %v3526 = vsel %vm3224, %v3521, %v3525
        %v3527 = vshrl.u32 %v3205, 16
        %v3529 = vrot.slane %v3527, 4
        %v3530 = vor.u32 %v3529, %v3525
        %v3531 = vrot.slane %v3530, 4
        %v3533 = vshll.u32 %v3206, 16
        %v3535 = vrot.slane %v3533, 5
        %v3536 = vsel %vm3224, %v3531, %v3535
        %v3538 = vshrl.u32 %v3207, 16
        %v3540 = vrot.slane %v3538, 4
        %v3541 = vshll.u32 %v3207, 16
        %v3543 = vrot.slane %v3541, 5
        %v3544 = vor.u32 %v3540, %v3543
        %v3545 = vrot.slane %v3544, 4
        %v3547 = vshll.u32 %v3208, 16
        %v3549 = vrot.slane %v3547, 5
        %v3550 = vsel %vm3224, %v3545, %v3549
        %v3551 = vshrl.u32 %v3208, 16
        %v3553 = vrot.slane %v3551, 4
        %v3554 = vor.u32 %v3553, %v3549
        %v3555 = vrot.slane %v3554, 4
        %v3557 = vshll.u32 %v3209, 16
        %v3559 = vrot.slane %v3557, 5
        %v3560 = vsel %vm3224, %v3555, %v3559
        %v3562 = vshrl.u32 %v3210, 16
        %v3564 = vrot.slane %v3562, 4
        %v3565 = vshll.u32 %v3210, 16
        %v3567 = vrot.slane %v3565, 5
        %v3568 = vor.u32 %v3564, %v3567
        %v3569 = vrot.slane %v3568, 4
        %v3571 = vshll.u32 %v3211, 16
        %v3573 = vrot.slane %v3571, 5
        %v3574 = vsel %vm3224, %v3569, %v3573
        %v3575 = vshrl.u32 %v3211, 16
        %v3577 = vrot.slane %v3575, 4
        %v3578 = vor.u32 %v3577, %v3573
        %v3579 = vrot.slane %v3578, 4
        %v3581 = vshll.u32 %v3212, 16
        %v3583 = vrot.slane %v3581, 5
        %v3584 = vsel %vm3224, %v3579, %v3583
        %v3586 = vshrl.u32 %v3213, 16
        %v3588 = vrot.slane %v3586, 4
        %v3589 = vshll.u32 %v3213, 16
        %v3591 = vrot.slane %v3589, 5
        %v3592 = vor.u32 %v3588, %v3591
        %v3593 = vrot.slane %v3592, 4
        %v3595 = vshll.u32 %v3214, 16
        %v3597 = vrot.slane %v3595, 5
        %v3598 = vsel %vm3224, %v3593, %v3597
        %v3599 = vshrl.u32 %v3214, 16
        %v3601 = vrot.slane %v3599, 4
        %v3602 = vor.u32 %v3601, %v3597
        %v3603 = vrot.slane %v3602, 4
        %v3605 = vshll.u32 %v3215, 16
        %v3607 = vrot.slane %v3605, 5
        %v3608 = vsel %vm3224, %v3603, %v3607
        %vm3657 = vcmask 1042432
        %vm3658 = vcmask 1046532
        %vm3659 = vmor %vm3657, %vm3658
        %v3660 = vrot.slane %v3168, 5
        %v3661 = vrot.slane %v3660, 4
        %v3662 = vrot.slane %v3169, 5
        %v3663 = vsel %vm3659, %v3661, %v3662
        %v3664 = vrot.slane %v3662, 4
        %v3665 = vrot.slane %v3170, 5
        %v3666 = vsel %vm3659, %v3664, %v3665
        %v3667 = vrot.slane %v3171, 5
        %v3668 = vrot.slane %v3667, 4
        %v3669 = vrot.slane %v3172, 5
        %v3670 = vsel %vm3659, %v3668, %v3669
        %v3671 = vrot.slane %v3669, 4
        %v3672 = vrot.slane %v3173, 5
        %v3673 = vsel %vm3659, %v3671, %v3672
        %v3674 = vrot.slane %v3174, 5
        %v3675 = vrot.slane %v3674, 4
        %v3676 = vrot.slane %v3175, 5
        %v3677 = vsel %vm3659, %v3675, %v3676
        %v3678 = vrot.slane %v3676, 4
        %v3679 = vrot.slane %v3176, 5
        %v3680 = vsel %vm3659, %v3678, %v3679
        %v3681 = vrot.slane %v3177, 5
        %v3682 = vrot.slane %v3681, 4
        %v3683 = vrot.slane %v3178, 5
        %v3684 = vsel %vm3659, %v3682, %v3683
        %v3685 = vrot.slane %v3683, 4
        %v3686 = vrot.slane %v3179, 5
        %v3687 = vsel %vm3659, %v3685, %v3686
        %v3688 = vrot.slane %v3180, 5
        %v3689 = vrot.slane %v3688, 4
        %v3690 = vrot.slane %v3181, 5
        %v3691 = vsel %vm3659, %v3689, %v3690
        %v3692 = vrot.slane %v3690, 4
        %v3693 = vrot.slane %v3182, 5
        %v3694 = vsel %vm3659, %v3692, %v3693
        %v3695 = vrot.slane %v3183, 5
        %v3696 = vrot.slane %v3695, 4
        %v3697 = vrot.slane %v3184, 5
        %v3698 = vsel %vm3659, %v3696, %v3697
        %v3699 = vrot.slane %v3697, 4
        %v3700 = vrot.slane %v3185, 5
        %v3701 = vsel %vm3659, %v3699, %v3700
        %v3702 = vrot.slane %v3186, 5
        %v3703 = vrot.slane %v3702, 4
        %v3704 = vrot.slane %v3187, 5
        %v3705 = vsel %vm3659, %v3703, %v3704
        %v3706 = vrot.slane %v3704, 4
        %v3707 = vrot.slane %v3188, 5
        %v3708 = vsel %vm3659, %v3706, %v3707
        %v3709 = vrot.slane %v3189, 5
        %v3710 = vrot.slane %v3709, 4
        %v3711 = vrot.slane %v3190, 5
        %v3712 = vsel %vm3659, %v3710, %v3711
        %v3713 = vrot.slane %v3711, 4
        %v3714 = vrot.slane %v3191, 5
        %v3715 = vsel %vm3659, %v3713, %v3714
        %v3716 = vrot.slane %v3192, 5
        %v3717 = vrot.slane %v3716, 4
        %v3718 = vrot.slane %v3193, 5
        %v3719 = vsel %vm3659, %v3717, %v3718
        %v3720 = vrot.slane %v3718, 4
        %v3721 = vrot.slane %v3194, 5
        %v3722 = vsel %vm3659, %v3720, %v3721
        %v3723 = vrot.slane %v3195, 5
        %v3724 = vrot.slane %v3723, 4
        %v3725 = vrot.slane %v3196, 5
        %v3726 = vsel %vm3659, %v3724, %v3725
        %v3727 = vrot.slane %v3725, 4
        %v3728 = vrot.slane %v3197, 5
        %v3729 = vsel %vm3659, %v3727, %v3728
        %v3730 = vrot.slane %v3198, 5
        %v3731 = vrot.slane %v3730, 4
        %v3732 = vrot.slane %v3199, 5
        %v3733 = vsel %vm3659, %v3731, %v3732
        %v3734 = vrot.slane %v3732, 4
        %v3735 = vrot.slane %v3200, 5
        %v3736 = vsel %vm3659, %v3734, %v3735
        %v3737 = vrot.slane %v3201, 5
        %v3738 = vrot.slane %v3737, 4
        %v3739 = vrot.slane %v3202, 5
        %v3740 = vsel %vm3659, %v3738, %v3739
        %v3741 = vrot.slane %v3739, 4
        %v3742 = vrot.slane %v3203, 5
        %v3743 = vsel %vm3659, %v3741, %v3742
        %v3744 = vrot.slane %v3204, 5
        %v3745 = vrot.slane %v3744, 4
        %v3746 = vrot.slane %v3205, 5
        %v3747 = vsel %vm3659, %v3745, %v3746
        %v3748 = vrot.slane %v3746, 4
        %v3749 = vrot.slane %v3206, 5
        %v3750 = vsel %vm3659, %v3748, %v3749
        %v3751 = vrot.slane %v3207, 5
        %v3752 = vrot.slane %v3751, 4
        %v3753 = vrot.slane %v3208, 5
        %v3754 = vsel %vm3659, %v3752, %v3753
        %v3755 = vrot.slane %v3753, 4
        %v3756 = vrot.slane %v3209, 5
        %v3757 = vsel %vm3659, %v3755, %v3756
        %v3758 = vrot.slane %v3210, 5
        %v3759 = vrot.slane %v3758, 4
        %v3760 = vrot.slane %v3211, 5
        %v3761 = vsel %vm3659, %v3759, %v3760
        %v3762 = vrot.slane %v3760, 4
        %v3763 = vrot.slane %v3212, 5
        %v3764 = vsel %vm3659, %v3762, %v3763
        %v3765 = vrot.slane %v3213, 5
        %v3766 = vrot.slane %v3765, 4
        %v3767 = vrot.slane %v3214, 5
        %v3768 = vsel %vm3659, %v3766, %v3767
        %v3769 = vrot.slane %v3767, 4
        %v3770 = vrot.slane %v3215, 5
        %v3771 = vsel %vm3659, %v3769, %v3770
        %v3773 = vshrl.u32 %v3216, 16
        %v3775 = vrot.slane %v3773, 4
        %v3776 = vshll.u32 %v3216, 16
        %v3778 = vrot.slane %v3776, 5
        %v3779 = vor.u32 %v3775, %v3778
        %v3780 = vrot.slane %v3779, 4
        %v3782 = vshll.u32 %v3217, 16
        %v3784 = vrot.slane %v3782, 5
        %v3785 = vsel %vm3224, %v3780, %v3784
        %v3786 = vshrl.u32 %v3217, 16
        %v3788 = vrot.slane %v3786, 4
        %v3789 = vor.u32 %v3788, %v3784
        %v3790 = vrot.slane %v3789, 4
        %v3792 = vshll.u32 %v3218, 16
        %v3794 = vrot.slane %v3792, 5
        %v3795 = vsel %vm3224, %v3790, %v3794
        %v3799 = vrot.slane %v3216, 5
        %v3800 = vrot.slane %v3799, 4
        %v3801 = vrot.slane %v3217, 5
        %v3802 = vsel %vm3659, %v3800, %v3801
        %v3803 = vrot.slane %v3801, 4
        %v3804 = vrot.slane %v3218, 5
        %v3805 = vsel %vm3659, %v3803, %v3804
        %v3807 = vshrl.u32 %v3219, 16
        %v3809 = vrot.slane %v3807, 4
        %v3810 = vshll.u32 %v3219, 16
        %v3812 = vrot.slane %v3810, 5
        %v3813 = vor.u32 %v3809, %v3812
        %v3814 = vrot.slane %v3813, 4
        %v3816 = vshll.u32 %v3220, 16
        %v3818 = vrot.slane %v3816, 5
        %v3819 = vsel %vm3224, %v3814, %v3818
        %v3820 = vshrl.u32 %v3220, 16
        %v3822 = vrot.slane %v3820, 4
        %v3823 = vor.u32 %v3822, %v3818
        %v3824 = vrot.slane %v3823, 4
        %v3826 = vshll.u32 %v3221, 16
        %v3828 = vrot.slane %v3826, 5
        %v3829 = vsel %vm3224, %v3824, %v3828
        %v3833 = vrot.slane %v3219, 5
        %v3834 = vrot.slane %v3833, 4
        %v3835 = vrot.slane %v3220, 5
        %v3836 = vsel %vm3659, %v3834, %v3835
        %v3837 = vrot.slane %v3835, 4
        %v3838 = vrot.slane %v3221, 5
        %v3839 = vsel %vm3659, %v3837, %v3838
        %v3840 = vunpack.c.l.b16 %v3168
        %v3841 = vunpack.c.l.b16 %v3169
        %v3842 = vunpack.c.l.b16 %v3171
        %v3843 = vunpack.c.l.b16 %v3172
        %v3844 = vunpack.c.l.b16 %v3174
        %v3845 = vunpack.c.l.b16 %v3175
        %v3846 = vunpack.c.l.b16 %v3177
        %v3847 = vunpack.c.l.b16 %v3178
        %v3848 = vunpack.c.l.b16 %v3180
        %v3849 = vunpack.c.l.b16 %v3181
        %v3850 = vunpack.c.l.b16 %v3183
        %v3851 = vunpack.c.l.b16 %v3184
        %v3852 = vunpack.c.l.b16 %v3186
        %v3853 = vunpack.c.l.b16 %v3187
        %v3854 = vunpack.c.l.b16 %v3189
        %v3855 = vunpack.c.l.b16 %v3190
        %v3856 = vunpack.c.l.b16 %v3192
        %v3857 = vunpack.c.l.b16 %v3193
        %v3858 = vunpack.c.l.b16 %v3195
        %v3859 = vunpack.c.l.b16 %v3196
        %v3860 = vunpack.c.l.b16 %v3198
        %v3861 = vunpack.c.l.b16 %v3199
        %v3862 = vunpack.c.l.b16 %v3201
        %v3863 = vunpack.c.l.b16 %v3202
        %v3864 = vunpack.c.l.b16 %v3204
        %v3865 = vunpack.c.l.b16 %v3205
        %v3866 = vunpack.c.l.b16 %v3207
        %v3867 = vunpack.c.l.b16 %v3208
        %v3868 = vunpack.c.l.b16 %v3210
        %v3869 = vunpack.c.l.b16 %v3211
        %v3870 = vunpack.c.l.b16 %v3213
        %v3871 = vunpack.c.l.b16 %v3214
        %v3872 = vpack.c.b16 %v3841, %v3840
        %v3873 = vpack.c.b16 %v3843, %v3842
        %v3874 = vpack.c.b16 %v3845, %v3844
        %v3875 = vpack.c.b16 %v3847, %v3846
        %v3876 = vpack.c.b16 %v3849, %v3848
        %v3877 = vpack.c.b16 %v3851, %v3850
        %v3878 = vpack.c.b16 %v3853, %v3852
        %v3879 = vpack.c.b16 %v3855, %v3854
        %v3880 = vpack.c.b16 %v3857, %v3856
        %v3881 = vpack.c.b16 %v3859, %v3858
        %v3882 = vpack.c.b16 %v3861, %v3860
        %v3883 = vpack.c.b16 %v3863, %v3862
        %v3884 = vpack.c.b16 %v3865, %v3864
        %v3885 = vpack.c.b16 %v3867, %v3866
        %v3886 = vpack.c.b16 %v3869, %v3868
        %v3887 = vpack.c.b16 %v3871, %v3870
        %v3904 = vunpack.c.l.b16 %v3238
        %v3905 = vunpack.c.l.b16 %v3248
        %v3906 = vunpack.c.l.b16 %v3262
        %v3907 = vunpack.c.l.b16 %v3272
        %v3908 = vunpack.c.l.b16 %v3286
        %v3909 = vunpack.c.l.b16 %v3296
        %v3910 = vunpack.c.l.b16 %v3310
        %v3911 = vunpack.c.l.b16 %v3320
        %v3912 = vunpack.c.l.b16 %v3334
        %v3913 = vunpack.c.l.b16 %v3344
        %v3914 = vunpack.c.l.b16 %v3358
        %v3915 = vunpack.c.l.b16 %v3368
        %v3916 = vunpack.c.l.b16 %v3382
        %v3917 = vunpack.c.l.b16 %v3392
        %v3918 = vunpack.c.l.b16 %v3406
        %v3919 = vunpack.c.l.b16 %v3416
        %v3920 = vunpack.c.l.b16 %v3430
        %v3921 = vunpack.c.l.b16 %v3440
        %v3922 = vunpack.c.l.b16 %v3454
        %v3923 = vunpack.c.l.b16 %v3464
        %v3924 = vunpack.c.l.b16 %v3478
        %v3925 = vunpack.c.l.b16 %v3488
        %v3926 = vunpack.c.l.b16 %v3502
        %v3927 = vunpack.c.l.b16 %v3512
        %v3928 = vunpack.c.l.b16 %v3526
        %v3929 = vunpack.c.l.b16 %v3536
        %v3930 = vunpack.c.l.b16 %v3550
        %v3931 = vunpack.c.l.b16 %v3560
        %v3932 = vunpack.c.l.b16 %v3574
        %v3933 = vunpack.c.l.b16 %v3584
        %v3934 = vunpack.c.l.b16 %v3598
        %v3935 = vunpack.c.l.b16 %v3608
        %v3936 = vpack.c.b16 %v3905, %v3904
        %v3937 = vpack.c.b16 %v3907, %v3906
        %v3938 = vpack.c.b16 %v3909, %v3908
        %v3939 = vpack.c.b16 %v3911, %v3910
        %v3940 = vpack.c.b16 %v3913, %v3912
        %v3941 = vpack.c.b16 %v3915, %v3914
        %v3942 = vpack.c.b16 %v3917, %v3916
        %v3943 = vpack.c.b16 %v3919, %v3918
        %v3944 = vpack.c.b16 %v3921, %v3920
        %v3945 = vpack.c.b16 %v3923, %v3922
        %v3946 = vpack.c.b16 %v3925, %v3924
        %v3947 = vpack.c.b16 %v3927, %v3926
        %v3948 = vpack.c.b16 %v3929, %v3928
        %v3949 = vpack.c.b16 %v3931, %v3930
        %v3950 = vpack.c.b16 %v3933, %v3932
        %v3951 = vpack.c.b16 %v3935, %v3934
        %v3968 = vunpack.c.l.b16 %v3663
        %v3969 = vunpack.c.l.b16 %v3666
        %v3970 = vunpack.c.l.b16 %v3670
        %v3971 = vunpack.c.l.b16 %v3673
        %v3972 = vunpack.c.l.b16 %v3677
        %v3973 = vunpack.c.l.b16 %v3680
        %v3974 = vunpack.c.l.b16 %v3684
        %v3975 = vunpack.c.l.b16 %v3687
        %v3976 = vunpack.c.l.b16 %v3691
        %v3977 = vunpack.c.l.b16 %v3694
        %v3978 = vunpack.c.l.b16 %v3698
        %v3979 = vunpack.c.l.b16 %v3701
        %v3980 = vunpack.c.l.b16 %v3705
        %v3981 = vunpack.c.l.b16 %v3708
        %v3982 = vunpack.c.l.b16 %v3712
        %v3983 = vunpack.c.l.b16 %v3715
        %v3984 = vunpack.c.l.b16 %v3719
        %v3985 = vunpack.c.l.b16 %v3722
        %v3986 = vunpack.c.l.b16 %v3726
        %v3987 = vunpack.c.l.b16 %v3729
        %v3988 = vunpack.c.l.b16 %v3733
        %v3989 = vunpack.c.l.b16 %v3736
        %v3990 = vunpack.c.l.b16 %v3740
        %v3991 = vunpack.c.l.b16 %v3743
        %v3992 = vunpack.c.l.b16 %v3747
        %v3993 = vunpack.c.l.b16 %v3750
        %v3994 = vunpack.c.l.b16 %v3754
        %v3995 = vunpack.c.l.b16 %v3757
        %v3996 = vunpack.c.l.b16 %v3761
        %v3997 = vunpack.c.l.b16 %v3764
        %v3998 = vunpack.c.l.b16 %v3768
        %v3999 = vunpack.c.l.b16 %v3771
        %v4000 = vpack.c.b16 %v3969, %v3968
        %v4001 = vpack.c.b16 %v3971, %v3970
        %v4002 = vpack.c.b16 %v3973, %v3972
        %v4003 = vpack.c.b16 %v3975, %v3974
        %v4004 = vpack.c.b16 %v3977, %v3976
        %v4005 = vpack.c.b16 %v3979, %v3978
        %v4006 = vpack.c.b16 %v3981, %v3980
        %v4007 = vpack.c.b16 %v3983, %v3982
        %v4008 = vpack.c.b16 %v3985, %v3984
        %v4009 = vpack.c.b16 %v3987, %v3986
        %v4010 = vpack.c.b16 %v3989, %v3988
        %v4011 = vpack.c.b16 %v3991, %v3990
        %v4012 = vpack.c.b16 %v3993, %v3992
        %v4013 = vpack.c.b16 %v3995, %v3994
        %v4014 = vpack.c.b16 %v3997, %v3996
        %v4015 = vpack.c.b16 %v3999, %v3998
        %v4032 = vunpack.c.l.b16 %v3216
        %v4033 = vunpack.c.l.b16 %v3217
        %v4034 = vpack.c.b16 %v4033, %v4032
        %v4036 = vunpack.c.l.b16 %v3785
        %v4037 = vunpack.c.l.b16 %v3795
        %v4038 = vpack.c.b16 %v4037, %v4036
        %v4040 = vunpack.c.l.b16 %v3802
        %v4041 = vunpack.c.l.b16 %v3805
        %v4042 = vpack.c.b16 %v4041, %v4040
        %v4044 = vunpack.c.l.b16 %v3219
        %v4045 = vunpack.c.l.b16 %v3220
        %v4046 = vpack.c.b16 %v4045, %v4044
        %v4048 = vunpack.c.l.b16 %v3819
        %v4049 = vunpack.c.l.b16 %v3829
        %v4050 = vpack.c.b16 %v4049, %v4048
        %v4052 = vunpack.c.l.b16 %v3836
        %v4053 = vunpack.c.l.b16 %v3839
        %v4054 = vpack.c.b16 %v4053, %v4052
        %v4056 = vld [vmem:[#allocation5] sm:$0xf]
        %v4057 = vld [vmem:[#allocation5 + $0x4] sm:$0xf]
        %v4058 = vld [vmem:[#allocation5 + $0x8] sm:$0xf]
        %v4059 = vld [vmem:[#allocation5 + $0xc] sm:$0xf]
        %v4060 = vld [vmem:[#allocation5 + $0x10] sm:$0xf]
        %v4061 = vld [vmem:[#allocation5 + $0x14] sm:$0xf]
        %v4062 = vld [vmem:[#allocation5 + $0x18] sm:$0xf]
        %v4063 = vld [vmem:[#allocation5 + $0x1c] sm:$0xf]
        %v4064 = vld [vmem:[#allocation5 + $0x20] sm:$0xf]
        %v4065 = vld [vmem:[#allocation5 + $0x24] sm:$0xf]
        %v4066 = vld [vmem:[#allocation5 + $0x28] sm:$0xf]
        %v4067 = vld [vmem:[#allocation5 + $0x2c] sm:$0xf]
        %v4068 = vld [vmem:[#allocation5 + $0x30] sm:$0xf]
        %v4069 = vld [vmem:[#allocation5 + $0x34] sm:$0xf]
        %v4070 = vld [vmem:[#allocation5 + $0x38] sm:$0xf]
        %v4071 = vld [vmem:[#allocation5 + $0x3c] sm:$0xf]
        %v4072 = vld [vmem:[#allocation5 + $0x40] sm:$0xf]
        %v4073 = vld [vmem:[#allocation5 + $0x44] sm:$0xf]
        %v4074 = vld [vmem:[#allocation5 + $0x48] sm:$0xf]
        %v4075 = vld [vmem:[#allocation5 + $0x4c] sm:$0xf]
        %v4076 = vld [vmem:[#allocation5 + $0x50] sm:$0xf]
        %v4077 = vld [vmem:[#allocation5 + $0x54] sm:$0xf]
        %v4078 = vld [vmem:[#allocation5 + $0x58] sm:$0xf]
        %v4079 = vld [vmem:[#allocation5 + $0x5c] sm:$0xf]
        %v4080 = vld [vmem:[#allocation5 + $0x60] sm:$0xf]
        %v4081 = vld [vmem:[#allocation5 + $0x64] sm:$0xf]
        %v4082 = vld [vmem:[#allocation5 + $0x68] sm:$0xf]
        %v4083 = vld [vmem:[#allocation5 + $0x6c] sm:$0xf]
        %v4084 = vld [vmem:[#allocation5 + $0x70] sm:$0xf]
        %v4085 = vld [vmem:[#allocation5 + $0x74] sm:$0xf]
        %v4086 = vld [vmem:[#allocation5 + $0x78] sm:$0xf]
        %v4087 = vld [vmem:[#allocation5 + $0x7c] sm:$0xf]
        %v4088 = vld [vmem:[#allocation5 + $0x80] sm:$0xf]
        %v4089 = vld [vmem:[#allocation5 + $0x84] sm:$0xf]
        %v4090 = vld [vmem:[#allocation5 + $0x88] sm:$0xf]
        %v4091 = vld [vmem:[#allocation5 + $0x8c] sm:$0xf]
        %v4092 = vld [vmem:[#allocation5 + $0x90] sm:$0xf]
        %v4093 = vld [vmem:[#allocation5 + $0x94] sm:$0xf]
        %v4094 = vld [vmem:[#allocation5 + $0x98] sm:$0xf]
        %v4095 = vld [vmem:[#allocation5 + $0x9c] sm:$0xf]
        %v4096 = vld [vmem:[#allocation5 + $0xa0] sm:$0xf]
        %v4097 = vld [vmem:[#allocation5 + $0xa4] sm:$0xf]
        %v4098 = vld [vmem:[#allocation5 + $0xa8] sm:$0xf]
        %v4099 = vld [vmem:[#allocation5 + $0xac] sm:$0xf]
        %v4100 = vld [vmem:[#allocation5 + $0xb0] sm:$0xf]
        %v4101 = vld [vmem:[#allocation5 + $0xb4] sm:$0xf]
        %v4102 = vld [vmem:[#allocation5 + $0xb8] sm:$0xf]
        %v4103 = vld [vmem:[#allocation5 + $0xbc] sm:$0xf]
        %v4104 = vld [vmem:[#allocation5 + $0xc0] sm:$0xf]
        %v4105 = vld [vmem:[#allocation5 + $0xc4] sm:$0xf]
        %v4106 = vld [vmem:[#allocation5 + $0xc8] sm:$0xf]
        %v4107 = vld [vmem:[#allocation5 + $0xcc] sm:$0xf]
        %v4108 = vld [vmem:[#allocation5 + $0xd0] sm:$0xf]
        %v4109 = vld [vmem:[#allocation5 + $0xd4] sm:$0xf]
        %v4110 = vld [vmem:[#allocation5 + $0xd8] sm:$0xf]
        %v4111 = vld [vmem:[#allocation5 + $0xdc] sm:$0xf]
        %v4112 = vld [vmem:[#allocation5 + $0xe0] sm:$0xf]
        %v4113 = vld [vmem:[#allocation5 + $0xe4] sm:$0xf]
        %v4114 = vld [vmem:[#allocation5 + $0xe8] sm:$0xf]
        %v4115 = vld [vmem:[#allocation5 + $0xec] sm:$0xf]
        %v4116 = vld [vmem:[#allocation5 + $0xf0] sm:$0xf]
        %v4117 = vld [vmem:[#allocation5 + $0xf4] sm:$0xf]
        %v4118 = vld [vmem:[#allocation5 + $0xf8] sm:$0xf]
        %v4119 = vld [vmem:[#allocation5 + $0xfc] sm:$0xf]
        %v4120 = vld [vmem:[#allocation5 + $0x100] sm:$0xf]
        %v4121 = vld [vmem:[#allocation5 + $0x104] sm:$0xf]
        %v4122 = vld [vmem:[#allocation5 + $0x108] sm:$0xf]
        %v4123 = vld [vmem:[#allocation5 + $0x10c] sm:$0xf]
        %v4124 = vld [vmem:[#allocation5 + $0x110] sm:$0xf]
        %v4125 = vld [vmem:[#allocation5 + $0x114] sm:$0xf]
        %v4126 = vld [vmem:[#allocation5 + $0x118] sm:$0xf]
        %v4127 = vld [vmem:[#allocation5 + $0x11c] sm:$0xf]
        %v4128 = vld [vmem:[#allocation5 + $0x120] sm:$0xf]
        %v4129 = vld [vmem:[#allocation5 + $0x124] sm:$0xf]
        %v4130 = vld [vmem:[#allocation5 + $0x128] sm:$0xf]
        %v4131 = vld [vmem:[#allocation5 + $0x12c] sm:$0xf]
        %v4132 = vld [vmem:[#allocation5 + $0x130] sm:$0xf]
        %v4133 = vld [vmem:[#allocation5 + $0x134] sm:$0xf]
        %v4134 = vld [vmem:[#allocation5 + $0x138] sm:$0xf]
        %v4135 = vld [vmem:[#allocation5 + $0x13c] sm:$0xf]
        %v4136 = vld [vmem:[#allocation5 + $0x140] sm:$0xf]
        %v4137 = vld [vmem:[#allocation5 + $0x144] sm:$0xf]
        %v4138 = vld [vmem:[#allocation5 + $0x148] sm:$0xf]
        %v4139 = vld [vmem:[#allocation5 + $0x14c] sm:$0xf]
        %v4140 = vld [vmem:[#allocation5 + $0x150] sm:$0xf]
        %v4141 = vld [vmem:[#allocation5 + $0x154] sm:$0xf]
        %v4142 = vld [vmem:[#allocation5 + $0x158] sm:$0xf]
        %v4143 = vld [vmem:[#allocation5 + $0x15c] sm:$0xf]
        %v4144 = vld [vmem:[#allocation5 + $0x160] sm:$0xf]
        %v4145 = vld [vmem:[#allocation5 + $0x164] sm:$0xf]
        %v4146 = vld [vmem:[#allocation5 + $0x168] sm:$0xf]
        %v4147 = vld [vmem:[#allocation5 + $0x16c] sm:$0xf]
        %v4148 = vld [vmem:[#allocation5 + $0x170] sm:$0xf]
        %v4149 = vld [vmem:[#allocation5 + $0x174] sm:$0xf]
        %v4150 = vld [vmem:[#allocation5 + $0x178] sm:$0xf]
        %v4151 = vld [vmem:[#allocation5 + $0x17c] sm:$0xf]
        %v4152 = vld [vmem:[#allocation5 + $0x180] sm:$0xf]
        %v4153 = vld [vmem:[#allocation5 + $0x184] sm:$0xf]
        %v4154 = vld [vmem:[#allocation5 + $0x188] sm:$0xf]
        %v4155 = vld [vmem:[#allocation5 + $0x18c] sm:$0xf]
        %v4156 = vld [vmem:[#allocation5 + $0x190] sm:$0xf]
        %v4157 = vld [vmem:[#allocation5 + $0x194] sm:$0xf]
        %v4158 = vld [vmem:[#allocation5 + $0x198] sm:$0xf]
        %v4159 = vld [vmem:[#allocation5 + $0x19c] sm:$0xf]
        %v4160 = vld [vmem:[#allocation5 + $0x1a0] sm:$0xf]
        %v4161 = vld [vmem:[#allocation5 + $0x1a4] sm:$0xf]
        %v4162 = vld [vmem:[#allocation5 + $0x1a8] sm:$0xf]
        %v4163 = vld [vmem:[#allocation5 + $0x1ac] sm:$0xf]
        %v4164 = vld [vmem:[#allocation5 + $0x1b0] sm:$0xf]
        %v4165 = vld [vmem:[#allocation5 + $0x1b4] sm:$0xf]
        %v4166 = vld [vmem:[#allocation5 + $0x1b8] sm:$0xf]
        %v4167 = vld [vmem:[#allocation5 + $0x1bc] sm:$0xf]
        %v4168 = vld [vmem:[#allocation5 + $0x1c0] sm:$0xf]
        %v4169 = vld [vmem:[#allocation5 + $0x1c4] sm:$0xf]
        %v4170 = vld [vmem:[#allocation5 + $0x1c8] sm:$0xf]
        %v4171 = vld [vmem:[#allocation5 + $0x1cc] sm:$0xf]
        %v4172 = vld [vmem:[#allocation5 + $0x1d0] sm:$0xf]
        %v4173 = vld [vmem:[#allocation5 + $0x1d4] sm:$0xf]
        %v4174 = vld [vmem:[#allocation5 + $0x1d8] sm:$0xf]
        %v4175 = vld [vmem:[#allocation5 + $0x1dc] sm:$0xf]
        %v4176 = vld [vmem:[#allocation5 + $0x1e0] sm:$0xf]
        %v4177 = vld [vmem:[#allocation5 + $0x1e4] sm:$0xf]
        %v4178 = vld [vmem:[#allocation5 + $0x1e8] sm:$0xf]
        %v4179 = vld [vmem:[#allocation5 + $0x1ec] sm:$0xf]
        %v4180 = vld [vmem:[#allocation5 + $0x1f0] sm:$0xf]
        %v4181 = vld [vmem:[#allocation5 + $0x1f4] sm:$0xf]
        %v4182 = vld [vmem:[#allocation5 + $0x1f8] sm:$0xf]
        %v4183 = vld [vmem:[#allocation5 + $0x1fc] sm:$0xf]
        %v4184 = vld [vmem:[#allocation5 + $0x200] sm:$0xf]
        %v4185 = vld [vmem:[#allocation5 + $0x204] sm:$0xf]
        %v4186 = vld [vmem:[#allocation5 + $0x208] sm:$0xf]
        %v4187 = vld [vmem:[#allocation5 + $0x20c] sm:$0xf]
        %v4188 = vld [vmem:[#allocation5 + $0x210] sm:$0xf]
        %v4189 = vld [vmem:[#allocation5 + $0x214] sm:$0xf]
        %v4190 = vld [vmem:[#allocation5 + $0x218] sm:$0xf]
        %v4191 = vld [vmem:[#allocation5 + $0x21c] sm:$0xf]
        %v4192 = vld [vmem:[#allocation5 + $0x220] sm:$0xf]
        %v4193 = vld [vmem:[#allocation5 + $0x224] sm:$0xf]
        %v4194 = vld [vmem:[#allocation5 + $0x228] sm:$0xf]
        %v4195 = vld [vmem:[#allocation5 + $0x22c] sm:$0xf]
        %v4196 = vld [vmem:[#allocation5 + $0x230] sm:$0xf]
        %v4197 = vld [vmem:[#allocation5 + $0x234] sm:$0xf]
        %v4198 = vld [vmem:[#allocation5 + $0x238] sm:$0xf]
        %v4199 = vld [vmem:[#allocation5 + $0x23c] sm:$0xf]
        %v4200 = vld [vmem:[%s4] sm:$0x1]
        %v4202 = vlaneseq
        %v4203 = vshrl.u32 %v4202, 7
        %v4204 = vsub.s32 0, %v4203
        %v4205 = vrot.slane %v4200, %v4204
        %v4351 = vunpack.c.l.b16 %v4056
        %v4352 = vunpack.c.l.b16 %v4057
        %v4353 = vunpack.c.l.b16 %v4058
        %v4354 = vunpack.c.l.b16 %v4059
        %v4355 = vunpack.c.l.b16 %v4060
        %v4356 = vunpack.c.l.b16 %v4061
        %v4357 = vunpack.c.l.b16 %v4062
        %v4358 = vunpack.c.l.b16 %v4063
        %v4359 = vunpack.c.l.b16 %v4064
        %v4360 = vunpack.c.l.b16 %v4065
        %v4361 = vunpack.c.l.b16 %v4066
        %v4362 = vunpack.c.l.b16 %v4067
        %v4363 = vunpack.c.l.b16 %v4068
        %v4364 = vunpack.c.l.b16 %v4069
        %v4365 = vunpack.c.l.b16 %v4070
        %v4366 = vunpack.c.l.b16 %v4071
        %v4367 = vunpack.c.l.b16 %v4072
        %v4368 = vunpack.c.l.b16 %v4073
        %v4369 = vunpack.c.l.b16 %v4074
        %v4370 = vunpack.c.l.b16 %v4075
        %v4371 = vunpack.c.l.b16 %v4076
        %v4372 = vunpack.c.l.b16 %v4077
        %v4373 = vunpack.c.l.b16 %v4078
        %v4374 = vunpack.c.l.b16 %v4079
        %v4375 = vunpack.c.l.b16 %v4080
        %v4376 = vunpack.c.l.b16 %v4081
        %v4377 = vunpack.c.l.b16 %v4082
        %v4378 = vunpack.c.l.b16 %v4083
        %v4379 = vunpack.c.l.b16 %v4084
        %v4380 = vunpack.c.l.b16 %v4085
        %v4381 = vunpack.c.l.b16 %v4086
        %v4382 = vunpack.c.l.b16 %v4087
        %v4383 = vunpack.c.l.b16 %v4088
        %v4384 = vunpack.c.l.b16 %v4089
        %v4385 = vunpack.c.l.b16 %v4090
        %v4386 = vunpack.c.l.b16 %v4091
        %v4387 = vunpack.c.l.b16 %v4092
        %v4388 = vunpack.c.l.b16 %v4093
        %v4389 = vunpack.c.l.b16 %v4094
        %v4390 = vunpack.c.l.b16 %v4095
        %v4391 = vunpack.c.l.b16 %v4096
        %v4392 = vunpack.c.l.b16 %v4097
        %v4393 = vunpack.c.l.b16 %v4098
        %v4394 = vunpack.c.l.b16 %v4099
        %v4395 = vunpack.c.l.b16 %v4100
        %v4396 = vunpack.c.l.b16 %v4101
        %v4397 = vunpack.c.l.b16 %v4102
        %v4398 = vunpack.c.l.b16 %v4103
        %v4399 = vunpack.c.l.b16 %v4104
        %v4400 = vunpack.c.l.b16 %v4105
        %v4401 = vunpack.c.l.b16 %v4106
        %v4402 = vunpack.c.l.b16 %v4107
        %v4403 = vunpack.c.l.b16 %v4108
        %v4404 = vunpack.c.l.b16 %v4109
        %v4405 = vunpack.c.l.b16 %v4110
        %v4406 = vunpack.c.l.b16 %v4111
        %v4407 = vunpack.c.l.b16 %v4112
        %v4408 = vunpack.c.l.b16 %v4113
        %v4409 = vunpack.c.l.b16 %v4114
        %v4410 = vunpack.c.l.b16 %v4115
        %v4411 = vunpack.c.l.b16 %v4116
        %v4412 = vunpack.c.l.b16 %v4117
        %v4413 = vunpack.c.l.b16 %v4118
        %v4414 = vunpack.c.l.b16 %v4119
        %v4415 = vunpack.c.l.b16 %v4120
        %v4416 = vunpack.c.l.b16 %v4121
        %v4417 = vunpack.c.l.b16 %v4122
        %v4418 = vunpack.c.l.b16 %v4123
        %v4419 = vunpack.c.l.b16 %v4124
        %v4420 = vunpack.c.l.b16 %v4125
        %v4421 = vunpack.c.l.b16 %v4126
        %v4422 = vunpack.c.l.b16 %v4127
        %v4423 = vunpack.c.l.b16 %v4128
        %v4424 = vunpack.c.l.b16 %v4129
        %v4425 = vunpack.c.l.b16 %v4130
        %v4426 = vunpack.c.l.b16 %v4131
        %v4427 = vunpack.c.l.b16 %v4132
        %v4428 = vunpack.c.l.b16 %v4133
        %v4429 = vunpack.c.l.b16 %v4134
        %v4430 = vunpack.c.l.b16 %v4135
        %v4431 = vunpack.c.l.b16 %v4136
        %v4432 = vunpack.c.l.b16 %v4137
        %v4433 = vunpack.c.l.b16 %v4138
        %v4434 = vunpack.c.l.b16 %v4139
        %v4435 = vunpack.c.l.b16 %v4140
        %v4436 = vunpack.c.l.b16 %v4141
        %v4437 = vunpack.c.l.b16 %v4142
        %v4438 = vunpack.c.l.b16 %v4143
        %v4439 = vunpack.c.l.b16 %v4144
        %v4440 = vunpack.c.l.b16 %v4145
        %v4441 = vunpack.c.l.b16 %v4146
        %v4442 = vunpack.c.l.b16 %v4147
        %v4443 = vunpack.c.l.b16 %v4148
        %v4444 = vunpack.c.l.b16 %v4149
        %v4445 = vunpack.c.l.b16 %v4150
        %v4446 = vunpack.c.l.b16 %v4151
        %v4447 = vunpack.c.l.b16 %v4152
        %v4448 = vunpack.c.l.b16 %v4153
        %v4449 = vunpack.c.l.b16 %v4154
        %v4450 = vunpack.c.l.b16 %v4155
        %v4451 = vunpack.c.l.b16 %v4156
        %v4452 = vunpack.c.l.b16 %v4157
        %v4453 = vunpack.c.l.b16 %v4158
        %v4454 = vunpack.c.l.b16 %v4159
        %v4455 = vunpack.c.l.b16 %v4160
        %v4456 = vunpack.c.l.b16 %v4161
        %v4457 = vunpack.c.l.b16 %v4162
        %v4458 = vunpack.c.l.b16 %v4163
        %v4459 = vunpack.c.l.b16 %v4164
        %v4460 = vunpack.c.l.b16 %v4165
        %v4461 = vunpack.c.l.b16 %v4166
        %v4462 = vunpack.c.l.b16 %v4167
        %v4463 = vunpack.c.l.b16 %v4168
        %v4464 = vunpack.c.l.b16 %v4169
        %v4465 = vunpack.c.l.b16 %v4170
        %v4466 = vunpack.c.l.b16 %v4171
        %v4467 = vunpack.c.l.b16 %v4172
        %v4468 = vunpack.c.l.b16 %v4173
        %v4469 = vunpack.c.l.b16 %v4174
        %v4470 = vunpack.c.l.b16 %v4175
        %v4471 = vunpack.c.l.b16 %v4176
        %v4472 = vunpack.c.l.b16 %v4177
        %v4473 = vunpack.c.l.b16 %v4178
        %v4474 = vunpack.c.l.b16 %v4179
        %v4475 = vunpack.c.l.b16 %v4180
        %v4476 = vunpack.c.l.b16 %v4181
        %v4477 = vunpack.c.l.b16 %v4182
        %v4478 = vunpack.c.l.b16 %v4183
        %v4479 = vunpack.c.l.b16 %v4184
        %v4480 = vunpack.c.l.b16 %v4185
        %v4481 = vunpack.c.l.b16 %v4186
        %v4482 = vunpack.c.l.b16 %v4187
        %v4483 = vunpack.c.l.b16 %v4188
        %v4484 = vunpack.c.l.b16 %v4189
        %v4485 = vunpack.c.l.b16 %v4190
        %v4486 = vunpack.c.l.b16 %v4191
        %v4487 = vunpack.c.l.b16 %v4192
        %v4488 = vunpack.c.l.b16 %v4193
        %v4489 = vunpack.c.l.b16 %v4194
        %v4490 = vunpack.c.l.b16 %v4195
        %v4491 = vunpack.c.l.b16 %v4196
        %v4492 = vunpack.c.l.b16 %v4197
        %v4493 = vunpack.c.l.b16 %v4198
        %v4494 = vunpack.c.l.b16 %v4199
        %v4495 = vpack.c.b16 %v4352, %v4351
        %v4496 = vpack.c.b16 %v4354, %v4353
        %v4497 = vpack.c.b16 %v4356, %v4355
        %v4498 = vpack.c.b16 %v4358, %v4357
        %v4499 = vpack.c.b16 %v4360, %v4359
        %v4500 = vpack.c.b16 %v4362, %v4361
        %v4501 = vpack.c.b16 %v4364, %v4363
        %v4502 = vpack.c.b16 %v4366, %v4365
        %v4503 = vpack.c.b16 %v4368, %v4367
        %v4504 = vpack.c.b16 %v4370, %v4369
        %v4505 = vpack.c.b16 %v4372, %v4371
        %v4506 = vpack.c.b16 %v4374, %v4373
        %v4507 = vpack.c.b16 %v4376, %v4375
        %v4508 = vpack.c.b16 %v4378, %v4377
        %v4509 = vpack.c.b16 %v4380, %v4379
        %v4510 = vpack.c.b16 %v4382, %v4381
        %v4511 = vpack.c.b16 %v4384, %v4383
        %v4512 = vpack.c.b16 %v4386, %v4385
        %v4513 = vpack.c.b16 %v4388, %v4387
        %v4514 = vpack.c.b16 %v4390, %v4389
        %v4515 = vpack.c.b16 %v4392, %v4391
        %v4516 = vpack.c.b16 %v4394, %v4393
        %v4517 = vpack.c.b16 %v4396, %v4395
        %v4518 = vpack.c.b16 %v4398, %v4397
        %v4519 = vpack.c.b16 %v4400, %v4399
        %v4520 = vpack.c.b16 %v4402, %v4401
        %v4521 = vpack.c.b16 %v4404, %v4403
        %v4522 = vpack.c.b16 %v4406, %v4405
        %v4523 = vpack.c.b16 %v4408, %v4407
        %v4524 = vpack.c.b16 %v4410, %v4409
        %v4525 = vpack.c.b16 %v4412, %v4411
        %v4526 = vpack.c.b16 %v4414, %v4413
        %v4527 = vpack.c.b16 %v4416, %v4415
        %v4528 = vpack.c.b16 %v4418, %v4417
        %v4529 = vpack.c.b16 %v4420, %v4419
        %v4530 = vpack.c.b16 %v4422, %v4421
        %v4531 = vpack.c.b16 %v4424, %v4423
        %v4532 = vpack.c.b16 %v4426, %v4425
        %v4533 = vpack.c.b16 %v4428, %v4427
        %v4534 = vpack.c.b16 %v4430, %v4429
        %v4535 = vpack.c.b16 %v4432, %v4431
        %v4536 = vpack.c.b16 %v4434, %v4433
        %v4537 = vpack.c.b16 %v4436, %v4435
        %v4538 = vpack.c.b16 %v4438, %v4437
        %v4539 = vpack.c.b16 %v4440, %v4439
        %v4540 = vpack.c.b16 %v4442, %v4441
        %v4541 = vpack.c.b16 %v4444, %v4443
        %v4542 = vpack.c.b16 %v4446, %v4445
        %v4543 = vpack.c.b16 %v4448, %v4447
        %v4544 = vpack.c.b16 %v4450, %v4449
        %v4545 = vpack.c.b16 %v4452, %v4451
        %v4546 = vpack.c.b16 %v4454, %v4453
        %v4547 = vpack.c.b16 %v4456, %v4455
        %v4548 = vpack.c.b16 %v4458, %v4457
        %v4549 = vpack.c.b16 %v4460, %v4459
        %v4550 = vpack.c.b16 %v4462, %v4461
        %v4551 = vpack.c.b16 %v4464, %v4463
        %v4552 = vpack.c.b16 %v4466, %v4465
        %v4553 = vpack.c.b16 %v4468, %v4467
        %v4554 = vpack.c.b16 %v4470, %v4469
        %v4555 = vpack.c.b16 %v4472, %v4471
        %v4556 = vpack.c.b16 %v4474, %v4473
        %v4557 = vpack.c.b16 %v4476, %v4475
        %v4558 = vpack.c.b16 %v4478, %v4477
        %v4559 = vpack.c.b16 %v4480, %v4479
        %v4560 = vpack.c.b16 %v4482, %v4481
        %v4561 = vpack.c.b16 %v4484, %v4483
        %v4562 = vpack.c.b16 %v4486, %v4485
        %v4563 = vpack.c.b16 %v4488, %v4487
        %v4564 = vpack.c.b16 %v4490, %v4489
        %v4565 = vpack.c.b16 %v4492, %v4491
        %v4566 = vpack.c.b16 %v4494, %v4493
        %4639 = vmatprep.subr.bf16.mxu0 0
        %4640 = vmatpush1.bf16.msra.mxu0 %v4495
        %4641 = vmatprep.subr.bf16.mxu0 0
        %4642 = vmatpush1.bf16.msra.mxu0 %v4496
        %4643 = vmatprep.subr.bf16.mxu0 0
        %4644 = vmatpush1.bf16.msra.mxu0 %v4497
        %4645 = vmatprep.subr.bf16.mxu0 0
        %4646 = vmatpush1.bf16.msra.mxu0 %v4498
        %4647 = vmatprep.subr.bf16.mxu0 0
        %4648 = vmatpush1.bf16.msra.mxu0 %v4499
        %4649 = vmatprep.subr.bf16.mxu0 0
        %4650 = vmatpush1.bf16.msra.mxu0 %v4500
        %4651 = vmatprep.subr.bf16.mxu0 0
        %4652 = vmatpush1.bf16.msra.mxu0 %v4501
        %4653 = vmatprep.subr.bf16.mxu0 0
        %4654 = vmatpush1.bf16.msra.mxu0 %v4502
        %4655 = vmatprep.subr.bf16.mxu0 0
        %4656 = vmatpush1.bf16.msra.mxu0 %v4503
        %4657 = vmatprep.subr.bf16.mxu0 0
        %4658 = vmatpush1.bf16.msra.mxu0 %v4504
        %4659 = vmatprep.subr.bf16.mxu0 0
        %4660 = vmatpush1.bf16.msra.mxu0 %v4505
        %4661 = vmatprep.subr.bf16.mxu0 0
        %4662 = vmatpush1.bf16.msra.mxu0 %v4506
        %4663 = vmatprep.subr.bf16.mxu0 0
        %4664 = vmatpush1.bf16.msra.mxu0 %v4507
        %4665 = vmatprep.subr.bf16.mxu0 0
        %4666 = vmatpush1.bf16.msra.mxu0 %v4508
        %4667 = vmatprep.subr.bf16.mxu0 0
        %4668 = vmatpush1.bf16.msra.mxu0 %v4509
        %4669 = vmatprep.subr.bf16.mxu0 0
        %4670 = vmatpush1.bf16.msra.mxu0 %v4510
        %4671 = vmatprep.mubr.bf16.mxu0 %v3936
        %4672 = vmatmul.mubr.bf16.gmra.mrb[0].mxu0 %v3872
        %v4673 = vpop.f32.mrb[0].mxu0
        %v4674 = vadd.f32 %v4205, %v4673
        %v4675 = vpop.f32.mrb[0].mxu0
        %v4676 = vpop.f32.mrb[0].mxu0
        %v4677 = vadd.f32 %v4205, %v4676
        %v4678 = vpop.f32.mrb[0].mxu0
        %4679 = vmatprep.mubr.bf16.mxu0 %v3937
        %4680 = vmatmul.mubr.bf16.gmra.mrb[0].mxu0 %v3873
        %v4681 = vpop.f32.mrb[0].mxu0
        %v4682 = vadd.f32 %v4205, %v4681
        %v4683 = vpop.f32.mrb[0].mxu0
        %v4684 = vpop.f32.mrb[0].mxu0
        %v4685 = vadd.f32 %v4205, %v4684
        %v4686 = vpop.f32.mrb[0].mxu0
        %4687 = vmatprep.mubr.bf16.mxu0 %v3938
        %4688 = vmatmul.mubr.bf16.gmra.mrb[0].mxu0 %v3874
        %v4689 = vpop.f32.mrb[0].mxu0
        %v4690 = vadd.f32 %v4205, %v4689
        %v4691 = vpop.f32.mrb[0].mxu0
        %v4692 = vpop.f32.mrb[0].mxu0
        %v4693 = vadd.f32 %v4205, %v4692
        %v4694 = vpop.f32.mrb[0].mxu0
        %4695 = vmatprep.mubr.bf16.mxu0 %v3939
        %4696 = vmatmul.mubr.bf16.gmra.mrb[0].mxu0 %v3875
        %v4697 = vpop.f32.mrb[0].mxu0
        %v4698 = vadd.f32 %v4205, %v4697
        %v4699 = vpop.f32.mrb[0].mxu0
        %v4700 = vpop.f32.mrb[0].mxu0
        %v4701 = vadd.f32 %v4205, %v4700
        %v4702 = vpop.f32.mrb[0].mxu0
        %4703 = vmatprep.mubr.bf16.mxu0 %v3940
        %4704 = vmatmul.mubr.bf16.gmra.mrb[0].mxu0 %v3876
        %v4705 = vpop.f32.mrb[0].mxu0
        %v4706 = vadd.f32 %v4205, %v4705
        %v4707 = vpop.f32.mrb[0].mxu0
        %v4708 = vpop.f32.mrb[0].mxu0
        %v4709 = vadd.f32 %v4205, %v4708
        %v4710 = vpop.f32.mrb[0].mxu0
        %4711 = vmatprep.mubr.bf16.mxu0 %v3941
        %4712 = vmatmul.mubr.bf16.gmra.mrb[0].mxu0 %v3877
        %v4713 = vpop.f32.mrb[0].mxu0
        %v4714 = vadd.f32 %v4205, %v4713
        %v4715 = vpop.f32.mrb[0].mxu0
        %v4716 = vpop.f32.mrb[0].mxu0
        %v4717 = vadd.f32 %v4205, %v4716
        %v4718 = vpop.f32.mrb[0].mxu0
        %4719 = vmatprep.mubr.bf16.mxu0 %v3942
        %4720 = vmatmul.mubr.bf16.gmra.mrb[0].mxu0 %v3878
        %v4721 = vpop.f32.mrb[0].mxu0
        %v4722 = vadd.f32 %v4205, %v4721
        %v4723 = vpop.f32.mrb[0].mxu0
        %v4724 = vpop.f32.mrb[0].mxu0
        %v4725 = vadd.f32 %v4205, %v4724
        %v4726 = vpop.f32.mrb[0].mxu0
        %4727 = vmatprep.mubr.bf16.mxu0 %v3943
        %4728 = vmatmul.mubr.bf16.gmra.mrb[0].mxu0 %v3879
        %v4729 = vpop.f32.mrb[0].mxu0
        %v4730 = vadd.f32 %v4205, %v4729
        %v4731 = vpop.f32.mrb[0].mxu0
        %v4732 = vpop.f32.mrb[0].mxu0
        %v4733 = vadd.f32 %v4205, %v4732
        %v4734 = vpop.f32.mrb[0].mxu0
        %4735 = vmatprep.mubr.bf16.mxu0 %v3944
        %4736 = vmatmul.mubr.bf16.gmra.mrb[0].mxu0 %v3880
        %v4737 = vpop.f32.mrb[0].mxu0
        %v4738 = vadd.f32 %v4205, %v4737
        %v4739 = vpop.f32.mrb[0].mxu0
        %v4740 = vpop.f32.mrb[0].mxu0
        %v4741 = vadd.f32 %v4205, %v4740
        %v4742 = vpop.f32.mrb[0].mxu0
        %4743 = vmatprep.mubr.bf16.mxu0 %v3945
        %4744 = vmatmul.mubr.bf16.gmra.mrb[0].mxu0 %v3881
        %v4745 = vpop.f32.mrb[0].mxu0
        %v4746 = vadd.f32 %v4205, %v4745
        %v4747 = vpop.f32.mrb[0].mxu0
        %v4748 = vpop.f32.mrb[0].mxu0
        %v4749 = vadd.f32 %v4205, %v4748
        %v4750 = vpop.f32.mrb[0].mxu0
        %4751 = vmatprep.mubr.bf16.mxu0 %v3946
        %4752 = vmatmul.mubr.bf16.gmra.mrb[0].mxu0 %v3882
        %v4753 = vpop.f32.mrb[0].mxu0
        %v4754 = vadd.f32 %v4205, %v4753
        %v4755 = vpop.f32.mrb[0].mxu0
        %v4756 = vpop.f32.mrb[0].mxu0
        %v4757 = vadd.f32 %v4205, %v4756
        %v4758 = vpop.f32.mrb[0].mxu0
        %4759 = vmatprep.mubr.bf16.mxu0 %v3947
        %4760 = vmatmul.mubr.bf16.gmra.mrb[0].mxu0 %v3883
        %v4761 = vpop.f32.mrb[0].mxu0
        %v4762 = vadd.f32 %v4205, %v4761
        %v4763 = vpop.f32.mrb[0].mxu0
        %v4764 = vpop.f32.mrb[0].mxu0
        %v4765 = vadd.f32 %v4205, %v4764
        %v4766 = vpop.f32.mrb[0].mxu0
        %4767 = vmatprep.mubr.bf16.mxu0 %v3948
        %4768 = vmatmul.mubr.bf16.gmra.mrb[0].mxu0 %v3884
        %v4769 = vpop.f32.mrb[0].mxu0
        %v4770 = vadd.f32 %v4205, %v4769
        %v4771 = vpop.f32.mrb[0].mxu0
        %v4772 = vpop.f32.mrb[0].mxu0
        %v4773 = vadd.f32 %v4205, %v4772
        %v4774 = vpop.f32.mrb[0].mxu0
        %4775 = vmatprep.mubr.bf16.mxu0 %v3949
        %4776 = vmatmul.mubr.bf16.gmra.mrb[0].mxu0 %v3885
        %v4777 = vpop.f32.mrb[0].mxu0
        %v4778 = vadd.f32 %v4205, %v4777
        %v4779 = vpop.f32.mrb[0].mxu0
        %v4780 = vpop.f32.mrb[0].mxu0
        %v4781 = vadd.f32 %v4205, %v4780
        %v4782 = vpop.f32.mrb[0].mxu0
        %4783 = vmatprep.mubr.bf16.mxu0 %v3950
        %4784 = vmatmul.mubr.bf16.gmra.mrb[0].mxu0 %v3886
        %v4785 = vpop.f32.mrb[0].mxu0
        %v4786 = vadd.f32 %v4205, %v4785
        %v4787 = vpop.f32.mrb[0].mxu0
        %v4788 = vpop.f32.mrb[0].mxu0
        %v4789 = vadd.f32 %v4205, %v4788
        %v4790 = vpop.f32.mrb[0].mxu0
        %4791 = vmatprep.mubr.bf16.mxu0 %v3951
        %4792 = vmatmul.mubr.bf16.gmra.mrb[0].mxu0 %v3887
        %v4793 = vpop.f32.mrb[0].mxu0
        %v4794 = vadd.f32 %v4205, %v4793
        %v4795 = vpop.f32.mrb[0].mxu0
        %v4796 = vpop.f32.mrb[0].mxu0
        %v4797 = vadd.f32 %v4205, %v4796
        %v4798 = vpop.f32.mrb[0].mxu0
        %4799 = vdwg.mxu0
        %4800 = vmatprep.subr.bf16.mxu0 0
        %4801 = vmatpush1.bf16.msra.mxu0 %v4511
        %4802 = vmatprep.subr.bf16.mxu0 0
        %4803 = vmatpush1.bf16.msra.mxu0 %v4512
        %4804 = vmatprep.subr.bf16.mxu0 0
        %4805 = vmatpush1.bf16.msra.mxu0 %v4513
        %4806 = vmatprep.subr.bf16.mxu0 0
        %4807 = vmatpush1.bf16.msra.mxu0 %v4514
        %4808 = vmatprep.subr.bf16.mxu0 0
        %4809 = vmatpush1.bf16.msra.mxu0 %v4515
        %4810 = vmatprep.subr.bf16.mxu0 0
        %4811 = vmatpush1.bf16.msra.mxu0 %v4516
        %4812 = vmatprep.subr.bf16.mxu0 0
        %4813 = vmatpush1.bf16.msra.mxu0 %v4517
        %4814 = vmatprep.subr.bf16.mxu0 0
        %4815 = vmatpush1.bf16.msra.mxu0 %v4518
        %4816 = vmatprep.subr.bf16.mxu0 0
        %4817 = vmatpush1.bf16.msra.mxu0 %v4519
        %4818 = vmatprep.subr.bf16.mxu0 0
        %4819 = vmatpush1.bf16.msra.mxu0 %v4520
        %4820 = vmatprep.subr.bf16.mxu0 0
        %4821 = vmatpush1.bf16.msra.mxu0 %v4521
        %4822 = vmatprep.subr.bf16.mxu0 0
        %4823 = vmatpush1.bf16.msra.mxu0 %v4522
        %4824 = vmatprep.subr.bf16.mxu0 0
        %4825 = vmatpush1.bf16.msra.mxu0 %v4523
        %4826 = vmatprep.subr.bf16.mxu0 0
        %4827 = vmatpush1.bf16.msra.mxu0 %v4524
        %4828 = vmatprep.subr.bf16.mxu0 0
        %4829 = vmatpush1.bf16.msra.mxu0 %v4525
        %4830 = vmatprep.subr.bf16.mxu0 0
        %4831 = vmatpush1.bf16.msra.mxu0 %v4526
        %4832 = vmatprep.mubr.bf16.mxu0 %v3873
        %4833 = vmatmul.mubr.bf16.gmra.mrb[0].mxu0 %v4000
        %v4834 = vpop.f32.mrb[0].mxu0
        %v4835 = vadd.f32 %v4674, %v4834
        %v4836 = vpop.f32.mrb[0].mxu0
        %v4837 = vpop.f32.mrb[0].mxu0
        %v4838 = vadd.f32 %v4677, %v4837
        %v4839 = vpop.f32.mrb[0].mxu0
        %4840 = vmatprep.mubr.bf16.mxu0 %v3874
        %4841 = vmatmul.mubr.bf16.gmra.mrb[0].mxu0 %v4001
        %v4842 = vpop.f32.mrb[0].mxu0
        %v4843 = vadd.f32 %v4682, %v4842
        %v4844 = vpop.f32.mrb[0].mxu0
        %v4845 = vpop.f32.mrb[0].mxu0
        %v4846 = vadd.f32 %v4685, %v4845
        %v4847 = vpop.f32.mrb[0].mxu0
        %4848 = vmatprep.mubr.bf16.mxu0 %v3875
        %4849 = vmatmul.mubr.bf16.gmra.mrb[0].mxu0 %v4002
        %v4850 = vpop.f32.mrb[0].mxu0
        %v4851 = vadd.f32 %v4690, %v4850
        %v4852 = vpop.f32.mrb[0].mxu0
        %v4853 = vpop.f32.mrb[0].mxu0
        %v4854 = vadd.f32 %v4693, %v4853
        %v4855 = vpop.f32.mrb[0].mxu0
        %4856 = vmatprep.mubr.bf16.mxu0 %v3876
        %4857 = vmatmul.mubr.bf16.gmra.mrb[0].mxu0 %v4003
        %v4858 = vpop.f32.mrb[0].mxu0
        %v4859 = vadd.f32 %v4698, %v4858
        %v4860 = vpop.f32.mrb[0].mxu0
        %v4861 = vpop.f32.mrb[0].mxu0
        %v4862 = vadd.f32 %v4701, %v4861
        %v4863 = vpop.f32.mrb[0].mxu0
        %4864 = vmatprep.mubr.bf16.mxu0 %v3877
        %4865 = vmatmul.mubr.bf16.gmra.mrb[0].mxu0 %v4004
        %v4866 = vpop.f32.mrb[0].mxu0
        %v4867 = vadd.f32 %v4706, %v4866
        %v4868 = vpop.f32.mrb[0].mxu0
        %v4869 = vpop.f32.mrb[0].mxu0
        %v4870 = vadd.f32 %v4709, %v4869
        %v4871 = vpop.f32.mrb[0].mxu0
        %4872 = vmatprep.mubr.bf16.mxu0 %v3878
        %4873 = vmatmul.mubr.bf16.gmra.mrb[0].mxu0 %v4005
        %v4874 = vpop.f32.mrb[0].mxu0
        %v4875 = vadd.f32 %v4714, %v4874
        %v4876 = vpop.f32.mrb[0].mxu0
        %v4877 = vpop.f32.mrb[0].mxu0
        %v4878 = vadd.f32 %v4717, %v4877
        %v4879 = vpop.f32.mrb[0].mxu0
        %4880 = vmatprep.mubr.bf16.mxu0 %v3879
        %4881 = vmatmul.mubr.bf16.gmra.mrb[0].mxu0 %v4006
        %v4882 = vpop.f32.mrb[0].mxu0
        %v4883 = vadd.f32 %v4722, %v4882
        %v4884 = vpop.f32.mrb[0].mxu0
        %v4885 = vpop.f32.mrb[0].mxu0
        %v4886 = vadd.f32 %v4725, %v4885
        %v4887 = vpop.f32.mrb[0].mxu0
        %4888 = vmatprep.mubr.bf16.mxu0 %v3880
        %4889 = vmatmul.mubr.bf16.gmra.mrb[0].mxu0 %v4007
        %v4890 = vpop.f32.mrb[0].mxu0
        %v4891 = vadd.f32 %v4730, %v4890
        %v4892 = vpop.f32.mrb[0].mxu0
        %v4893 = vpop.f32.mrb[0].mxu0
        %v4894 = vadd.f32 %v4733, %v4893
        %v4895 = vpop.f32.mrb[0].mxu0
        %4896 = vmatprep.mubr.bf16.mxu0 %v3881
        %4897 = vmatmul.mubr.bf16.gmra.mrb[0].mxu0 %v4008
        %v4898 = vpop.f32.mrb[0].mxu0
        %v4899 = vadd.f32 %v4738, %v4898
        %v4900 = vpop.f32.mrb[0].mxu0
        %v4901 = vpop.f32.mrb[0].mxu0
        %v4902 = vadd.f32 %v4741, %v4901
        %v4903 = vpop.f32.mrb[0].mxu0
        %4904 = vmatprep.mubr.bf16.mxu0 %v3882
        %4905 = vmatmul.mubr.bf16.gmra.mrb[0].mxu0 %v4009
        %v4906 = vpop.f32.mrb[0].mxu0
        %v4907 = vadd.f32 %v4746, %v4906
        %v4908 = vpop.f32.mrb[0].mxu0
        %v4909 = vpop.f32.mrb[0].mxu0
        %v4910 = vadd.f32 %v4749, %v4909
        %v4911 = vpop.f32.mrb[0].mxu0
        %4912 = vmatprep.mubr.bf16.mxu0 %v3883
        %4913 = vmatmul.mubr.bf16.gmra.mrb[0].mxu0 %v4010
        %v4914 = vpop.f32.mrb[0].mxu0
        %v4915 = vadd.f32 %v4754, %v4914
        %v4916 = vpop.f32.mrb[0].mxu0
        %v4917 = vpop.f32.mrb[0].mxu0
        %v4918 = vadd.f32 %v4757, %v4917
        %v4919 = vpop.f32.mrb[0].mxu0
        %4920 = vmatprep.mubr.bf16.mxu0 %v3884
        %4921 = vmatmul.mubr.bf16.gmra.mrb[0].mxu0 %v4011
        %v4922 = vpop.f32.mrb[0].mxu0
        %v4923 = vadd.f32 %v4762, %v4922
        %v4924 = vpop.f32.mrb[0].mxu0
        %v4925 = vpop.f32.mrb[0].mxu0
        %v4926 = vadd.f32 %v4765, %v4925
        %v4927 = vpop.f32.mrb[0].mxu0
        %4928 = vmatprep.mubr.bf16.mxu0 %v3885
        %4929 = vmatmul.mubr.bf16.gmra.mrb[0].mxu0 %v4012
        %v4930 = vpop.f32.mrb[0].mxu0
        %v4931 = vadd.f32 %v4770, %v4930
        %v4932 = vpop.f32.mrb[0].mxu0
        %v4933 = vpop.f32.mrb[0].mxu0
        %v4934 = vadd.f32 %v4773, %v4933
        %v4935 = vpop.f32.mrb[0].mxu0
        %4936 = vmatprep.mubr.bf16.mxu0 %v3886
        %4937 = vmatmul.mubr.bf16.gmra.mrb[0].mxu0 %v4013
        %v4938 = vpop.f32.mrb[0].mxu0
        %v4939 = vadd.f32 %v4778, %v4938
        %v4940 = vpop.f32.mrb[0].mxu0
        %v4941 = vpop.f32.mrb[0].mxu0
        %v4942 = vadd.f32 %v4781, %v4941
        %v4943 = vpop.f32.mrb[0].mxu0
        %4944 = vmatprep.mubr.bf16.mxu0 %v3887
        %4945 = vmatmul.mubr.bf16.gmra.mrb[0].mxu0 %v4014
        %v4946 = vpop.f32.mrb[0].mxu0
        %v4947 = vadd.f32 %v4786, %v4946
        %v4948 = vpop.f32.mrb[0].mxu0
        %v4949 = vpop.f32.mrb[0].mxu0
        %v4950 = vadd.f32 %v4789, %v4949
        %v4951 = vpop.f32.mrb[0].mxu0
        %4952 = vmatprep.mubr.bf16.mxu0 %v4034
        %4953 = vmatmul.mubr.bf16.gmra.mrb[0].mxu0 %v4015
        %v4954 = vpop.f32.mrb[0].mxu0
        %v4955 = vadd.f32 %v4794, %v4954
        %v4956 = vpop.f32.mrb[0].mxu0
        %v4957 = vpop.f32.mrb[0].mxu0
        %v4958 = vadd.f32 %v4797, %v4957
        %v4959 = vpop.f32.mrb[0].mxu0
        %4960 = vdwg.mxu0
        %4961 = vmatprep.subr.bf16.mxu0 0
        %4962 = vmatpush1.bf16.msra.mxu0 %v4527
        %4963 = vmatprep.subr.bf16.mxu0 0
        %4964 = vmatpush1.bf16.msra.mxu0 %v4528
        %4965 = vmatprep.subr.bf16.mxu0 0
        %4966 = vmatpush1.bf16.msra.mxu0 %v4529
        %4967 = vmatprep.subr.bf16.mxu0 0
        %4968 = vmatpush1.bf16.msra.mxu0 %v4530
        %4969 = vmatprep.subr.bf16.mxu0 0
        %4970 = vmatpush1.bf16.msra.mxu0 %v4531
        %4971 = vmatprep.subr.bf16.mxu0 0
        %4972 = vmatpush1.bf16.msra.mxu0 %v4532
        %4973 = vmatprep.subr.bf16.mxu0 0
        %4974 = vmatpush1.bf16.msra.mxu0 %v4533
        %4975 = vmatprep.subr.bf16.mxu0 0
        %4976 = vmatpush1.bf16.msra.mxu0 %v4534
        %4977 = vmatprep.subr.bf16.mxu0 0
        %4978 = vmatpush1.bf16.msra.mxu0 %v4535
        %4979 = vmatprep.subr.bf16.mxu0 0
        %4980 = vmatpush1.bf16.msra.mxu0 %v4536
        %4981 = vmatprep.subr.bf16.mxu0 0
        %4982 = vmatpush1.bf16.msra.mxu0 %v4537
        %4983 = vmatprep.subr.bf16.mxu0 0
        %4984 = vmatpush1.bf16.msra.mxu0 %v4538
        %4985 = vmatprep.subr.bf16.mxu0 0
        %4986 = vmatpush1.bf16.msra.mxu0 %v4539
        %4987 = vmatprep.subr.bf16.mxu0 0
        %4988 = vmatpush1.bf16.msra.mxu0 %v4540
        %4989 = vmatprep.subr.bf16.mxu0 0
        %4990 = vmatpush1.bf16.msra.mxu0 %v4541
        %4991 = vmatprep.subr.bf16.mxu0 0
        %4992 = vmatpush1.bf16.msra.mxu0 %v4542
        %4993 = vmatprep.mubr.bf16.mxu0 %v4001
        %4994 = vmatmul.mubr.bf16.gmra.mrb[0].mxu0 %v3937
        %v4995 = vpop.f32.mrb[0].mxu0
        %v4996 = vadd.f32 %v4835, %v4995
        %v4997 = vpop.f32.mrb[0].mxu0
        %v4998 = vpop.f32.mrb[0].mxu0
        %v4999 = vadd.f32 %v4838, %v4998
        %v5000 = vpop.f32.mrb[0].mxu0
        %5001 = vmatprep.mubr.bf16.mxu0 %v4002
        %5002 = vmatmul.mubr.bf16.gmra.mrb[0].mxu0 %v3938
        %v5003 = vpop.f32.mrb[0].mxu0
        %v5004 = vadd.f32 %v4843, %v5003
        %v5005 = vpop.f32.mrb[0].mxu0
        %v5006 = vpop.f32.mrb[0].mxu0
        %v5007 = vadd.f32 %v4846, %v5006
        %v5008 = vpop.f32.mrb[0].mxu0
        %5009 = vmatprep.mubr.bf16.mxu0 %v4003
        %5010 = vmatmul.mubr.bf16.gmra.mrb[0].mxu0 %v3939
        %v5011 = vpop.f32.mrb[0].mxu0
        %v5012 = vadd.f32 %v4851, %v5011
        %v5013 = vpop.f32.mrb[0].mxu0
        %v5014 = vpop.f32.mrb[0].mxu0
        %v5015 = vadd.f32 %v4854, %v5014
        %v5016 = vpop.f32.mrb[0].mxu0
        %5017 = vmatprep.mubr.bf16.mxu0 %v4004
        %5018 = vmatmul.mubr.bf16.gmra.mrb[0].mxu0 %v3940
        %v5019 = vpop.f32.mrb[0].mxu0
        %v5020 = vadd.f32 %v4859, %v5019
        %v5021 = vpop.f32.mrb[0].mxu0
        %v5022 = vpop.f32.mrb[0].mxu0
        %v5023 = vadd.f32 %v4862, %v5022
        %v5024 = vpop.f32.mrb[0].mxu0
        %5025 = vmatprep.mubr.bf16.mxu0 %v4005
        %5026 = vmatmul.mubr.bf16.gmra.mrb[0].mxu0 %v3941
        %v5027 = vpop.f32.mrb[0].mxu0
        %v5028 = vadd.f32 %v4867, %v5027
        %v5029 = vpop.f32.mrb[0].mxu0
        %v5030 = vpop.f32.mrb[0].mxu0
        %v5031 = vadd.f32 %v4870, %v5030
        %v5032 = vpop.f32.mrb[0].mxu0
        %5033 = vmatprep.mubr.bf16.mxu0 %v4006
        %5034 = vmatmul.mubr.bf16.gmra.mrb[0].mxu0 %v3942
        %v5035 = vpop.f32.mrb[0].mxu0
        %v5036 = vadd.f32 %v4875, %v5035
        %v5037 = vpop.f32.mrb[0].mxu0
        %v5038 = vpop.f32.mrb[0].mxu0
        %v5039 = vadd.f32 %v4878, %v5038
        %v5040 = vpop.f32.mrb[0].mxu0
        %5041 = vmatprep.mubr.bf16.mxu0 %v4007
        %5042 = vmatmul.mubr.bf16.gmra.mrb[0].mxu0 %v3943
        %v5043 = vpop.f32.mrb[0].mxu0
        %v5044 = vadd.f32 %v4883, %v5043
        %v5045 = vpop.f32.mrb[0].mxu0
        %v5046 = vpop.f32.mrb[0].mxu0
        %v5047 = vadd.f32 %v4886, %v5046
        %v5048 = vpop.f32.mrb[0].mxu0
        %5049 = vmatprep.mubr.bf16.mxu0 %v4008
        %5050 = vmatmul.mubr.bf16.gmra.mrb[0].mxu0 %v3944
        %v5051 = vpop.f32.mrb[0].mxu0
        %v5052 = vadd.f32 %v4891, %v5051
        %v5053 = vpop.f32.mrb[0].mxu0
        %v5054 = vpop.f32.mrb[0].mxu0
        %v5055 = vadd.f32 %v4894, %v5054
        %v5056 = vpop.f32.mrb[0].mxu0
        %5057 = vmatprep.mubr.bf16.mxu0 %v4009
        %5058 = vmatmul.mubr.bf16.gmra.mrb[0].mxu0 %v3945
        %v5059 = vpop.f32.mrb[0].mxu0
        %v5060 = vadd.f32 %v4899, %v5059
        %v5061 = vpop.f32.mrb[0].mxu0
        %v5062 = vpop.f32.mrb[0].mxu0
        %v5063 = vadd.f32 %v4902, %v5062
        %v5064 = vpop.f32.mrb[0].mxu0
        %5065 = vmatprep.mubr.bf16.mxu0 %v4010
        %5066 = vmatmul.mubr.bf16.gmra.mrb[0].mxu0 %v3946
        %v5067 = vpop.f32.mrb[0].mxu0
        %v5068 = vadd.f32 %v4907, %v5067
        %v5069 = vpop.f32.mrb[0].mxu0
        %v5070 = vpop.f32.mrb[0].mxu0
        %v5071 = vadd.f32 %v4910, %v5070
        %v5072 = vpop.f32.mrb[0].mxu0
        %5073 = vmatprep.mubr.bf16.mxu0 %v4011
        %5074 = vmatmul.mubr.bf16.gmra.mrb[0].mxu0 %v3947
        %v5075 = vpop.f32.mrb[0].mxu0
        %v5076 = vadd.f32 %v4915, %v5075
        %v5077 = vpop.f32.mrb[0].mxu0
        %v5078 = vpop.f32.mrb[0].mxu0
        %v5079 = vadd.f32 %v4918, %v5078
        %v5080 = vpop.f32.mrb[0].mxu0
        %5081 = vmatprep.mubr.bf16.mxu0 %v4012
        %5082 = vmatmul.mubr.bf16.gmra.mrb[0].mxu0 %v3948
        %v5083 = vpop.f32.mrb[0].mxu0
        %v5084 = vadd.f32 %v4923, %v5083
        %v5085 = vpop.f32.mrb[0].mxu0
        %v5086 = vpop.f32.mrb[0].mxu0
        %v5087 = vadd.f32 %v4926, %v5086
        %v5088 = vpop.f32.mrb[0].mxu0
        %5089 = vmatprep.mubr.bf16.mxu0 %v4013
        %5090 = vmatmul.mubr.bf16.gmra.mrb[0].mxu0 %v3949
        %v5091 = vpop.f32.mrb[0].mxu0
        %v5092 = vadd.f32 %v4931, %v5091
        %v5093 = vpop.f32.mrb[0].mxu0
        %v5094 = vpop.f32.mrb[0].mxu0
        %v5095 = vadd.f32 %v4934, %v5094
        %v5096 = vpop.f32.mrb[0].mxu0
        %5097 = vmatprep.mubr.bf16.mxu0 %v4014
        %5098 = vmatmul.mubr.bf16.gmra.mrb[0].mxu0 %v3950
        %v5099 = vpop.f32.mrb[0].mxu0
        %v5100 = vadd.f32 %v4939, %v5099
        %v5101 = vpop.f32.mrb[0].mxu0
        %v5102 = vpop.f32.mrb[0].mxu0
        %v5103 = vadd.f32 %v4942, %v5102
        %v5104 = vpop.f32.mrb[0].mxu0
        %5105 = vmatprep.mubr.bf16.mxu0 %v4015
        %5106 = vmatmul.mubr.bf16.gmra.mrb[0].mxu0 %v3951
        %v5107 = vpop.f32.mrb[0].mxu0
        %v5108 = vadd.f32 %v4947, %v5107
        %v5109 = vpop.f32.mrb[0].mxu0
        %v5110 = vpop.f32.mrb[0].mxu0
        %v5111 = vadd.f32 %v4950, %v5110
        %v5112 = vpop.f32.mrb[0].mxu0
        %5113 = vmatprep.mubr.bf16.mxu0 %v4042
        %5114 = vmatmul.mubr.bf16.gmra.mrb[0].mxu0 %v4038
        %v5115 = vpop.f32.mrb[0].mxu0
        %v5116 = vadd.f32 %v4955, %v5115
        %v5117 = vpop.f32.mrb[0].mxu0
        %v5118 = vpop.f32.mrb[0].mxu0
        %v5119 = vadd.f32 %v4958, %v5118
        %v5120 = vpop.f32.mrb[0].mxu0
        %5121 = vdwg.mxu0
        %5122 = vmatprep.subr.bf16.mxu0 0
        %5123 = vmatpush1.bf16.msra.mxu0 %v4543
        %5124 = vmatprep.subr.bf16.mxu0 0
        %5125 = vmatpush1.bf16.msra.mxu0 %v4544
        %5126 = vmatprep.subr.bf16.mxu0 0
        %5127 = vmatpush1.bf16.msra.mxu0 %v4545
        %5128 = vmatprep.subr.bf16.mxu0 0
        %5129 = vmatpush1.bf16.msra.mxu0 %v4546
        %5130 = vmatprep.subr.bf16.mxu0 0
        %5131 = vmatpush1.bf16.msra.mxu0 %v4547
        %5132 = vmatprep.subr.bf16.mxu0 0
        %5133 = vmatpush1.bf16.msra.mxu0 %v4548
        %5134 = vmatprep.subr.bf16.mxu0 0
        %5135 = vmatpush1.bf16.msra.mxu0 %v4549
        %5136 = vmatprep.subr.bf16.mxu0 0
        %5137 = vmatpush1.bf16.msra.mxu0 %v4550
        %5138 = vmatprep.subr.bf16.mxu0 0
        %5139 = vmatpush1.bf16.msra.mxu0 %v4551
        %5140 = vmatprep.subr.bf16.mxu0 0
        %5141 = vmatpush1.bf16.msra.mxu0 %v4552
        %5142 = vmatprep.subr.bf16.mxu0 0
        %5143 = vmatpush1.bf16.msra.mxu0 %v4553
        %5144 = vmatprep.subr.bf16.mxu0 0
        %5145 = vmatpush1.bf16.msra.mxu0 %v4554
        %5146 = vmatprep.subr.bf16.mxu0 0
        %5147 = vmatpush1.bf16.msra.mxu0 %v4555
        %5148 = vmatprep.subr.bf16.mxu0 0
        %5149 = vmatpush1.bf16.msra.mxu0 %v4556
        %5150 = vmatprep.subr.bf16.mxu0 0
        %5151 = vmatpush1.bf16.msra.mxu0 %v4557
        %5152 = vmatprep.subr.bf16.mxu0 0
        %5153 = vmatpush1.bf16.msra.mxu0 %v4558
        %5154 = vmatprep.mubr.bf16.mxu0 %v3938
        %5155 = vmatmul.mubr.bf16.gmra.mrb[0].mxu0 %v3874
        %v5156 = vpop.f32.mrb[0].mxu0
        %v5157 = vadd.f32 %v4996, %v5156
        %v5158 = vpop.f32.mrb[0].mxu0
        %v5159 = vpop.f32.mrb[0].mxu0
        %v5160 = vadd.f32 %v4999, %v5159
        %v5161 = vpop.f32.mrb[0].mxu0
        %5162 = vmatprep.mubr.bf16.mxu0 %v3939
        %5163 = vmatmul.mubr.bf16.gmra.mrb[0].mxu0 %v3875
        %v5164 = vpop.f32.mrb[0].mxu0
        %v5165 = vadd.f32 %v5004, %v5164
        %v5166 = vpop.f32.mrb[0].mxu0
        %v5167 = vpop.f32.mrb[0].mxu0
        %v5168 = vadd.f32 %v5007, %v5167
        %v5169 = vpop.f32.mrb[0].mxu0
        %5170 = vmatprep.mubr.bf16.mxu0 %v3940
        %5171 = vmatmul.mubr.bf16.gmra.mrb[0].mxu0 %v3876
        %v5172 = vpop.f32.mrb[0].mxu0
        %v5173 = vadd.f32 %v5012, %v5172
        %v5174 = vpop.f32.mrb[0].mxu0
        %v5175 = vpop.f32.mrb[0].mxu0
        %v5176 = vadd.f32 %v5015, %v5175
        %v5177 = vpop.f32.mrb[0].mxu0
        %5178 = vmatprep.mubr.bf16.mxu0 %v3941
        %5179 = vmatmul.mubr.bf16.gmra.mrb[0].mxu0 %v3877
        %v5180 = vpop.f32.mrb[0].mxu0
        %v5181 = vadd.f32 %v5020, %v5180
        %v5182 = vpop.f32.mrb[0].mxu0
        %v5183 = vpop.f32.mrb[0].mxu0
        %v5184 = vadd.f32 %v5023, %v5183
        %v5185 = vpop.f32.mrb[0].mxu0
        %5186 = vmatprep.mubr.bf16.mxu0 %v3942
        %5187 = vmatmul.mubr.bf16.gmra.mrb[0].mxu0 %v3878
        %v5188 = vpop.f32.mrb[0].mxu0
        %v5189 = vadd.f32 %v5028, %v5188
        %v5190 = vpop.f32.mrb[0].mxu0
        %v5191 = vpop.f32.mrb[0].mxu0
        %v5192 = vadd.f32 %v5031, %v5191
        %v5193 = vpop.f32.mrb[0].mxu0
        %5194 = vmatprep.mubr.bf16.mxu0 %v3943
        %5195 = vmatmul.mubr.bf16.gmra.mrb[0].mxu0 %v3879
        %v5196 = vpop.f32.mrb[0].mxu0
        %v5197 = vadd.f32 %v5036, %v5196
        %v5198 = vpop.f32.mrb[0].mxu0
        %v5199 = vpop.f32.mrb[0].mxu0
        %v5200 = vadd.f32 %v5039, %v5199
        %v5201 = vpop.f32.mrb[0].mxu0
        %5202 = vmatprep.mubr.bf16.mxu0 %v3944
        %5203 = vmatmul.mubr.bf16.gmra.mrb[0].mxu0 %v3880
        %v5204 = vpop.f32.mrb[0].mxu0
        %v5205 = vadd.f32 %v5044, %v5204
        %v5206 = vpop.f32.mrb[0].mxu0
        %v5207 = vpop.f32.mrb[0].mxu0
        %v5208 = vadd.f32 %v5047, %v5207
        %v5209 = vpop.f32.mrb[0].mxu0
        %5210 = vmatprep.mubr.bf16.mxu0 %v3945
        %5211 = vmatmul.mubr.bf16.gmra.mrb[0].mxu0 %v3881
        %v5212 = vpop.f32.mrb[0].mxu0
        %v5213 = vadd.f32 %v5052, %v5212
        %v5214 = vpop.f32.mrb[0].mxu0
        %v5215 = vpop.f32.mrb[0].mxu0
        %v5216 = vadd.f32 %v5055, %v5215
        %v5217 = vpop.f32.mrb[0].mxu0
        %5218 = vmatprep.mubr.bf16.mxu0 %v3946
        %5219 = vmatmul.mubr.bf16.gmra.mrb[0].mxu0 %v3882
        %v5220 = vpop.f32.mrb[0].mxu0
        %v5221 = vadd.f32 %v5060, %v5220
        %v5222 = vpop.f32.mrb[0].mxu0
        %v5223 = vpop.f32.mrb[0].mxu0
        %v5224 = vadd.f32 %v5063, %v5223
        %v5225 = vpop.f32.mrb[0].mxu0
        %5226 = vmatprep.mubr.bf16.mxu0 %v3947
        %5227 = vmatmul.mubr.bf16.gmra.mrb[0].mxu0 %v3883
        %v5228 = vpop.f32.mrb[0].mxu0
        %v5229 = vadd.f32 %v5068, %v5228
        %v5230 = vpop.f32.mrb[0].mxu0
        %v5231 = vpop.f32.mrb[0].mxu0
        %v5232 = vadd.f32 %v5071, %v5231
        %v5233 = vpop.f32.mrb[0].mxu0
        %5234 = vmatprep.mubr.bf16.mxu0 %v3948
        %5235 = vmatmul.mubr.bf16.gmra.mrb[0].mxu0 %v3884
        %v5236 = vpop.f32.mrb[0].mxu0
        %v5237 = vadd.f32 %v5076, %v5236
        %v5238 = vpop.f32.mrb[0].mxu0
        %v5239 = vpop.f32.mrb[0].mxu0
        %v5240 = vadd.f32 %v5079, %v5239
        %v5241 = vpop.f32.mrb[0].mxu0
        %5242 = vmatprep.mubr.bf16.mxu0 %v3949
        %5243 = vmatmul.mubr.bf16.gmra.mrb[0].mxu0 %v3885
        %v5244 = vpop.f32.mrb[0].mxu0
        %v5245 = vadd.f32 %v5084, %v5244
        %v5246 = vpop.f32.mrb[0].mxu0
        %v5247 = vpop.f32.mrb[0].mxu0
        %v5248 = vadd.f32 %v5087, %v5247
        %v5249 = vpop.f32.mrb[0].mxu0
        %5250 = vmatprep.mubr.bf16.mxu0 %v3950
        %5251 = vmatmul.mubr.bf16.gmra.mrb[0].mxu0 %v3886
        %v5252 = vpop.f32.mrb[0].mxu0
        %v5253 = vadd.f32 %v5092, %v5252
        %v5254 = vpop.f32.mrb[0].mxu0
        %v5255 = vpop.f32.mrb[0].mxu0
        %v5256 = vadd.f32 %v5095, %v5255
        %v5257 = vpop.f32.mrb[0].mxu0
        %5258 = vmatprep.mubr.bf16.mxu0 %v3951
        %5259 = vmatmul.mubr.bf16.gmra.mrb[0].mxu0 %v3887
        %v5260 = vpop.f32.mrb[0].mxu0
        %v5261 = vadd.f32 %v5100, %v5260
        %v5262 = vpop.f32.mrb[0].mxu0
        %v5263 = vpop.f32.mrb[0].mxu0
        %v5264 = vadd.f32 %v5103, %v5263
        %v5265 = vpop.f32.mrb[0].mxu0
        %5266 = vmatprep.mubr.bf16.mxu0 %v4038
        %5267 = vmatmul.mubr.bf16.gmra.mrb[0].mxu0 %v4034
        %v5268 = vpop.f32.mrb[0].mxu0
        %v5269 = vadd.f32 %v5108, %v5268
        %v5270 = vpop.f32.mrb[0].mxu0
        %v5271 = vpop.f32.mrb[0].mxu0
        %v5272 = vadd.f32 %v5111, %v5271
        %v5273 = vpop.f32.mrb[0].mxu0
        %5274 = vmatprep.mubr.bf16.mxu0 %v4050
        %5275 = vmatmul.mubr.bf16.gmra.mrb[0].mxu0 %v4046
        %v5276 = vpop.f32.mrb[0].mxu0
        %v5277 = vadd.f32 %v5116, %v5276
        %v5278 = vpop.f32.mrb[0].mxu0
        %v5279 = vpop.f32.mrb[0].mxu0
        %v5280 = vadd.f32 %v5119, %v5279
        %v5281 = vpop.f32.mrb[0].mxu0
        %5282 = vdwg.mxu0
        %5283 = vmatprep.subr.bf16.mxu0 0
        %5284 = vmatpush1.bf16.msra.mxu0 %v4559
        %5285 = vmatprep.subr.bf16.mxu0 0
        %5286 = vmatpush1.bf16.msra.mxu0 %v4560
        %5287 = vmatprep.subr.bf16.mxu0 0
        %5288 = vmatpush1.bf16.msra.mxu0 %v4561
        %5289 = vmatprep.subr.bf16.mxu0 0
        %5290 = vmatpush1.bf16.msra.mxu0 %v4562
        %5291 = vmatprep.subr.bf16.mxu0 0
        %5292 = vmatpush1.bf16.msra.mxu0 %v4563
        %5293 = vmatprep.subr.bf16.mxu0 0
        %5294 = vmatpush1.bf16.msra.mxu0 %v4564
        %5295 = vmatprep.subr.bf16.mxu0 0
        %5296 = vmatpush1.bf16.msra.mxu0 %v4565
        %5297 = vmatprep.subr.bf16.mxu0 0
        %5298 = vmatpush1.bf16.msra.mxu0 %v4566
        %5299 = vmatprep.subr.bf16.mxu0 0
        %5300 = vmatpush1.bf16.msra.mxu0 0
        %5301 = vmatprep.subr.bf16.mxu0 0
        %5302 = vmatpush1.bf16.msra.mxu0 0
        %5303 = vmatprep.subr.bf16.mxu0 0
        %5304 = vmatpush1.bf16.msra.mxu0 0
        %5305 = vmatprep.subr.bf16.mxu0 0
        %5306 = vmatpush1.bf16.msra.mxu0 0
        %5307 = vmatprep.subr.bf16.mxu0 0
        %5308 = vmatpush1.bf16.msra.mxu0 0
        %5309 = vmatprep.subr.bf16.mxu0 0
        %5310 = vmatpush1.bf16.msra.mxu0 0
        %5311 = vmatprep.subr.bf16.mxu0 0
        %5312 = vmatpush1.bf16.msra.mxu0 0
        %5313 = vmatprep.subr.bf16.mxu0 0
        %5314 = vmatpush1.bf16.msra.mxu0 0
        %5315 = vmatprep.mubr.bf16.mxu0 0
        %5316 = vmatmul.mubr.bf16.gmra.mrb[0].mxu0 %v4002
        %v5317 = vpop.f32.mrb[0].mxu0
        %v5318 = vadd.f32 %v5157, %v5317
        %v5319 = vpop.f32.mrb[0].mxu0
        %v5320 = vpop.f32.mrb[0].mxu0
        %v5321 = vadd.f32 %v5160, %v5320
        %v5322 = vpop.f32.mrb[0].mxu0
        %5323 = vmatprep.mubr.bf16.mxu0 0
        %5324 = vmatmul.mubr.bf16.gmra.mrb[0].mxu0 %v4003
        %v5325 = vpop.f32.mrb[0].mxu0
        %v5326 = vadd.f32 %v5165, %v5325
        %v5327 = vpop.f32.mrb[0].mxu0
        %v5328 = vpop.f32.mrb[0].mxu0
        %v5329 = vadd.f32 %v5168, %v5328
        %v5330 = vpop.f32.mrb[0].mxu0
        %5331 = vmatprep.mubr.bf16.mxu0 0
        %5332 = vmatmul.mubr.bf16.gmra.mrb[0].mxu0 %v4004
        %v5333 = vpop.f32.mrb[0].mxu0
        %v5334 = vadd.f32 %v5173, %v5333
        %v5335 = vpop.f32.mrb[0].mxu0
        %v5336 = vpop.f32.mrb[0].mxu0
        %v5337 = vadd.f32 %v5176, %v5336
        %v5338 = vpop.f32.mrb[0].mxu0
        %5339 = vmatprep.mubr.bf16.mxu0 0
        %5340 = vmatmul.mubr.bf16.gmra.mrb[0].mxu0 %v4005
        %v5341 = vpop.f32.mrb[0].mxu0
        %v5342 = vadd.f32 %v5181, %v5341
        %v5343 = vpop.f32.mrb[0].mxu0
        %v5344 = vpop.f32.mrb[0].mxu0
        %v5345 = vadd.f32 %v5184, %v5344
        %v5346 = vpop.f32.mrb[0].mxu0
        %5347 = vmatprep.mubr.bf16.mxu0 0
        %5348 = vmatmul.mubr.bf16.gmra.mrb[0].mxu0 %v4006
        %v5349 = vpop.f32.mrb[0].mxu0
        %v5350 = vadd.f32 %v5189, %v5349
        %v5351 = vpop.f32.mrb[0].mxu0
        %v5352 = vpop.f32.mrb[0].mxu0
        %v5353 = vadd.f32 %v5192, %v5352
        %v5354 = vpop.f32.mrb[0].mxu0
        %5355 = vmatprep.mubr.bf16.mxu0 0
        %5356 = vmatmul.mubr.bf16.gmra.mrb[0].mxu0 %v4007
        %v5357 = vpop.f32.mrb[0].mxu0
        %v5358 = vadd.f32 %v5197, %v5357
        %v5359 = vpop.f32.mrb[0].mxu0
        %v5360 = vpop.f32.mrb[0].mxu0
        %v5361 = vadd.f32 %v5200, %v5360
        %v5362 = vpop.f32.mrb[0].mxu0
        %5363 = vmatprep.mubr.bf16.mxu0 0
        %5364 = vmatmul.mubr.bf16.gmra.mrb[0].mxu0 %v4008
        %v5365 = vpop.f32.mrb[0].mxu0
        %v5366 = vadd.f32 %v5205, %v5365
        %v5367 = vpop.f32.mrb[0].mxu0
        %v5368 = vpop.f32.mrb[0].mxu0
        %v5369 = vadd.f32 %v5208, %v5368
        %v5370 = vpop.f32.mrb[0].mxu0
        %5371 = vmatprep.mubr.bf16.mxu0 0
        %5372 = vmatmul.mubr.bf16.gmra.mrb[0].mxu0 %v4009
        %v5373 = vpop.f32.mrb[0].mxu0
        %v5374 = vadd.f32 %v5213, %v5373
        %v5375 = vpop.f32.mrb[0].mxu0
        %v5376 = vpop.f32.mrb[0].mxu0
        %v5377 = vadd.f32 %v5216, %v5376
        %v5378 = vpop.f32.mrb[0].mxu0
        %5379 = vmatprep.mubr.bf16.mxu0 0
        %5380 = vmatmul.mubr.bf16.gmra.mrb[0].mxu0 %v4010
        %v5381 = vpop.f32.mrb[0].mxu0
        %v5382 = vadd.f32 %v5221, %v5381
        %v5383 = vpop.f32.mrb[0].mxu0
        %v5384 = vpop.f32.mrb[0].mxu0
        %v5385 = vadd.f32 %v5224, %v5384
        %v5386 = vpop.f32.mrb[0].mxu0
        %5387 = vmatprep.mubr.bf16.mxu0 0
        %5388 = vmatmul.mubr.bf16.gmra.mrb[0].mxu0 %v4011
        %v5389 = vpop.f32.mrb[0].mxu0
        %v5390 = vadd.f32 %v5229, %v5389
        %v5391 = vpop.f32.mrb[0].mxu0
        %v5392 = vpop.f32.mrb[0].mxu0
        %v5393 = vadd.f32 %v5232, %v5392
        %v5394 = vpop.f32.mrb[0].mxu0
        %5395 = vmatprep.mubr.bf16.mxu0 0
        %5396 = vmatmul.mubr.bf16.gmra.mrb[0].mxu0 %v4012
        %v5397 = vpop.f32.mrb[0].mxu0
        %v5398 = vadd.f32 %v5237, %v5397
        %v5399 = vpop.f32.mrb[0].mxu0
        %v5400 = vpop.f32.mrb[0].mxu0
        %v5401 = vadd.f32 %v5240, %v5400
        %v5402 = vpop.f32.mrb[0].mxu0
        %5403 = vmatprep.mubr.bf16.mxu0 0
        %5404 = vmatmul.mubr.bf16.gmra.mrb[0].mxu0 %v4013
        %v5405 = vpop.f32.mrb[0].mxu0
        %v5406 = vadd.f32 %v5245, %v5405
        %v5407 = vpop.f32.mrb[0].mxu0
        %v5408 = vpop.f32.mrb[0].mxu0
        %v5409 = vadd.f32 %v5248, %v5408
        %v5410 = vpop.f32.mrb[0].mxu0
        %5411 = vmatprep.mubr.bf16.mxu0 0
        %5412 = vmatmul.mubr.bf16.gmra.mrb[0].mxu0 %v4014
        %v5413 = vpop.f32.mrb[0].mxu0
        %v5414 = vadd.f32 %v5253, %v5413
        %v5415 = vpop.f32.mrb[0].mxu0
        %v5416 = vpop.f32.mrb[0].mxu0
        %v5417 = vadd.f32 %v5256, %v5416
        %v5418 = vpop.f32.mrb[0].mxu0
        %5419 = vmatprep.mubr.bf16.mxu0 0
        %5420 = vmatmul.mubr.bf16.gmra.mrb[0].mxu0 %v4015
        %v5421 = vpop.f32.mrb[0].mxu0
        %v5422 = vadd.f32 %v5261, %v5421
        %v5423 = vpop.f32.mrb[0].mxu0
        %v5424 = vpop.f32.mrb[0].mxu0
        %v5425 = vadd.f32 %v5264, %v5424
        %v5426 = vpop.f32.mrb[0].mxu0
        %5427 = vmatprep.mubr.bf16.mxu0 0
        %5428 = vmatmul.mubr.bf16.gmra.mrb[0].mxu0 %v4042
        %v5429 = vpop.f32.mrb[0].mxu0
        %v5430 = vadd.f32 %v5269, %v5429
        %v5431 = vpop.f32.mrb[0].mxu0
        %v5432 = vpop.f32.mrb[0].mxu0
        %v5433 = vadd.f32 %v5272, %v5432
        %v5434 = vpop.f32.mrb[0].mxu0
        %5435 = vmatprep.mubr.bf16.mxu0 0
        %5436 = vmatmul.mubr.bf16.gmra.mrb[0].mxu0 %v4054
        %v5437 = vpop.f32.mrb[0].mxu0
        %v5438 = vadd.f32 %v5277, %v5437
        %v5439 = vpop.f32.mrb[0].mxu0
        %v5440 = vpop.f32.mrb[0].mxu0
        %v5441 = vadd.f32 %v5280, %v5440
        %v5442 = vpop.f32.mrb[0].mxu0
        %5443 = vdwg.mxu0
        %v5444 = vmax.f32 %v5318, 0.0
        %v5445 = vmax.f32 %v5321, 0.0
        %v5446 = vmax.f32 %v5326, 0.0
        %v5447 = vmax.f32 %v5329, 0.0
        %v5448 = vmax.f32 %v5334, 0.0
        %v5449 = vmax.f32 %v5337, 0.0
        %v5450 = vmax.f32 %v5342, 0.0
        %v5451 = vmax.f32 %v5345, 0.0
        %v5452 = vmax.f32 %v5350, 0.0
        %v5453 = vmax.f32 %v5353, 0.0
        %v5454 = vmax.f32 %v5358, 0.0
        %v5455 = vmax.f32 %v5361, 0.0
        %v5456 = vmax.f32 %v5366, 0.0
        %v5457 = vmax.f32 %v5369, 0.0
        %v5458 = vmax.f32 %v5374, 0.0
        %v5459 = vmax.f32 %v5377, 0.0
        %v5460 = vmax.f32 %v5382, 0.0
        %v5461 = vmax.f32 %v5385, 0.0
        %v5462 = vmax.f32 %v5390, 0.0
        %v5463 = vmax.f32 %v5393, 0.0
        %v5464 = vmax.f32 %v5398, 0.0
        %v5465 = vmax.f32 %v5401, 0.0
        %v5466 = vmax.f32 %v5406, 0.0
        %v5467 = vmax.f32 %v5409, 0.0
        %v5468 = vmax.f32 %v5414, 0.0
        %v5469 = vmax.f32 %v5417, 0.0
        %v5470 = vmax.f32 %v5422, 0.0
        %v5471 = vmax.f32 %v5425, 0.0
        %v5472 = vmax.f32 %v5430, 0.0
        %v5473 = vmax.f32 %v5433, 0.0
        %v5474 = vmax.f32 %v5438, 0.0
        %v5475 = vmax.f32 %v5441, 0.0
        %5476 = vst [vmem:[#allocation4] sm:$0xf] 0
        %5477 = vst [vmem:[#allocation4 + $0x4] sm:$0xf] 0
        %5478 = vst [vmem:[#allocation4 + $0x8] sm:$0x3] 0
        %5479 = vst [vmem:[#allocation4 + $0xc] sm:$0xf] 0
        %5480 = vst [vmem:[#allocation4 + $0x10] sm:$0xf] 0
        %5481 = vst [vmem:[#allocation4 + $0x14] sm:$0x3] 0
        %5482 = vst [vmem:[#allocation4 + $0x18] sm:$0xf] 0
        %5483 = vst [vmem:[#allocation4 + $0x1c] sm:$0xf] 0
        %5484 = vst [vmem:[#allocation4 + $0x20] sm:$0x3] 0
        %5485 = vst [vmem:[#allocation4 + $0x24] sm:$0xf] 0
        %5486 = vst [vmem:[#allocation4 + $0x28] sm:$0xf] 0
        %5487 = vst [vmem:[#allocation4 + $0x2c] sm:$0x3] 0
        %5488 = vst [vmem:[#allocation4 + $0x30] sm:$0xf] 0
        %5489 = vst [vmem:[#allocation4 + $0x34] sm:$0xf] 0
        %5490 = vst [vmem:[#allocation4 + $0x38] sm:$0x3] 0
        %5491 = vst [vmem:[#allocation4 + $0x3c] sm:$0xf] 0
        %5492 = vst [vmem:[#allocation4 + $0x40] sm:$0xf] 0
        %5493 = vst [vmem:[#allocation4 + $0x44] sm:$0x3] 0
        %5494 = vst [vmem:[#allocation4 + $0x48] sm:$0xf] 0
        %5495 = vst [vmem:[#allocation4 + $0x4c] sm:$0xf] 0
        %5496 = vst [vmem:[#allocation4 + $0x50] sm:$0x3] 0
        %5497 = vst [vmem:[#allocation4 + $0x54] sm:$0xf] 0
        %5498 = vst [vmem:[#allocation4 + $0x58] sm:$0xf] 0
        %5499 = vst [vmem:[#allocation4 + $0x5c] sm:$0x3] 0
        %5500 = vst [vmem:[#allocation4 + $0x60] sm:$0xf] 0
        %5501 = vst [vmem:[#allocation4 + $0x64] sm:$0xf] 0
        %5502 = vst [vmem:[#allocation4 + $0x68] sm:$0x3] 0
        %5503 = vst [vmem:[#allocation4 + $0x6c] sm:$0xf] 0
        %5504 = vst [vmem:[#allocation4 + $0x70] sm:$0xf] 0
        %5505 = vst [vmem:[#allocation4 + $0x74] sm:$0x3] 0
        %5506 = vst [vmem:[#allocation4 + $0x78] sm:$0xf] 0
        %5507 = vst [vmem:[#allocation4 + $0x7c] sm:$0xf] 0
        %5508 = vst [vmem:[#allocation4 + $0x80] sm:$0x3] 0
        %5509 = vst [vmem:[#allocation4 + $0x84] sm:$0xf] 0
        %5510 = vst [vmem:[#allocation4 + $0x88] sm:$0xf] 0
        %5511 = vst [vmem:[#allocation4 + $0x8c] sm:$0x3] 0
        %5512 = vst [vmem:[#allocation4 + $0x90] sm:$0xf] 0
        %5513 = vst [vmem:[#allocation4 + $0x94] sm:$0xf] 0
        %5514 = vst [vmem:[#allocation4 + $0x98] sm:$0x3] 0
        %5515 = vst [vmem:[#allocation4 + $0x9c] sm:$0xf] 0
        %5516 = vst [vmem:[#allocation4 + $0xa0] sm:$0xf] 0
        %5517 = vst [vmem:[#allocation4 + $0xa4] sm:$0x3] 0
        %5518 = vst [vmem:[#allocation4 + $0xa8] sm:$0xf] 0
        %5519 = vst [vmem:[#allocation4 + $0xac] sm:$0xf] 0
        %5520 = vst [vmem:[#allocation4 + $0xb0] sm:$0x3] 0
        %5521 = vst [vmem:[#allocation4 + $0xb4] sm:$0xf] 0
        %5522 = vst [vmem:[#allocation4 + $0xb8] sm:$0xf] 0
        %5523 = vst [vmem:[#allocation4 + $0xbc] sm:$0x3] 0
        %5524 = vst [vmem:[#allocation4 + $0xc0] sm:$0xf] 0
        %5525 = vst [vmem:[#allocation4 + $0xc4] sm:$0xf] 0
        %5526 = vst [vmem:[#allocation4 + $0xc8] sm:$0x3] 0
        %5527 = vst [vmem:[#allocation4 + $0xcc] sm:$0xf] 0
        %5528 = vst [vmem:[#allocation4 + $0xd0] sm:$0xf] 0
        %5529 = vst [vmem:[#allocation4 + $0xd4] sm:$0x3] 0
        %5530 = vst [vmem:[#allocation4 + $0xd8] sm:$0xf] 0
        %5531 = vst [vmem:[#allocation4 + $0xdc] sm:$0xf] 0
        %5532 = vst [vmem:[#allocation4 + $0xe0] sm:$0x3] 0
        %5533 = vst [vmem:[#allocation4 + $0xe4] sm:$0xf] 0
        %5534 = vst [vmem:[#allocation4 + $0xe8] sm:$0xf] 0
        %5535 = vst [vmem:[#allocation4 + $0xec] sm:$0x3] 0
        %v5552 = vunpack.c.l.b16 %v1036
        %v5553 = vunpack.c.h.b16 %v1036
        %v5554 = vunpack.c.l.b16 %v1037
        %v5555 = vunpack.c.h.b16 %v1037
        %v5556 = vunpack.c.l.b16 %v1038
        %v5557 = vunpack.c.h.b16 %v1038
        %v5558 = vunpack.c.l.b16 %v1039
        %v5559 = vunpack.c.h.b16 %v1039
        %v5560 = vunpack.c.l.b16 %v1040
        %v5561 = vunpack.c.h.b16 %v1040
        %v5562 = vunpack.c.l.b16 %v1041
        %v5563 = vunpack.c.h.b16 %v1041
        %v5564 = vunpack.c.l.b16 %v1042
        %v5565 = vunpack.c.h.b16 %v1042
        %v5566 = vunpack.c.l.b16 %v1043
        %v5567 = vunpack.c.h.b16 %v1043
        %v5568 = vunpack.c.l.b16 %v1044
        %v5569 = vunpack.c.h.b16 %v1044
        %v5570 = vunpack.c.l.b16 %v1045
        %v5571 = vunpack.c.h.b16 %v1045
        %v5572 = vunpack.c.l.b16 %v1046
        %v5573 = vunpack.c.h.b16 %v1046
        %v5574 = vunpack.c.l.b16 %v1047
        %v5575 = vunpack.c.h.b16 %v1047
        %v5576 = vunpack.c.l.b16 %v1048
        %v5577 = vunpack.c.h.b16 %v1048
        %v5578 = vunpack.c.l.b16 %v1049
        %v5579 = vunpack.c.h.b16 %v1049
        %v5580 = vunpack.c.l.b16 %v1050
        %v5581 = vunpack.c.h.b16 %v1050
        %v5582 = vunpack.c.l.b16 %v1051
        %v5583 = vunpack.c.h.b16 %v1051
        %v5584 = vpack.c.b16 %v5552, %v5552
        %v5585 = vpack.c.b16 %v5553, %v5553
        %v5586 = vpack.c.b16 %v5554, %v5554
        %v5587 = vpack.c.b16 %v5555, %v5555
        %v5588 = vpack.c.b16 %v5556, %v5556
        %v5589 = vpack.c.b16 %v5557, %v5557
        %v5590 = vpack.c.b16 %v5558, %v5558
        %v5591 = vpack.c.b16 %v5559, %v5559
        %v5592 = vpack.c.b16 %v5560, %v5560
        %v5593 = vpack.c.b16 %v5561, %v5561
        %v5594 = vpack.c.b16 %v5562, %v5562
        %v5595 = vpack.c.b16 %v5563, %v5563
        %v5596 = vpack.c.b16 %v5564, %v5564
        %v5597 = vpack.c.b16 %v5565, %v5565
        %v5598 = vpack.c.b16 %v5566, %v5566
        %v5599 = vpack.c.b16 %v5567, %v5567
        %v5600 = vpack.c.b16 %v5568, %v5568
        %v5601 = vpack.c.b16 %v5569, %v5569
        %v5602 = vpack.c.b16 %v5570, %v5570
        %v5603 = vpack.c.b16 %v5571, %v5571
        %v5604 = vpack.c.b16 %v5572, %v5572
        %v5605 = vpack.c.b16 %v5573, %v5573
        %v5606 = vpack.c.b16 %v5574, %v5574
        %v5607 = vpack.c.b16 %v5575, %v5575
        %v5608 = vpack.c.b16 %v5576, %v5576
        %v5609 = vpack.c.b16 %v5577, %v5577
        %v5610 = vpack.c.b16 %v5578, %v5578
        %v5611 = vpack.c.b16 %v5579, %v5579
        %v5612 = vpack.c.b16 %v5580, %v5580
        %v5613 = vpack.c.b16 %v5581, %v5581
        %v5614 = vpack.c.b16 %v5582, %v5582
        %v5615 = vpack.c.b16 %v5583, %v5583
        %vm5616 = vcmask 1044484
        %vm5617 = vmor %vm3058, %vm5616
        %v5618 = vrot.slane %v5584, 7
        %v5619 = vrot.slane %v5618, 4
        %v5620 = vrot.slane %v5585, 7
        %v5621 = vsel %vm5617, %v5619, %v5620
        %v5622 = vrot.slane %v5620, 4
        %v5623 = vrot.slane %v5586, 7
        %v5624 = vrot.slane %v5623, 4
        %v5625 = vrot.slane %v5587, 7
        %v5626 = vsel %vm5617, %v5624, %v5625
        %v5627 = vrot.slane %v5625, 4
        %v5628 = vrot.slane %v5588, 7
        %v5629 = vrot.slane %v5628, 4
        %v5630 = vrot.slane %v5589, 7
        %v5631 = vsel %vm5617, %v5629, %v5630
        %v5632 = vrot.slane %v5630, 4
        %v5633 = vrot.slane %v5590, 7
        %v5634 = vrot.slane %v5633, 4
        %v5635 = vrot.slane %v5591, 7
        %v5636 = vsel %vm5617, %v5634, %v5635
        %v5637 = vrot.slane %v5635, 4
        %v5638 = vrot.slane %v5592, 7
        %v5639 = vrot.slane %v5638, 4
        %v5640 = vrot.slane %v5593, 7
        %v5641 = vsel %vm5617, %v5639, %v5640
        %v5642 = vrot.slane %v5640, 4
        %v5643 = vrot.slane %v5594, 7
        %v5644 = vrot.slane %v5643, 4
        %v5645 = vrot.slane %v5595, 7
        %v5646 = vsel %vm5617, %v5644, %v5645
        %v5647 = vrot.slane %v5645, 4
        %v5648 = vrot.slane %v5596, 7
        %v5649 = vrot.slane %v5648, 4
        %v5650 = vrot.slane %v5597, 7
        %v5651 = vsel %vm5617, %v5649, %v5650
        %v5652 = vrot.slane %v5650, 4
        %v5653 = vrot.slane %v5598, 7
        %v5654 = vrot.slane %v5653, 4
        %v5655 = vrot.slane %v5599, 7
        %v5656 = vsel %vm5617, %v5654, %v5655
        %v5657 = vrot.slane %v5655, 4
        %v5658 = vrot.slane %v5600, 7
        %v5659 = vrot.slane %v5658, 4
        %v5660 = vrot.slane %v5601, 7
        %v5661 = vsel %vm5617, %v5659, %v5660
        %v5662 = vrot.slane %v5660, 4
        %v5663 = vrot.slane %v5602, 7
        %v5664 = vrot.slane %v5663, 4
        %v5665 = vrot.slane %v5603, 7
        %v5666 = vsel %vm5617, %v5664, %v5665
        %v5667 = vrot.slane %v5665, 4
        %v5668 = vrot.slane %v5604, 7
        %v5669 = vrot.slane %v5668, 4
        %v5670 = vrot.slane %v5605, 7
        %v5671 = vsel %vm5617, %v5669, %v5670
        %v5672 = vrot.slane %v5670, 4
        %v5673 = vrot.slane %v5606, 7
        %v5674 = vrot.slane %v5673, 4
        %v5675 = vrot.slane %v5607, 7
        %v5676 = vsel %vm5617, %v5674, %v5675
        %v5677 = vrot.slane %v5675, 4
        %v5678 = vrot.slane %v5608, 7
        %v5679 = vrot.slane %v5678, 4
        %v5680 = vrot.slane %v5609, 7
        %v5681 = vsel %vm5617, %v5679, %v5680
        %v5682 = vrot.slane %v5680, 4
        %v5683 = vrot.slane %v5610, 7
        %v5684 = vrot.slane %v5683, 4
        %v5685 = vrot.slane %v5611, 7
        %v5686 = vsel %vm5617, %v5684, %v5685
        %v5687 = vrot.slane %v5685, 4
        %v5688 = vrot.slane %v5612, 7
        %v5689 = vrot.slane %v5688, 4
        %v5690 = vrot.slane %v5613, 7
        %v5691 = vsel %vm5617, %v5689, %v5690
        %v5692 = vrot.slane %v5690, 4
        %v5693 = vrot.slane %v5614, 7
        %v5694 = vrot.slane %v5693, 4
        %v5695 = vrot.slane %v5615, 7
        %v5696 = vsel %vm5617, %v5694, %v5695
        %v5697 = vrot.slane %v5695, 4
        %s5746 = scalar_lea.vmem [#allocation4], 24
        %5747 = vst [vmem:[%s5746] sm:$0xe] %v5618
        %5748 = vst [vmem:[%s5746 + $0x4] sm:$0xf] %v5621
        %5749 = vst [vmem:[%s5746 + $0x8] sm:$0x1] %v5622
        %5750 = vst [vmem:[%s5746 + $0xc] sm:$0xe] %v5623
        %5751 = vst [vmem:[%s5746 + $0x10] sm:$0xf] %v5626
        %5752 = vst [vmem:[%s5746 + $0x14] sm:$0x1] %v5627
        %5753 = vst [vmem:[%s5746 + $0x18] sm:$0xe] %v5628
        %5754 = vst [vmem:[%s5746 + $0x1c] sm:$0xf] %v5631
        %5755 = vst [vmem:[%s5746 + $0x20] sm:$0x1] %v5632
        %5756 = vst [vmem:[%s5746 + $0x24] sm:$0xe] %v5633
        %5757 = vst [vmem:[%s5746 + $0x28] sm:$0xf] %v5636
        %5758 = vst [vmem:[%s5746 + $0x2c] sm:$0x1] %v5637
        %5759 = vst [vmem:[%s5746 + $0x30] sm:$0xe] %v5638
        %5760 = vst [vmem:[%s5746 + $0x34] sm:$0xf] %v5641
        %5761 = vst [vmem:[%s5746 + $0x38] sm:$0x1] %v5642
        %5762 = vst [vmem:[%s5746 + $0x3c] sm:$0xe] %v5643
        %5763 = vst [vmem:[%s5746 + $0x40] sm:$0xf] %v5646
        %5764 = vst [vmem:[%s5746 + $0x44] sm:$0x1] %v5647
        %5765 = vst [vmem:[%s5746 + $0x48] sm:$0xe] %v5648
        %5766 = vst [vmem:[%s5746 + $0x4c] sm:$0xf] %v5651
        %5767 = vst [vmem:[%s5746 + $0x50] sm:$0x1] %v5652
        %5768 = vst [vmem:[%s5746 + $0x54] sm:$0xe] %v5653
        %5769 = vst [vmem:[%s5746 + $0x58] sm:$0xf] %v5656
        %5770 = vst [vmem:[%s5746 + $0x5c] sm:$0x1] %v5657
        %5771 = vst [vmem:[%s5746 + $0x60] sm:$0xe] %v5658
        %5772 = vst [vmem:[%s5746 + $0x64] sm:$0xf] %v5661
        %5773 = vst [vmem:[%s5746 + $0x68] sm:$0x1] %v5662
        %5774 = vst [vmem:[%s5746 + $0x6c] sm:$0xe] %v5663
        %5775 = vst [vmem:[%s5746 + $0x70] sm:$0xf] %v5666
        %5776 = vst [vmem:[%s5746 + $0x74] sm:$0x1] %v5667
        %5777 = vst [vmem:[%s5746 + $0x78] sm:$0xe] %v5668
        %5778 = vst [vmem:[%s5746 + $0x7c] sm:$0xf] %v5671
        %5779 = vst [vmem:[%s5746 + $0x80] sm:$0x1] %v5672
        %5780 = vst [vmem:[%s5746 + $0x84] sm:$0xe] %v5673
        %5781 = vst [vmem:[%s5746 + $0x88] sm:$0xf] %v5676
        %5782 = vst [vmem:[%s5746 + $0x8c] sm:$0x1] %v5677
        %5783 = vst [vmem:[%s5746 + $0x90] sm:$0xe] %v5678
        %5784 = vst [vmem:[%s5746 + $0x94] sm:$0xf] %v5681
        %5785 = vst [vmem:[%s5746 + $0x98] sm:$0x1] %v5682
        %5786 = vst [vmem:[%s5746 + $0x9c] sm:$0xe] %v5683
        %5787 = vst [vmem:[%s5746 + $0xa0] sm:$0xf] %v5686
        %5788 = vst [vmem:[%s5746 + $0xa4] sm:$0x1] %v5687
        %5789 = vst [vmem:[%s5746 + $0xa8] sm:$0xe] %v5688
        %5790 = vst [vmem:[%s5746 + $0xac] sm:$0xf] %v5691
        %5791 = vst [vmem:[%s5746 + $0xb0] sm:$0x1] %v5692
        %5792 = vst [vmem:[%s5746 + $0xb4] sm:$0xe] %v5693
        %5793 = vst [vmem:[%s5746 + $0xb8] sm:$0xf] %v5696
        %5794 = vst [vmem:[%s5746 + $0xbc] sm:$0x1] %v5697
        %v5795 = vld [vmem:[#allocation4] sm:$0xf]
        %v5796 = vld [vmem:[#allocation4 + $0x4] sm:$0xf]
        %v5797 = vld [vmem:[#allocation4 + $0x8] sm:$0x3]
        %v5798 = vld [vmem:[#allocation4 + $0xc] sm:$0xf]
        %v5799 = vld [vmem:[#allocation4 + $0x10] sm:$0xf]
        %v5800 = vld [vmem:[#allocation4 + $0x14] sm:$0x3]
        %v5801 = vld [vmem:[#allocation4 + $0x18] sm:$0xf]
        %v5802 = vld [vmem:[#allocation4 + $0x1c] sm:$0xf]
        %v5803 = vld [vmem:[#allocation4 + $0x20] sm:$0x3]
        %v5804 = vld [vmem:[#allocation4 + $0x24] sm:$0xf]
        %v5805 = vld [vmem:[#allocation4 + $0x28] sm:$0xf]
        %v5806 = vld [vmem:[#allocation4 + $0x2c] sm:$0x3]
        %v5807 = vld [vmem:[#allocation4 + $0x30] sm:$0xf]
        %v5808 = vld [vmem:[#allocation4 + $0x34] sm:$0xf]
        %v5809 = vld [vmem:[#allocation4 + $0x38] sm:$0x3]
        %v5810 = vld [vmem:[#allocation4 + $0x3c] sm:$0xf]
        %v5811 = vld [vmem:[#allocation4 + $0x40] sm:$0xf]
        %v5812 = vld [vmem:[#allocation4 + $0x44] sm:$0x3]
        %v5813 = vld [vmem:[#allocation4 + $0x48] sm:$0xf]
        %v5814 = vld [vmem:[#allocation4 + $0x4c] sm:$0xf]
        %v5815 = vld [vmem:[#allocation4 + $0x50] sm:$0x3]
        %v5816 = vld [vmem:[#allocation4 + $0x54] sm:$0xf]
        %v5817 = vld [vmem:[#allocation4 + $0x58] sm:$0xf]
        %v5818 = vld [vmem:[#allocation4 + $0x5c] sm:$0x3]
        %v5819 = vld [vmem:[#allocation4 + $0x60] sm:$0xf]
        %v5820 = vld [vmem:[#allocation4 + $0x64] sm:$0xf]
        %v5821 = vld [vmem:[#allocation4 + $0x68] sm:$0x3]
        %v5822 = vld [vmem:[#allocation4 + $0x6c] sm:$0xf]
        %v5823 = vld [vmem:[#allocation4 + $0x70] sm:$0xf]
        %v5824 = vld [vmem:[#allocation4 + $0x74] sm:$0x3]
        %v5825 = vld [vmem:[#allocation4 + $0x78] sm:$0xf]
        %v5826 = vld [vmem:[#allocation4 + $0x7c] sm:$0xf]
        %v5827 = vld [vmem:[#allocation4 + $0x80] sm:$0x3]
        %v5828 = vld [vmem:[#allocation4 + $0x84] sm:$0xf]
        %v5829 = vld [vmem:[#allocation4 + $0x88] sm:$0xf]
        %v5830 = vld [vmem:[#allocation4 + $0x8c] sm:$0x3]
        %v5831 = vld [vmem:[#allocation4 + $0x90] sm:$0xf]
        %v5832 = vld [vmem:[#allocation4 + $0x94] sm:$0xf]
        %v5833 = vld [vmem:[#allocation4 + $0x98] sm:$0x3]
        %v5834 = vld [vmem:[#allocation4 + $0x9c] sm:$0xf]
        %v5835 = vld [vmem:[#allocation4 + $0xa0] sm:$0xf]
        %v5836 = vld [vmem:[#allocation4 + $0xa4] sm:$0x3]
        %v5837 = vld [vmem:[#allocation4 + $0xa8] sm:$0xf]
        %v5838 = vld [vmem:[#allocation4 + $0xac] sm:$0xf]
        %v5839 = vld [vmem:[#allocation4 + $0xb0] sm:$0x3]
        %v5840 = vld [vmem:[#allocation4 + $0xb4] sm:$0xf]
        %v5841 = vld [vmem:[#allocation4 + $0xb8] sm:$0xf]
        %v5842 = vld [vmem:[#allocation4 + $0xbc] sm:$0x3]
        %v5843 = vld [vmem:[#allocation4 + $0xc0] sm:$0xf]
        %v5844 = vld [vmem:[#allocation4 + $0xc4] sm:$0xf]
        %v5845 = vld [vmem:[#allocation4 + $0xc8] sm:$0x3]
        %v5846 = vld [vmem:[#allocation4 + $0xcc] sm:$0xf]
        %v5847 = vld [vmem:[#allocation4 + $0xd0] sm:$0xf]
        %v5848 = vld [vmem:[#allocation4 + $0xd4] sm:$0x3]
        %v5849 = vld [vmem:[#allocation4 + $0xd8] sm:$0xf]
        %v5850 = vld [vmem:[#allocation4 + $0xdc] sm:$0xf]
        %v5851 = vld [vmem:[#allocation4 + $0xe0] sm:$0x3]
        %v5852 = vld [vmem:[#allocation4 + $0xe4] sm:$0xf]
        %v5853 = vld [vmem:[#allocation4 + $0xe8] sm:$0xf]
        %v5854 = vld [vmem:[#allocation4 + $0xec] sm:$0x3]
        %v5856 = vshrl.u32 %v5795, 16
        %v5858 = vrot.slane %v5856, 4
        %v5859 = vshll.u32 %v5795, 16
        %v5861 = vrot.slane %v5859, 5
        %v5862 = vor.u32 %v5858, %v5861
        %v5863 = vrot.slane %v5862, 4
        %v5865 = vshll.u32 %v5796, 16
        %v5867 = vrot.slane %v5865, 5
        %v5868 = vsel %vm3224, %v5863, %v5867
        %v5869 = vshrl.u32 %v5796, 16
        %v5871 = vrot.slane %v5869, 4
        %v5872 = vor.u32 %v5871, %v5867
        %v5873 = vrot.slane %v5872, 4
        %v5875 = vshll.u32 %v5797, 16
        %v5877 = vrot.slane %v5875, 5
        %v5878 = vsel %vm3224, %v5873, %v5877
        %v5880 = vshrl.u32 %v5798, 16
        %v5882 = vrot.slane %v5880, 4
        %v5883 = vshll.u32 %v5798, 16
        %v5885 = vrot.slane %v5883, 5
        %v5886 = vor.u32 %v5882, %v5885
        %v5887 = vrot.slane %v5886, 4
        %v5889 = vshll.u32 %v5799, 16
        %v5891 = vrot.slane %v5889, 5
        %v5892 = vsel %vm3224, %v5887, %v5891
        %v5893 = vshrl.u32 %v5799, 16
        %v5895 = vrot.slane %v5893, 4
        %v5896 = vor.u32 %v5895, %v5891
        %v5897 = vrot.slane %v5896, 4
        %v5899 = vshll.u32 %v5800, 16
        %v5901 = vrot.slane %v5899, 5
        %v5902 = vsel %vm3224, %v5897, %v5901
        %v5904 = vshrl.u32 %v5801, 16
        %v5906 = vrot.slane %v5904, 4
        %v5907 = vshll.u32 %v5801, 16
        %v5909 = vrot.slane %v5907, 5
        %v5910 = vor.u32 %v5906, %v5909
        %v5911 = vrot.slane %v5910, 4
        %v5913 = vshll.u32 %v5802, 16
        %v5915 = vrot.slane %v5913, 5
        %v5916 = vsel %vm3224, %v5911, %v5915
        %v5917 = vshrl.u32 %v5802, 16
        %v5919 = vrot.slane %v5917, 4
        %v5920 = vor.u32 %v5919, %v5915
        %v5921 = vrot.slane %v5920, 4
        %v5923 = vshll.u32 %v5803, 16
        %v5925 = vrot.slane %v5923, 5
        %v5926 = vsel %vm3224, %v5921, %v5925
        %v5928 = vshrl.u32 %v5804, 16
        %v5930 = vrot.slane %v5928, 4
        %v5931 = vshll.u32 %v5804, 16
        %v5933 = vrot.slane %v5931, 5
        %v5934 = vor.u32 %v5930, %v5933
        %v5935 = vrot.slane %v5934, 4
        %v5937 = vshll.u32 %v5805, 16
        %v5939 = vrot.slane %v5937, 5
        %v5940 = vsel %vm3224, %v5935, %v5939
        %v5941 = vshrl.u32 %v5805, 16
        %v5943 = vrot.slane %v5941, 4
        %v5944 = vor.u32 %v5943, %v5939
        %v5945 = vrot.slane %v5944, 4
        %v5947 = vshll.u32 %v5806, 16
        %v5949 = vrot.slane %v5947, 5
        %v5950 = vsel %vm3224, %v5945, %v5949
        %v5952 = vshrl.u32 %v5807, 16
        %v5954 = vrot.slane %v5952, 4
        %v5955 = vshll.u32 %v5807, 16
        %v5957 = vrot.slane %v5955, 5
        %v5958 = vor.u32 %v5954, %v5957
        %v5959 = vrot.slane %v5958, 4
        %v5961 = vshll.u32 %v5808, 16
        %v5963 = vrot.slane %v5961, 5
        %v5964 = vsel %vm3224, %v5959, %v5963
        %v5965 = vshrl.u32 %v5808, 16
        %v5967 = vrot.slane %v5965, 4
        %v5968 = vor.u32 %v5967, %v5963
        %v5969 = vrot.slane %v5968, 4
        %v5971 = vshll.u32 %v5809, 16
        %v5973 = vrot.slane %v5971, 5
        %v5974 = vsel %vm3224, %v5969, %v5973
        %v5976 = vshrl.u32 %v5810, 16
        %v5978 = vrot.slane %v5976, 4
        %v5979 = vshll.u32 %v5810, 16
        %v5981 = vrot.slane %v5979, 5
        %v5982 = vor.u32 %v5978, %v5981
        %v5983 = vrot.slane %v5982, 4
        %v5985 = vshll.u32 %v5811, 16
        %v5987 = vrot.slane %v5985, 5
        %v5988 = vsel %vm3224, %v5983, %v5987
        %v5989 = vshrl.u32 %v5811, 16
        %v5991 = vrot.slane %v5989, 4
        %v5992 = vor.u32 %v5991, %v5987
        %v5993 = vrot.slane %v5992, 4
        %v5995 = vshll.u32 %v5812, 16
        %v5997 = vrot.slane %v5995, 5
        %v5998 = vsel %vm3224, %v5993, %v5997
        %v6000 = vshrl.u32 %v5813, 16
        %v6002 = vrot.slane %v6000, 4
        %v6003 = vshll.u32 %v5813, 16
        %v6005 = vrot.slane %v6003, 5
        %v6006 = vor.u32 %v6002, %v6005
        %v6007 = vrot.slane %v6006, 4
        %v6009 = vshll.u32 %v5814, 16
        %v6011 = vrot.slane %v6009, 5
        %v6012 = vsel %vm3224, %v6007, %v6011
        %v6013 = vshrl.u32 %v5814, 16
        %v6015 = vrot.slane %v6013, 4
        %v6016 = vor.u32 %v6015, %v6011
        %v6017 = vrot.slane %v6016, 4
        %v6019 = vshll.u32 %v5815, 16
        %v6021 = vrot.slane %v6019, 5
        %v6022 = vsel %vm3224, %v6017, %v6021
        %v6024 = vshrl.u32 %v5816, 16
        %v6026 = vrot.slane %v6024, 4
        %v6027 = vshll.u32 %v5816, 16
        %v6029 = vrot.slane %v6027, 5
        %v6030 = vor.u32 %v6026, %v6029
        %v6031 = vrot.slane %v6030, 4
        %v6033 = vshll.u32 %v5817, 16
        %v6035 = vrot.slane %v6033, 5
        %v6036 = vsel %vm3224, %v6031, %v6035
        %v6037 = vshrl.u32 %v5817, 16
        %v6039 = vrot.slane %v6037, 4
        %v6040 = vor.u32 %v6039, %v6035
        %v6041 = vrot.slane %v6040, 4
        %v6043 = vshll.u32 %v5818, 16
        %v6045 = vrot.slane %v6043, 5
        %v6046 = vsel %vm3224, %v6041, %v6045
        %v6048 = vshrl.u32 %v5819, 16
        %v6050 = vrot.slane %v6048, 4
        %v6051 = vshll.u32 %v5819, 16
        %v6053 = vrot.slane %v6051, 5
        %v6054 = vor.u32 %v6050, %v6053
        %v6055 = vrot.slane %v6054, 4
        %v6057 = vshll.u32 %v5820, 16
        %v6059 = vrot.slane %v6057, 5
        %v6060 = vsel %vm3224, %v6055, %v6059
        %v6061 = vshrl.u32 %v5820, 16
        %v6063 = vrot.slane %v6061, 4
        %v6064 = vor.u32 %v6063, %v6059
        %v6065 = vrot.slane %v6064, 4
        %v6067 = vshll.u32 %v5821, 16
        %v6069 = vrot.slane %v6067, 5
        %v6070 = vsel %vm3224, %v6065, %v6069
        %v6072 = vshrl.u32 %v5822, 16
        %v6074 = vrot.slane %v6072, 4
        %v6075 = vshll.u32 %v5822, 16
        %v6077 = vrot.slane %v6075, 5
        %v6078 = vor.u32 %v6074, %v6077
        %v6079 = vrot.slane %v6078, 4
        %v6081 = vshll.u32 %v5823, 16
        %v6083 = vrot.slane %v6081, 5
        %v6084 = vsel %vm3224, %v6079, %v6083
        %v6085 = vshrl.u32 %v5823, 16
        %v6087 = vrot.slane %v6085, 4
        %v6088 = vor.u32 %v6087, %v6083
        %v6089 = vrot.slane %v6088, 4
        %v6091 = vshll.u32 %v5824, 16
        %v6093 = vrot.slane %v6091, 5
        %v6094 = vsel %vm3224, %v6089, %v6093
        %v6096 = vshrl.u32 %v5825, 16
        %v6098 = vrot.slane %v6096, 4
        %v6099 = vshll.u32 %v5825, 16
        %v6101 = vrot.slane %v6099, 5
        %v6102 = vor.u32 %v6098, %v6101
        %v6103 = vrot.slane %v6102, 4
        %v6105 = vshll.u32 %v5826, 16
        %v6107 = vrot.slane %v6105, 5
        %v6108 = vsel %vm3224, %v6103, %v6107
        %v6109 = vshrl.u32 %v5826, 16
        %v6111 = vrot.slane %v6109, 4
        %v6112 = vor.u32 %v6111, %v6107
        %v6113 = vrot.slane %v6112, 4
        %v6115 = vshll.u32 %v5827, 16
        %v6117 = vrot.slane %v6115, 5
        %v6118 = vsel %vm3224, %v6113, %v6117
        %v6120 = vshrl.u32 %v5828, 16
        %v6122 = vrot.slane %v6120, 4
        %v6123 = vshll.u32 %v5828, 16
        %v6125 = vrot.slane %v6123, 5
        %v6126 = vor.u32 %v6122, %v6125
        %v6127 = vrot.slane %v6126, 4
        %v6129 = vshll.u32 %v5829, 16
        %v6131 = vrot.slane %v6129, 5
        %v6132 = vsel %vm3224, %v6127, %v6131
        %v6133 = vshrl.u32 %v5829, 16
        %v6135 = vrot.slane %v6133, 4
        %v6136 = vor.u32 %v6135, %v6131
        %v6137 = vrot.slane %v6136, 4
        %v6139 = vshll.u32 %v5830, 16
        %v6141 = vrot.slane %v6139, 5
        %v6142 = vsel %vm3224, %v6137, %v6141
        %v6144 = vshrl.u32 %v5831, 16
        %v6146 = vrot.slane %v6144, 4
        %v6147 = vshll.u32 %v5831, 16
        %v6149 = vrot.slane %v6147, 5
        %v6150 = vor.u32 %v6146, %v6149
        %v6151 = vrot.slane %v6150, 4
        %v6153 = vshll.u32 %v5832, 16
        %v6155 = vrot.slane %v6153, 5
        %v6156 = vsel %vm3224, %v6151, %v6155
        %v6157 = vshrl.u32 %v5832, 16
        %v6159 = vrot.slane %v6157, 4
        %v6160 = vor.u32 %v6159, %v6155
        %v6161 = vrot.slane %v6160, 4
        %v6163 = vshll.u32 %v5833, 16
        %v6165 = vrot.slane %v6163, 5
        %v6166 = vsel %vm3224, %v6161, %v6165
        %v6168 = vshrl.u32 %v5834, 16
        %v6170 = vrot.slane %v6168, 4
        %v6171 = vshll.u32 %v5834, 16
        %v6173 = vrot.slane %v6171, 5
        %v6174 = vor.u32 %v6170, %v6173
        %v6175 = vrot.slane %v6174, 4
        %v6177 = vshll.u32 %v5835, 16
        %v6179 = vrot.slane %v6177, 5
        %v6180 = vsel %vm3224, %v6175, %v6179
        %v6181 = vshrl.u32 %v5835, 16
        %v6183 = vrot.slane %v6181, 4
        %v6184 = vor.u32 %v6183, %v6179
        %v6185 = vrot.slane %v6184, 4
        %v6187 = vshll.u32 %v5836, 16
        %v6189 = vrot.slane %v6187, 5
        %v6190 = vsel %vm3224, %v6185, %v6189
        %v6192 = vshrl.u32 %v5837, 16
        %v6194 = vrot.slane %v6192, 4
        %v6195 = vshll.u32 %v5837, 16
        %v6197 = vrot.slane %v6195, 5
        %v6198 = vor.u32 %v6194, %v6197
        %v6199 = vrot.slane %v6198, 4
        %v6201 = vshll.u32 %v5838, 16
        %v6203 = vrot.slane %v6201, 5
        %v6204 = vsel %vm3224, %v6199, %v6203
        %v6205 = vshrl.u32 %v5838, 16
        %v6207 = vrot.slane %v6205, 4
        %v6208 = vor.u32 %v6207, %v6203
        %v6209 = vrot.slane %v6208, 4
        %v6211 = vshll.u32 %v5839, 16
        %v6213 = vrot.slane %v6211, 5
        %v6214 = vsel %vm3224, %v6209, %v6213
        %v6216 = vshrl.u32 %v5840, 16
        %v6218 = vrot.slane %v6216, 4
        %v6219 = vshll.u32 %v5840, 16
        %v6221 = vrot.slane %v6219, 5
        %v6222 = vor.u32 %v6218, %v6221
        %v6223 = vrot.slane %v6222, 4
        %v6225 = vshll.u32 %v5841, 16
        %v6227 = vrot.slane %v6225, 5
        %v6228 = vsel %vm3224, %v6223, %v6227
        %v6229 = vshrl.u32 %v5841, 16
        %v6231 = vrot.slane %v6229, 4
        %v6232 = vor.u32 %v6231, %v6227
        %v6233 = vrot.slane %v6232, 4
        %v6235 = vshll.u32 %v5842, 16
        %v6237 = vrot.slane %v6235, 5
        %v6238 = vsel %vm3224, %v6233, %v6237
        %v6287 = vrot.slane %v5795, 5
        %v6288 = vrot.slane %v6287, 4
        %v6289 = vrot.slane %v5796, 5
        %v6290 = vsel %vm3659, %v6288, %v6289
        %v6291 = vrot.slane %v6289, 4
        %v6292 = vrot.slane %v5797, 5
        %v6293 = vsel %vm3659, %v6291, %v6292
        %v6294 = vrot.slane %v5798, 5
        %v6295 = vrot.slane %v6294, 4
        %v6296 = vrot.slane %v5799, 5
        %v6297 = vsel %vm3659, %v6295, %v6296
        %v6298 = vrot.slane %v6296, 4
        %v6299 = vrot.slane %v5800, 5
        %v6300 = vsel %vm3659, %v6298, %v6299
        %v6301 = vrot.slane %v5801, 5
        %v6302 = vrot.slane %v6301, 4
        %v6303 = vrot.slane %v5802, 5
        %v6304 = vsel %vm3659, %v6302, %v6303
        %v6305 = vrot.slane %v6303, 4
        %v6306 = vrot.slane %v5803, 5
        %v6307 = vsel %vm3659, %v6305, %v6306
        %v6308 = vrot.slane %v5804, 5
        %v6309 = vrot.slane %v6308, 4
        %v6310 = vrot.slane %v5805, 5
        %v6311 = vsel %vm3659, %v6309, %v6310
        %v6312 = vrot.slane %v6310, 4
        %v6313 = vrot.slane %v5806, 5
        %v6314 = vsel %vm3659, %v6312, %v6313
        %v6315 = vrot.slane %v5807, 5
        %v6316 = vrot.slane %v6315, 4
        %v6317 = vrot.slane %v5808, 5
        %v6318 = vsel %vm3659, %v6316, %v6317
        %v6319 = vrot.slane %v6317, 4
        %v6320 = vrot.slane %v5809, 5
        %v6321 = vsel %vm3659, %v6319, %v6320
        %v6322 = vrot.slane %v5810, 5
        %v6323 = vrot.slane %v6322, 4
        %v6324 = vrot.slane %v5811, 5
        %v6325 = vsel %vm3659, %v6323, %v6324
        %v6326 = vrot.slane %v6324, 4
        %v6327 = vrot.slane %v5812, 5
        %v6328 = vsel %vm3659, %v6326, %v6327
        %v6329 = vrot.slane %v5813, 5
        %v6330 = vrot.slane %v6329, 4
        %v6331 = vrot.slane %v5814, 5
        %v6332 = vsel %vm3659, %v6330, %v6331
        %v6333 = vrot.slane %v6331, 4
        %v6334 = vrot.slane %v5815, 5
        %v6335 = vsel %vm3659, %v6333, %v6334
        %v6336 = vrot.slane %v5816, 5
        %v6337 = vrot.slane %v6336, 4
        %v6338 = vrot.slane %v5817, 5
        %v6339 = vsel %vm3659, %v6337, %v6338
        %v6340 = vrot.slane %v6338, 4
        %v6341 = vrot.slane %v5818, 5
        %v6342 = vsel %vm3659, %v6340, %v6341
        %v6343 = vrot.slane %v5819, 5
        %v6344 = vrot.slane %v6343, 4
        %v6345 = vrot.slane %v5820, 5
        %v6346 = vsel %vm3659, %v6344, %v6345
        %v6347 = vrot.slane %v6345, 4
        %v6348 = vrot.slane %v5821, 5
        %v6349 = vsel %vm3659, %v6347, %v6348
        %v6350 = vrot.slane %v5822, 5
        %v6351 = vrot.slane %v6350, 4
        %v6352 = vrot.slane %v5823, 5
        %v6353 = vsel %vm3659, %v6351, %v6352
        %v6354 = vrot.slane %v6352, 4
        %v6355 = vrot.slane %v5824, 5
        %v6356 = vsel %vm3659, %v6354, %v6355
        %v6357 = vrot.slane %v5825, 5
        %v6358 = vrot.slane %v6357, 4
        %v6359 = vrot.slane %v5826, 5
        %v6360 = vsel %vm3659, %v6358, %v6359
        %v6361 = vrot.slane %v6359, 4
        %v6362 = vrot.slane %v5827, 5
        %v6363 = vsel %vm3659, %v6361, %v6362
        %v6364 = vrot.slane %v5828, 5
        %v6365 = vrot.slane %v6364, 4
        %v6366 = vrot.slane %v5829, 5
        %v6367 = vsel %vm3659, %v6365, %v6366
        %v6368 = vrot.slane %v6366, 4
        %v6369 = vrot.slane %v5830, 5
        %v6370 = vsel %vm3659, %v6368, %v6369
        %v6371 = vrot.slane %v5831, 5
        %v6372 = vrot.slane %v6371, 4
        %v6373 = vrot.slane %v5832, 5
        %v6374 = vsel %vm3659, %v6372, %v6373
        %v6375 = vrot.slane %v6373, 4
        %v6376 = vrot.slane %v5833, 5
        %v6377 = vsel %vm3659, %v6375, %v6376
        %v6378 = vrot.slane %v5834, 5
        %v6379 = vrot.slane %v6378, 4
        %v6380 = vrot.slane %v5835, 5
        %v6381 = vsel %vm3659, %v6379, %v6380
        %v6382 = vrot.slane %v6380, 4
        %v6383 = vrot.slane %v5836, 5
        %v6384 = vsel %vm3659, %v6382, %v6383
        %v6385 = vrot.slane %v5837, 5
        %v6386 = vrot.slane %v6385, 4
        %v6387 = vrot.slane %v5838, 5
        %v6388 = vsel %vm3659, %v6386, %v6387
        %v6389 = vrot.slane %v6387, 4
        %v6390 = vrot.slane %v5839, 5
        %v6391 = vsel %vm3659, %v6389, %v6390
        %v6392 = vrot.slane %v5840, 5
        %v6393 = vrot.slane %v6392, 4
        %v6394 = vrot.slane %v5841, 5
        %v6395 = vsel %vm3659, %v6393, %v6394
        %v6396 = vrot.slane %v6394, 4
        %v6397 = vrot.slane %v5842, 5
        %v6398 = vsel %vm3659, %v6396, %v6397
        %vm6399 = vsmask.f32 2304
        %vm6400 = vsmask.f32 6416
        %vm6401 = vmor %vm6399, %vm6400
        %v6402 = vrot.slane %v5856, 5
        %v6403 = vrot.slane %v5859, 6
        %v6404 = vor.u32 %v6402, %v6403
        %v6405 = vrot.slane %v6404, 4
        %v6406 = vrot.slane %v5869, 5
        %v6407 = vrot.slane %v5865, 6
        %v6408 = vor.u32 %v6406, %v6407
        %v6409 = vsel %vm6401, %v6405, %v6408
        %v6410 = vrot.slane %v6408, 4
        %v6411 = vshrl.u32 %v5797, 16
        %v6413 = vrot.slane %v6411, 5
        %v6414 = vrot.slane %v5875, 6
        %v6415 = vor.u32 %v6413, %v6414
        %v6416 = vsel %vm6401, %v6410, %v6415
        %v6417 = vrot.slane %v5880, 5
        %v6418 = vrot.slane %v5883, 6
        %v6419 = vor.u32 %v6417, %v6418
        %v6420 = vrot.slane %v6419, 4
        %v6421 = vrot.slane %v5893, 5
        %v6422 = vrot.slane %v5889, 6
        %v6423 = vor.u32 %v6421, %v6422
        %v6424 = vsel %vm6401, %v6420, %v6423
        %v6425 = vrot.slane %v6423, 4
        %v6426 = vshrl.u32 %v5800, 16
        %v6428 = vrot.slane %v6426, 5
        %v6429 = vrot.slane %v5899, 6
        %v6430 = vor.u32 %v6428, %v6429
        %v6431 = vsel %vm6401, %v6425, %v6430
        %v6432 = vrot.slane %v5904, 5
        %v6433 = vrot.slane %v5907, 6
        %v6434 = vor.u32 %v6432, %v6433
        %v6435 = vrot.slane %v6434, 4
        %v6436 = vrot.slane %v5917, 5
        %v6437 = vrot.slane %v5913, 6
        %v6438 = vor.u32 %v6436, %v6437
        %v6439 = vsel %vm6401, %v6435, %v6438
        %v6440 = vrot.slane %v6438, 4
        %v6441 = vshrl.u32 %v5803, 16
        %v6443 = vrot.slane %v6441, 5
        %v6444 = vrot.slane %v5923, 6
        %v6445 = vor.u32 %v6443, %v6444
        %v6446 = vsel %vm6401, %v6440, %v6445
        %v6447 = vrot.slane %v5928, 5
        %v6448 = vrot.slane %v5931, 6
        %v6449 = vor.u32 %v6447, %v6448
        %v6450 = vrot.slane %v6449, 4
        %v6451 = vrot.slane %v5941, 5
        %v6452 = vrot.slane %v5937, 6
        %v6453 = vor.u32 %v6451, %v6452
        %v6454 = vsel %vm6401, %v6450, %v6453
        %v6455 = vrot.slane %v6453, 4
        %v6456 = vshrl.u32 %v5806, 16
        %v6458 = vrot.slane %v6456, 5
        %v6459 = vrot.slane %v5947, 6
        %v6460 = vor.u32 %v6458, %v6459
        %v6461 = vsel %vm6401, %v6455, %v6460
        %v6462 = vrot.slane %v5952, 5
        %v6463 = vrot.slane %v5955, 6
        %v6464 = vor.u32 %v6462, %v6463
        %v6465 = vrot.slane %v6464, 4
        %v6466 = vrot.slane %v5965, 5
        %v6467 = vrot.slane %v5961, 6
        %v6468 = vor.u32 %v6466, %v6467
        %v6469 = vsel %vm6401, %v6465, %v6468
        %v6470 = vrot.slane %v6468, 4
        %v6471 = vshrl.u32 %v5809, 16
        %v6473 = vrot.slane %v6471, 5
        %v6474 = vrot.slane %v5971, 6
        %v6475 = vor.u32 %v6473, %v6474
        %v6476 = vsel %vm6401, %v6470, %v6475
        %v6477 = vrot.slane %v5976, 5
        %v6478 = vrot.slane %v5979, 6
        %v6479 = vor.u32 %v6477, %v6478
        %v6480 = vrot.slane %v6479, 4
        %v6481 = vrot.slane %v5989, 5
        %v6482 = vrot.slane %v5985, 6
        %v6483 = vor.u32 %v6481, %v6482
        %v6484 = vsel %vm6401, %v6480, %v6483
        %v6485 = vrot.slane %v6483, 4
        %v6486 = vshrl.u32 %v5812, 16
        %v6488 = vrot.slane %v6486, 5
        %v6489 = vrot.slane %v5995, 6
        %v6490 = vor.u32 %v6488, %v6489
        %v6491 = vsel %vm6401, %v6485, %v6490
        %v6492 = vrot.slane %v6000, 5
        %v6493 = vrot.slane %v6003, 6
        %v6494 = vor.u32 %v6492, %v6493
        %v6495 = vrot.slane %v6494, 4
        %v6496 = vrot.slane %v6013, 5
        %v6497 = vrot.slane %v6009, 6
        %v6498 = vor.u32 %v6496, %v6497
        %v6499 = vsel %vm6401, %v6495, %v6498
        %v6500 = vrot.slane %v6498, 4
        %v6501 = vshrl.u32 %v5815, 16
        %v6503 = vrot.slane %v6501, 5
        %v6504 = vrot.slane %v6019, 6
        %v6505 = vor.u32 %v6503, %v6504
        %v6506 = vsel %vm6401, %v6500, %v6505
        %v6507 = vrot.slane %v6024, 5
        %v6508 = vrot.slane %v6027, 6
        %v6509 = vor.u32 %v6507, %v6508
        %v6510 = vrot.slane %v6509, 4
        %v6511 = vrot.slane %v6037, 5
        %v6512 = vrot.slane %v6033, 6
        %v6513 = vor.u32 %v6511, %v6512
        %v6514 = vsel %vm6401, %v6510, %v6513
        %v6515 = vrot.slane %v6513, 4
        %v6516 = vshrl.u32 %v5818, 16
        %v6518 = vrot.slane %v6516, 5
        %v6519 = vrot.slane %v6043, 6
        %v6520 = vor.u32 %v6518, %v6519
        %v6521 = vsel %vm6401, %v6515, %v6520
        %v6522 = vrot.slane %v6048, 5
        %v6523 = vrot.slane %v6051, 6
        %v6524 = vor.u32 %v6522, %v6523
        %v6525 = vrot.slane %v6524, 4
        %v6526 = vrot.slane %v6061, 5
        %v6527 = vrot.slane %v6057, 6
        %v6528 = vor.u32 %v6526, %v6527
        %v6529 = vsel %vm6401, %v6525, %v6528
        %v6530 = vrot.slane %v6528, 4
        %v6531 = vshrl.u32 %v5821, 16
        %v6533 = vrot.slane %v6531, 5
        %v6534 = vrot.slane %v6067, 6
        %v6535 = vor.u32 %v6533, %v6534
        %v6536 = vsel %vm6401, %v6530, %v6535
        %v6537 = vrot.slane %v6072, 5
        %v6538 = vrot.slane %v6075, 6
        %v6539 = vor.u32 %v6537, %v6538
        %v6540 = vrot.slane %v6539, 4
        %v6541 = vrot.slane %v6085, 5
        %v6542 = vrot.slane %v6081, 6
        %v6543 = vor.u32 %v6541, %v6542
        %v6544 = vsel %vm6401, %v6540, %v6543
        %v6545 = vrot.slane %v6543, 4
        %v6546 = vshrl.u32 %v5824, 16
        %v6548 = vrot.slane %v6546, 5
        %v6549 = vrot.slane %v6091, 6
        %v6550 = vor.u32 %v6548, %v6549
        %v6551 = vsel %vm6401, %v6545, %v6550
        %v6552 = vrot.slane %v6096, 5
        %v6553 = vrot.slane %v6099, 6
        %v6554 = vor.u32 %v6552, %v6553
        %v6555 = vrot.slane %v6554, 4
        %v6556 = vrot.slane %v6109, 5
        %v6557 = vrot.slane %v6105, 6
        %v6558 = vor.u32 %v6556, %v6557
        %v6559 = vsel %vm6401, %v6555, %v6558
        %v6560 = vrot.slane %v6558, 4
        %v6561 = vshrl.u32 %v5827, 16
        %v6563 = vrot.slane %v6561, 5
        %v6564 = vrot.slane %v6115, 6
        %v6565 = vor.u32 %v6563, %v6564
        %v6566 = vsel %vm6401, %v6560, %v6565
        %v6567 = vrot.slane %v6120, 5
        %v6568 = vrot.slane %v6123, 6
        %v6569 = vor.u32 %v6567, %v6568
        %v6570 = vrot.slane %v6569, 4
        %v6571 = vrot.slane %v6133, 5
        %v6572 = vrot.slane %v6129, 6
        %v6573 = vor.u32 %v6571, %v6572
        %v6574 = vsel %vm6401, %v6570, %v6573
        %v6575 = vrot.slane %v6573, 4
        %v6576 = vshrl.u32 %v5830, 16
        %v6578 = vrot.slane %v6576, 5
        %v6579 = vrot.slane %v6139, 6
        %v6580 = vor.u32 %v6578, %v6579
        %v6581 = vsel %vm6401, %v6575, %v6580
        %v6582 = vrot.slane %v6144, 5
        %v6583 = vrot.slane %v6147, 6
        %v6584 = vor.u32 %v6582, %v6583
        %v6585 = vrot.slane %v6584, 4
        %v6586 = vrot.slane %v6157, 5
        %v6587 = vrot.slane %v6153, 6
        %v6588 = vor.u32 %v6586, %v6587
        %v6589 = vsel %vm6401, %v6585, %v6588
        %v6590 = vrot.slane %v6588, 4
        %v6591 = vshrl.u32 %v5833, 16
        %v6593 = vrot.slane %v6591, 5
        %v6594 = vrot.slane %v6163, 6
        %v6595 = vor.u32 %v6593, %v6594
        %v6596 = vsel %vm6401, %v6590, %v6595
        %v6597 = vrot.slane %v6168, 5
        %v6598 = vrot.slane %v6171, 6
        %v6599 = vor.u32 %v6597, %v6598
        %v6600 = vrot.slane %v6599, 4
        %v6601 = vrot.slane %v6181, 5
        %v6602 = vrot.slane %v6177, 6
        %v6603 = vor.u32 %v6601, %v6602
        %v6604 = vsel %vm6401, %v6600, %v6603
        %v6605 = vrot.slane %v6603, 4
        %v6606 = vshrl.u32 %v5836, 16
        %v6608 = vrot.slane %v6606, 5
        %v6609 = vrot.slane %v6187, 6
        %v6610 = vor.u32 %v6608, %v6609
        %v6611 = vsel %vm6401, %v6605, %v6610
        %v6612 = vrot.slane %v6192, 5
        %v6613 = vrot.slane %v6195, 6
        %v6614 = vor.u32 %v6612, %v6613
        %v6615 = vrot.slane %v6614, 4
        %v6616 = vrot.slane %v6205, 5
        %v6617 = vrot.slane %v6201, 6
        %v6618 = vor.u32 %v6616, %v6617
        %v6619 = vsel %vm6401, %v6615, %v6618
        %v6620 = vrot.slane %v6618, 4
        %v6621 = vshrl.u32 %v5839, 16
        %v6623 = vrot.slane %v6621, 5
        %v6624 = vrot.slane %v6211, 6
        %v6625 = vor.u32 %v6623, %v6624
        %v6626 = vsel %vm6401, %v6620, %v6625
        %v6627 = vrot.slane %v6216, 5
        %v6628 = vrot.slane %v6219, 6
        %v6629 = vor.u32 %v6627, %v6628
        %v6630 = vrot.slane %v6629, 4
        %v6631 = vrot.slane %v6229, 5
        %v6632 = vrot.slane %v6225, 6
        %v6633 = vor.u32 %v6631, %v6632
        %v6634 = vsel %vm6401, %v6630, %v6633
        %v6635 = vrot.slane %v6633, 4
        %v6636 = vshrl.u32 %v5842, 16
        %v6638 = vrot.slane %v6636, 5
        %v6639 = vrot.slane %v6235, 6
        %v6640 = vor.u32 %v6638, %v6639
        %v6641 = vsel %vm6401, %v6635, %v6640
        %vm6642 = vcmask 1041408
        %vm6643 = vcmask 1045508
        %vm6644 = vmor %vm6642, %vm6643
        %v6645 = vrot.slane %v5795, 6
        %v6646 = vrot.slane %v6645, 4
        %v6647 = vrot.slane %v5796, 6
        %v6648 = vsel %vm6644, %v6646, %v6647
        %v6649 = vrot.slane %v6647, 4
        %v6650 = vrot.slane %v5797, 6
        %v6651 = vsel %vm6644, %v6649, %v6650
        %v6652 = vrot.slane %v5798, 6
        %v6653 = vrot.slane %v6652, 4
        %v6654 = vrot.slane %v5799, 6
        %v6655 = vsel %vm6644, %v6653, %v6654
        %v6656 = vrot.slane %v6654, 4
        %v6657 = vrot.slane %v5800, 6
        %v6658 = vsel %vm6644, %v6656, %v6657
        %v6659 = vrot.slane %v5801, 6
        %v6660 = vrot.slane %v6659, 4
        %v6661 = vrot.slane %v5802, 6
        %v6662 = vsel %vm6644, %v6660, %v6661
        %v6663 = vrot.slane %v6661, 4
        %v6664 = vrot.slane %v5803, 6
        %v6665 = vsel %vm6644, %v6663, %v6664
        %v6666 = vrot.slane %v5804, 6
        %v6667 = vrot.slane %v6666, 4
        %v6668 = vrot.slane %v5805, 6
        %v6669 = vsel %vm6644, %v6667, %v6668
        %v6670 = vrot.slane %v6668, 4
        %v6671 = vrot.slane %v5806, 6
        %v6672 = vsel %vm6644, %v6670, %v6671
        %v6673 = vrot.slane %v5807, 6
        %v6674 = vrot.slane %v6673, 4
        %v6675 = vrot.slane %v5808, 6
        %v6676 = vsel %vm6644, %v6674, %v6675
        %v6677 = vrot.slane %v6675, 4
        %v6678 = vrot.slane %v5809, 6
        %v6679 = vsel %vm6644, %v6677, %v6678
        %v6680 = vrot.slane %v5810, 6
        %v6681 = vrot.slane %v6680, 4
        %v6682 = vrot.slane %v5811, 6
        %v6683 = vsel %vm6644, %v6681, %v6682
        %v6684 = vrot.slane %v6682, 4
        %v6685 = vrot.slane %v5812, 6
        %v6686 = vsel %vm6644, %v6684, %v6685
        %v6687 = vrot.slane %v5813, 6
        %v6688 = vrot.slane %v6687, 4
        %v6689 = vrot.slane %v5814, 6
        %v6690 = vsel %vm6644, %v6688, %v6689
        %v6691 = vrot.slane %v6689, 4
        %v6692 = vrot.slane %v5815, 6
        %v6693 = vsel %vm6644, %v6691, %v6692
        %v6694 = vrot.slane %v5816, 6
        %v6695 = vrot.slane %v6694, 4
        %v6696 = vrot.slane %v5817, 6
        %v6697 = vsel %vm6644, %v6695, %v6696
        %v6698 = vrot.slane %v6696, 4
        %v6699 = vrot.slane %v5818, 6
        %v6700 = vsel %vm6644, %v6698, %v6699
        %v6701 = vrot.slane %v5819, 6
        %v6702 = vrot.slane %v6701, 4
        %v6703 = vrot.slane %v5820, 6
        %v6704 = vsel %vm6644, %v6702, %v6703
        %v6705 = vrot.slane %v6703, 4
        %v6706 = vrot.slane %v5821, 6
        %v6707 = vsel %vm6644, %v6705, %v6706
        %v6708 = vrot.slane %v5822, 6
        %v6709 = vrot.slane %v6708, 4
        %v6710 = vrot.slane %v5823, 6
        %v6711 = vsel %vm6644, %v6709, %v6710
        %v6712 = vrot.slane %v6710, 4
        %v6713 = vrot.slane %v5824, 6
        %v6714 = vsel %vm6644, %v6712, %v6713
        %v6715 = vrot.slane %v5825, 6
        %v6716 = vrot.slane %v6715, 4
        %v6717 = vrot.slane %v5826, 6
        %v6718 = vsel %vm6644, %v6716, %v6717
        %v6719 = vrot.slane %v6717, 4
        %v6720 = vrot.slane %v5827, 6
        %v6721 = vsel %vm6644, %v6719, %v6720
        %v6722 = vrot.slane %v5828, 6
        %v6723 = vrot.slane %v6722, 4
        %v6724 = vrot.slane %v5829, 6
        %v6725 = vsel %vm6644, %v6723, %v6724
        %v6726 = vrot.slane %v6724, 4
        %v6727 = vrot.slane %v5830, 6
        %v6728 = vsel %vm6644, %v6726, %v6727
        %v6729 = vrot.slane %v5831, 6
        %v6730 = vrot.slane %v6729, 4
        %v6731 = vrot.slane %v5832, 6
        %v6732 = vsel %vm6644, %v6730, %v6731
        %v6733 = vrot.slane %v6731, 4
        %v6734 = vrot.slane %v5833, 6
        %v6735 = vsel %vm6644, %v6733, %v6734
        %v6736 = vrot.slane %v5834, 6
        %v6737 = vrot.slane %v6736, 4
        %v6738 = vrot.slane %v5835, 6
        %v6739 = vsel %vm6644, %v6737, %v6738
        %v6740 = vrot.slane %v6738, 4
        %v6741 = vrot.slane %v5836, 6
        %v6742 = vsel %vm6644, %v6740, %v6741
        %v6743 = vrot.slane %v5837, 6
        %v6744 = vrot.slane %v6743, 4
        %v6745 = vrot.slane %v5838, 6
        %v6746 = vsel %vm6644, %v6744, %v6745
        %v6747 = vrot.slane %v6745, 4
        %v6748 = vrot.slane %v5839, 6
        %v6749 = vsel %vm6644, %v6747, %v6748
        %v6750 = vrot.slane %v5840, 6
        %v6751 = vrot.slane %v6750, 4
        %v6752 = vrot.slane %v5841, 6
        %v6753 = vsel %vm6644, %v6751, %v6752
        %v6754 = vrot.slane %v6752, 4
        %v6755 = vrot.slane %v5842, 6
        %v6756 = vsel %vm6644, %v6754, %v6755
        %v6758 = vshrl.u32 %v5843, 16
        %v6760 = vrot.slane %v6758, 4
        %v6761 = vshll.u32 %v5843, 16
        %v6763 = vrot.slane %v6761, 5
        %v6764 = vor.u32 %v6760, %v6763
        %v6765 = vrot.slane %v6764, 4
        %v6767 = vshll.u32 %v5844, 16
        %v6769 = vrot.slane %v6767, 5
        %v6770 = vsel %vm3224, %v6765, %v6769
        %v6771 = vshrl.u32 %v5844, 16
        %v6773 = vrot.slane %v6771, 4
        %v6774 = vor.u32 %v6773, %v6769
        %v6775 = vrot.slane %v6774, 4
        %v6777 = vshll.u32 %v5845, 16
        %v6779 = vrot.slane %v6777, 5
        %v6780 = vsel %vm3224, %v6775, %v6779
        %v6784 = vrot.slane %v5843, 5
        %v6785 = vrot.slane %v6784, 4
        %v6786 = vrot.slane %v5844, 5
        %v6787 = vsel %vm3659, %v6785, %v6786
        %v6788 = vrot.slane %v6786, 4
        %v6789 = vrot.slane %v5845, 5
        %v6790 = vsel %vm3659, %v6788, %v6789
        %v6791 = vrot.slane %v6758, 5
        %v6792 = vrot.slane %v6761, 6
        %v6793 = vor.u32 %v6791, %v6792
        %v6794 = vrot.slane %v6793, 4
        %v6795 = vrot.slane %v6771, 5
        %v6796 = vrot.slane %v6767, 6
        %v6797 = vor.u32 %v6795, %v6796
        %v6798 = vsel %vm6401, %v6794, %v6797
        %v6799 = vrot.slane %v6797, 4
        %v6800 = vshrl.u32 %v5845, 16
        %v6802 = vrot.slane %v6800, 5
        %v6803 = vrot.slane %v6777, 6
        %v6804 = vor.u32 %v6802, %v6803
        %v6805 = vsel %vm6401, %v6799, %v6804
        %v6806 = vrot.slane %v5843, 6
        %v6807 = vrot.slane %v6806, 4
        %v6808 = vrot.slane %v5844, 6
        %v6809 = vsel %vm6644, %v6807, %v6808
        %v6810 = vrot.slane %v6808, 4
        %v6811 = vrot.slane %v5845, 6
        %v6812 = vsel %vm6644, %v6810, %v6811
        %v6814 = vshrl.u32 %v5846, 16
        %v6816 = vrot.slane %v6814, 4
        %v6817 = vshll.u32 %v5846, 16
        %v6819 = vrot.slane %v6817, 5
        %v6820 = vor.u32 %v6816, %v6819
        %v6821 = vrot.slane %v6820, 4
        %v6823 = vshll.u32 %v5847, 16
        %v6825 = vrot.slane %v6823, 5
        %v6826 = vsel %vm3224, %v6821, %v6825
        %v6827 = vshrl.u32 %v5847, 16
        %v6829 = vrot.slane %v6827, 4
        %v6830 = vor.u32 %v6829, %v6825
        %v6831 = vrot.slane %v6830, 4
        %v6833 = vshll.u32 %v5848, 16
        %v6835 = vrot.slane %v6833, 5
        %v6836 = vsel %vm3224, %v6831, %v6835
        %v6840 = vrot.slane %v5846, 5
        %v6841 = vrot.slane %v6840, 4
        %v6842 = vrot.slane %v5847, 5
        %v6843 = vsel %vm3659, %v6841, %v6842
        %v6844 = vrot.slane %v6842, 4
        %v6845 = vrot.slane %v5848, 5
        %v6846 = vsel %vm3659, %v6844, %v6845
        %v6847 = vrot.slane %v6814, 5
        %v6848 = vrot.slane %v6817, 6
        %v6849 = vor.u32 %v6847, %v6848
        %v6850 = vrot.slane %v6849, 4
        %v6851 = vrot.slane %v6827, 5
        %v6852 = vrot.slane %v6823, 6
        %v6853 = vor.u32 %v6851, %v6852
        %v6854 = vsel %vm6401, %v6850, %v6853
        %v6855 = vrot.slane %v6853, 4
        %v6856 = vshrl.u32 %v5848, 16
        %v6858 = vrot.slane %v6856, 5
        %v6859 = vrot.slane %v6833, 6
        %v6860 = vor.u32 %v6858, %v6859
        %v6861 = vsel %vm6401, %v6855, %v6860
        %v6862 = vrot.slane %v5846, 6
        %v6863 = vrot.slane %v6862, 4
        %v6864 = vrot.slane %v5847, 6
        %v6865 = vsel %vm6644, %v6863, %v6864
        %v6866 = vrot.slane %v6864, 4
        %v6867 = vrot.slane %v5848, 6
        %v6868 = vsel %vm6644, %v6866, %v6867
        %v6870 = vshrl.u32 %v5849, 16
        %v6872 = vrot.slane %v6870, 4
        %v6873 = vshll.u32 %v5849, 16
        %v6875 = vrot.slane %v6873, 5
        %v6876 = vor.u32 %v6872, %v6875
        %v6877 = vrot.slane %v6876, 4
        %v6879 = vshll.u32 %v5850, 16
        %v6881 = vrot.slane %v6879, 5
        %v6882 = vsel %vm3224, %v6877, %v6881
        %v6883 = vshrl.u32 %v5850, 16
        %v6885 = vrot.slane %v6883, 4
        %v6886 = vor.u32 %v6885, %v6881
        %v6887 = vrot.slane %v6886, 4
        %v6889 = vshll.u32 %v5851, 16
        %v6891 = vrot.slane %v6889, 5
        %v6892 = vsel %vm3224, %v6887, %v6891
        %v6896 = vrot.slane %v5849, 5
        %v6897 = vrot.slane %v6896, 4
        %v6898 = vrot.slane %v5850, 5
        %v6899 = vsel %vm3659, %v6897, %v6898
        %v6900 = vrot.slane %v6898, 4
        %v6901 = vrot.slane %v5851, 5
        %v6902 = vsel %vm3659, %v6900, %v6901
        %v6903 = vrot.slane %v6870, 5
        %v6904 = vrot.slane %v6873, 6
        %v6905 = vor.u32 %v6903, %v6904
        %v6906 = vrot.slane %v6905, 4
        %v6907 = vrot.slane %v6883, 5
        %v6908 = vrot.slane %v6879, 6
        %v6909 = vor.u32 %v6907, %v6908
        %v6910 = vsel %vm6401, %v6906, %v6909
        %v6911 = vrot.slane %v6909, 4
        %v6912 = vshrl.u32 %v5851, 16
        %v6914 = vrot.slane %v6912, 5
        %v6915 = vrot.slane %v6889, 6
        %v6916 = vor.u32 %v6914, %v6915
        %v6917 = vsel %vm6401, %v6911, %v6916
        %v6918 = vrot.slane %v5849, 6
        %v6919 = vrot.slane %v6918, 4
        %v6920 = vrot.slane %v5850, 6
        %v6921 = vsel %vm6644, %v6919, %v6920
        %v6922 = vrot.slane %v6920, 4
        %v6923 = vrot.slane %v5851, 6
        %v6924 = vsel %vm6644, %v6922, %v6923
        %v6926 = vshrl.u32 %v5852, 16
        %v6928 = vrot.slane %v6926, 4
        %v6929 = vshll.u32 %v5852, 16
        %v6931 = vrot.slane %v6929, 5
        %v6932 = vor.u32 %v6928, %v6931
        %v6933 = vrot.slane %v6932, 4
        %v6935 = vshll.u32 %v5853, 16
        %v6937 = vrot.slane %v6935, 5
        %v6938 = vsel %vm3224, %v6933, %v6937
        %v6939 = vshrl.u32 %v5853, 16
        %v6941 = vrot.slane %v6939, 4
        %v6942 = vor.u32 %v6941, %v6937
        %v6943 = vrot.slane %v6942, 4
        %v6945 = vshll.u32 %v5854, 16
        %v6947 = vrot.slane %v6945, 5
        %v6948 = vsel %vm3224, %v6943, %v6947
        %v6952 = vrot.slane %v5852, 5
        %v6953 = vrot.slane %v6952, 4
        %v6954 = vrot.slane %v5853, 5
        %v6955 = vsel %vm3659, %v6953, %v6954
        %v6956 = vrot.slane %v6954, 4
        %v6957 = vrot.slane %v5854, 5
        %v6958 = vsel %vm3659, %v6956, %v6957
        %v6959 = vrot.slane %v6926, 5
        %v6960 = vrot.slane %v6929, 6
        %v6961 = vor.u32 %v6959, %v6960
        %v6962 = vrot.slane %v6961, 4
        %v6963 = vrot.slane %v6939, 5
        %v6964 = vrot.slane %v6935, 6
        %v6965 = vor.u32 %v6963, %v6964
        %v6966 = vsel %vm6401, %v6962, %v6965
        %v6967 = vrot.slane %v6965, 4
        %v6968 = vshrl.u32 %v5854, 16
        %v6970 = vrot.slane %v6968, 5
        %v6971 = vrot.slane %v6945, 6
        %v6972 = vor.u32 %v6970, %v6971
        %v6973 = vsel %vm6401, %v6967, %v6972
        %v6974 = vrot.slane %v5852, 6
        %v6975 = vrot.slane %v6974, 4
        %v6976 = vrot.slane %v5853, 6
        %v6977 = vsel %vm6644, %v6975, %v6976
        %v6978 = vrot.slane %v6976, 4
        %v6979 = vrot.slane %v5854, 6
        %v6980 = vsel %vm6644, %v6978, %v6979
        %v6981 = vunpack.c.l.b16 %v5795
        %v6982 = vunpack.c.l.b16 %v5796
        %v6983 = vunpack.c.l.b16 %v5798
        %v6984 = vunpack.c.l.b16 %v5799
        %v6985 = vunpack.c.l.b16 %v5801
        %v6986 = vunpack.c.l.b16 %v5802
        %v6987 = vunpack.c.l.b16 %v5804
        %v6988 = vunpack.c.l.b16 %v5805
        %v6989 = vunpack.c.l.b16 %v5807
        %v6990 = vunpack.c.l.b16 %v5808
        %v6991 = vunpack.c.l.b16 %v5810
        %v6992 = vunpack.c.l.b16 %v5811
        %v6993 = vunpack.c.l.b16 %v5813
        %v6994 = vunpack.c.l.b16 %v5814
        %v6995 = vunpack.c.l.b16 %v5816
        %v6996 = vunpack.c.l.b16 %v5817
        %v6997 = vunpack.c.l.b16 %v5819
        %v6998 = vunpack.c.l.b16 %v5820
        %v6999 = vunpack.c.l.b16 %v5822
        %v7000 = vunpack.c.l.b16 %v5823
        %v7001 = vunpack.c.l.b16 %v5825
        %v7002 = vunpack.c.l.b16 %v5826
        %v7003 = vunpack.c.l.b16 %v5828
        %v7004 = vunpack.c.l.b16 %v5829
        %v7005 = vunpack.c.l.b16 %v5831
        %v7006 = vunpack.c.l.b16 %v5832
        %v7007 = vunpack.c.l.b16 %v5834
        %v7008 = vunpack.c.l.b16 %v5835
        %v7009 = vunpack.c.l.b16 %v5837
        %v7010 = vunpack.c.l.b16 %v5838
        %v7011 = vunpack.c.l.b16 %v5840
        %v7012 = vunpack.c.l.b16 %v5841
        %v7013 = vpack.c.b16 %v6982, %v6981
        %v7014 = vpack.c.b16 %v6984, %v6983
        %v7015 = vpack.c.b16 %v6986, %v6985
        %v7016 = vpack.c.b16 %v6988, %v6987
        %v7017 = vpack.c.b16 %v6990, %v6989
        %v7018 = vpack.c.b16 %v6992, %v6991
        %v7019 = vpack.c.b16 %v6994, %v6993
        %v7020 = vpack.c.b16 %v6996, %v6995
        %v7021 = vpack.c.b16 %v6998, %v6997
        %v7022 = vpack.c.b16 %v7000, %v6999
        %v7023 = vpack.c.b16 %v7002, %v7001
        %v7024 = vpack.c.b16 %v7004, %v7003
        %v7025 = vpack.c.b16 %v7006, %v7005
        %v7026 = vpack.c.b16 %v7008, %v7007
        %v7027 = vpack.c.b16 %v7010, %v7009
        %v7028 = vpack.c.b16 %v7012, %v7011
        %v7045 = vunpack.c.l.b16 %v5868
        %v7046 = vunpack.c.l.b16 %v5878
        %v7047 = vunpack.c.l.b16 %v5892
        %v7048 = vunpack.c.l.b16 %v5902
        %v7049 = vunpack.c.l.b16 %v5916
        %v7050 = vunpack.c.l.b16 %v5926
        %v7051 = vunpack.c.l.b16 %v5940
        %v7052 = vunpack.c.l.b16 %v5950
        %v7053 = vunpack.c.l.b16 %v5964
        %v7054 = vunpack.c.l.b16 %v5974
        %v7055 = vunpack.c.l.b16 %v5988
        %v7056 = vunpack.c.l.b16 %v5998
        %v7057 = vunpack.c.l.b16 %v6012
        %v7058 = vunpack.c.l.b16 %v6022
        %v7059 = vunpack.c.l.b16 %v6036
        %v7060 = vunpack.c.l.b16 %v6046
        %v7061 = vunpack.c.l.b16 %v6060
        %v7062 = vunpack.c.l.b16 %v6070
        %v7063 = vunpack.c.l.b16 %v6084
        %v7064 = vunpack.c.l.b16 %v6094
        %v7065 = vunpack.c.l.b16 %v6108
        %v7066 = vunpack.c.l.b16 %v6118
        %v7067 = vunpack.c.l.b16 %v6132
        %v7068 = vunpack.c.l.b16 %v6142
        %v7069 = vunpack.c.l.b16 %v6156
        %v7070 = vunpack.c.l.b16 %v6166
        %v7071 = vunpack.c.l.b16 %v6180
        %v7072 = vunpack.c.l.b16 %v6190
        %v7073 = vunpack.c.l.b16 %v6204
        %v7074 = vunpack.c.l.b16 %v6214
        %v7075 = vunpack.c.l.b16 %v6228
        %v7076 = vunpack.c.l.b16 %v6238
        %v7077 = vpack.c.b16 %v7046, %v7045
        %v7078 = vpack.c.b16 %v7048, %v7047
        %v7079 = vpack.c.b16 %v7050, %v7049
        %v7080 = vpack.c.b16 %v7052, %v7051
        %v7081 = vpack.c.b16 %v7054, %v7053
        %v7082 = vpack.c.b16 %v7056, %v7055
        %v7083 = vpack.c.b16 %v7058, %v7057
        %v7084 = vpack.c.b16 %v7060, %v7059
        %v7085 = vpack.c.b16 %v7062, %v7061
        %v7086 = vpack.c.b16 %v7064, %v7063
        %v7087 = vpack.c.b16 %v7066, %v7065
        %v7088 = vpack.c.b16 %v7068, %v7067
        %v7089 = vpack.c.b16 %v7070, %v7069
        %v7090 = vpack.c.b16 %v7072, %v7071
        %v7091 = vpack.c.b16 %v7074, %v7073
        %v7092 = vpack.c.b16 %v7076, %v7075
        %v7109 = vunpack.c.l.b16 %v6290
        %v7110 = vunpack.c.l.b16 %v6293
        %v7111 = vunpack.c.l.b16 %v6297
        %v7112 = vunpack.c.l.b16 %v6300
        %v7113 = vunpack.c.l.b16 %v6304
        %v7114 = vunpack.c.l.b16 %v6307
        %v7115 = vunpack.c.l.b16 %v6311
        %v7116 = vunpack.c.l.b16 %v6314
        %v7117 = vunpack.c.l.b16 %v6318
        %v7118 = vunpack.c.l.b16 %v6321
        %v7119 = vunpack.c.l.b16 %v6325
        %v7120 = vunpack.c.l.b16 %v6328
        %v7121 = vunpack.c.l.b16 %v6332
        %v7122 = vunpack.c.l.b16 %v6335
        %v7123 = vunpack.c.l.b16 %v6339
        %v7124 = vunpack.c.l.b16 %v6342
        %v7125 = vunpack.c.l.b16 %v6346
        %v7126 = vunpack.c.l.b16 %v6349
        %v7127 = vunpack.c.l.b16 %v6353
        %v7128 = vunpack.c.l.b16 %v6356
        %v7129 = vunpack.c.l.b16 %v6360
        %v7130 = vunpack.c.l.b16 %v6363
        %v7131 = vunpack.c.l.b16 %v6367
        %v7132 = vunpack.c.l.b16 %v6370
        %v7133 = vunpack.c.l.b16 %v6374
        %v7134 = vunpack.c.l.b16 %v6377
        %v7135 = vunpack.c.l.b16 %v6381
        %v7136 = vunpack.c.l.b16 %v6384
        %v7137 = vunpack.c.l.b16 %v6388
        %v7138 = vunpack.c.l.b16 %v6391
        %v7139 = vunpack.c.l.b16 %v6395
        %v7140 = vunpack.c.l.b16 %v6398
        %v7141 = vpack.c.b16 %v7110, %v7109
        %v7142 = vpack.c.b16 %v7112, %v7111
        %v7143 = vpack.c.b16 %v7114, %v7113
        %v7144 = vpack.c.b16 %v7116, %v7115
        %v7145 = vpack.c.b16 %v7118, %v7117
        %v7146 = vpack.c.b16 %v7120, %v7119
        %v7147 = vpack.c.b16 %v7122, %v7121
        %v7148 = vpack.c.b16 %v7124, %v7123
        %v7149 = vpack.c.b16 %v7126, %v7125
        %v7150 = vpack.c.b16 %v7128, %v7127
        %v7151 = vpack.c.b16 %v7130, %v7129
        %v7152 = vpack.c.b16 %v7132, %v7131
        %v7153 = vpack.c.b16 %v7134, %v7133
        %v7154 = vpack.c.b16 %v7136, %v7135
        %v7155 = vpack.c.b16 %v7138, %v7137
        %v7156 = vpack.c.b16 %v7140, %v7139
        %v7173 = vunpack.c.l.b16 %v6409
        %v7174 = vunpack.c.l.b16 %v6416
        %v7175 = vunpack.c.l.b16 %v6424
        %v7176 = vunpack.c.l.b16 %v6431
        %v7177 = vunpack.c.l.b16 %v6439
        %v7178 = vunpack.c.l.b16 %v6446
        %v7179 = vunpack.c.l.b16 %v6454
        %v7180 = vunpack.c.l.b16 %v6461
        %v7181 = vunpack.c.l.b16 %v6469
        %v7182 = vunpack.c.l.b16 %v6476
        %v7183 = vunpack.c.l.b16 %v6484
        %v7184 = vunpack.c.l.b16 %v6491
        %v7185 = vunpack.c.l.b16 %v6499
        %v7186 = vunpack.c.l.b16 %v6506
        %v7187 = vunpack.c.l.b16 %v6514
        %v7188 = vunpack.c.l.b16 %v6521
        %v7189 = vunpack.c.l.b16 %v6529
        %v7190 = vunpack.c.l.b16 %v6536
        %v7191 = vunpack.c.l.b16 %v6544
        %v7192 = vunpack.c.l.b16 %v6551
        %v7193 = vunpack.c.l.b16 %v6559
        %v7194 = vunpack.c.l.b16 %v6566
        %v7195 = vunpack.c.l.b16 %v6574
        %v7196 = vunpack.c.l.b16 %v6581
        %v7197 = vunpack.c.l.b16 %v6589
        %v7198 = vunpack.c.l.b16 %v6596
        %v7199 = vunpack.c.l.b16 %v6604
        %v7200 = vunpack.c.l.b16 %v6611
        %v7201 = vunpack.c.l.b16 %v6619
        %v7202 = vunpack.c.l.b16 %v6626
        %v7203 = vunpack.c.l.b16 %v6634
        %v7204 = vunpack.c.l.b16 %v6641
        %v7205 = vpack.c.b16 %v7174, %v7173
        %v7206 = vpack.c.b16 %v7176, %v7175
        %v7207 = vpack.c.b16 %v7178, %v7177
        %v7208 = vpack.c.b16 %v7180, %v7179
        %v7209 = vpack.c.b16 %v7182, %v7181
        %v7210 = vpack.c.b16 %v7184, %v7183
        %v7211 = vpack.c.b16 %v7186, %v7185
        %v7212 = vpack.c.b16 %v7188, %v7187
        %v7213 = vpack.c.b16 %v7190, %v7189
        %v7214 = vpack.c.b16 %v7192, %v7191
        %v7215 = vpack.c.b16 %v7194, %v7193
        %v7216 = vpack.c.b16 %v7196, %v7195
        %v7217 = vpack.c.b16 %v7198, %v7197
        %v7218 = vpack.c.b16 %v7200, %v7199
        %v7219 = vpack.c.b16 %v7202, %v7201
        %v7220 = vpack.c.b16 %v7204, %v7203
        %v7237 = vunpack.c.l.b16 %v6648
        %v7238 = vunpack.c.l.b16 %v6651
        %v7239 = vunpack.c.l.b16 %v6655
        %v7240 = vunpack.c.l.b16 %v6658
        %v7241 = vunpack.c.l.b16 %v6662
        %v7242 = vunpack.c.l.b16 %v6665
        %v7243 = vunpack.c.l.b16 %v6669
        %v7244 = vunpack.c.l.b16 %v6672
        %v7245 = vunpack.c.l.b16 %v6676
        %v7246 = vunpack.c.l.b16 %v6679
        %v7247 = vunpack.c.l.b16 %v6683
        %v7248 = vunpack.c.l.b16 %v6686
        %v7249 = vunpack.c.l.b16 %v6690
        %v7250 = vunpack.c.l.b16 %v6693
        %v7251 = vunpack.c.l.b16 %v6697
        %v7252 = vunpack.c.l.b16 %v6700
        %v7253 = vunpack.c.l.b16 %v6704
        %v7254 = vunpack.c.l.b16 %v6707
        %v7255 = vunpack.c.l.b16 %v6711
        %v7256 = vunpack.c.l.b16 %v6714
        %v7257 = vunpack.c.l.b16 %v6718
        %v7258 = vunpack.c.l.b16 %v6721
        %v7259 = vunpack.c.l.b16 %v6725
        %v7260 = vunpack.c.l.b16 %v6728
        %v7261 = vunpack.c.l.b16 %v6732
        %v7262 = vunpack.c.l.b16 %v6735
        %v7263 = vunpack.c.l.b16 %v6739
        %v7264 = vunpack.c.l.b16 %v6742
        %v7265 = vunpack.c.l.b16 %v6746
        %v7266 = vunpack.c.l.b16 %v6749
        %v7267 = vunpack.c.l.b16 %v6753
        %v7268 = vunpack.c.l.b16 %v6756
        %v7269 = vpack.c.b16 %v7238, %v7237
        %v7270 = vpack.c.b16 %v7240, %v7239
        %v7271 = vpack.c.b16 %v7242, %v7241
        %v7272 = vpack.c.b16 %v7244, %v7243
        %v7273 = vpack.c.b16 %v7246, %v7245
        %v7274 = vpack.c.b16 %v7248, %v7247
        %v7275 = vpack.c.b16 %v7250, %v7249
        %v7276 = vpack.c.b16 %v7252, %v7251
        %v7277 = vpack.c.b16 %v7254, %v7253
        %v7278 = vpack.c.b16 %v7256, %v7255
        %v7279 = vpack.c.b16 %v7258, %v7257
        %v7280 = vpack.c.b16 %v7260, %v7259
        %v7281 = vpack.c.b16 %v7262, %v7261
        %v7282 = vpack.c.b16 %v7264, %v7263
        %v7283 = vpack.c.b16 %v7266, %v7265
        %v7284 = vpack.c.b16 %v7268, %v7267
        %v7301 = vunpack.c.l.b16 %v5843
        %v7302 = vunpack.c.l.b16 %v5844
        %v7303 = vpack.c.b16 %v7302, %v7301
        %v7305 = vunpack.c.l.b16 %v6770
        %v7306 = vunpack.c.l.b16 %v6780
        %v7307 = vpack.c.b16 %v7306, %v7305
        %v7309 = vunpack.c.l.b16 %v6787
        %v7310 = vunpack.c.l.b16 %v6790
        %v7311 = vpack.c.b16 %v7310, %v7309
        %v7313 = vunpack.c.l.b16 %v6798
        %v7314 = vunpack.c.l.b16 %v6805
        %v7315 = vpack.c.b16 %v7314, %v7313
        %v7317 = vunpack.c.l.b16 %v6809
        %v7318 = vunpack.c.l.b16 %v6812
        %v7319 = vpack.c.b16 %v7318, %v7317
        %v7321 = vunpack.c.l.b16 %v5846
        %v7322 = vunpack.c.l.b16 %v5847
        %v7323 = vpack.c.b16 %v7322, %v7321
        %v7325 = vunpack.c.l.b16 %v6826
        %v7326 = vunpack.c.l.b16 %v6836
        %v7327 = vpack.c.b16 %v7326, %v7325
        %v7329 = vunpack.c.l.b16 %v6843
        %v7330 = vunpack.c.l.b16 %v6846
        %v7331 = vpack.c.b16 %v7330, %v7329
        %v7333 = vunpack.c.l.b16 %v6854
        %v7334 = vunpack.c.l.b16 %v6861
        %v7335 = vpack.c.b16 %v7334, %v7333
        %v7337 = vunpack.c.l.b16 %v6865
        %v7338 = vunpack.c.l.b16 %v6868
        %v7339 = vpack.c.b16 %v7338, %v7337
        %v7341 = vunpack.c.l.b16 %v5849
        %v7342 = vunpack.c.l.b16 %v5850
        %v7343 = vpack.c.b16 %v7342, %v7341
        %v7345 = vunpack.c.l.b16 %v6882
        %v7346 = vunpack.c.l.b16 %v6892
        %v7347 = vpack.c.b16 %v7346, %v7345
        %v7349 = vunpack.c.l.b16 %v6899
        %v7350 = vunpack.c.l.b16 %v6902
        %v7351 = vpack.c.b16 %v7350, %v7349
        %v7353 = vunpack.c.l.b16 %v6910
        %v7354 = vunpack.c.l.b16 %v6917
        %v7355 = vpack.c.b16 %v7354, %v7353
        %v7357 = vunpack.c.l.b16 %v6921
        %v7358 = vunpack.c.l.b16 %v6924
        %v7359 = vpack.c.b16 %v7358, %v7357
        %v7361 = vunpack.c.l.b16 %v5852
        %v7362 = vunpack.c.l.b16 %v5853
        %v7363 = vpack.c.b16 %v7362, %v7361
        %v7365 = vunpack.c.l.b16 %v6938
        %v7366 = vunpack.c.l.b16 %v6948
        %v7367 = vpack.c.b16 %v7366, %v7365
        %v7369 = vunpack.c.l.b16 %v6955
        %v7370 = vunpack.c.l.b16 %v6958
        %v7371 = vpack.c.b16 %v7370, %v7369
        %v7373 = vunpack.c.l.b16 %v6966
        %v7374 = vunpack.c.l.b16 %v6973
        %v7375 = vpack.c.b16 %v7374, %v7373
        %v7377 = vunpack.c.l.b16 %v6977
        %v7378 = vunpack.c.l.b16 %v6980
        %v7379 = vpack.c.b16 %v7378, %v7377
        %v7381 = vld [vmem:[#allocation7] sm:$0xf]
        %v7382 = vld [vmem:[#allocation7 + $0x4] sm:$0xf]
        %v7383 = vld [vmem:[#allocation7 + $0x8] sm:$0xf]
        %v7384 = vld [vmem:[#allocation7 + $0xc] sm:$0xf]
        %v7385 = vld [vmem:[#allocation7 + $0x10] sm:$0xf]
        %v7386 = vld [vmem:[#allocation7 + $0x14] sm:$0xf]
        %v7387 = vld [vmem:[#allocation7 + $0x18] sm:$0xf]
        %v7388 = vld [vmem:[#allocation7 + $0x1c] sm:$0xf]
        %v7389 = vld [vmem:[#allocation7 + $0x20] sm:$0xf]
        %v7390 = vld [vmem:[#allocation7 + $0x24] sm:$0xf]
        %v7391 = vld [vmem:[#allocation7 + $0x28] sm:$0xf]
        %v7392 = vld [vmem:[#allocation7 + $0x2c] sm:$0xf]
        %v7393 = vld [vmem:[#allocation7 + $0x30] sm:$0xf]
        %v7394 = vld [vmem:[#allocation7 + $0x34] sm:$0xf]
        %v7395 = vld [vmem:[#allocation7 + $0x38] sm:$0xf]
        %v7396 = vld [vmem:[#allocation7 + $0x3c] sm:$0xf]
        %v7397 = vld [vmem:[#allocation7 + $0x40] sm:$0xf]
        %v7398 = vld [vmem:[#allocation7 + $0x44] sm:$0xf]
        %v7399 = vld [vmem:[#allocation7 + $0x48] sm:$0xf]
        %v7400 = vld [vmem:[#allocation7 + $0x4c] sm:$0xf]
        %v7401 = vld [vmem:[#allocation7 + $0x50] sm:$0xf]
        %v7402 = vld [vmem:[#allocation7 + $0x54] sm:$0xf]
        %v7403 = vld [vmem:[#allocation7 + $0x58] sm:$0xf]
        %v7404 = vld [vmem:[#allocation7 + $0x5c] sm:$0xf]
        %v7405 = vld [vmem:[#allocation7 + $0x60] sm:$0xf]
        %v7406 = vld [vmem:[#allocation7 + $0x64] sm:$0xf]
        %v7407 = vld [vmem:[#allocation7 + $0x68] sm:$0xf]
        %v7408 = vld [vmem:[#allocation7 + $0x6c] sm:$0xf]
        %v7409 = vld [vmem:[#allocation7 + $0x70] sm:$0xf]
        %v7410 = vld [vmem:[#allocation7 + $0x74] sm:$0xf]
        %v7411 = vld [vmem:[#allocation7 + $0x78] sm:$0xf]
        %v7412 = vld [vmem:[#allocation7 + $0x7c] sm:$0xf]
        %v7413 = vld [vmem:[#allocation7 + $0x80] sm:$0xf]
        %v7414 = vld [vmem:[#allocation7 + $0x84] sm:$0xf]
        %v7415 = vld [vmem:[#allocation7 + $0x88] sm:$0xf]
        %v7416 = vld [vmem:[#allocation7 + $0x8c] sm:$0xf]
        %v7417 = vld [vmem:[#allocation7 + $0x90] sm:$0xf]
        %v7418 = vld [vmem:[#allocation7 + $0x94] sm:$0xf]
        %v7419 = vld [vmem:[#allocation7 + $0x98] sm:$0xf]
        %v7420 = vld [vmem:[#allocation7 + $0x9c] sm:$0xf]
        %v7421 = vld [vmem:[#allocation7 + $0xa0] sm:$0xf]
        %v7422 = vld [vmem:[#allocation7 + $0xa4] sm:$0xf]
        %v7423 = vld [vmem:[#allocation7 + $0xa8] sm:$0xf]
        %v7424 = vld [vmem:[#allocation7 + $0xac] sm:$0xf]
        %v7425 = vld [vmem:[#allocation7 + $0xb0] sm:$0xf]
        %v7426 = vld [vmem:[#allocation7 + $0xb4] sm:$0xf]
        %v7427 = vld [vmem:[#allocation7 + $0xb8] sm:$0xf]
        %v7428 = vld [vmem:[#allocation7 + $0xbc] sm:$0xf]
        %v7429 = vld [vmem:[#allocation7 + $0xc0] sm:$0xf]
        %v7430 = vld [vmem:[#allocation7 + $0xc4] sm:$0xf]
        %v7431 = vld [vmem:[#allocation7 + $0xc8] sm:$0xf]
        %v7432 = vld [vmem:[#allocation7 + $0xcc] sm:$0xf]
        %v7433 = vld [vmem:[#allocation7 + $0xd0] sm:$0xf]
        %v7434 = vld [vmem:[#allocation7 + $0xd4] sm:$0xf]
        %v7435 = vld [vmem:[#allocation7 + $0xd8] sm:$0xf]
        %v7436 = vld [vmem:[#allocation7 + $0xdc] sm:$0xf]
        %v7437 = vld [vmem:[#allocation7 + $0xe0] sm:$0xf]
        %v7438 = vld [vmem:[#allocation7 + $0xe4] sm:$0xf]
        %v7439 = vld [vmem:[#allocation7 + $0xe8] sm:$0xf]
        %v7440 = vld [vmem:[#allocation7 + $0xec] sm:$0xf]
        %v7441 = vld [vmem:[#allocation7 + $0xf0] sm:$0xf]
        %v7442 = vld [vmem:[#allocation7 + $0xf4] sm:$0xf]
        %v7443 = vld [vmem:[#allocation7 + $0xf8] sm:$0xf]
        %v7444 = vld [vmem:[#allocation7 + $0xfc] sm:$0xf]
        %v7445 = vld [vmem:[#allocation7 + $0x100] sm:$0xf]
        %v7446 = vld [vmem:[#allocation7 + $0x104] sm:$0xf]
        %v7447 = vld [vmem:[#allocation7 + $0x108] sm:$0xf]
        %v7448 = vld [vmem:[#allocation7 + $0x10c] sm:$0xf]
        %v7449 = vld [vmem:[#allocation7 + $0x110] sm:$0xf]
        %v7450 = vld [vmem:[#allocation7 + $0x114] sm:$0xf]
        %v7451 = vld [vmem:[#allocation7 + $0x118] sm:$0xf]
        %v7452 = vld [vmem:[#allocation7 + $0x11c] sm:$0xf]
        %v7453 = vld [vmem:[#allocation7 + $0x120] sm:$0xf]
        %v7454 = vld [vmem:[#allocation7 + $0x124] sm:$0xf]
        %v7455 = vld [vmem:[#allocation7 + $0x128] sm:$0xf]
        %v7456 = vld [vmem:[#allocation7 + $0x12c] sm:$0xf]
        %v7457 = vld [vmem:[#allocation7 + $0x130] sm:$0xf]
        %v7458 = vld [vmem:[#allocation7 + $0x134] sm:$0xf]
        %v7459 = vld [vmem:[#allocation7 + $0x138] sm:$0xf]
        %v7460 = vld [vmem:[#allocation7 + $0x13c] sm:$0xf]
        %v7461 = vld [vmem:[#allocation7 + $0x140] sm:$0xf]
        %v7462 = vld [vmem:[#allocation7 + $0x144] sm:$0xf]
        %v7463 = vld [vmem:[#allocation7 + $0x148] sm:$0xf]
        %v7464 = vld [vmem:[#allocation7 + $0x14c] sm:$0xf]
        %v7465 = vld [vmem:[#allocation7 + $0x150] sm:$0xf]
        %v7466 = vld [vmem:[#allocation7 + $0x154] sm:$0xf]
        %v7467 = vld [vmem:[#allocation7 + $0x158] sm:$0xf]
        %v7468 = vld [vmem:[#allocation7 + $0x15c] sm:$0xf]
        %v7469 = vld [vmem:[#allocation7 + $0x160] sm:$0xf]
        %v7470 = vld [vmem:[#allocation7 + $0x164] sm:$0xf]
        %v7471 = vld [vmem:[#allocation7 + $0x168] sm:$0xf]
        %v7472 = vld [vmem:[#allocation7 + $0x16c] sm:$0xf]
        %v7473 = vld [vmem:[#allocation7 + $0x170] sm:$0xf]
        %v7474 = vld [vmem:[#allocation7 + $0x174] sm:$0xf]
        %v7475 = vld [vmem:[#allocation7 + $0x178] sm:$0xf]
        %v7476 = vld [vmem:[#allocation7 + $0x17c] sm:$0xf]
        %v7477 = vld [vmem:[#allocation7 + $0x180] sm:$0xf]
        %v7478 = vld [vmem:[#allocation7 + $0x184] sm:$0xf]
        %v7479 = vld [vmem:[#allocation7 + $0x188] sm:$0xf]
        %v7480 = vld [vmem:[#allocation7 + $0x18c] sm:$0xf]
        %v7481 = vld [vmem:[#allocation7 + $0x190] sm:$0xf]
        %v7482 = vld [vmem:[#allocation7 + $0x194] sm:$0xf]
        %v7483 = vld [vmem:[#allocation7 + $0x198] sm:$0xf]
        %v7484 = vld [vmem:[#allocation7 + $0x19c] sm:$0xf]
        %v7485 = vld [vmem:[#allocation7 + $0x1a0] sm:$0xf]
        %v7486 = vld [vmem:[#allocation7 + $0x1a4] sm:$0xf]
        %v7487 = vld [vmem:[#allocation7 + $0x1a8] sm:$0xf]
        %v7488 = vld [vmem:[#allocation7 + $0x1ac] sm:$0xf]
        %v7489 = vld [vmem:[#allocation7 + $0x1b0] sm:$0xf]
        %v7490 = vld [vmem:[#allocation7 + $0x1b4] sm:$0xf]
        %v7491 = vld [vmem:[#allocation7 + $0x1b8] sm:$0xf]
        %v7492 = vld [vmem:[#allocation7 + $0x1bc] sm:$0xf]
        %v7493 = vld [vmem:[#allocation7 + $0x1c0] sm:$0xf]
        %v7494 = vld [vmem:[#allocation7 + $0x1c4] sm:$0xf]
        %v7495 = vld [vmem:[#allocation7 + $0x1c8] sm:$0xf]
        %v7496 = vld [vmem:[#allocation7 + $0x1cc] sm:$0xf]
        %v7497 = vld [vmem:[#allocation7 + $0x1d0] sm:$0xf]
        %v7498 = vld [vmem:[#allocation7 + $0x1d4] sm:$0xf]
        %v7499 = vld [vmem:[#allocation7 + $0x1d8] sm:$0xf]
        %v7500 = vld [vmem:[#allocation7 + $0x1dc] sm:$0xf]
        %v7501 = vld [vmem:[#allocation7 + $0x1e0] sm:$0xf]
        %v7502 = vld [vmem:[#allocation7 + $0x1e4] sm:$0xf]
        %v7503 = vld [vmem:[#allocation7 + $0x1e8] sm:$0xf]
        %v7504 = vld [vmem:[#allocation7 + $0x1ec] sm:$0xf]
        %v7505 = vld [vmem:[#allocation7 + $0x1f0] sm:$0xf]
        %v7506 = vld [vmem:[#allocation7 + $0x1f4] sm:$0xf]
        %v7507 = vld [vmem:[#allocation7 + $0x1f8] sm:$0xf]
        %v7508 = vld [vmem:[#allocation7 + $0x1fc] sm:$0xf]
        %v7509 = vld [vmem:[#allocation7 + $0x200] sm:$0xf]
        %v7510 = vld [vmem:[#allocation7 + $0x204] sm:$0xf]
        %v7511 = vld [vmem:[#allocation7 + $0x208] sm:$0xf]
        %v7512 = vld [vmem:[#allocation7 + $0x20c] sm:$0xf]
        %v7513 = vld [vmem:[#allocation7 + $0x210] sm:$0xf]
        %v7514 = vld [vmem:[#allocation7 + $0x214] sm:$0xf]
        %v7515 = vld [vmem:[#allocation7 + $0x218] sm:$0xf]
        %v7516 = vld [vmem:[#allocation7 + $0x21c] sm:$0xf]
        %v7517 = vld [vmem:[#allocation7 + $0x220] sm:$0xf]
        %v7518 = vld [vmem:[#allocation7 + $0x224] sm:$0xf]
        %v7519 = vld [vmem:[#allocation7 + $0x228] sm:$0xf]
        %v7520 = vld [vmem:[#allocation7 + $0x22c] sm:$0xf]
        %v7521 = vld [vmem:[#allocation7 + $0x230] sm:$0xf]
        %v7522 = vld [vmem:[#allocation7 + $0x234] sm:$0xf]
        %v7523 = vld [vmem:[#allocation7 + $0x238] sm:$0xf]
        %v7524 = vld [vmem:[#allocation7 + $0x23c] sm:$0xf]
        %v7525 = vld [vmem:[#allocation7 + $0x240] sm:$0xf]
        %v7526 = vld [vmem:[#allocation7 + $0x244] sm:$0xf]
        %v7527 = vld [vmem:[#allocation7 + $0x248] sm:$0xf]
        %v7528 = vld [vmem:[#allocation7 + $0x24c] sm:$0xf]
        %v7529 = vld [vmem:[#allocation7 + $0x250] sm:$0xf]
        %v7530 = vld [vmem:[#allocation7 + $0x254] sm:$0xf]
        %v7531 = vld [vmem:[#allocation7 + $0x258] sm:$0xf]
        %v7532 = vld [vmem:[#allocation7 + $0x25c] sm:$0xf]
        %v7533 = vld [vmem:[#allocation7 + $0x260] sm:$0xf]
        %v7534 = vld [vmem:[#allocation7 + $0x264] sm:$0xf]
        %v7535 = vld [vmem:[#allocation7 + $0x268] sm:$0xf]
        %v7536 = vld [vmem:[#allocation7 + $0x26c] sm:$0xf]
        %v7537 = vld [vmem:[#allocation7 + $0x270] sm:$0xf]
        %v7538 = vld [vmem:[#allocation7 + $0x274] sm:$0xf]
        %v7539 = vld [vmem:[#allocation7 + $0x278] sm:$0xf]
        %v7540 = vld [vmem:[#allocation7 + $0x27c] sm:$0xf]
        %v7541 = vld [vmem:[#allocation7 + $0x280] sm:$0xf]
        %v7542 = vld [vmem:[#allocation7 + $0x284] sm:$0xf]
        %v7543 = vld [vmem:[#allocation7 + $0x288] sm:$0xf]
        %v7544 = vld [vmem:[#allocation7 + $0x28c] sm:$0xf]
        %v7545 = vld [vmem:[#allocation7 + $0x290] sm:$0xf]
        %v7546 = vld [vmem:[#allocation7 + $0x294] sm:$0xf]
        %v7547 = vld [vmem:[#allocation7 + $0x298] sm:$0xf]
        %v7548 = vld [vmem:[#allocation7 + $0x29c] sm:$0xf]
        %v7549 = vld [vmem:[#allocation7 + $0x2a0] sm:$0xf]
        %v7550 = vld [vmem:[#allocation7 + $0x2a4] sm:$0xf]
        %v7551 = vld [vmem:[#allocation7 + $0x2a8] sm:$0xf]
        %v7552 = vld [vmem:[#allocation7 + $0x2ac] sm:$0xf]
        %v7553 = vld [vmem:[#allocation7 + $0x2b0] sm:$0xf]
        %v7554 = vld [vmem:[#allocation7 + $0x2b4] sm:$0xf]
        %v7555 = vld [vmem:[#allocation7 + $0x2b8] sm:$0xf]
        %v7556 = vld [vmem:[#allocation7 + $0x2bc] sm:$0xf]
        %v7557 = vld [vmem:[#allocation7 + $0x2c0] sm:$0xf]
        %v7558 = vld [vmem:[#allocation7 + $0x2c4] sm:$0xf]
        %v7559 = vld [vmem:[#allocation7 + $0x2c8] sm:$0xf]
        %v7560 = vld [vmem:[#allocation7 + $0x2cc] sm:$0xf]
        %v7561 = vld [vmem:[#allocation7 + $0x2d0] sm:$0xf]
        %v7562 = vld [vmem:[#allocation7 + $0x2d4] sm:$0xf]
        %v7563 = vld [vmem:[#allocation7 + $0x2d8] sm:$0xf]
        %v7564 = vld [vmem:[#allocation7 + $0x2dc] sm:$0xf]
        %v7565 = vld [vmem:[#allocation7 + $0x2e0] sm:$0xf]
        %v7566 = vld [vmem:[#allocation7 + $0x2e4] sm:$0xf]
        %v7567 = vld [vmem:[#allocation7 + $0x2e8] sm:$0xf]
        %v7568 = vld [vmem:[#allocation7 + $0x2ec] sm:$0xf]
        %v7569 = vld [vmem:[#allocation7 + $0x2f0] sm:$0xf]
        %v7570 = vld [vmem:[#allocation7 + $0x2f4] sm:$0xf]
        %v7571 = vld [vmem:[#allocation7 + $0x2f8] sm:$0xf]
        %v7572 = vld [vmem:[#allocation7 + $0x2fc] sm:$0xf]
        %v7573 = vld [vmem:[#allocation7 + $0x300] sm:$0xf]
        %v7574 = vld [vmem:[#allocation7 + $0x304] sm:$0xf]
        %v7575 = vld [vmem:[#allocation7 + $0x308] sm:$0xf]
        %v7576 = vld [vmem:[#allocation7 + $0x30c] sm:$0xf]
        %v7577 = vld [vmem:[#allocation7 + $0x310] sm:$0xf]
        %v7578 = vld [vmem:[#allocation7 + $0x314] sm:$0xf]
        %v7579 = vld [vmem:[#allocation7 + $0x318] sm:$0xf]
        %v7580 = vld [vmem:[#allocation7 + $0x31c] sm:$0xf]
        %v7581 = vld [vmem:[#allocation7 + $0x320] sm:$0xf]
        %v7582 = vld [vmem:[#allocation7 + $0x324] sm:$0xf]
        %v7583 = vld [vmem:[#allocation7 + $0x328] sm:$0xf]
        %v7584 = vld [vmem:[#allocation7 + $0x32c] sm:$0xf]
        %v7585 = vld [vmem:[#allocation7 + $0x330] sm:$0xf]
        %v7586 = vld [vmem:[#allocation7 + $0x334] sm:$0xf]
        %v7587 = vld [vmem:[#allocation7 + $0x338] sm:$0xf]
        %v7588 = vld [vmem:[#allocation7 + $0x33c] sm:$0xf]
        %v7589 = vld [vmem:[#allocation7 + $0x340] sm:$0xf]
        %v7590 = vld [vmem:[#allocation7 + $0x344] sm:$0xf]
        %v7591 = vld [vmem:[#allocation7 + $0x348] sm:$0xf]
        %v7592 = vld [vmem:[#allocation7 + $0x34c] sm:$0xf]
        %v7593 = vld [vmem:[#allocation7 + $0x350] sm:$0xf]
        %v7594 = vld [vmem:[#allocation7 + $0x354] sm:$0xf]
        %v7595 = vld [vmem:[#allocation7 + $0x358] sm:$0xf]
        %v7596 = vld [vmem:[#allocation7 + $0x35c] sm:$0xf]
        %v7597 = vld [vmem:[#allocation7 + $0x360] sm:$0xf]
        %v7598 = vld [vmem:[#allocation7 + $0x364] sm:$0xf]
        %v7599 = vld [vmem:[#allocation7 + $0x368] sm:$0xf]
        %v7600 = vld [vmem:[#allocation7 + $0x36c] sm:$0xf]
        %v7601 = vld [vmem:[#allocation7 + $0x370] sm:$0xf]
        %v7602 = vld [vmem:[#allocation7 + $0x374] sm:$0xf]
        %v7603 = vld [vmem:[#allocation7 + $0x378] sm:$0xf]
        %v7604 = vld [vmem:[#allocation7 + $0x37c] sm:$0xf]
        %v7605 = vld [vmem:[#allocation7 + $0x380] sm:$0xf]
        %v7606 = vld [vmem:[#allocation7 + $0x384] sm:$0xf]
        %v7607 = vld [vmem:[#allocation7 + $0x388] sm:$0xf]
        %v7608 = vld [vmem:[#allocation7 + $0x38c] sm:$0xf]
        %v7609 = vld [vmem:[#allocation7 + $0x390] sm:$0xf]
        %v7610 = vld [vmem:[#allocation7 + $0x394] sm:$0xf]
        %v7611 = vld [vmem:[#allocation7 + $0x398] sm:$0xf]
        %v7612 = vld [vmem:[#allocation7 + $0x39c] sm:$0xf]
        %v7613 = vld [vmem:[#allocation7 + $0x3a0] sm:$0xf]
        %v7614 = vld [vmem:[#allocation7 + $0x3a4] sm:$0xf]
        %v7615 = vld [vmem:[#allocation7 + $0x3a8] sm:$0xf]
        %v7616 = vld [vmem:[#allocation7 + $0x3ac] sm:$0xf]
        %v7617 = vld [vmem:[#allocation7 + $0x3b0] sm:$0xf]
        %v7618 = vld [vmem:[#allocation7 + $0x3b4] sm:$0xf]
        %v7619 = vld [vmem:[#allocation7 + $0x3b8] sm:$0xf]
        %v7620 = vld [vmem:[#allocation7 + $0x3bc] sm:$0xf]
        %v7621 = vld [vmem:[#allocation7 + $0x3c0] sm:$0xf]
        %v7622 = vld [vmem:[#allocation7 + $0x3c4] sm:$0xf]
        %v7623 = vld [vmem:[#allocation7 + $0x3c8] sm:$0xf]
        %v7624 = vld [vmem:[#allocation7 + $0x3cc] sm:$0xf]
        %v7625 = vld [vmem:[#allocation7 + $0x3d0] sm:$0xf]
        %v7626 = vld [vmem:[#allocation7 + $0x3d4] sm:$0xf]
        %v7627 = vld [vmem:[#allocation7 + $0x3d8] sm:$0xf]
        %v7628 = vld [vmem:[#allocation7 + $0x3dc] sm:$0xf]
        %v7629 = vld [vmem:[#allocation7 + $0x3e0] sm:$0xf]
        %v7630 = vld [vmem:[#allocation7 + $0x3e4] sm:$0xf]
        %v7631 = vld [vmem:[#allocation7 + $0x3e8] sm:$0xf]
        %v7632 = vld [vmem:[#allocation7 + $0x3ec] sm:$0xf]
        %v7633 = vld [vmem:[#allocation7 + $0x3f0] sm:$0xf]
        %v7634 = vld [vmem:[#allocation7 + $0x3f4] sm:$0xf]
        %v7635 = vld [vmem:[#allocation7 + $0x3f8] sm:$0xf]
        %v7636 = vld [vmem:[#allocation7 + $0x3fc] sm:$0xf]
        %v7637 = vld [vmem:[#allocation7 + $0x400] sm:$0xf]
        %v7638 = vld [vmem:[#allocation7 + $0x404] sm:$0xf]
        %v7639 = vld [vmem:[#allocation7 + $0x408] sm:$0xf]
        %v7640 = vld [vmem:[#allocation7 + $0x40c] sm:$0xf]
        %v7641 = vld [vmem:[#allocation7 + $0x410] sm:$0xf]
        %v7642 = vld [vmem:[#allocation7 + $0x414] sm:$0xf]
        %v7643 = vld [vmem:[#allocation7 + $0x418] sm:$0xf]
        %v7644 = vld [vmem:[#allocation7 + $0x41c] sm:$0xf]
        %v7645 = vld [vmem:[#allocation7 + $0x420] sm:$0xf]
        %v7646 = vld [vmem:[#allocation7 + $0x424] sm:$0xf]
        %v7647 = vld [vmem:[#allocation7 + $0x428] sm:$0xf]
        %v7648 = vld [vmem:[#allocation7 + $0x42c] sm:$0xf]
        %v7649 = vld [vmem:[#allocation7 + $0x430] sm:$0xf]
        %v7650 = vld [vmem:[#allocation7 + $0x434] sm:$0xf]
        %v7651 = vld [vmem:[#allocation7 + $0x438] sm:$0xf]
        %v7652 = vld [vmem:[#allocation7 + $0x43c] sm:$0xf]
        %v7653 = vld [vmem:[#allocation7 + $0x440] sm:$0xf]
        %v7654 = vld [vmem:[#allocation7 + $0x444] sm:$0xf]
        %v7655 = vld [vmem:[#allocation7 + $0x448] sm:$0xf]
        %v7656 = vld [vmem:[#allocation7 + $0x44c] sm:$0xf]
        %v7657 = vld [vmem:[#allocation7 + $0x450] sm:$0xf]
        %v7658 = vld [vmem:[#allocation7 + $0x454] sm:$0xf]
        %v7659 = vld [vmem:[#allocation7 + $0x458] sm:$0xf]
        %v7660 = vld [vmem:[#allocation7 + $0x45c] sm:$0xf]
        %v7661 = vld [vmem:[#allocation7 + $0x460] sm:$0xf]
        %v7662 = vld [vmem:[#allocation7 + $0x464] sm:$0xf]
        %v7663 = vld [vmem:[#allocation7 + $0x468] sm:$0xf]
        %v7664 = vld [vmem:[#allocation7 + $0x46c] sm:$0xf]
        %v7665 = vld [vmem:[#allocation7 + $0x470] sm:$0xf]
        %v7666 = vld [vmem:[#allocation7 + $0x474] sm:$0xf]
        %v7667 = vld [vmem:[#allocation7 + $0x478] sm:$0xf]
        %v7668 = vld [vmem:[#allocation7 + $0x47c] sm:$0xf]
        %v7669 = vld [vmem:[#allocation7 + $0x480] sm:$0xf]
        %v7670 = vld [vmem:[#allocation7 + $0x484] sm:$0xf]
        %v7671 = vld [vmem:[#allocation7 + $0x488] sm:$0xf]
        %v7672 = vld [vmem:[#allocation7 + $0x48c] sm:$0xf]
        %v7673 = vld [vmem:[#allocation7 + $0x490] sm:$0xf]
        %v7674 = vld [vmem:[#allocation7 + $0x494] sm:$0xf]
        %v7675 = vld [vmem:[#allocation7 + $0x498] sm:$0xf]
        %v7676 = vld [vmem:[#allocation7 + $0x49c] sm:$0xf]
        %v7677 = vld [vmem:[#allocation7 + $0x4a0] sm:$0xf]
        %v7678 = vld [vmem:[#allocation7 + $0x4a4] sm:$0xf]
        %v7679 = vld [vmem:[#allocation7 + $0x4a8] sm:$0xf]
        %v7680 = vld [vmem:[#allocation7 + $0x4ac] sm:$0xf]
        %v7681 = vld [vmem:[#allocation7 + $0x4b0] sm:$0xf]
        %v7682 = vld [vmem:[#allocation7 + $0x4b4] sm:$0xf]
        %v7683 = vld [vmem:[#allocation7 + $0x4b8] sm:$0xf]
        %v7684 = vld [vmem:[#allocation7 + $0x4bc] sm:$0xf]
        %v7685 = vld [vmem:[#allocation7 + $0x4c0] sm:$0xf]
        %v7686 = vld [vmem:[#allocation7 + $0x4c4] sm:$0xf]
        %v7687 = vld [vmem:[#allocation7 + $0x4c8] sm:$0xf]
        %v7688 = vld [vmem:[#allocation7 + $0x4cc] sm:$0xf]
        %v7689 = vld [vmem:[#allocation7 + $0x4d0] sm:$0xf]
        %v7690 = vld [vmem:[#allocation7 + $0x4d4] sm:$0xf]
        %v7691 = vld [vmem:[#allocation7 + $0x4d8] sm:$0xf]
        %v7692 = vld [vmem:[#allocation7 + $0x4dc] sm:$0xf]
        %v7693 = vld [vmem:[#allocation7 + $0x4e0] sm:$0xf]
        %v7694 = vld [vmem:[#allocation7 + $0x4e4] sm:$0xf]
        %v7695 = vld [vmem:[#allocation7 + $0x4e8] sm:$0xf]
        %v7696 = vld [vmem:[#allocation7 + $0x4ec] sm:$0xf]
        %v7697 = vld [vmem:[#allocation7 + $0x4f0] sm:$0xf]
        %v7698 = vld [vmem:[#allocation7 + $0x4f4] sm:$0xf]
        %v7699 = vld [vmem:[#allocation7 + $0x4f8] sm:$0xf]
        %v7700 = vld [vmem:[#allocation7 + $0x4fc] sm:$0xf]
        %v7701 = vld [vmem:[#allocation7 + $0x500] sm:$0xf]
        %v7702 = vld [vmem:[#allocation7 + $0x504] sm:$0xf]
        %v7703 = vld [vmem:[#allocation7 + $0x508] sm:$0xf]
        %v7704 = vld [vmem:[#allocation7 + $0x50c] sm:$0xf]
        %v7705 = vld [vmem:[#allocation7 + $0x510] sm:$0xf]
        %v7706 = vld [vmem:[#allocation7 + $0x514] sm:$0xf]
        %v7707 = vld [vmem:[#allocation7 + $0x518] sm:$0xf]
        %v7708 = vld [vmem:[#allocation7 + $0x51c] sm:$0xf]
        %v7709 = vld [vmem:[#allocation7 + $0x520] sm:$0xf]
        %v7710 = vld [vmem:[#allocation7 + $0x524] sm:$0xf]
        %v7711 = vld [vmem:[#allocation7 + $0x528] sm:$0xf]
        %v7712 = vld [vmem:[#allocation7 + $0x52c] sm:$0xf]
        %v7713 = vld [vmem:[#allocation7 + $0x530] sm:$0xf]
        %v7714 = vld [vmem:[#allocation7 + $0x534] sm:$0xf]
        %v7715 = vld [vmem:[#allocation7 + $0x538] sm:$0xf]
        %v7716 = vld [vmem:[#allocation7 + $0x53c] sm:$0xf]
        %v7717 = vld [vmem:[#allocation7 + $0x540] sm:$0xf]
        %v7718 = vld [vmem:[#allocation7 + $0x544] sm:$0xf]
        %v7719 = vld [vmem:[#allocation7 + $0x548] sm:$0xf]
        %v7720 = vld [vmem:[#allocation7 + $0x54c] sm:$0xf]
        %v7721 = vld [vmem:[#allocation7 + $0x550] sm:$0xf]
        %v7722 = vld [vmem:[#allocation7 + $0x554] sm:$0xf]
        %v7723 = vld [vmem:[#allocation7 + $0x558] sm:$0xf]
        %v7724 = vld [vmem:[#allocation7 + $0x55c] sm:$0xf]
        %v7725 = vld [vmem:[#allocation7 + $0x560] sm:$0xf]
        %v7726 = vld [vmem:[#allocation7 + $0x564] sm:$0xf]
        %v7727 = vld [vmem:[#allocation7 + $0x568] sm:$0xf]
        %v7728 = vld [vmem:[#allocation7 + $0x56c] sm:$0xf]
        %v7729 = vld [vmem:[#allocation7 + $0x570] sm:$0xf]
        %v7730 = vld [vmem:[#allocation7 + $0x574] sm:$0xf]
        %v7731 = vld [vmem:[#allocation7 + $0x578] sm:$0xf]
        %v7732 = vld [vmem:[#allocation7 + $0x57c] sm:$0xf]
        %v7733 = vld [vmem:[#allocation7 + $0x580] sm:$0xf]
        %v7734 = vld [vmem:[#allocation7 + $0x584] sm:$0xf]
        %v7735 = vld [vmem:[#allocation7 + $0x588] sm:$0xf]
        %v7736 = vld [vmem:[#allocation7 + $0x58c] sm:$0xf]
        %v7737 = vld [vmem:[#allocation7 + $0x590] sm:$0xf]
        %v7738 = vld [vmem:[#allocation7 + $0x594] sm:$0xf]
        %v7739 = vld [vmem:[#allocation7 + $0x598] sm:$0xf]
        %v7740 = vld [vmem:[#allocation7 + $0x59c] sm:$0xf]
        %v7741 = vld [vmem:[#allocation7 + $0x5a0] sm:$0xf]
        %v7742 = vld [vmem:[#allocation7 + $0x5a4] sm:$0xf]
        %v7743 = vld [vmem:[#allocation7 + $0x5a8] sm:$0xf]
        %v7744 = vld [vmem:[#allocation7 + $0x5ac] sm:$0xf]
        %v7745 = vld [vmem:[#allocation7 + $0x5b0] sm:$0xf]
        %v7746 = vld [vmem:[#allocation7 + $0x5b4] sm:$0xf]
        %v7747 = vld [vmem:[#allocation7 + $0x5b8] sm:$0xf]
        %v7748 = vld [vmem:[#allocation7 + $0x5bc] sm:$0xf]
        %v7749 = vld [vmem:[#allocation7 + $0x5c0] sm:$0xf]
        %v7750 = vld [vmem:[#allocation7 + $0x5c4] sm:$0xf]
        %v7751 = vld [vmem:[#allocation7 + $0x5c8] sm:$0xf]
        %v7752 = vld [vmem:[#allocation7 + $0x5cc] sm:$0xf]
        %v7753 = vld [vmem:[#allocation7 + $0x5d0] sm:$0xf]
        %v7754 = vld [vmem:[#allocation7 + $0x5d4] sm:$0xf]
        %v7755 = vld [vmem:[#allocation7 + $0x5d8] sm:$0xf]
        %v7756 = vld [vmem:[#allocation7 + $0x5dc] sm:$0xf]
        %v7757 = vld [vmem:[#allocation7 + $0x5e0] sm:$0xf]
        %v7758 = vld [vmem:[#allocation7 + $0x5e4] sm:$0xf]
        %v7759 = vld [vmem:[#allocation7 + $0x5e8] sm:$0xf]
        %v7760 = vld [vmem:[#allocation7 + $0x5ec] sm:$0xf]
        %v7761 = vld [vmem:[#allocation7 + $0x5f0] sm:$0xf]
        %v7762 = vld [vmem:[#allocation7 + $0x5f4] sm:$0xf]
        %v7763 = vld [vmem:[#allocation7 + $0x5f8] sm:$0xf]
        %v7764 = vld [vmem:[#allocation7 + $0x5fc] sm:$0xf]
        %v7765 = vld [vmem:[#allocation7 + $0x600] sm:$0xf]
        %v7766 = vld [vmem:[#allocation7 + $0x604] sm:$0xf]
        %v7767 = vld [vmem:[#allocation7 + $0x608] sm:$0xf]
        %v7768 = vld [vmem:[#allocation7 + $0x60c] sm:$0xf]
        %v7769 = vld [vmem:[#allocation7 + $0x610] sm:$0xf]
        %v7770 = vld [vmem:[#allocation7 + $0x614] sm:$0xf]
        %v7771 = vld [vmem:[#allocation7 + $0x618] sm:$0xf]
        %v7772 = vld [vmem:[#allocation7 + $0x61c] sm:$0xf]
        %v7773 = vld [vmem:[#allocation7 + $0x620] sm:$0xf]
        %v7774 = vld [vmem:[#allocation7 + $0x624] sm:$0xf]
        %v7775 = vld [vmem:[#allocation7 + $0x628] sm:$0xf]
        %v7776 = vld [vmem:[#allocation7 + $0x62c] sm:$0xf]
        %v7777 = vld [vmem:[#allocation7 + $0x630] sm:$0xf]
        %v7778 = vld [vmem:[#allocation7 + $0x634] sm:$0xf]
        %v7779 = vld [vmem:[#allocation7 + $0x638] sm:$0xf]
        %v7780 = vld [vmem:[#allocation7 + $0x63c] sm:$0xf]
        %v7781 = vld [vmem:[%s6] sm:$0x1]
        %v7783 = vlaneseq
        %v7784 = vshrl.u32 %v7783, 7
        %v7785 = vsub.s32 0, %v7784
        %v7786 = vrot.slane %v7781, %v7785
        %v8188 = vunpack.c.l.b16 %v7381
        %v8189 = vunpack.c.l.b16 %v7382
        %v8190 = vunpack.c.l.b16 %v7383
        %v8191 = vunpack.c.l.b16 %v7384
        %v8192 = vunpack.c.l.b16 %v7385
        %v8193 = vunpack.c.l.b16 %v7386
        %v8194 = vunpack.c.l.b16 %v7387
        %v8195 = vunpack.c.l.b16 %v7388
        %v8196 = vunpack.c.l.b16 %v7389
        %v8197 = vunpack.c.l.b16 %v7390
        %v8198 = vunpack.c.l.b16 %v7391
        %v8199 = vunpack.c.l.b16 %v7392
        %v8200 = vunpack.c.l.b16 %v7393
        %v8201 = vunpack.c.l.b16 %v7394
        %v8202 = vunpack.c.l.b16 %v7395
        %v8203 = vunpack.c.l.b16 %v7396
        %v8204 = vunpack.c.l.b16 %v7397
        %v8205 = vunpack.c.l.b16 %v7398
        %v8206 = vunpack.c.l.b16 %v7399
        %v8207 = vunpack.c.l.b16 %v7400
        %v8208 = vunpack.c.l.b16 %v7401
        %v8209 = vunpack.c.l.b16 %v7402
        %v8210 = vunpack.c.l.b16 %v7403
        %v8211 = vunpack.c.l.b16 %v7404
        %v8212 = vunpack.c.l.b16 %v7405
        %v8213 = vunpack.c.l.b16 %v7406
        %v8214 = vunpack.c.l.b16 %v7407
        %v8215 = vunpack.c.l.b16 %v7408
        %v8216 = vunpack.c.l.b16 %v7409
        %v8217 = vunpack.c.l.b16 %v7410
        %v8218 = vunpack.c.l.b16 %v7411
        %v8219 = vunpack.c.l.b16 %v7412
        %v8220 = vunpack.c.l.b16 %v7413
        %v8221 = vunpack.c.l.b16 %v7414
        %v8222 = vunpack.c.l.b16 %v7415
        %v8223 = vunpack.c.l.b16 %v7416
        %v8224 = vunpack.c.l.b16 %v7417
        %v8225 = vunpack.c.l.b16 %v7418
        %v8226 = vunpack.c.l.b16 %v7419
        %v8227 = vunpack.c.l.b16 %v7420
        %v8228 = vunpack.c.l.b16 %v7421
        %v8229 = vunpack.c.l.b16 %v7422
        %v8230 = vunpack.c.l.b16 %v7423
        %v8231 = vunpack.c.l.b16 %v7424
        %v8232 = vunpack.c.l.b16 %v7425
        %v8233 = vunpack.c.l.b16 %v7426
        %v8234 = vunpack.c.l.b16 %v7427
        %v8235 = vunpack.c.l.b16 %v7428
        %v8236 = vunpack.c.l.b16 %v7429
        %v8237 = vunpack.c.l.b16 %v7430
        %v8238 = vunpack.c.l.b16 %v7431
        %v8239 = vunpack.c.l.b16 %v7432
        %v8240 = vunpack.c.l.b16 %v7433
        %v8241 = vunpack.c.l.b16 %v7434
        %v8242 = vunpack.c.l.b16 %v7435
        %v8243 = vunpack.c.l.b16 %v7436
        %v8244 = vunpack.c.l.b16 %v7437
        %v8245 = vunpack.c.l.b16 %v7438
        %v8246 = vunpack.c.l.b16 %v7439
        %v8247 = vunpack.c.l.b16 %v7440
        %v8248 = vunpack.c.l.b16 %v7441
        %v8249 = vunpack.c.l.b16 %v7442
        %v8250 = vunpack.c.l.b16 %v7443
        %v8251 = vunpack.c.l.b16 %v7444
        %v8252 = vunpack.c.l.b16 %v7445
        %v8253 = vunpack.c.l.b16 %v7446
        %v8254 = vunpack.c.l.b16 %v7447
        %v8255 = vunpack.c.l.b16 %v7448
        %v8256 = vunpack.c.l.b16 %v7449
        %v8257 = vunpack.c.l.b16 %v7450
        %v8258 = vunpack.c.l.b16 %v7451
        %v8259 = vunpack.c.l.b16 %v7452
        %v8260 = vunpack.c.l.b16 %v7453
        %v8261 = vunpack.c.l.b16 %v7454
        %v8262 = vunpack.c.l.b16 %v7455
        %v8263 = vunpack.c.l.b16 %v7456
        %v8264 = vunpack.c.l.b16 %v7457
        %v8265 = vunpack.c.l.b16 %v7458
        %v8266 = vunpack.c.l.b16 %v7459
        %v8267 = vunpack.c.l.b16 %v7460
        %v8268 = vunpack.c.l.b16 %v7461
        %v8269 = vunpack.c.l.b16 %v7462
        %v8270 = vunpack.c.l.b16 %v7463
        %v8271 = vunpack.c.l.b16 %v7464
        %v8272 = vunpack.c.l.b16 %v7465
        %v8273 = vunpack.c.l.b16 %v7466
        %v8274 = vunpack.c.l.b16 %v7467
        %v8275 = vunpack.c.l.b16 %v7468
        %v8276 = vunpack.c.l.b16 %v7469
        %v8277 = vunpack.c.l.b16 %v7470
        %v8278 = vunpack.c.l.b16 %v7471
        %v8279 = vunpack.c.l.b16 %v7472
        %v8280 = vunpack.c.l.b16 %v7473
        %v8281 = vunpack.c.l.b16 %v7474
        %v8282 = vunpack.c.l.b16 %v7475
        %v8283 = vunpack.c.l.b16 %v7476
        %v8284 = vunpack.c.l.b16 %v7477
        %v8285 = vunpack.c.l.b16 %v7478
        %v8286 = vunpack.c.l.b16 %v7479
        %v8287 = vunpack.c.l.b16 %v7480
        %v8288 = vunpack.c.l.b16 %v7481
        %v8289 = vunpack.c.l.b16 %v7482
        %v8290 = vunpack.c.l.b16 %v7483
        %v8291 = vunpack.c.l.b16 %v7484
        %v8292 = vunpack.c.l.b16 %v7485
        %v8293 = vunpack.c.l.b16 %v7486
        %v8294 = vunpack.c.l.b16 %v7487
        %v8295 = vunpack.c.l.b16 %v7488
        %v8296 = vunpack.c.l.b16 %v7489
        %v8297 = vunpack.c.l.b16 %v7490
        %v8298 = vunpack.c.l.b16 %v7491
        %v8299 = vunpack.c.l.b16 %v7492
        %v8300 = vunpack.c.l.b16 %v7493
        %v8301 = vunpack.c.l.b16 %v7494
        %v8302 = vunpack.c.l.b16 %v7495
        %v8303 = vunpack.c.l.b16 %v7496
        %v8304 = vunpack.c.l.b16 %v7497
        %v8305 = vunpack.c.l.b16 %v7498
        %v8306 = vunpack.c.l.b16 %v7499
        %v8307 = vunpack.c.l.b16 %v7500
        %v8308 = vunpack.c.l.b16 %v7501
        %v8309 = vunpack.c.l.b16 %v7502
        %v8310 = vunpack.c.l.b16 %v7503
        %v8311 = vunpack.c.l.b16 %v7504
        %v8312 = vunpack.c.l.b16 %v7505
        %v8313 = vunpack.c.l.b16 %v7506
        %v8314 = vunpack.c.l.b16 %v7507
        %v8315 = vunpack.c.l.b16 %v7508
        %v8316 = vunpack.c.l.b16 %v7509
        %v8317 = vunpack.c.l.b16 %v7510
        %v8318 = vunpack.c.l.b16 %v7511
        %v8319 = vunpack.c.l.b16 %v7512
        %v8320 = vunpack.c.l.b16 %v7513
        %v8321 = vunpack.c.l.b16 %v7514
        %v8322 = vunpack.c.l.b16 %v7515
        %v8323 = vunpack.c.l.b16 %v7516
        %v8324 = vunpack.c.l.b16 %v7517
        %v8325 = vunpack.c.l.b16 %v7518
        %v8326 = vunpack.c.l.b16 %v7519
        %v8327 = vunpack.c.l.b16 %v7520
        %v8328 = vunpack.c.l.b16 %v7521
        %v8329 = vunpack.c.l.b16 %v7522
        %v8330 = vunpack.c.l.b16 %v7523
        %v8331 = vunpack.c.l.b16 %v7524
        %v8332 = vunpack.c.l.b16 %v7525
        %v8333 = vunpack.c.l.b16 %v7526
        %v8334 = vunpack.c.l.b16 %v7527
        %v8335 = vunpack.c.l.b16 %v7528
        %v8336 = vunpack.c.l.b16 %v7529
        %v8337 = vunpack.c.l.b16 %v7530
        %v8338 = vunpack.c.l.b16 %v7531
        %v8339 = vunpack.c.l.b16 %v7532
        %v8340 = vunpack.c.l.b16 %v7533
        %v8341 = vunpack.c.l.b16 %v7534
        %v8342 = vunpack.c.l.b16 %v7535
        %v8343 = vunpack.c.l.b16 %v7536
        %v8344 = vunpack.c.l.b16 %v7537
        %v8345 = vunpack.c.l.b16 %v7538
        %v8346 = vunpack.c.l.b16 %v7539
        %v8347 = vunpack.c.l.b16 %v7540
        %v8348 = vunpack.c.l.b16 %v7541
        %v8349 = vunpack.c.l.b16 %v7542
        %v8350 = vunpack.c.l.b16 %v7543
        %v8351 = vunpack.c.l.b16 %v7544
        %v8352 = vunpack.c.l.b16 %v7545
        %v8353 = vunpack.c.l.b16 %v7546
        %v8354 = vunpack.c.l.b16 %v7547
        %v8355 = vunpack.c.l.b16 %v7548
        %v8356 = vunpack.c.l.b16 %v7549
        %v8357 = vunpack.c.l.b16 %v7550
        %v8358 = vunpack.c.l.b16 %v7551
        %v8359 = vunpack.c.l.b16 %v7552
        %v8360 = vunpack.c.l.b16 %v7553
        %v8361 = vunpack.c.l.b16 %v7554
        %v8362 = vunpack.c.l.b16 %v7555
        %v8363 = vunpack.c.l.b16 %v7556
        %v8364 = vunpack.c.l.b16 %v7557
        %v8365 = vunpack.c.l.b16 %v7558
        %v8366 = vunpack.c.l.b16 %v7559
        %v8367 = vunpack.c.l.b16 %v7560
        %v8368 = vunpack.c.l.b16 %v7561
        %v8369 = vunpack.c.l.b16 %v7562
        %v8370 = vunpack.c.l.b16 %v7563
        %v8371 = vunpack.c.l.b16 %v7564
        %v8372 = vunpack.c.l.b16 %v7565
        %v8373 = vunpack.c.l.b16 %v7566
        %v8374 = vunpack.c.l.b16 %v7567
        %v8375 = vunpack.c.l.b16 %v7568
        %v8376 = vunpack.c.l.b16 %v7569
        %v8377 = vunpack.c.l.b16 %v7570
        %v8378 = vunpack.c.l.b16 %v7571
        %v8379 = vunpack.c.l.b16 %v7572
        %v8380 = vunpack.c.l.b16 %v7573
        %v8381 = vunpack.c.l.b16 %v7574
        %v8382 = vunpack.c.l.b16 %v7575
        %v8383 = vunpack.c.l.b16 %v7576
        %v8384 = vunpack.c.l.b16 %v7577
        %v8385 = vunpack.c.l.b16 %v7578
        %v8386 = vunpack.c.l.b16 %v7579
        %v8387 = vunpack.c.l.b16 %v7580
        %v8388 = vunpack.c.l.b16 %v7581
        %v8389 = vunpack.c.l.b16 %v7582
        %v8390 = vunpack.c.l.b16 %v7583
        %v8391 = vunpack.c.l.b16 %v7584
        %v8392 = vunpack.c.l.b16 %v7585
        %v8393 = vunpack.c.l.b16 %v7586
        %v8394 = vunpack.c.l.b16 %v7587
        %v8395 = vunpack.c.l.b16 %v7588
        %v8396 = vunpack.c.l.b16 %v7589
        %v8397 = vunpack.c.l.b16 %v7590
        %v8398 = vunpack.c.l.b16 %v7591
        %v8399 = vunpack.c.l.b16 %v7592
        %v8400 = vunpack.c.l.b16 %v7593
        %v8401 = vunpack.c.l.b16 %v7594
        %v8402 = vunpack.c.l.b16 %v7595
        %v8403 = vunpack.c.l.b16 %v7596
        %v8404 = vunpack.c.l.b16 %v7597
        %v8405 = vunpack.c.l.b16 %v7598
        %v8406 = vunpack.c.l.b16 %v7599
        %v8407 = vunpack.c.l.b16 %v7600
        %v8408 = vunpack.c.l.b16 %v7601
        %v8409 = vunpack.c.l.b16 %v7602
        %v8410 = vunpack.c.l.b16 %v7603
        %v8411 = vunpack.c.l.b16 %v7604
        %v8412 = vunpack.c.l.b16 %v7605
        %v8413 = vunpack.c.l.b16 %v7606
        %v8414 = vunpack.c.l.b16 %v7607
        %v8415 = vunpack.c.l.b16 %v7608
        %v8416 = vunpack.c.l.b16 %v7609
        %v8417 = vunpack.c.l.b16 %v7610
        %v8418 = vunpack.c.l.b16 %v7611
        %v8419 = vunpack.c.l.b16 %v7612
        %v8420 = vunpack.c.l.b16 %v7613
        %v8421 = vunpack.c.l.b16 %v7614
        %v8422 = vunpack.c.l.b16 %v7615
        %v8423 = vunpack.c.l.b16 %v7616
        %v8424 = vunpack.c.l.b16 %v7617
        %v8425 = vunpack.c.l.b16 %v7618
        %v8426 = vunpack.c.l.b16 %v7619
        %v8427 = vunpack.c.l.b16 %v7620
        %v8428 = vunpack.c.l.b16 %v7621
        %v8429 = vunpack.c.l.b16 %v7622
        %v8430 = vunpack.c.l.b16 %v7623
        %v8431 = vunpack.c.l.b16 %v7624
        %v8432 = vunpack.c.l.b16 %v7625
        %v8433 = vunpack.c.l.b16 %v7626
        %v8434 = vunpack.c.l.b16 %v7627
        %v8435 = vunpack.c.l.b16 %v7628
        %v8436 = vunpack.c.l.b16 %v7629
        %v8437 = vunpack.c.l.b16 %v7630
        %v8438 = vunpack.c.l.b16 %v7631
        %v8439 = vunpack.c.l.b16 %v7632
        %v8440 = vunpack.c.l.b16 %v7633
        %v8441 = vunpack.c.l.b16 %v7634
        %v8442 = vunpack.c.l.b16 %v7635
        %v8443 = vunpack.c.l.b16 %v7636
        %v8444 = vunpack.c.l.b16 %v7637
        %v8445 = vunpack.c.l.b16 %v7638
        %v8446 = vunpack.c.l.b16 %v7639
        %v8447 = vunpack.c.l.b16 %v7640
        %v8448 = vunpack.c.l.b16 %v7641
        %v8449 = vunpack.c.l.b16 %v7642
        %v8450 = vunpack.c.l.b16 %v7643
        %v8451 = vunpack.c.l.b16 %v7644
        %v8452 = vunpack.c.l.b16 %v7645
        %v8453 = vunpack.c.l.b16 %v7646
        %v8454 = vunpack.c.l.b16 %v7647
        %v8455 = vunpack.c.l.b16 %v7648
        %v8456 = vunpack.c.l.b16 %v7649
        %v8457 = vunpack.c.l.b16 %v7650
        %v8458 = vunpack.c.l.b16 %v7651
        %v8459 = vunpack.c.l.b16 %v7652
        %v8460 = vunpack.c.l.b16 %v7653
        %v8461 = vunpack.c.l.b16 %v7654
        %v8462 = vunpack.c.l.b16 %v7655
        %v8463 = vunpack.c.l.b16 %v7656
        %v8464 = vunpack.c.l.b16 %v7657
        %v8465 = vunpack.c.l.b16 %v7658
        %v8466 = vunpack.c.l.b16 %v7659
        %v8467 = vunpack.c.l.b16 %v7660
        %v8468 = vunpack.c.l.b16 %v7661
        %v8469 = vunpack.c.l.b16 %v7662
        %v8470 = vunpack.c.l.b16 %v7663
        %v8471 = vunpack.c.l.b16 %v7664
        %v8472 = vunpack.c.l.b16 %v7665
        %v8473 = vunpack.c.l.b16 %v7666
        %v8474 = vunpack.c.l.b16 %v7667
        %v8475 = vunpack.c.l.b16 %v7668
        %v8476 = vunpack.c.l.b16 %v7669
        %v8477 = vunpack.c.l.b16 %v7670
        %v8478 = vunpack.c.l.b16 %v7671
        %v8479 = vunpack.c.l.b16 %v7672
        %v8480 = vunpack.c.l.b16 %v7673
        %v8481 = vunpack.c.l.b16 %v7674
        %v8482 = vunpack.c.l.b16 %v7675
        %v8483 = vunpack.c.l.b16 %v7676
        %v8484 = vunpack.c.l.b16 %v7677
        %v8485 = vunpack.c.l.b16 %v7678
        %v8486 = vunpack.c.l.b16 %v7679
        %v8487 = vunpack.c.l.b16 %v7680
        %v8488 = vunpack.c.l.b16 %v7681
        %v8489 = vunpack.c.l.b16 %v7682
        %v8490 = vunpack.c.l.b16 %v7683
        %v8491 = vunpack.c.l.b16 %v7684
        %v8492 = vunpack.c.l.b16 %v7685
        %v8493 = vunpack.c.l.b16 %v7686
        %v8494 = vunpack.c.l.b16 %v7687
        %v8495 = vunpack.c.l.b16 %v7688
        %v8496 = vunpack.c.l.b16 %v7689
        %v8497 = vunpack.c.l.b16 %v7690
        %v8498 = vunpack.c.l.b16 %v7691
        %v8499 = vunpack.c.l.b16 %v7692
        %v8500 = vunpack.c.l.b16 %v7693
        %v8501 = vunpack.c.l.b16 %v7694
        %v8502 = vunpack.c.l.b16 %v7695
        %v8503 = vunpack.c.l.b16 %v7696
        %v8504 = vunpack.c.l.b16 %v7697
        %v8505 = vunpack.c.l.b16 %v7698
        %v8506 = vunpack.c.l.b16 %v7699
        %v8507 = vunpack.c.l.b16 %v7700
        %v8508 = vunpack.c.l.b16 %v7701
        %v8509 = vunpack.c.l.b16 %v7702
        %v8510 = vunpack.c.l.b16 %v7703
        %v8511 = vunpack.c.l.b16 %v7704
        %v8512 = vunpack.c.l.b16 %v7705
        %v8513 = vunpack.c.l.b16 %v7706
        %v8514 = vunpack.c.l.b16 %v7707
        %v8515 = vunpack.c.l.b16 %v7708
        %v8516 = vunpack.c.l.b16 %v7709
        %v8517 = vunpack.c.l.b16 %v7710
        %v8518 = vunpack.c.l.b16 %v7711
        %v8519 = vunpack.c.l.b16 %v7712
        %v8520 = vunpack.c.l.b16 %v7713
        %v8521 = vunpack.c.l.b16 %v7714
        %v8522 = vunpack.c.l.b16 %v7715
        %v8523 = vunpack.c.l.b16 %v7716
        %v8524 = vunpack.c.l.b16 %v7717
        %v8525 = vunpack.c.l.b16 %v7718
        %v8526 = vunpack.c.l.b16 %v7719
        %v8527 = vunpack.c.l.b16 %v7720
        %v8528 = vunpack.c.l.b16 %v7721
        %v8529 = vunpack.c.l.b16 %v7722
        %v8530 = vunpack.c.l.b16 %v7723
        %v8531 = vunpack.c.l.b16 %v7724
        %v8532 = vunpack.c.l.b16 %v7725
        %v8533 = vunpack.c.l.b16 %v7726
        %v8534 = vunpack.c.l.b16 %v7727
        %v8535 = vunpack.c.l.b16 %v7728
        %v8536 = vunpack.c.l.b16 %v7729
        %v8537 = vunpack.c.l.b16 %v7730
        %v8538 = vunpack.c.l.b16 %v7731
        %v8539 = vunpack.c.l.b16 %v7732
        %v8540 = vunpack.c.l.b16 %v7733
        %v8541 = vunpack.c.l.b16 %v7734
        %v8542 = vunpack.c.l.b16 %v7735
        %v8543 = vunpack.c.l.b16 %v7736
        %v8544 = vunpack.c.l.b16 %v7737
        %v8545 = vunpack.c.l.b16 %v7738
        %v8546 = vunpack.c.l.b16 %v7739
        %v8547 = vunpack.c.l.b16 %v7740
        %v8548 = vunpack.c.l.b16 %v7741
        %v8549 = vunpack.c.l.b16 %v7742
        %v8550 = vunpack.c.l.b16 %v7743
        %v8551 = vunpack.c.l.b16 %v7744
        %v8552 = vunpack.c.l.b16 %v7745
        %v8553 = vunpack.c.l.b16 %v7746
        %v8554 = vunpack.c.l.b16 %v7747
        %v8555 = vunpack.c.l.b16 %v7748
        %v8556 = vunpack.c.l.b16 %v7749
        %v8557 = vunpack.c.l.b16 %v7750
        %v8558 = vunpack.c.l.b16 %v7751
        %v8559 = vunpack.c.l.b16 %v7752
        %v8560 = vunpack.c.l.b16 %v7753
        %v8561 = vunpack.c.l.b16 %v7754
        %v8562 = vunpack.c.l.b16 %v7755
        %v8563 = vunpack.c.l.b16 %v7756
        %v8564 = vunpack.c.l.b16 %v7757
        %v8565 = vunpack.c.l.b16 %v7758
        %v8566 = vunpack.c.l.b16 %v7759
        %v8567 = vunpack.c.l.b16 %v7760
        %v8568 = vunpack.c.l.b16 %v7761
        %v8569 = vunpack.c.l.b16 %v7762
        %v8570 = vunpack.c.l.b16 %v7763
        %v8571 = vunpack.c.l.b16 %v7764
        %v8572 = vunpack.c.l.b16 %v7765
        %v8573 = vunpack.c.l.b16 %v7766
        %v8574 = vunpack.c.l.b16 %v7767
        %v8575 = vunpack.c.l.b16 %v7768
        %v8576 = vunpack.c.l.b16 %v7769
        %v8577 = vunpack.c.l.b16 %v7770
        %v8578 = vunpack.c.l.b16 %v7771
        %v8579 = vunpack.c.l.b16 %v7772
        %v8580 = vunpack.c.l.b16 %v7773
        %v8581 = vunpack.c.l.b16 %v7774
        %v8582 = vunpack.c.l.b16 %v7775
        %v8583 = vunpack.c.l.b16 %v7776
        %v8584 = vunpack.c.l.b16 %v7777
        %v8585 = vunpack.c.l.b16 %v7778
        %v8586 = vunpack.c.l.b16 %v7779
        %v8587 = vunpack.c.l.b16 %v7780
        %v8588 = vpack.c.b16 %v8189, %v8188
        %v8589 = vpack.c.b16 %v8191, %v8190
        %v8590 = vpack.c.b16 %v8193, %v8192
        %v8591 = vpack.c.b16 %v8195, %v8194
        %v8592 = vpack.c.b16 %v8197, %v8196
        %v8593 = vpack.c.b16 %v8199, %v8198
        %v8594 = vpack.c.b16 %v8201, %v8200
        %v8595 = vpack.c.b16 %v8203, %v8202
        %v8596 = vpack.c.b16 %v8205, %v8204
        %v8597 = vpack.c.b16 %v8207, %v8206
        %v8598 = vpack.c.b16 %v8209, %v8208
        %v8599 = vpack.c.b16 %v8211, %v8210
        %v8600 = vpack.c.b16 %v8213, %v8212
        %v8601 = vpack.c.b16 %v8215, %v8214
        %v8602 = vpack.c.b16 %v8217, %v8216
        %v8603 = vpack.c.b16 %v8219, %v8218
        %v8604 = vpack.c.b16 %v8221, %v8220
        %v8605 = vpack.c.b16 %v8223, %v8222
        %v8606 = vpack.c.b16 %v8225, %v8224
        %v8607 = vpack.c.b16 %v8227, %v8226
        %v8608 = vpack.c.b16 %v8229, %v8228
        %v8609 = vpack.c.b16 %v8231, %v8230
        %v8610 = vpack.c.b16 %v8233, %v8232
        %v8611 = vpack.c.b16 %v8235, %v8234
        %v8612 = vpack.c.b16 %v8237, %v8236
        %v8613 = vpack.c.b16 %v8239, %v8238
        %v8614 = vpack.c.b16 %v8241, %v8240
        %v8615 = vpack.c.b16 %v8243, %v8242
        %v8616 = vpack.c.b16 %v8245, %v8244
        %v8617 = vpack.c.b16 %v8247, %v8246
        %v8618 = vpack.c.b16 %v8249, %v8248
        %v8619 = vpack.c.b16 %v8251, %v8250
        %v8620 = vpack.c.b16 %v8253, %v8252
        %v8621 = vpack.c.b16 %v8255, %v8254
        %v8622 = vpack.c.b16 %v8257, %v8256
        %v8623 = vpack.c.b16 %v8259, %v8258
        %v8624 = vpack.c.b16 %v8261, %v8260
        %v8625 = vpack.c.b16 %v8263, %v8262
        %v8626 = vpack.c.b16 %v8265, %v8264
        %v8627 = vpack.c.b16 %v8267, %v8266
        %v8628 = vpack.c.b16 %v8269, %v8268
        %v8629 = vpack.c.b16 %v8271, %v8270
        %v8630 = vpack.c.b16 %v8273, %v8272
        %v8631 = vpack.c.b16 %v8275, %v8274
        %v8632 = vpack.c.b16 %v8277, %v8276
        %v8633 = vpack.c.b16 %v8279, %v8278
        %v8634 = vpack.c.b16 %v8281, %v8280
        %v8635 = vpack.c.b16 %v8283, %v8282
        %v8636 = vpack.c.b16 %v8285, %v8284
        %v8637 = vpack.c.b16 %v8287, %v8286
        %v8638 = vpack.c.b16 %v8289, %v8288
        %v8639 = vpack.c.b16 %v8291, %v8290
        %v8640 = vpack.c.b16 %v8293, %v8292
        %v8641 = vpack.c.b16 %v8295, %v8294
        %v8642 = vpack.c.b16 %v8297, %v8296
        %v8643 = vpack.c.b16 %v8299, %v8298
        %v8644 = vpack.c.b16 %v8301, %v8300
        %v8645 = vpack.c.b16 %v8303, %v8302
        %v8646 = vpack.c.b16 %v8305, %v8304
        %v8647 = vpack.c.b16 %v8307, %v8306
        %v8648 = vpack.c.b16 %v8309, %v8308
        %v8649 = vpack.c.b16 %v8311, %v8310
        %v8650 = vpack.c.b16 %v8313, %v8312
        %v8651 = vpack.c.b16 %v8315, %v8314
        %v8652 = vpack.c.b16 %v8317, %v8316
        %v8653 = vpack.c.b16 %v8319, %v8318
        %v8654 = vpack.c.b16 %v8321, %v8320
        %v8655 = vpack.c.b16 %v8323, %v8322
        %v8656 = vpack.c.b16 %v8325, %v8324
        %v8657 = vpack.c.b16 %v8327, %v8326
        %v8658 = vpack.c.b16 %v8329, %v8328
        %v8659 = vpack.c.b16 %v8331, %v8330
        %v8660 = vpack.c.b16 %v8333, %v8332
        %v8661 = vpack.c.b16 %v8335, %v8334
        %v8662 = vpack.c.b16 %v8337, %v8336
        %v8663 = vpack.c.b16 %v8339, %v8338
        %v8664 = vpack.c.b16 %v8341, %v8340
        %v8665 = vpack.c.b16 %v8343, %v8342
        %v8666 = vpack.c.b16 %v8345, %v8344
        %v8667 = vpack.c.b16 %v8347, %v8346
        %v8668 = vpack.c.b16 %v8349, %v8348
        %v8669 = vpack.c.b16 %v8351, %v8350
        %v8670 = vpack.c.b16 %v8353, %v8352
        %v8671 = vpack.c.b16 %v8355, %v8354
        %v8672 = vpack.c.b16 %v8357, %v8356
        %v8673 = vpack.c.b16 %v8359, %v8358
        %v8674 = vpack.c.b16 %v8361, %v8360
        %v8675 = vpack.c.b16 %v8363, %v8362
        %v8676 = vpack.c.b16 %v8365, %v8364
        %v8677 = vpack.c.b16 %v8367, %v8366
        %v8678 = vpack.c.b16 %v8369, %v8368
        %v8679 = vpack.c.b16 %v8371, %v8370
        %v8680 = vpack.c.b16 %v8373, %v8372
        %v8681 = vpack.c.b16 %v8375, %v8374
        %v8682 = vpack.c.b16 %v8377, %v8376
        %v8683 = vpack.c.b16 %v8379, %v8378
        %v8684 = vpack.c.b16 %v8381, %v8380
        %v8685 = vpack.c.b16 %v8383, %v8382
        %v8686 = vpack.c.b16 %v8385, %v8384
        %v8687 = vpack.c.b16 %v8387, %v8386
        %v8688 = vpack.c.b16 %v8389, %v8388
        %v8689 = vpack.c.b16 %v8391, %v8390
        %v8690 = vpack.c.b16 %v8393, %v8392
        %v8691 = vpack.c.b16 %v8395, %v8394
        %v8692 = vpack.c.b16 %v8397, %v8396
        %v8693 = vpack.c.b16 %v8399, %v8398
        %v8694 = vpack.c.b16 %v8401, %v8400
        %v8695 = vpack.c.b16 %v8403, %v8402
        %v8696 = vpack.c.b16 %v8405, %v8404
        %v8697 = vpack.c.b16 %v8407, %v8406
        %v8698 = vpack.c.b16 %v8409, %v8408
        %v8699 = vpack.c.b16 %v8411, %v8410
        %v8700 = vpack.c.b16 %v8413, %v8412
        %v8701 = vpack.c.b16 %v8415, %v8414
        %v8702 = vpack.c.b16 %v8417, %v8416
        %v8703 = vpack.c.b16 %v8419, %v8418
        %v8704 = vpack.c.b16 %v8421, %v8420
        %v8705 = vpack.c.b16 %v8423, %v8422
        %v8706 = vpack.c.b16 %v8425, %v8424
        %v8707 = vpack.c.b16 %v8427, %v8426
        %v8708 = vpack.c.b16 %v8429, %v8428
        %v8709 = vpack.c.b16 %v8431, %v8430
        %v8710 = vpack.c.b16 %v8433, %v8432
        %v8711 = vpack.c.b16 %v8435, %v8434
        %v8712 = vpack.c.b16 %v8437, %v8436
        %v8713 = vpack.c.b16 %v8439, %v8438
        %v8714 = vpack.c.b16 %v8441, %v8440
        %v8715 = vpack.c.b16 %v8443, %v8442
        %v8716 = vpack.c.b16 %v8445, %v8444
        %v8717 = vpack.c.b16 %v8447, %v8446
        %v8718 = vpack.c.b16 %v8449, %v8448
        %v8719 = vpack.c.b16 %v8451, %v8450
        %v8720 = vpack.c.b16 %v8453, %v8452
        %v8721 = vpack.c.b16 %v8455, %v8454
        %v8722 = vpack.c.b16 %v8457, %v8456
        %v8723 = vpack.c.b16 %v8459, %v8458
        %v8724 = vpack.c.b16 %v8461, %v8460
        %v8725 = vpack.c.b16 %v8463, %v8462
        %v8726 = vpack.c.b16 %v8465, %v8464
        %v8727 = vpack.c.b16 %v8467, %v8466
        %v8728 = vpack.c.b16 %v8469, %v8468
        %v8729 = vpack.c.b16 %v8471, %v8470
        %v8730 = vpack.c.b16 %v8473, %v8472
        %v8731 = vpack.c.b16 %v8475, %v8474
        %v8732 = vpack.c.b16 %v8477, %v8476
        %v8733 = vpack.c.b16 %v8479, %v8478
        %v8734 = vpack.c.b16 %v8481, %v8480
        %v8735 = vpack.c.b16 %v8483, %v8482
        %v8736 = vpack.c.b16 %v8485, %v8484
        %v8737 = vpack.c.b16 %v8487, %v8486
        %v8738 = vpack.c.b16 %v8489, %v8488
        %v8739 = vpack.c.b16 %v8491, %v8490
        %v8740 = vpack.c.b16 %v8493, %v8492
        %v8741 = vpack.c.b16 %v8495, %v8494
        %v8742 = vpack.c.b16 %v8497, %v8496
        %v8743 = vpack.c.b16 %v8499, %v8498
        %v8744 = vpack.c.b16 %v8501, %v8500
        %v8745 = vpack.c.b16 %v8503, %v8502
        %v8746 = vpack.c.b16 %v8505, %v8504
        %v8747 = vpack.c.b16 %v8507, %v8506
        %v8748 = vpack.c.b16 %v8509, %v8508
        %v8749 = vpack.c.b16 %v8511, %v8510
        %v8750 = vpack.c.b16 %v8513, %v8512
        %v8751 = vpack.c.b16 %v8515, %v8514
        %v8752 = vpack.c.b16 %v8517, %v8516
        %v8753 = vpack.c.b16 %v8519, %v8518
        %v8754 = vpack.c.b16 %v8521, %v8520
        %v8755 = vpack.c.b16 %v8523, %v8522
        %v8756 = vpack.c.b16 %v8525, %v8524
        %v8757 = vpack.c.b16 %v8527, %v8526
        %v8758 = vpack.c.b16 %v8529, %v8528
        %v8759 = vpack.c.b16 %v8531, %v8530
        %v8760 = vpack.c.b16 %v8533, %v8532
        %v8761 = vpack.c.b16 %v8535, %v8534
        %v8762 = vpack.c.b16 %v8537, %v8536
        %v8763 = vpack.c.b16 %v8539, %v8538
        %v8764 = vpack.c.b16 %v8541, %v8540
        %v8765 = vpack.c.b16 %v8543, %v8542
        %v8766 = vpack.c.b16 %v8545, %v8544
        %v8767 = vpack.c.b16 %v8547, %v8546
        %v8768 = vpack.c.b16 %v8549, %v8548
        %v8769 = vpack.c.b16 %v8551, %v8550
        %v8770 = vpack.c.b16 %v8553, %v8552
        %v8771 = vpack.c.b16 %v8555, %v8554
        %v8772 = vpack.c.b16 %v8557, %v8556
        %v8773 = vpack.c.b16 %v8559, %v8558
        %v8774 = vpack.c.b16 %v8561, %v8560
        %v8775 = vpack.c.b16 %v8563, %v8562
        %v8776 = vpack.c.b16 %v8565, %v8564
        %v8777 = vpack.c.b16 %v8567, %v8566
        %v8778 = vpack.c.b16 %v8569, %v8568
        %v8779 = vpack.c.b16 %v8571, %v8570
        %v8780 = vpack.c.b16 %v8573, %v8572
        %v8781 = vpack.c.b16 %v8575, %v8574
        %v8782 = vpack.c.b16 %v8577, %v8576
        %v8783 = vpack.c.b16 %v8579, %v8578
        %v8784 = vpack.c.b16 %v8581, %v8580
        %v8785 = vpack.c.b16 %v8583, %v8582
        %v8786 = vpack.c.b16 %v8585, %v8584
        %v8787 = vpack.c.b16 %v8587, %v8586
        %8988 = vmatprep.subr.bf16.mxu0 0
        %8989 = vmatpush1.bf16.msra.mxu0 %v8588
        %8990 = vmatprep.subr.bf16.mxu0 0
        %8991 = vmatpush1.bf16.msra.mxu0 %v8589
        %8992 = vmatprep.subr.bf16.mxu0 0
        %8993 = vmatpush1.bf16.msra.mxu0 %v8590
        %8994 = vmatprep.subr.bf16.mxu0 0
        %8995 = vmatpush1.bf16.msra.mxu0 %v8591
        %8996 = vmatprep.subr.bf16.mxu0 0
        %8997 = vmatpush1.bf16.msra.mxu0 %v8592
        %8998 = vmatprep.subr.bf16.mxu0 0
        %8999 = vmatpush1.bf16.msra.mxu0 %v8593
        %9000 = vmatprep.subr.bf16.mxu0 0
        %9001 = vmatpush1.bf16.msra.mxu0 %v8594
        %9002 = vmatprep.subr.bf16.mxu0 0
        %9003 = vmatpush1.bf16.msra.mxu0 %v8595
        %9004 = vmatprep.subr.bf16.mxu0 0
        %9005 = vmatpush1.bf16.msra.mxu0 %v8596
        %9006 = vmatprep.subr.bf16.mxu0 0
        %9007 = vmatpush1.bf16.msra.mxu0 %v8597
        %9008 = vmatprep.subr.bf16.mxu0 0
        %9009 = vmatpush1.bf16.msra.mxu0 %v8598
        %9010 = vmatprep.subr.bf16.mxu0 0
        %9011 = vmatpush1.bf16.msra.mxu0 %v8599
        %9012 = vmatprep.subr.bf16.mxu0 0
        %9013 = vmatpush1.bf16.msra.mxu0 %v8600
        %9014 = vmatprep.subr.bf16.mxu0 0
        %9015 = vmatpush1.bf16.msra.mxu0 %v8601
        %9016 = vmatprep.subr.bf16.mxu0 0
        %9017 = vmatpush1.bf16.msra.mxu0 %v8602
        %9018 = vmatprep.subr.bf16.mxu0 0
        %9019 = vmatpush1.bf16.msra.mxu0 %v8603
        %9020 = vmatprep.mubr.bf16.mxu0 %v7077
        %9021 = vmatmul.mubr.bf16.gmra.mrb[0].mxu0 %v7013
        %v9022 = vpop.f32.mrb[0].mxu0
        %v9023 = vadd.f32 %v7786, %v9022
        %v9024 = vpop.f32.mrb[0].mxu0
        %v9025 = vpop.f32.mrb[0].mxu0
        %v9026 = vadd.f32 %v7786, %v9025
        %v9027 = vpop.f32.mrb[0].mxu0
        %9028 = vmatprep.mubr.bf16.mxu0 %v7078
        %9029 = vmatmul.mubr.bf16.gmra.mrb[0].mxu0 %v7014
        %v9030 = vpop.f32.mrb[0].mxu0
        %v9031 = vadd.f32 %v7786, %v9030
        %v9032 = vpop.f32.mrb[0].mxu0
        %v9033 = vpop.f32.mrb[0].mxu0
        %v9034 = vadd.f32 %v7786, %v9033
        %v9035 = vpop.f32.mrb[0].mxu0
        %9036 = vmatprep.mubr.bf16.mxu0 %v7079
        %9037 = vmatmul.mubr.bf16.gmra.mrb[0].mxu0 %v7015
        %v9038 = vpop.f32.mrb[0].mxu0
        %v9039 = vadd.f32 %v7786, %v9038
        %v9040 = vpop.f32.mrb[0].mxu0
        %v9041 = vpop.f32.mrb[0].mxu0
        %v9042 = vadd.f32 %v7786, %v9041
        %v9043 = vpop.f32.mrb[0].mxu0
        %9044 = vmatprep.mubr.bf16.mxu0 %v7080
        %9045 = vmatmul.mubr.bf16.gmra.mrb[0].mxu0 %v7016
        %v9046 = vpop.f32.mrb[0].mxu0
        %v9047 = vadd.f32 %v7786, %v9046
        %v9048 = vpop.f32.mrb[0].mxu0
        %v9049 = vpop.f32.mrb[0].mxu0
        %v9050 = vadd.f32 %v7786, %v9049
        %v9051 = vpop.f32.mrb[0].mxu0
        %9052 = vmatprep.mubr.bf16.mxu0 %v7081
        %9053 = vmatmul.mubr.bf16.gmra.mrb[0].mxu0 %v7017
        %v9054 = vpop.f32.mrb[0].mxu0
        %v9055 = vadd.f32 %v7786, %v9054
        %v9056 = vpop.f32.mrb[0].mxu0
        %v9057 = vpop.f32.mrb[0].mxu0
        %v9058 = vadd.f32 %v7786, %v9057
        %v9059 = vpop.f32.mrb[0].mxu0
        %9060 = vmatprep.mubr.bf16.mxu0 %v7082
        %9061 = vmatmul.mubr.bf16.gmra.mrb[0].mxu0 %v7018
        %v9062 = vpop.f32.mrb[0].mxu0
        %v9063 = vadd.f32 %v7786, %v9062
        %v9064 = vpop.f32.mrb[0].mxu0
        %v9065 = vpop.f32.mrb[0].mxu0
        %v9066 = vadd.f32 %v7786, %v9065
        %v9067 = vpop.f32.mrb[0].mxu0
        %9068 = vmatprep.mubr.bf16.mxu0 %v7083
        %9069 = vmatmul.mubr.bf16.gmra.mrb[0].mxu0 %v7019
        %v9070 = vpop.f32.mrb[0].mxu0
        %v9071 = vadd.f32 %v7786, %v9070
        %v9072 = vpop.f32.mrb[0].mxu0
        %v9073 = vpop.f32.mrb[0].mxu0
        %v9074 = vadd.f32 %v7786, %v9073
        %v9075 = vpop.f32.mrb[0].mxu0
        %9076 = vmatprep.mubr.bf16.mxu0 %v7084
        %9077 = vmatmul.mubr.bf16.gmra.mrb[0].mxu0 %v7020
        %v9078 = vpop.f32.mrb[0].mxu0
        %v9079 = vadd.f32 %v7786, %v9078
        %v9080 = vpop.f32.mrb[0].mxu0
        %v9081 = vpop.f32.mrb[0].mxu0
        %v9082 = vadd.f32 %v7786, %v9081
        %v9083 = vpop.f32.mrb[0].mxu0
        %9084 = vmatprep.mubr.bf16.mxu0 %v7085
        %9085 = vmatmul.mubr.bf16.gmra.mrb[0].mxu0 %v7021
        %v9086 = vpop.f32.mrb[0].mxu0
        %v9087 = vadd.f32 %v7786, %v9086
        %v9088 = vpop.f32.mrb[0].mxu0
        %v9089 = vpop.f32.mrb[0].mxu0
        %v9090 = vadd.f32 %v7786, %v9089
        %v9091 = vpop.f32.mrb[0].mxu0
        %9092 = vmatprep.mubr.bf16.mxu0 %v7086
        %9093 = vmatmul.mubr.bf16.gmra.mrb[0].mxu0 %v7022
        %v9094 = vpop.f32.mrb[0].mxu0
        %v9095 = vadd.f32 %v7786, %v9094
        %v9096 = vpop.f32.mrb[0].mxu0
        %v9097 = vpop.f32.mrb[0].mxu0
        %v9098 = vadd.f32 %v7786, %v9097
        %v9099 = vpop.f32.mrb[0].mxu0
        %9100 = vmatprep.mubr.bf16.mxu0 %v7087
        %9101 = vmatmul.mubr.bf16.gmra.mrb[0].mxu0 %v7023
        %v9102 = vpop.f32.mrb[0].mxu0
        %v9103 = vadd.f32 %v7786, %v9102
        %v9104 = vpop.f32.mrb[0].mxu0
        %v9105 = vpop.f32.mrb[0].mxu0
        %v9106 = vadd.f32 %v7786, %v9105
        %v9107 = vpop.f32.mrb[0].mxu0
        %9108 = vmatprep.mubr.bf16.mxu0 %v7088
        %9109 = vmatmul.mubr.bf16.gmra.mrb[0].mxu0 %v7024
        %v9110 = vpop.f32.mrb[0].mxu0
        %v9111 = vadd.f32 %v7786, %v9110
        %v9112 = vpop.f32.mrb[0].mxu0
        %v9113 = vpop.f32.mrb[0].mxu0
        %v9114 = vadd.f32 %v7786, %v9113
        %v9115 = vpop.f32.mrb[0].mxu0
        %9116 = vmatprep.mubr.bf16.mxu0 %v7089
        %9117 = vmatmul.mubr.bf16.gmra.mrb[0].mxu0 %v7025
        %v9118 = vpop.f32.mrb[0].mxu0
        %v9119 = vadd.f32 %v7786, %v9118
        %v9120 = vpop.f32.mrb[0].mxu0
        %v9121 = vpop.f32.mrb[0].mxu0
        %v9122 = vadd.f32 %v7786, %v9121
        %v9123 = vpop.f32.mrb[0].mxu0
        %9124 = vmatprep.mubr.bf16.mxu0 %v7090
        %9125 = vmatmul.mubr.bf16.gmra.mrb[0].mxu0 %v7026
        %v9126 = vpop.f32.mrb[0].mxu0
        %v9127 = vadd.f32 %v7786, %v9126
        %v9128 = vpop.f32.mrb[0].mxu0
        %v9129 = vpop.f32.mrb[0].mxu0
        %v9130 = vadd.f32 %v7786, %v9129
        %v9131 = vpop.f32.mrb[0].mxu0
        %9132 = vmatprep.mubr.bf16.mxu0 %v7091
        %9133 = vmatmul.mubr.bf16.gmra.mrb[0].mxu0 %v7027
        %v9134 = vpop.f32.mrb[0].mxu0
        %v9135 = vadd.f32 %v7786, %v9134
        %v9136 = vpop.f32.mrb[0].mxu0
        %v9137 = vpop.f32.mrb[0].mxu0
        %v9138 = vadd.f32 %v7786, %v9137
        %v9139 = vpop.f32.mrb[0].mxu0
        %9140 = vmatprep.mubr.bf16.mxu0 %v7092
        %9141 = vmatmul.mubr.bf16.gmra.mrb[0].mxu0 %v7028
        %v9142 = vpop.f32.mrb[0].mxu0
        %v9143 = vadd.f32 %v7786, %v9142
        %v9144 = vpop.f32.mrb[0].mxu0
        %v9145 = vpop.f32.mrb[0].mxu0
        %v9146 = vadd.f32 %v7786, %v9145
        %v9147 = vpop.f32.mrb[0].mxu0
        %9148 = vdwg.mxu0
        %9149 = vmatprep.subr.bf16.mxu0 0
        %9150 = vmatpush1.bf16.msra.mxu0 %v8604
        %9151 = vmatprep.subr.bf16.mxu0 0
        %9152 = vmatpush1.bf16.msra.mxu0 %v8605
        %9153 = vmatprep.subr.bf16.mxu0 0
        %9154 = vmatpush1.bf16.msra.mxu0 %v8606
        %9155 = vmatprep.subr.bf16.mxu0 0
        %9156 = vmatpush1.bf16.msra.mxu0 %v8607
        %9157 = vmatprep.subr.bf16.mxu0 0
        %9158 = vmatpush1.bf16.msra.mxu0 %v8608
        %9159 = vmatprep.subr.bf16.mxu0 0
        %9160 = vmatpush1.bf16.msra.mxu0 %v8609
        %9161 = vmatprep.subr.bf16.mxu0 0
        %9162 = vmatpush1.bf16.msra.mxu0 %v8610
        %9163 = vmatprep.subr.bf16.mxu0 0
        %9164 = vmatpush1.bf16.msra.mxu0 %v8611
        %9165 = vmatprep.subr.bf16.mxu0 0
        %9166 = vmatpush1.bf16.msra.mxu0 %v8612
        %9167 = vmatprep.subr.bf16.mxu0 0
        %9168 = vmatpush1.bf16.msra.mxu0 %v8613
        %9169 = vmatprep.subr.bf16.mxu0 0
        %9170 = vmatpush1.bf16.msra.mxu0 %v8614
        %9171 = vmatprep.subr.bf16.mxu0 0
        %9172 = vmatpush1.bf16.msra.mxu0 %v8615
        %9173 = vmatprep.subr.bf16.mxu0 0
        %9174 = vmatpush1.bf16.msra.mxu0 %v8616
        %9175 = vmatprep.subr.bf16.mxu0 0
        %9176 = vmatpush1.bf16.msra.mxu0 %v8617
        %9177 = vmatprep.subr.bf16.mxu0 0
        %9178 = vmatpush1.bf16.msra.mxu0 %v8618
        %9179 = vmatprep.subr.bf16.mxu0 0
        %9180 = vmatpush1.bf16.msra.mxu0 %v8619
        %9181 = vmatprep.mubr.bf16.mxu0 %v7205
        %9182 = vmatmul.mubr.bf16.gmra.mrb[0].mxu0 %v7141
        %v9183 = vpop.f32.mrb[0].mxu0
        %v9184 = vadd.f32 %v9023, %v9183
        %v9185 = vpop.f32.mrb[0].mxu0
        %v9186 = vpop.f32.mrb[0].mxu0
        %v9187 = vadd.f32 %v9026, %v9186
        %v9188 = vpop.f32.mrb[0].mxu0
        %9189 = vmatprep.mubr.bf16.mxu0 %v7206
        %9190 = vmatmul.mubr.bf16.gmra.mrb[0].mxu0 %v7142
        %v9191 = vpop.f32.mrb[0].mxu0
        %v9192 = vadd.f32 %v9031, %v9191
        %v9193 = vpop.f32.mrb[0].mxu0
        %v9194 = vpop.f32.mrb[0].mxu0
        %v9195 = vadd.f32 %v9034, %v9194
        %v9196 = vpop.f32.mrb[0].mxu0
        %9197 = vmatprep.mubr.bf16.mxu0 %v7207
        %9198 = vmatmul.mubr.bf16.gmra.mrb[0].mxu0 %v7143
        %v9199 = vpop.f32.mrb[0].mxu0
        %v9200 = vadd.f32 %v9039, %v9199
        %v9201 = vpop.f32.mrb[0].mxu0
        %v9202 = vpop.f32.mrb[0].mxu0
        %v9203 = vadd.f32 %v9042, %v9202
        %v9204 = vpop.f32.mrb[0].mxu0
        %9205 = vmatprep.mubr.bf16.mxu0 %v7208
        %9206 = vmatmul.mubr.bf16.gmra.mrb[0].mxu0 %v7144
        %v9207 = vpop.f32.mrb[0].mxu0
        %v9208 = vadd.f32 %v9047, %v9207
        %v9209 = vpop.f32.mrb[0].mxu0
        %v9210 = vpop.f32.mrb[0].mxu0
        %v9211 = vadd.f32 %v9050, %v9210
        %v9212 = vpop.f32.mrb[0].mxu0
        %9213 = vmatprep.mubr.bf16.mxu0 %v7209
        %9214 = vmatmul.mubr.bf16.gmra.mrb[0].mxu0 %v7145
        %v9215 = vpop.f32.mrb[0].mxu0
        %v9216 = vadd.f32 %v9055, %v9215
        %v9217 = vpop.f32.mrb[0].mxu0
        %v9218 = vpop.f32.mrb[0].mxu0
        %v9219 = vadd.f32 %v9058, %v9218
        %v9220 = vpop.f32.mrb[0].mxu0
        %9221 = vmatprep.mubr.bf16.mxu0 %v7210
        %9222 = vmatmul.mubr.bf16.gmra.mrb[0].mxu0 %v7146
        %v9223 = vpop.f32.mrb[0].mxu0
        %v9224 = vadd.f32 %v9063, %v9223
        %v9225 = vpop.f32.mrb[0].mxu0
        %v9226 = vpop.f32.mrb[0].mxu0
        %v9227 = vadd.f32 %v9066, %v9226
        %v9228 = vpop.f32.mrb[0].mxu0
        %9229 = vmatprep.mubr.bf16.mxu0 %v7211
        %9230 = vmatmul.mubr.bf16.gmra.mrb[0].mxu0 %v7147
        %v9231 = vpop.f32.mrb[0].mxu0
        %v9232 = vadd.f32 %v9071, %v9231
        %v9233 = vpop.f32.mrb[0].mxu0
        %v9234 = vpop.f32.mrb[0].mxu0
        %v9235 = vadd.f32 %v9074, %v9234
        %v9236 = vpop.f32.mrb[0].mxu0
        %9237 = vmatprep.mubr.bf16.mxu0 %v7212
        %9238 = vmatmul.mubr.bf16.gmra.mrb[0].mxu0 %v7148
        %v9239 = vpop.f32.mrb[0].mxu0
        %v9240 = vadd.f32 %v9079, %v9239
        %v9241 = vpop.f32.mrb[0].mxu0
        %v9242 = vpop.f32.mrb[0].mxu0
        %v9243 = vadd.f32 %v9082, %v9242
        %v9244 = vpop.f32.mrb[0].mxu0
        %9245 = vmatprep.mubr.bf16.mxu0 %v7213
        %9246 = vmatmul.mubr.bf16.gmra.mrb[0].mxu0 %v7149
        %v9247 = vpop.f32.mrb[0].mxu0
        %v9248 = vadd.f32 %v9087, %v9247
        %v9249 = vpop.f32.mrb[0].mxu0
        %v9250 = vpop.f32.mrb[0].mxu0
        %v9251 = vadd.f32 %v9090, %v9250
        %v9252 = vpop.f32.mrb[0].mxu0
        %9253 = vmatprep.mubr.bf16.mxu0 %v7214
        %9254 = vmatmul.mubr.bf16.gmra.mrb[0].mxu0 %v7150
        %v9255 = vpop.f32.mrb[0].mxu0
        %v9256 = vadd.f32 %v9095, %v9255
        %v9257 = vpop.f32.mrb[0].mxu0
        %v9258 = vpop.f32.mrb[0].mxu0
        %v9259 = vadd.f32 %v9098, %v9258
        %v9260 = vpop.f32.mrb[0].mxu0
        %9261 = vmatprep.mubr.bf16.mxu0 %v7215
        %9262 = vmatmul.mubr.bf16.gmra.mrb[0].mxu0 %v7151
        %v9263 = vpop.f32.mrb[0].mxu0
        %v9264 = vadd.f32 %v9103, %v9263
        %v9265 = vpop.f32.mrb[0].mxu0
        %v9266 = vpop.f32.mrb[0].mxu0
        %v9267 = vadd.f32 %v9106, %v9266
        %v9268 = vpop.f32.mrb[0].mxu0
        %9269 = vmatprep.mubr.bf16.mxu0 %v7216
        %9270 = vmatmul.mubr.bf16.gmra.mrb[0].mxu0 %v7152
        %v9271 = vpop.f32.mrb[0].mxu0
        %v9272 = vadd.f32 %v9111, %v9271
        %v9273 = vpop.f32.mrb[0].mxu0
        %v9274 = vpop.f32.mrb[0].mxu0
        %v9275 = vadd.f32 %v9114, %v9274
        %v9276 = vpop.f32.mrb[0].mxu0
        %9277 = vmatprep.mubr.bf16.mxu0 %v7217
        %9278 = vmatmul.mubr.bf16.gmra.mrb[0].mxu0 %v7153
        %v9279 = vpop.f32.mrb[0].mxu0
        %v9280 = vadd.f32 %v9119, %v9279
        %v9281 = vpop.f32.mrb[0].mxu0
        %v9282 = vpop.f32.mrb[0].mxu0
        %v9283 = vadd.f32 %v9122, %v9282
        %v9284 = vpop.f32.mrb[0].mxu0
        %9285 = vmatprep.mubr.bf16.mxu0 %v7218
        %9286 = vmatmul.mubr.bf16.gmra.mrb[0].mxu0 %v7154
        %v9287 = vpop.f32.mrb[0].mxu0
        %v9288 = vadd.f32 %v9127, %v9287
        %v9289 = vpop.f32.mrb[0].mxu0
        %v9290 = vpop.f32.mrb[0].mxu0
        %v9291 = vadd.f32 %v9130, %v9290
        %v9292 = vpop.f32.mrb[0].mxu0
        %9293 = vmatprep.mubr.bf16.mxu0 %v7219
        %9294 = vmatmul.mubr.bf16.gmra.mrb[0].mxu0 %v7155
        %v9295 = vpop.f32.mrb[0].mxu0
        %v9296 = vadd.f32 %v9135, %v9295
        %v9297 = vpop.f32.mrb[0].mxu0
        %v9298 = vpop.f32.mrb[0].mxu0
        %v9299 = vadd.f32 %v9138, %v9298
        %v9300 = vpop.f32.mrb[0].mxu0
        %9301 = vmatprep.mubr.bf16.mxu0 %v7220
        %9302 = vmatmul.mubr.bf16.gmra.mrb[0].mxu0 %v7156
        %v9303 = vpop.f32.mrb[0].mxu0
        %v9304 = vadd.f32 %v9143, %v9303
        %v9305 = vpop.f32.mrb[0].mxu0
        %v9306 = vpop.f32.mrb[0].mxu0
        %v9307 = vadd.f32 %v9146, %v9306
        %v9308 = vpop.f32.mrb[0].mxu0
        %9309 = vdwg.mxu0
        %9310 = vmatprep.subr.bf16.mxu0 0
        %9311 = vmatpush1.bf16.msra.mxu0 %v8620
        %9312 = vmatprep.subr.bf16.mxu0 0
        %9313 = vmatpush1.bf16.msra.mxu0 %v8621
        %9314 = vmatprep.subr.bf16.mxu0 0
        %9315 = vmatpush1.bf16.msra.mxu0 %v8622
        %9316 = vmatprep.subr.bf16.mxu0 0
        %9317 = vmatpush1.bf16.msra.mxu0 %v8623
        %9318 = vmatprep.subr.bf16.mxu0 0
        %9319 = vmatpush1.bf16.msra.mxu0 %v8624
        %9320 = vmatprep.subr.bf16.mxu0 0
        %9321 = vmatpush1.bf16.msra.mxu0 %v8625
        %9322 = vmatprep.subr.bf16.mxu0 0
        %9323 = vmatpush1.bf16.msra.mxu0 %v8626
        %9324 = vmatprep.subr.bf16.mxu0 0
        %9325 = vmatpush1.bf16.msra.mxu0 %v8627
        %9326 = vmatprep.subr.bf16.mxu0 0
        %9327 = vmatpush1.bf16.msra.mxu0 %v8628
        %9328 = vmatprep.subr.bf16.mxu0 0
        %9329 = vmatpush1.bf16.msra.mxu0 %v8629
        %9330 = vmatprep.subr.bf16.mxu0 0
        %9331 = vmatpush1.bf16.msra.mxu0 %v8630
        %9332 = vmatprep.subr.bf16.mxu0 0
        %9333 = vmatpush1.bf16.msra.mxu0 %v8631
        %9334 = vmatprep.subr.bf16.mxu0 0
        %9335 = vmatpush1.bf16.msra.mxu0 %v8632
        %9336 = vmatprep.subr.bf16.mxu0 0
        %9337 = vmatpush1.bf16.msra.mxu0 %v8633
        %9338 = vmatprep.subr.bf16.mxu0 0
        %9339 = vmatpush1.bf16.msra.mxu0 %v8634
        %9340 = vmatprep.subr.bf16.mxu0 0
        %9341 = vmatpush1.bf16.msra.mxu0 %v8635
        %9342 = vmatprep.mubr.bf16.mxu0 %v7014
        %9343 = vmatmul.mubr.bf16.gmra.mrb[0].mxu0 %v7269
        %v9344 = vpop.f32.mrb[0].mxu0
        %v9345 = vadd.f32 %v9184, %v9344
        %v9346 = vpop.f32.mrb[0].mxu0
        %v9347 = vpop.f32.mrb[0].mxu0
        %v9348 = vadd.f32 %v9187, %v9347
        %v9349 = vpop.f32.mrb[0].mxu0
        %9350 = vmatprep.mubr.bf16.mxu0 %v7015
        %9351 = vmatmul.mubr.bf16.gmra.mrb[0].mxu0 %v7270
        %v9352 = vpop.f32.mrb[0].mxu0
        %v9353 = vadd.f32 %v9192, %v9352
        %v9354 = vpop.f32.mrb[0].mxu0
        %v9355 = vpop.f32.mrb[0].mxu0
        %v9356 = vadd.f32 %v9195, %v9355
        %v9357 = vpop.f32.mrb[0].mxu0
        %9358 = vmatprep.mubr.bf16.mxu0 %v7016
        %9359 = vmatmul.mubr.bf16.gmra.mrb[0].mxu0 %v7271
        %v9360 = vpop.f32.mrb[0].mxu0
        %v9361 = vadd.f32 %v9200, %v9360
        %v9362 = vpop.f32.mrb[0].mxu0
        %v9363 = vpop.f32.mrb[0].mxu0
        %v9364 = vadd.f32 %v9203, %v9363
        %v9365 = vpop.f32.mrb[0].mxu0
        %9366 = vmatprep.mubr.bf16.mxu0 %v7017
        %9367 = vmatmul.mubr.bf16.gmra.mrb[0].mxu0 %v7272
        %v9368 = vpop.f32.mrb[0].mxu0
        %v9369 = vadd.f32 %v9208, %v9368
        %v9370 = vpop.f32.mrb[0].mxu0
        %v9371 = vpop.f32.mrb[0].mxu0
        %v9372 = vadd.f32 %v9211, %v9371
        %v9373 = vpop.f32.mrb[0].mxu0
        %9374 = vmatprep.mubr.bf16.mxu0 %v7018
        %9375 = vmatmul.mubr.bf16.gmra.mrb[0].mxu0 %v7273
        %v9376 = vpop.f32.mrb[0].mxu0
        %v9377 = vadd.f32 %v9216, %v9376
        %v9378 = vpop.f32.mrb[0].mxu0
        %v9379 = vpop.f32.mrb[0].mxu0
        %v9380 = vadd.f32 %v9219, %v9379
        %v9381 = vpop.f32.mrb[0].mxu0
        %9382 = vmatprep.mubr.bf16.mxu0 %v7019
        %9383 = vmatmul.mubr.bf16.gmra.mrb[0].mxu0 %v7274
        %v9384 = vpop.f32.mrb[0].mxu0
        %v9385 = vadd.f32 %v9224, %v9384
        %v9386 = vpop.f32.mrb[0].mxu0
        %v9387 = vpop.f32.mrb[0].mxu0
        %v9388 = vadd.f32 %v9227, %v9387
        %v9389 = vpop.f32.mrb[0].mxu0
        %9390 = vmatprep.mubr.bf16.mxu0 %v7020
        %9391 = vmatmul.mubr.bf16.gmra.mrb[0].mxu0 %v7275
        %v9392 = vpop.f32.mrb[0].mxu0
        %v9393 = vadd.f32 %v9232, %v9392
        %v9394 = vpop.f32.mrb[0].mxu0
        %v9395 = vpop.f32.mrb[0].mxu0
        %v9396 = vadd.f32 %v9235, %v9395
        %v9397 = vpop.f32.mrb[0].mxu0
        %9398 = vmatprep.mubr.bf16.mxu0 %v7021
        %9399 = vmatmul.mubr.bf16.gmra.mrb[0].mxu0 %v7276
        %v9400 = vpop.f32.mrb[0].mxu0
        %v9401 = vadd.f32 %v9240, %v9400
        %v9402 = vpop.f32.mrb[0].mxu0
        %v9403 = vpop.f32.mrb[0].mxu0
        %v9404 = vadd.f32 %v9243, %v9403
        %v9405 = vpop.f32.mrb[0].mxu0
        %9406 = vmatprep.mubr.bf16.mxu0 %v7022
        %9407 = vmatmul.mubr.bf16.gmra.mrb[0].mxu0 %v7277
        %v9408 = vpop.f32.mrb[0].mxu0
        %v9409 = vadd.f32 %v9248, %v9408
        %v9410 = vpop.f32.mrb[0].mxu0
        %v9411 = vpop.f32.mrb[0].mxu0
        %v9412 = vadd.f32 %v9251, %v9411
        %v9413 = vpop.f32.mrb[0].mxu0
        %9414 = vmatprep.mubr.bf16.mxu0 %v7023
        %9415 = vmatmul.mubr.bf16.gmra.mrb[0].mxu0 %v7278
        %v9416 = vpop.f32.mrb[0].mxu0
        %v9417 = vadd.f32 %v9256, %v9416
        %v9418 = vpop.f32.mrb[0].mxu0
        %v9419 = vpop.f32.mrb[0].mxu0
        %v9420 = vadd.f32 %v9259, %v9419
        %v9421 = vpop.f32.mrb[0].mxu0
        %9422 = vmatprep.mubr.bf16.mxu0 %v7024
        %9423 = vmatmul.mubr.bf16.gmra.mrb[0].mxu0 %v7279
        %v9424 = vpop.f32.mrb[0].mxu0
        %v9425 = vadd.f32 %v9264, %v9424
        %v9426 = vpop.f32.mrb[0].mxu0
        %v9427 = vpop.f32.mrb[0].mxu0
        %v9428 = vadd.f32 %v9267, %v9427
        %v9429 = vpop.f32.mrb[0].mxu0
        %9430 = vmatprep.mubr.bf16.mxu0 %v7025
        %9431 = vmatmul.mubr.bf16.gmra.mrb[0].mxu0 %v7280
        %v9432 = vpop.f32.mrb[0].mxu0
        %v9433 = vadd.f32 %v9272, %v9432
        %v9434 = vpop.f32.mrb[0].mxu0
        %v9435 = vpop.f32.mrb[0].mxu0
        %v9436 = vadd.f32 %v9275, %v9435
        %v9437 = vpop.f32.mrb[0].mxu0
        %9438 = vmatprep.mubr.bf16.mxu0 %v7026
        %9439 = vmatmul.mubr.bf16.gmra.mrb[0].mxu0 %v7281
        %v9440 = vpop.f32.mrb[0].mxu0
        %v9441 = vadd.f32 %v9280, %v9440
        %v9442 = vpop.f32.mrb[0].mxu0
        %v9443 = vpop.f32.mrb[0].mxu0
        %v9444 = vadd.f32 %v9283, %v9443
        %v9445 = vpop.f32.mrb[0].mxu0
        %9446 = vmatprep.mubr.bf16.mxu0 %v7027
        %9447 = vmatmul.mubr.bf16.gmra.mrb[0].mxu0 %v7282
        %v9448 = vpop.f32.mrb[0].mxu0
        %v9449 = vadd.f32 %v9288, %v9448
        %v9450 = vpop.f32.mrb[0].mxu0
        %v9451 = vpop.f32.mrb[0].mxu0
        %v9452 = vadd.f32 %v9291, %v9451
        %v9453 = vpop.f32.mrb[0].mxu0
        %9454 = vmatprep.mubr.bf16.mxu0 %v7028
        %9455 = vmatmul.mubr.bf16.gmra.mrb[0].mxu0 %v7283
        %v9456 = vpop.f32.mrb[0].mxu0
        %v9457 = vadd.f32 %v9296, %v9456
        %v9458 = vpop.f32.mrb[0].mxu0
        %v9459 = vpop.f32.mrb[0].mxu0
        %v9460 = vadd.f32 %v9299, %v9459
        %v9461 = vpop.f32.mrb[0].mxu0
        %9462 = vmatprep.mubr.bf16.mxu0 %v7303
        %9463 = vmatmul.mubr.bf16.gmra.mrb[0].mxu0 %v7284
        %v9464 = vpop.f32.mrb[0].mxu0
        %v9465 = vadd.f32 %v9304, %v9464
        %v9466 = vpop.f32.mrb[0].mxu0
        %v9467 = vpop.f32.mrb[0].mxu0
        %v9468 = vadd.f32 %v9307, %v9467
        %v9469 = vpop.f32.mrb[0].mxu0
        %9470 = vdwg.mxu0
        %9471 = vmatprep.subr.bf16.mxu0 0
        %9472 = vmatpush1.bf16.msra.mxu0 %v8636
        %9473 = vmatprep.subr.bf16.mxu0 0
        %9474 = vmatpush1.bf16.msra.mxu0 %v8637
        %9475 = vmatprep.subr.bf16.mxu0 0
        %9476 = vmatpush1.bf16.msra.mxu0 %v8638
        %9477 = vmatprep.subr.bf16.mxu0 0
        %9478 = vmatpush1.bf16.msra.mxu0 %v8639
        %9479 = vmatprep.subr.bf16.mxu0 0
        %9480 = vmatpush1.bf16.msra.mxu0 %v8640
        %9481 = vmatprep.subr.bf16.mxu0 0
        %9482 = vmatpush1.bf16.msra.mxu0 %v8641
        %9483 = vmatprep.subr.bf16.mxu0 0
        %9484 = vmatpush1.bf16.msra.mxu0 %v8642
        %9485 = vmatprep.subr.bf16.mxu0 0
        %9486 = vmatpush1.bf16.msra.mxu0 %v8643
        %9487 = vmatprep.subr.bf16.mxu0 0
        %9488 = vmatpush1.bf16.msra.mxu0 %v8644
        %9489 = vmatprep.subr.bf16.mxu0 0
        %9490 = vmatpush1.bf16.msra.mxu0 %v8645
        %9491 = vmatprep.subr.bf16.mxu0 0
        %9492 = vmatpush1.bf16.msra.mxu0 %v8646
        %9493 = vmatprep.subr.bf16.mxu0 0
        %9494 = vmatpush1.bf16.msra.mxu0 %v8647
        %9495 = vmatprep.subr.bf16.mxu0 0
        %9496 = vmatpush1.bf16.msra.mxu0 %v8648
        %9497 = vmatprep.subr.bf16.mxu0 0
        %9498 = vmatpush1.bf16.msra.mxu0 %v8649
        %9499 = vmatprep.subr.bf16.mxu0 0
        %9500 = vmatpush1.bf16.msra.mxu0 %v8650
        %9501 = vmatprep.subr.bf16.mxu0 0
        %9502 = vmatpush1.bf16.msra.mxu0 %v8651
        %9503 = vmatprep.mubr.bf16.mxu0 %v7142
        %9504 = vmatmul.mubr.bf16.gmra.mrb[0].mxu0 %v7078
        %v9505 = vpop.f32.mrb[0].mxu0
        %v9506 = vadd.f32 %v9345, %v9505
        %v9507 = vpop.f32.mrb[0].mxu0
        %v9508 = vpop.f32.mrb[0].mxu0
        %v9509 = vadd.f32 %v9348, %v9508
        %v9510 = vpop.f32.mrb[0].mxu0
        %9511 = vmatprep.mubr.bf16.mxu0 %v7143
        %9512 = vmatmul.mubr.bf16.gmra.mrb[0].mxu0 %v7079
        %v9513 = vpop.f32.mrb[0].mxu0
        %v9514 = vadd.f32 %v9353, %v9513
        %v9515 = vpop.f32.mrb[0].mxu0
        %v9516 = vpop.f32.mrb[0].mxu0
        %v9517 = vadd.f32 %v9356, %v9516
        %v9518 = vpop.f32.mrb[0].mxu0
        %9519 = vmatprep.mubr.bf16.mxu0 %v7144
        %9520 = vmatmul.mubr.bf16.gmra.mrb[0].mxu0 %v7080
        %v9521 = vpop.f32.mrb[0].mxu0
        %v9522 = vadd.f32 %v9361, %v9521
        %v9523 = vpop.f32.mrb[0].mxu0
        %v9524 = vpop.f32.mrb[0].mxu0
        %v9525 = vadd.f32 %v9364, %v9524
        %v9526 = vpop.f32.mrb[0].mxu0
        %9527 = vmatprep.mubr.bf16.mxu0 %v7145
        %9528 = vmatmul.mubr.bf16.gmra.mrb[0].mxu0 %v7081
        %v9529 = vpop.f32.mrb[0].mxu0
        %v9530 = vadd.f32 %v9369, %v9529
        %v9531 = vpop.f32.mrb[0].mxu0
        %v9532 = vpop.f32.mrb[0].mxu0
        %v9533 = vadd.f32 %v9372, %v9532
        %v9534 = vpop.f32.mrb[0].mxu0
        %9535 = vmatprep.mubr.bf16.mxu0 %v7146
        %9536 = vmatmul.mubr.bf16.gmra.mrb[0].mxu0 %v7082
        %v9537 = vpop.f32.mrb[0].mxu0
        %v9538 = vadd.f32 %v9377, %v9537
        %v9539 = vpop.f32.mrb[0].mxu0
        %v9540 = vpop.f32.mrb[0].mxu0
        %v9541 = vadd.f32 %v9380, %v9540
        %v9542 = vpop.f32.mrb[0].mxu0
        %9543 = vmatprep.mubr.bf16.mxu0 %v7147
        %9544 = vmatmul.mubr.bf16.gmra.mrb[0].mxu0 %v7083
        %v9545 = vpop.f32.mrb[0].mxu0
        %v9546 = vadd.f32 %v9385, %v9545
        %v9547 = vpop.f32.mrb[0].mxu0
        %v9548 = vpop.f32.mrb[0].mxu0
        %v9549 = vadd.f32 %v9388, %v9548
        %v9550 = vpop.f32.mrb[0].mxu0
        %9551 = vmatprep.mubr.bf16.mxu0 %v7148
        %9552 = vmatmul.mubr.bf16.gmra.mrb[0].mxu0 %v7084
        %v9553 = vpop.f32.mrb[0].mxu0
        %v9554 = vadd.f32 %v9393, %v9553
        %v9555 = vpop.f32.mrb[0].mxu0
        %v9556 = vpop.f32.mrb[0].mxu0
        %v9557 = vadd.f32 %v9396, %v9556
        %v9558 = vpop.f32.mrb[0].mxu0
        %9559 = vmatprep.mubr.bf16.mxu0 %v7149
        %9560 = vmatmul.mubr.bf16.gmra.mrb[0].mxu0 %v7085
        %v9561 = vpop.f32.mrb[0].mxu0
        %v9562 = vadd.f32 %v9401, %v9561
        %v9563 = vpop.f32.mrb[0].mxu0
        %v9564 = vpop.f32.mrb[0].mxu0
        %v9565 = vadd.f32 %v9404, %v9564
        %v9566 = vpop.f32.mrb[0].mxu0
        %9567 = vmatprep.mubr.bf16.mxu0 %v7150
        %9568 = vmatmul.mubr.bf16.gmra.mrb[0].mxu0 %v7086
        %v9569 = vpop.f32.mrb[0].mxu0
        %v9570 = vadd.f32 %v9409, %v9569
        %v9571 = vpop.f32.mrb[0].mxu0
        %v9572 = vpop.f32.mrb[0].mxu0
        %v9573 = vadd.f32 %v9412, %v9572
        %v9574 = vpop.f32.mrb[0].mxu0
        %9575 = vmatprep.mubr.bf16.mxu0 %v7151
        %9576 = vmatmul.mubr.bf16.gmra.mrb[0].mxu0 %v7087
        %v9577 = vpop.f32.mrb[0].mxu0
        %v9578 = vadd.f32 %v9417, %v9577
        %v9579 = vpop.f32.mrb[0].mxu0
        %v9580 = vpop.f32.mrb[0].mxu0
        %v9581 = vadd.f32 %v9420, %v9580
        %v9582 = vpop.f32.mrb[0].mxu0
        %9583 = vmatprep.mubr.bf16.mxu0 %v7152
        %9584 = vmatmul.mubr.bf16.gmra.mrb[0].mxu0 %v7088
        %v9585 = vpop.f32.mrb[0].mxu0
        %v9586 = vadd.f32 %v9425, %v9585
        %v9587 = vpop.f32.mrb[0].mxu0
        %v9588 = vpop.f32.mrb[0].mxu0
        %v9589 = vadd.f32 %v9428, %v9588
        %v9590 = vpop.f32.mrb[0].mxu0
        %9591 = vmatprep.mubr.bf16.mxu0 %v7153
        %9592 = vmatmul.mubr.bf16.gmra.mrb[0].mxu0 %v7089
        %v9593 = vpop.f32.mrb[0].mxu0
        %v9594 = vadd.f32 %v9433, %v9593
        %v9595 = vpop.f32.mrb[0].mxu0
        %v9596 = vpop.f32.mrb[0].mxu0
        %v9597 = vadd.f32 %v9436, %v9596
        %v9598 = vpop.f32.mrb[0].mxu0
        %9599 = vmatprep.mubr.bf16.mxu0 %v7154
        %9600 = vmatmul.mubr.bf16.gmra.mrb[0].mxu0 %v7090
        %v9601 = vpop.f32.mrb[0].mxu0
        %v9602 = vadd.f32 %v9441, %v9601
        %v9603 = vpop.f32.mrb[0].mxu0
        %v9604 = vpop.f32.mrb[0].mxu0
        %v9605 = vadd.f32 %v9444, %v9604
        %v9606 = vpop.f32.mrb[0].mxu0
        %9607 = vmatprep.mubr.bf16.mxu0 %v7155
        %9608 = vmatmul.mubr.bf16.gmra.mrb[0].mxu0 %v7091
        %v9609 = vpop.f32.mrb[0].mxu0
        %v9610 = vadd.f32 %v9449, %v9609
        %v9611 = vpop.f32.mrb[0].mxu0
        %v9612 = vpop.f32.mrb[0].mxu0
        %v9613 = vadd.f32 %v9452, %v9612
        %v9614 = vpop.f32.mrb[0].mxu0
        %9615 = vmatprep.mubr.bf16.mxu0 %v7156
        %9616 = vmatmul.mubr.bf16.gmra.mrb[0].mxu0 %v7092
        %v9617 = vpop.f32.mrb[0].mxu0
        %v9618 = vadd.f32 %v9457, %v9617
        %v9619 = vpop.f32.mrb[0].mxu0
        %v9620 = vpop.f32.mrb[0].mxu0
        %v9621 = vadd.f32 %v9460, %v9620
        %v9622 = vpop.f32.mrb[0].mxu0
        %9623 = vmatprep.mubr.bf16.mxu0 %v7311
        %9624 = vmatmul.mubr.bf16.gmra.mrb[0].mxu0 %v7307
        %v9625 = vpop.f32.mrb[0].mxu0
        %v9626 = vadd.f32 %v9465, %v9625
        %v9627 = vpop.f32.mrb[0].mxu0
        %v9628 = vpop.f32.mrb[0].mxu0
        %v9629 = vadd.f32 %v9468, %v9628
        %v9630 = vpop.f32.mrb[0].mxu0
        %9631 = vdwg.mxu0
        %9632 = vmatprep.subr.bf16.mxu0 0
        %9633 = vmatpush1.bf16.msra.mxu0 %v8652
        %9634 = vmatprep.subr.bf16.mxu0 0
        %9635 = vmatpush1.bf16.msra.mxu0 %v8653
        %9636 = vmatprep.subr.bf16.mxu0 0
        %9637 = vmatpush1.bf16.msra.mxu0 %v8654
        %9638 = vmatprep.subr.bf16.mxu0 0
        %9639 = vmatpush1.bf16.msra.mxu0 %v8655
        %9640 = vmatprep.subr.bf16.mxu0 0
        %9641 = vmatpush1.bf16.msra.mxu0 %v8656
        %9642 = vmatprep.subr.bf16.mxu0 0
        %9643 = vmatpush1.bf16.msra.mxu0 %v8657
        %9644 = vmatprep.subr.bf16.mxu0 0
        %9645 = vmatpush1.bf16.msra.mxu0 %v8658
        %9646 = vmatprep.subr.bf16.mxu0 0
        %9647 = vmatpush1.bf16.msra.mxu0 %v8659
        %9648 = vmatprep.subr.bf16.mxu0 0
        %9649 = vmatpush1.bf16.msra.mxu0 %v8660
        %9650 = vmatprep.subr.bf16.mxu0 0
        %9651 = vmatpush1.bf16.msra.mxu0 %v8661
        %9652 = vmatprep.subr.bf16.mxu0 0
        %9653 = vmatpush1.bf16.msra.mxu0 %v8662
        %9654 = vmatprep.subr.bf16.mxu0 0
        %9655 = vmatpush1.bf16.msra.mxu0 %v8663
        %9656 = vmatprep.subr.bf16.mxu0 0
        %9657 = vmatpush1.bf16.msra.mxu0 %v8664
        %9658 = vmatprep.subr.bf16.mxu0 0
        %9659 = vmatpush1.bf16.msra.mxu0 %v8665
        %9660 = vmatprep.subr.bf16.mxu0 0
        %9661 = vmatpush1.bf16.msra.mxu0 %v8666
        %9662 = vmatprep.subr.bf16.mxu0 0
        %9663 = vmatpush1.bf16.msra.mxu0 %v8667
        %9664 = vmatprep.mubr.bf16.mxu0 %v7270
        %9665 = vmatmul.mubr.bf16.gmra.mrb[0].mxu0 %v7206
        %v9666 = vpop.f32.mrb[0].mxu0
        %v9667 = vadd.f32 %v9506, %v9666
        %v9668 = vpop.f32.mrb[0].mxu0
        %v9669 = vpop.f32.mrb[0].mxu0
        %v9670 = vadd.f32 %v9509, %v9669
        %v9671 = vpop.f32.mrb[0].mxu0
        %9672 = vmatprep.mubr.bf16.mxu0 %v7271
        %9673 = vmatmul.mubr.bf16.gmra.mrb[0].mxu0 %v7207
        %v9674 = vpop.f32.mrb[0].mxu0
        %v9675 = vadd.f32 %v9514, %v9674
        %v9676 = vpop.f32.mrb[0].mxu0
        %v9677 = vpop.f32.mrb[0].mxu0
        %v9678 = vadd.f32 %v9517, %v9677
        %v9679 = vpop.f32.mrb[0].mxu0
        %9680 = vmatprep.mubr.bf16.mxu0 %v7272
        %9681 = vmatmul.mubr.bf16.gmra.mrb[0].mxu0 %v7208
        %v9682 = vpop.f32.mrb[0].mxu0
        %v9683 = vadd.f32 %v9522, %v9682
        %v9684 = vpop.f32.mrb[0].mxu0
        %v9685 = vpop.f32.mrb[0].mxu0
        %v9686 = vadd.f32 %v9525, %v9685
        %v9687 = vpop.f32.mrb[0].mxu0
        %9688 = vmatprep.mubr.bf16.mxu0 %v7273
        %9689 = vmatmul.mubr.bf16.gmra.mrb[0].mxu0 %v7209
        %v9690 = vpop.f32.mrb[0].mxu0
        %v9691 = vadd.f32 %v9530, %v9690
        %v9692 = vpop.f32.mrb[0].mxu0
        %v9693 = vpop.f32.mrb[0].mxu0
        %v9694 = vadd.f32 %v9533, %v9693
        %v9695 = vpop.f32.mrb[0].mxu0
        %9696 = vmatprep.mubr.bf16.mxu0 %v7274
        %9697 = vmatmul.mubr.bf16.gmra.mrb[0].mxu0 %v7210
        %v9698 = vpop.f32.mrb[0].mxu0
        %v9699 = vadd.f32 %v9538, %v9698
        %v9700 = vpop.f32.mrb[0].mxu0
        %v9701 = vpop.f32.mrb[0].mxu0
        %v9702 = vadd.f32 %v9541, %v9701
        %v9703 = vpop.f32.mrb[0].mxu0
        %9704 = vmatprep.mubr.bf16.mxu0 %v7275
        %9705 = vmatmul.mubr.bf16.gmra.mrb[0].mxu0 %v7211
        %v9706 = vpop.f32.mrb[0].mxu0
        %v9707 = vadd.f32 %v9546, %v9706
        %v9708 = vpop.f32.mrb[0].mxu0
        %v9709 = vpop.f32.mrb[0].mxu0
        %v9710 = vadd.f32 %v9549, %v9709
        %v9711 = vpop.f32.mrb[0].mxu0
        %9712 = vmatprep.mubr.bf16.mxu0 %v7276
        %9713 = vmatmul.mubr.bf16.gmra.mrb[0].mxu0 %v7212
        %v9714 = vpop.f32.mrb[0].mxu0
        %v9715 = vadd.f32 %v9554, %v9714
        %v9716 = vpop.f32.mrb[0].mxu0
        %v9717 = vpop.f32.mrb[0].mxu0
        %v9718 = vadd.f32 %v9557, %v9717
        %v9719 = vpop.f32.mrb[0].mxu0
        %9720 = vmatprep.mubr.bf16.mxu0 %v7277
        %9721 = vmatmul.mubr.bf16.gmra.mrb[0].mxu0 %v7213
        %v9722 = vpop.f32.mrb[0].mxu0
        %v9723 = vadd.f32 %v9562, %v9722
        %v9724 = vpop.f32.mrb[0].mxu0
        %v9725 = vpop.f32.mrb[0].mxu0
        %v9726 = vadd.f32 %v9565, %v9725
        %v9727 = vpop.f32.mrb[0].mxu0
        %9728 = vmatprep.mubr.bf16.mxu0 %v7278
        %9729 = vmatmul.mubr.bf16.gmra.mrb[0].mxu0 %v7214
        %v9730 = vpop.f32.mrb[0].mxu0
        %v9731 = vadd.f32 %v9570, %v9730
        %v9732 = vpop.f32.mrb[0].mxu0
        %v9733 = vpop.f32.mrb[0].mxu0
        %v9734 = vadd.f32 %v9573, %v9733
        %v9735 = vpop.f32.mrb[0].mxu0
        %9736 = vmatprep.mubr.bf16.mxu0 %v7279
        %9737 = vmatmul.mubr.bf16.gmra.mrb[0].mxu0 %v7215
        %v9738 = vpop.f32.mrb[0].mxu0
        %v9739 = vadd.f32 %v9578, %v9738
        %v9740 = vpop.f32.mrb[0].mxu0
        %v9741 = vpop.f32.mrb[0].mxu0
        %v9742 = vadd.f32 %v9581, %v9741
        %v9743 = vpop.f32.mrb[0].mxu0
        %9744 = vmatprep.mubr.bf16.mxu0 %v7280
        %9745 = vmatmul.mubr.bf16.gmra.mrb[0].mxu0 %v7216
        %v9746 = vpop.f32.mrb[0].mxu0
        %v9747 = vadd.f32 %v9586, %v9746
        %v9748 = vpop.f32.mrb[0].mxu0
        %v9749 = vpop.f32.mrb[0].mxu0
        %v9750 = vadd.f32 %v9589, %v9749
        %v9751 = vpop.f32.mrb[0].mxu0
        %9752 = vmatprep.mubr.bf16.mxu0 %v7281
        %9753 = vmatmul.mubr.bf16.gmra.mrb[0].mxu0 %v7217
        %v9754 = vpop.f32.mrb[0].mxu0
        %v9755 = vadd.f32 %v9594, %v9754
        %v9756 = vpop.f32.mrb[0].mxu0
        %v9757 = vpop.f32.mrb[0].mxu0
        %v9758 = vadd.f32 %v9597, %v9757
        %v9759 = vpop.f32.mrb[0].mxu0
        %9760 = vmatprep.mubr.bf16.mxu0 %v7282
        %9761 = vmatmul.mubr.bf16.gmra.mrb[0].mxu0 %v7218
        %v9762 = vpop.f32.mrb[0].mxu0
        %v9763 = vadd.f32 %v9602, %v9762
        %v9764 = vpop.f32.mrb[0].mxu0
        %v9765 = vpop.f32.mrb[0].mxu0
        %v9766 = vadd.f32 %v9605, %v9765
        %v9767 = vpop.f32.mrb[0].mxu0
        %9768 = vmatprep.mubr.bf16.mxu0 %v7283
        %9769 = vmatmul.mubr.bf16.gmra.mrb[0].mxu0 %v7219
        %v9770 = vpop.f32.mrb[0].mxu0
        %v9771 = vadd.f32 %v9610, %v9770
        %v9772 = vpop.f32.mrb[0].mxu0
        %v9773 = vpop.f32.mrb[0].mxu0
        %v9774 = vadd.f32 %v9613, %v9773
        %v9775 = vpop.f32.mrb[0].mxu0
        %9776 = vmatprep.mubr.bf16.mxu0 %v7284
        %9777 = vmatmul.mubr.bf16.gmra.mrb[0].mxu0 %v7220
        %v9778 = vpop.f32.mrb[0].mxu0
        %v9779 = vadd.f32 %v9618, %v9778
        %v9780 = vpop.f32.mrb[0].mxu0
        %v9781 = vpop.f32.mrb[0].mxu0
        %v9782 = vadd.f32 %v9621, %v9781
        %v9783 = vpop.f32.mrb[0].mxu0
        %9784 = vmatprep.mubr.bf16.mxu0 %v7319
        %9785 = vmatmul.mubr.bf16.gmra.mrb[0].mxu0 %v7315
        %v9786 = vpop.f32.mrb[0].mxu0
        %v9787 = vadd.f32 %v9626, %v9786
        %v9788 = vpop.f32.mrb[0].mxu0
        %v9789 = vpop.f32.mrb[0].mxu0
        %v9790 = vadd.f32 %v9629, %v9789
        %v9791 = vpop.f32.mrb[0].mxu0
        %9792 = vdwg.mxu0
        %9793 = vmatprep.subr.bf16.mxu0 0
        %9794 = vmatpush1.bf16.msra.mxu0 %v8668
        %9795 = vmatprep.subr.bf16.mxu0 0
        %9796 = vmatpush1.bf16.msra.mxu0 %v8669
        %9797 = vmatprep.subr.bf16.mxu0 0
        %9798 = vmatpush1.bf16.msra.mxu0 %v8670
        %9799 = vmatprep.subr.bf16.mxu0 0
        %9800 = vmatpush1.bf16.msra.mxu0 %v8671
        %9801 = vmatprep.subr.bf16.mxu0 0
        %9802 = vmatpush1.bf16.msra.mxu0 %v8672
        %9803 = vmatprep.subr.bf16.mxu0 0
        %9804 = vmatpush1.bf16.msra.mxu0 %v8673
        %9805 = vmatprep.subr.bf16.mxu0 0
        %9806 = vmatpush1.bf16.msra.mxu0 %v8674
        %9807 = vmatprep.subr.bf16.mxu0 0
        %9808 = vmatpush1.bf16.msra.mxu0 %v8675
        %9809 = vmatprep.subr.bf16.mxu0 0
        %9810 = vmatpush1.bf16.msra.mxu0 %v8676
        %9811 = vmatprep.subr.bf16.mxu0 0
        %9812 = vmatpush1.bf16.msra.mxu0 %v8677
        %9813 = vmatprep.subr.bf16.mxu0 0
        %9814 = vmatpush1.bf16.msra.mxu0 %v8678
        %9815 = vmatprep.subr.bf16.mxu0 0
        %9816 = vmatpush1.bf16.msra.mxu0 %v8679
        %9817 = vmatprep.subr.bf16.mxu0 0
        %9818 = vmatpush1.bf16.msra.mxu0 %v8680
        %9819 = vmatprep.subr.bf16.mxu0 0
        %9820 = vmatpush1.bf16.msra.mxu0 %v8681
        %9821 = vmatprep.subr.bf16.mxu0 0
        %9822 = vmatpush1.bf16.msra.mxu0 %v8682
        %9823 = vmatprep.subr.bf16.mxu0 0
        %9824 = vmatpush1.bf16.msra.mxu0 %v8683
        %9825 = vmatprep.mubr.bf16.mxu0 %v7079
        %9826 = vmatmul.mubr.bf16.gmra.mrb[0].mxu0 %v7015
        %v9827 = vpop.f32.mrb[0].mxu0
        %v9828 = vadd.f32 %v9667, %v9827
        %v9829 = vpop.f32.mrb[0].mxu0
        %v9830 = vpop.f32.mrb[0].mxu0
        %v9831 = vadd.f32 %v9670, %v9830
        %v9832 = vpop.f32.mrb[0].mxu0
        %9833 = vmatprep.mubr.bf16.mxu0 %v7080
        %9834 = vmatmul.mubr.bf16.gmra.mrb[0].mxu0 %v7016
        %v9835 = vpop.f32.mrb[0].mxu0
        %v9836 = vadd.f32 %v9675, %v9835
        %v9837 = vpop.f32.mrb[0].mxu0
        %v9838 = vpop.f32.mrb[0].mxu0
        %v9839 = vadd.f32 %v9678, %v9838
        %v9840 = vpop.f32.mrb[0].mxu0
        %9841 = vmatprep.mubr.bf16.mxu0 %v7081
        %9842 = vmatmul.mubr.bf16.gmra.mrb[0].mxu0 %v7017
        %v9843 = vpop.f32.mrb[0].mxu0
        %v9844 = vadd.f32 %v9683, %v9843
        %v9845 = vpop.f32.mrb[0].mxu0
        %v9846 = vpop.f32.mrb[0].mxu0
        %v9847 = vadd.f32 %v9686, %v9846
        %v9848 = vpop.f32.mrb[0].mxu0
        %9849 = vmatprep.mubr.bf16.mxu0 %v7082
        %9850 = vmatmul.mubr.bf16.gmra.mrb[0].mxu0 %v7018
        %v9851 = vpop.f32.mrb[0].mxu0
        %v9852 = vadd.f32 %v9691, %v9851
        %v9853 = vpop.f32.mrb[0].mxu0
        %v9854 = vpop.f32.mrb[0].mxu0
        %v9855 = vadd.f32 %v9694, %v9854
        %v9856 = vpop.f32.mrb[0].mxu0
        %9857 = vmatprep.mubr.bf16.mxu0 %v7083
        %9858 = vmatmul.mubr.bf16.gmra.mrb[0].mxu0 %v7019
        %v9859 = vpop.f32.mrb[0].mxu0
        %v9860 = vadd.f32 %v9699, %v9859
        %v9861 = vpop.f32.mrb[0].mxu0
        %v9862 = vpop.f32.mrb[0].mxu0
        %v9863 = vadd.f32 %v9702, %v9862
        %v9864 = vpop.f32.mrb[0].mxu0
        %9865 = vmatprep.mubr.bf16.mxu0 %v7084
        %9866 = vmatmul.mubr.bf16.gmra.mrb[0].mxu0 %v7020
        %v9867 = vpop.f32.mrb[0].mxu0
        %v9868 = vadd.f32 %v9707, %v9867
        %v9869 = vpop.f32.mrb[0].mxu0
        %v9870 = vpop.f32.mrb[0].mxu0
        %v9871 = vadd.f32 %v9710, %v9870
        %v9872 = vpop.f32.mrb[0].mxu0
        %9873 = vmatprep.mubr.bf16.mxu0 %v7085
        %9874 = vmatmul.mubr.bf16.gmra.mrb[0].mxu0 %v7021
        %v9875 = vpop.f32.mrb[0].mxu0
        %v9876 = vadd.f32 %v9715, %v9875
        %v9877 = vpop.f32.mrb[0].mxu0
        %v9878 = vpop.f32.mrb[0].mxu0
        %v9879 = vadd.f32 %v9718, %v9878
        %v9880 = vpop.f32.mrb[0].mxu0
        %9881 = vmatprep.mubr.bf16.mxu0 %v7086
        %9882 = vmatmul.mubr.bf16.gmra.mrb[0].mxu0 %v7022
        %v9883 = vpop.f32.mrb[0].mxu0
        %v9884 = vadd.f32 %v9723, %v9883
        %v9885 = vpop.f32.mrb[0].mxu0
        %v9886 = vpop.f32.mrb[0].mxu0
        %v9887 = vadd.f32 %v9726, %v9886
        %v9888 = vpop.f32.mrb[0].mxu0
        %9889 = vmatprep.mubr.bf16.mxu0 %v7087
        %9890 = vmatmul.mubr.bf16.gmra.mrb[0].mxu0 %v7023
        %v9891 = vpop.f32.mrb[0].mxu0
        %v9892 = vadd.f32 %v9731, %v9891
        %v9893 = vpop.f32.mrb[0].mxu0
        %v9894 = vpop.f32.mrb[0].mxu0
        %v9895 = vadd.f32 %v9734, %v9894
        %v9896 = vpop.f32.mrb[0].mxu0
        %9897 = vmatprep.mubr.bf16.mxu0 %v7088
        %9898 = vmatmul.mubr.bf16.gmra.mrb[0].mxu0 %v7024
        %v9899 = vpop.f32.mrb[0].mxu0
        %v9900 = vadd.f32 %v9739, %v9899
        %v9901 = vpop.f32.mrb[0].mxu0
        %v9902 = vpop.f32.mrb[0].mxu0
        %v9903 = vadd.f32 %v9742, %v9902
        %v9904 = vpop.f32.mrb[0].mxu0
        %9905 = vmatprep.mubr.bf16.mxu0 %v7089
        %9906 = vmatmul.mubr.bf16.gmra.mrb[0].mxu0 %v7025
        %v9907 = vpop.f32.mrb[0].mxu0
        %v9908 = vadd.f32 %v9747, %v9907
        %v9909 = vpop.f32.mrb[0].mxu0
        %v9910 = vpop.f32.mrb[0].mxu0
        %v9911 = vadd.f32 %v9750, %v9910
        %v9912 = vpop.f32.mrb[0].mxu0
        %9913 = vmatprep.mubr.bf16.mxu0 %v7090
        %9914 = vmatmul.mubr.bf16.gmra.mrb[0].mxu0 %v7026
        %v9915 = vpop.f32.mrb[0].mxu0
        %v9916 = vadd.f32 %v9755, %v9915
        %v9917 = vpop.f32.mrb[0].mxu0
        %v9918 = vpop.f32.mrb[0].mxu0
        %v9919 = vadd.f32 %v9758, %v9918
        %v9920 = vpop.f32.mrb[0].mxu0
        %9921 = vmatprep.mubr.bf16.mxu0 %v7091
        %9922 = vmatmul.mubr.bf16.gmra.mrb[0].mxu0 %v7027
        %v9923 = vpop.f32.mrb[0].mxu0
        %v9924 = vadd.f32 %v9763, %v9923
        %v9925 = vpop.f32.mrb[0].mxu0
        %v9926 = vpop.f32.mrb[0].mxu0
        %v9927 = vadd.f32 %v9766, %v9926
        %v9928 = vpop.f32.mrb[0].mxu0
        %9929 = vmatprep.mubr.bf16.mxu0 %v7092
        %9930 = vmatmul.mubr.bf16.gmra.mrb[0].mxu0 %v7028
        %v9931 = vpop.f32.mrb[0].mxu0
        %v9932 = vadd.f32 %v9771, %v9931
        %v9933 = vpop.f32.mrb[0].mxu0
        %v9934 = vpop.f32.mrb[0].mxu0
        %v9935 = vadd.f32 %v9774, %v9934
        %v9936 = vpop.f32.mrb[0].mxu0
        %9937 = vmatprep.mubr.bf16.mxu0 %v7307
        %9938 = vmatmul.mubr.bf16.gmra.mrb[0].mxu0 %v7303
        %v9939 = vpop.f32.mrb[0].mxu0
        %v9940 = vadd.f32 %v9779, %v9939
        %v9941 = vpop.f32.mrb[0].mxu0
        %v9942 = vpop.f32.mrb[0].mxu0
        %v9943 = vadd.f32 %v9782, %v9942
        %v9944 = vpop.f32.mrb[0].mxu0
        %9945 = vmatprep.mubr.bf16.mxu0 %v7327
        %9946 = vmatmul.mubr.bf16.gmra.mrb[0].mxu0 %v7323
        %v9947 = vpop.f32.mrb[0].mxu0
        %v9948 = vadd.f32 %v9787, %v9947
        %v9949 = vpop.f32.mrb[0].mxu0
        %v9950 = vpop.f32.mrb[0].mxu0
        %v9951 = vadd.f32 %v9790, %v9950
        %v9952 = vpop.f32.mrb[0].mxu0
        %9953 = vdwg.mxu0
        %9954 = vmatprep.subr.bf16.mxu0 0
        %9955 = vmatpush1.bf16.msra.mxu0 %v8684
        %9956 = vmatprep.subr.bf16.mxu0 0
        %9957 = vmatpush1.bf16.msra.mxu0 %v8685
        %9958 = vmatprep.subr.bf16.mxu0 0
        %9959 = vmatpush1.bf16.msra.mxu0 %v8686
        %9960 = vmatprep.subr.bf16.mxu0 0
        %9961 = vmatpush1.bf16.msra.mxu0 %v8687
        %9962 = vmatprep.subr.bf16.mxu0 0
        %9963 = vmatpush1.bf16.msra.mxu0 %v8688
        %9964 = vmatprep.subr.bf16.mxu0 0
        %9965 = vmatpush1.bf16.msra.mxu0 %v8689
        %9966 = vmatprep.subr.bf16.mxu0 0
        %9967 = vmatpush1.bf16.msra.mxu0 %v8690
        %9968 = vmatprep.subr.bf16.mxu0 0
        %9969 = vmatpush1.bf16.msra.mxu0 %v8691
        %9970 = vmatprep.subr.bf16.mxu0 0
        %9971 = vmatpush1.bf16.msra.mxu0 %v8692
        %9972 = vmatprep.subr.bf16.mxu0 0
        %9973 = vmatpush1.bf16.msra.mxu0 %v8693
        %9974 = vmatprep.subr.bf16.mxu0 0
        %9975 = vmatpush1.bf16.msra.mxu0 %v8694
        %9976 = vmatprep.subr.bf16.mxu0 0
        %9977 = vmatpush1.bf16.msra.mxu0 %v8695
        %9978 = vmatprep.subr.bf16.mxu0 0
        %9979 = vmatpush1.bf16.msra.mxu0 %v8696
        %9980 = vmatprep.subr.bf16.mxu0 0
        %9981 = vmatpush1.bf16.msra.mxu0 %v8697
        %9982 = vmatprep.subr.bf16.mxu0 0
        %9983 = vmatpush1.bf16.msra.mxu0 %v8698
        %9984 = vmatprep.subr.bf16.mxu0 0
        %9985 = vmatpush1.bf16.msra.mxu0 %v8699
        %9986 = vmatprep.mubr.bf16.mxu0 %v7207
        %9987 = vmatmul.mubr.bf16.gmra.mrb[0].mxu0 %v7143
        %v9988 = vpop.f32.mrb[0].mxu0
        %v9989 = vadd.f32 %v9828, %v9988
        %v9990 = vpop.f32.mrb[0].mxu0
        %v9991 = vpop.f32.mrb[0].mxu0
        %v9992 = vadd.f32 %v9831, %v9991
        %v9993 = vpop.f32.mrb[0].mxu0
        %9994 = vmatprep.mubr.bf16.mxu0 %v7208
        %9995 = vmatmul.mubr.bf16.gmra.mrb[0].mxu0 %v7144
        %v9996 = vpop.f32.mrb[0].mxu0
        %v9997 = vadd.f32 %v9836, %v9996
        %v9998 = vpop.f32.mrb[0].mxu0
        %v9999 = vpop.f32.mrb[0].mxu0
        %v10000 = vadd.f32 %v9839, %v9999
        %v10001 = vpop.f32.mrb[0].mxu0
        %10002 = vmatprep.mubr.bf16.mxu0 %v7209
        %10003 = vmatmul.mubr.bf16.gmra.mrb[0].mxu0 %v7145
        %v10004 = vpop.f32.mrb[0].mxu0
        %v10005 = vadd.f32 %v9844, %v10004
        %v10006 = vpop.f32.mrb[0].mxu0
        %v10007 = vpop.f32.mrb[0].mxu0
        %v10008 = vadd.f32 %v9847, %v10007
        %v10009 = vpop.f32.mrb[0].mxu0
        %10010 = vmatprep.mubr.bf16.mxu0 %v7210
        %10011 = vmatmul.mubr.bf16.gmra.mrb[0].mxu0 %v7146
        %v10012 = vpop.f32.mrb[0].mxu0
        %v10013 = vadd.f32 %v9852, %v10012
        %v10014 = vpop.f32.mrb[0].mxu0
        %v10015 = vpop.f32.mrb[0].mxu0
        %v10016 = vadd.f32 %v9855, %v10015
        %v10017 = vpop.f32.mrb[0].mxu0
        %10018 = vmatprep.mubr.bf16.mxu0 %v7211
        %10019 = vmatmul.mubr.bf16.gmra.mrb[0].mxu0 %v7147
        %v10020 = vpop.f32.mrb[0].mxu0
        %v10021 = vadd.f32 %v9860, %v10020
        %v10022 = vpop.f32.mrb[0].mxu0
        %v10023 = vpop.f32.mrb[0].mxu0
        %v10024 = vadd.f32 %v9863, %v10023
        %v10025 = vpop.f32.mrb[0].mxu0
        %10026 = vmatprep.mubr.bf16.mxu0 %v7212
        %10027 = vmatmul.mubr.bf16.gmra.mrb[0].mxu0 %v7148
        %v10028 = vpop.f32.mrb[0].mxu0
        %v10029 = vadd.f32 %v9868, %v10028
        %v10030 = vpop.f32.mrb[0].mxu0
        %v10031 = vpop.f32.mrb[0].mxu0
        %v10032 = vadd.f32 %v9871, %v10031
        %v10033 = vpop.f32.mrb[0].mxu0
        %10034 = vmatprep.mubr.bf16.mxu0 %v7213
        %10035 = vmatmul.mubr.bf16.gmra.mrb[0].mxu0 %v7149
        %v10036 = vpop.f32.mrb[0].mxu0
        %v10037 = vadd.f32 %v9876, %v10036
        %v10038 = vpop.f32.mrb[0].mxu0
        %v10039 = vpop.f32.mrb[0].mxu0
        %v10040 = vadd.f32 %v9879, %v10039
        %v10041 = vpop.f32.mrb[0].mxu0
        %10042 = vmatprep.mubr.bf16.mxu0 %v7214
        %10043 = vmatmul.mubr.bf16.gmra.mrb[0].mxu0 %v7150
        %v10044 = vpop.f32.mrb[0].mxu0
        %v10045 = vadd.f32 %v9884, %v10044
        %v10046 = vpop.f32.mrb[0].mxu0
        %v10047 = vpop.f32.mrb[0].mxu0
        %v10048 = vadd.f32 %v9887, %v10047
        %v10049 = vpop.f32.mrb[0].mxu0
        %10050 = vmatprep.mubr.bf16.mxu0 %v7215
        %10051 = vmatmul.mubr.bf16.gmra.mrb[0].mxu0 %v7151
        %v10052 = vpop.f32.mrb[0].mxu0
        %v10053 = vadd.f32 %v9892, %v10052
        %v10054 = vpop.f32.mrb[0].mxu0
        %v10055 = vpop.f32.mrb[0].mxu0
        %v10056 = vadd.f32 %v9895, %v10055
        %v10057 = vpop.f32.mrb[0].mxu0
        %10058 = vmatprep.mubr.bf16.mxu0 %v7216
        %10059 = vmatmul.mubr.bf16.gmra.mrb[0].mxu0 %v7152
        %v10060 = vpop.f32.mrb[0].mxu0
        %v10061 = vadd.f32 %v9900, %v10060
        %v10062 = vpop.f32.mrb[0].mxu0
        %v10063 = vpop.f32.mrb[0].mxu0
        %v10064 = vadd.f32 %v9903, %v10063
        %v10065 = vpop.f32.mrb[0].mxu0
        %10066 = vmatprep.mubr.bf16.mxu0 %v7217
        %10067 = vmatmul.mubr.bf16.gmra.mrb[0].mxu0 %v7153
        %v10068 = vpop.f32.mrb[0].mxu0
        %v10069 = vadd.f32 %v9908, %v10068
        %v10070 = vpop.f32.mrb[0].mxu0
        %v10071 = vpop.f32.mrb[0].mxu0
        %v10072 = vadd.f32 %v9911, %v10071
        %v10073 = vpop.f32.mrb[0].mxu0
        %10074 = vmatprep.mubr.bf16.mxu0 %v7218
        %10075 = vmatmul.mubr.bf16.gmra.mrb[0].mxu0 %v7154
        %v10076 = vpop.f32.mrb[0].mxu0
        %v10077 = vadd.f32 %v9916, %v10076
        %v10078 = vpop.f32.mrb[0].mxu0
        %v10079 = vpop.f32.mrb[0].mxu0
        %v10080 = vadd.f32 %v9919, %v10079
        %v10081 = vpop.f32.mrb[0].mxu0
        %10082 = vmatprep.mubr.bf16.mxu0 %v7219
        %10083 = vmatmul.mubr.bf16.gmra.mrb[0].mxu0 %v7155
        %v10084 = vpop.f32.mrb[0].mxu0
        %v10085 = vadd.f32 %v9924, %v10084
        %v10086 = vpop.f32.mrb[0].mxu0
        %v10087 = vpop.f32.mrb[0].mxu0
        %v10088 = vadd.f32 %v9927, %v10087
        %v10089 = vpop.f32.mrb[0].mxu0
        %10090 = vmatprep.mubr.bf16.mxu0 %v7220
        %10091 = vmatmul.mubr.bf16.gmra.mrb[0].mxu0 %v7156
        %v10092 = vpop.f32.mrb[0].mxu0
        %v10093 = vadd.f32 %v9932, %v10092
        %v10094 = vpop.f32.mrb[0].mxu0
        %v10095 = vpop.f32.mrb[0].mxu0
        %v10096 = vadd.f32 %v9935, %v10095
        %v10097 = vpop.f32.mrb[0].mxu0
        %10098 = vmatprep.mubr.bf16.mxu0 %v7315
        %10099 = vmatmul.mubr.bf16.gmra.mrb[0].mxu0 %v7311
        %v10100 = vpop.f32.mrb[0].mxu0
        %v10101 = vadd.f32 %v9940, %v10100
        %v10102 = vpop.f32.mrb[0].mxu0
        %v10103 = vpop.f32.mrb[0].mxu0
        %v10104 = vadd.f32 %v9943, %v10103
        %v10105 = vpop.f32.mrb[0].mxu0
        %10106 = vmatprep.mubr.bf16.mxu0 %v7335
        %10107 = vmatmul.mubr.bf16.gmra.mrb[0].mxu0 %v7331
        %v10108 = vpop.f32.mrb[0].mxu0
        %v10109 = vadd.f32 %v9948, %v10108
        %v10110 = vpop.f32.mrb[0].mxu0
        %v10111 = vpop.f32.mrb[0].mxu0
        %v10112 = vadd.f32 %v9951, %v10111
        %v10113 = vpop.f32.mrb[0].mxu0
        %10114 = vdwg.mxu0
        %10115 = vmatprep.subr.bf16.mxu0 0
        %10116 = vmatpush1.bf16.msra.mxu0 %v8700
        %10117 = vmatprep.subr.bf16.mxu0 0
        %10118 = vmatpush1.bf16.msra.mxu0 %v8701
        %10119 = vmatprep.subr.bf16.mxu0 0
        %10120 = vmatpush1.bf16.msra.mxu0 %v8702
        %10121 = vmatprep.subr.bf16.mxu0 0
        %10122 = vmatpush1.bf16.msra.mxu0 %v8703
        %10123 = vmatprep.subr.bf16.mxu0 0
        %10124 = vmatpush1.bf16.msra.mxu0 %v8704
        %10125 = vmatprep.subr.bf16.mxu0 0
        %10126 = vmatpush1.bf16.msra.mxu0 %v8705
        %10127 = vmatprep.subr.bf16.mxu0 0
        %10128 = vmatpush1.bf16.msra.mxu0 %v8706
        %10129 = vmatprep.subr.bf16.mxu0 0
        %10130 = vmatpush1.bf16.msra.mxu0 %v8707
        %10131 = vmatprep.subr.bf16.mxu0 0
        %10132 = vmatpush1.bf16.msra.mxu0 %v8708
        %10133 = vmatprep.subr.bf16.mxu0 0
        %10134 = vmatpush1.bf16.msra.mxu0 %v8709
        %10135 = vmatprep.subr.bf16.mxu0 0
        %10136 = vmatpush1.bf16.msra.mxu0 %v8710
        %10137 = vmatprep.subr.bf16.mxu0 0
        %10138 = vmatpush1.bf16.msra.mxu0 %v8711
        %10139 = vmatprep.subr.bf16.mxu0 0
        %10140 = vmatpush1.bf16.msra.mxu0 %v8712
        %10141 = vmatprep.subr.bf16.mxu0 0
        %10142 = vmatpush1.bf16.msra.mxu0 %v8713
        %10143 = vmatprep.subr.bf16.mxu0 0
        %10144 = vmatpush1.bf16.msra.mxu0 %v8714
        %10145 = vmatprep.subr.bf16.mxu0 0
        %10146 = vmatpush1.bf16.msra.mxu0 %v8715
        %10147 = vmatprep.mubr.bf16.mxu0 %v7016
        %10148 = vmatmul.mubr.bf16.gmra.mrb[0].mxu0 %v7271
        %v10149 = vpop.f32.mrb[0].mxu0
        %v10150 = vadd.f32 %v9989, %v10149
        %v10151 = vpop.f32.mrb[0].mxu0
        %v10152 = vpop.f32.mrb[0].mxu0
        %v10153 = vadd.f32 %v9992, %v10152
        %v10154 = vpop.f32.mrb[0].mxu0
        %10155 = vmatprep.mubr.bf16.mxu0 %v7017
        %10156 = vmatmul.mubr.bf16.gmra.mrb[0].mxu0 %v7272
        %v10157 = vpop.f32.mrb[0].mxu0
        %v10158 = vadd.f32 %v9997, %v10157
        %v10159 = vpop.f32.mrb[0].mxu0
        %v10160 = vpop.f32.mrb[0].mxu0
        %v10161 = vadd.f32 %v10000, %v10160
        %v10162 = vpop.f32.mrb[0].mxu0
        %10163 = vmatprep.mubr.bf16.mxu0 %v7018
        %10164 = vmatmul.mubr.bf16.gmra.mrb[0].mxu0 %v7273
        %v10165 = vpop.f32.mrb[0].mxu0
        %v10166 = vadd.f32 %v10005, %v10165
        %v10167 = vpop.f32.mrb[0].mxu0
        %v10168 = vpop.f32.mrb[0].mxu0
        %v10169 = vadd.f32 %v10008, %v10168
        %v10170 = vpop.f32.mrb[0].mxu0
        %10171 = vmatprep.mubr.bf16.mxu0 %v7019
        %10172 = vmatmul.mubr.bf16.gmra.mrb[0].mxu0 %v7274
        %v10173 = vpop.f32.mrb[0].mxu0
        %v10174 = vadd.f32 %v10013, %v10173
        %v10175 = vpop.f32.mrb[0].mxu0
        %v10176 = vpop.f32.mrb[0].mxu0
        %v10177 = vadd.f32 %v10016, %v10176
        %v10178 = vpop.f32.mrb[0].mxu0
        %10179 = vmatprep.mubr.bf16.mxu0 %v7020
        %10180 = vmatmul.mubr.bf16.gmra.mrb[0].mxu0 %v7275
        %v10181 = vpop.f32.mrb[0].mxu0
        %v10182 = vadd.f32 %v10021, %v10181
        %v10183 = vpop.f32.mrb[0].mxu0
        %v10184 = vpop.f32.mrb[0].mxu0
        %v10185 = vadd.f32 %v10024, %v10184
        %v10186 = vpop.f32.mrb[0].mxu0
        %10187 = vmatprep.mubr.bf16.mxu0 %v7021
        %10188 = vmatmul.mubr.bf16.gmra.mrb[0].mxu0 %v7276
        %v10189 = vpop.f32.mrb[0].mxu0
        %v10190 = vadd.f32 %v10029, %v10189
        %v10191 = vpop.f32.mrb[0].mxu0
        %v10192 = vpop.f32.mrb[0].mxu0
        %v10193 = vadd.f32 %v10032, %v10192
        %v10194 = vpop.f32.mrb[0].mxu0
        %10195 = vmatprep.mubr.bf16.mxu0 %v7022
        %10196 = vmatmul.mubr.bf16.gmra.mrb[0].mxu0 %v7277
        %v10197 = vpop.f32.mrb[0].mxu0
        %v10198 = vadd.f32 %v10037, %v10197
        %v10199 = vpop.f32.mrb[0].mxu0
        %v10200 = vpop.f32.mrb[0].mxu0
        %v10201 = vadd.f32 %v10040, %v10200
        %v10202 = vpop.f32.mrb[0].mxu0
        %10203 = vmatprep.mubr.bf16.mxu0 %v7023
        %10204 = vmatmul.mubr.bf16.gmra.mrb[0].mxu0 %v7278
        %v10205 = vpop.f32.mrb[0].mxu0
        %v10206 = vadd.f32 %v10045, %v10205
        %v10207 = vpop.f32.mrb[0].mxu0
        %v10208 = vpop.f32.mrb[0].mxu0
        %v10209 = vadd.f32 %v10048, %v10208
        %v10210 = vpop.f32.mrb[0].mxu0
        %10211 = vmatprep.mubr.bf16.mxu0 %v7024
        %10212 = vmatmul.mubr.bf16.gmra.mrb[0].mxu0 %v7279
        %v10213 = vpop.f32.mrb[0].mxu0
        %v10214 = vadd.f32 %v10053, %v10213
        %v10215 = vpop.f32.mrb[0].mxu0
        %v10216 = vpop.f32.mrb[0].mxu0
        %v10217 = vadd.f32 %v10056, %v10216
        %v10218 = vpop.f32.mrb[0].mxu0
        %10219 = vmatprep.mubr.bf16.mxu0 %v7025
        %10220 = vmatmul.mubr.bf16.gmra.mrb[0].mxu0 %v7280
        %v10221 = vpop.f32.mrb[0].mxu0
        %v10222 = vadd.f32 %v10061, %v10221
        %v10223 = vpop.f32.mrb[0].mxu0
        %v10224 = vpop.f32.mrb[0].mxu0
        %v10225 = vadd.f32 %v10064, %v10224
        %v10226 = vpop.f32.mrb[0].mxu0
        %10227 = vmatprep.mubr.bf16.mxu0 %v7026
        %10228 = vmatmul.mubr.bf16.gmra.mrb[0].mxu0 %v7281
        %v10229 = vpop.f32.mrb[0].mxu0
        %v10230 = vadd.f32 %v10069, %v10229
        %v10231 = vpop.f32.mrb[0].mxu0
        %v10232 = vpop.f32.mrb[0].mxu0
        %v10233 = vadd.f32 %v10072, %v10232
        %v10234 = vpop.f32.mrb[0].mxu0
        %10235 = vmatprep.mubr.bf16.mxu0 %v7027
        %10236 = vmatmul.mubr.bf16.gmra.mrb[0].mxu0 %v7282
        %v10237 = vpop.f32.mrb[0].mxu0
        %v10238 = vadd.f32 %v10077, %v10237
        %v10239 = vpop.f32.mrb[0].mxu0
        %v10240 = vpop.f32.mrb[0].mxu0
        %v10241 = vadd.f32 %v10080, %v10240
        %v10242 = vpop.f32.mrb[0].mxu0
        %10243 = vmatprep.mubr.bf16.mxu0 %v7028
        %10244 = vmatmul.mubr.bf16.gmra.mrb[0].mxu0 %v7283
        %v10245 = vpop.f32.mrb[0].mxu0
        %v10246 = vadd.f32 %v10085, %v10245
        %v10247 = vpop.f32.mrb[0].mxu0
        %v10248 = vpop.f32.mrb[0].mxu0
        %v10249 = vadd.f32 %v10088, %v10248
        %v10250 = vpop.f32.mrb[0].mxu0
        %10251 = vmatprep.mubr.bf16.mxu0 %v7303
        %10252 = vmatmul.mubr.bf16.gmra.mrb[0].mxu0 %v7284
        %v10253 = vpop.f32.mrb[0].mxu0
        %v10254 = vadd.f32 %v10093, %v10253
        %v10255 = vpop.f32.mrb[0].mxu0
        %v10256 = vpop.f32.mrb[0].mxu0
        %v10257 = vadd.f32 %v10096, %v10256
        %v10258 = vpop.f32.mrb[0].mxu0
        %10259 = vmatprep.mubr.bf16.mxu0 %v7323
        %10260 = vmatmul.mubr.bf16.gmra.mrb[0].mxu0 %v7319
        %v10261 = vpop.f32.mrb[0].mxu0
        %v10262 = vadd.f32 %v10101, %v10261
        %v10263 = vpop.f32.mrb[0].mxu0
        %v10264 = vpop.f32.mrb[0].mxu0
        %v10265 = vadd.f32 %v10104, %v10264
        %v10266 = vpop.f32.mrb[0].mxu0
        %10267 = vmatprep.mubr.bf16.mxu0 %v7343
        %10268 = vmatmul.mubr.bf16.gmra.mrb[0].mxu0 %v7339
        %v10269 = vpop.f32.mrb[0].mxu0
        %v10270 = vadd.f32 %v10109, %v10269
        %v10271 = vpop.f32.mrb[0].mxu0
        %v10272 = vpop.f32.mrb[0].mxu0
        %v10273 = vadd.f32 %v10112, %v10272
        %v10274 = vpop.f32.mrb[0].mxu0
        %10275 = vdwg.mxu0
        %10276 = vmatprep.subr.bf16.mxu0 0
        %10277 = vmatpush1.bf16.msra.mxu0 %v8716
        %10278 = vmatprep.subr.bf16.mxu0 0
        %10279 = vmatpush1.bf16.msra.mxu0 %v8717
        %10280 = vmatprep.subr.bf16.mxu0 0
        %10281 = vmatpush1.bf16.msra.mxu0 %v8718
        %10282 = vmatprep.subr.bf16.mxu0 0
        %10283 = vmatpush1.bf16.msra.mxu0 %v8719
        %10284 = vmatprep.subr.bf16.mxu0 0
        %10285 = vmatpush1.bf16.msra.mxu0 %v8720
        %10286 = vmatprep.subr.bf16.mxu0 0
        %10287 = vmatpush1.bf16.msra.mxu0 %v8721
        %10288 = vmatprep.subr.bf16.mxu0 0
        %10289 = vmatpush1.bf16.msra.mxu0 %v8722
        %10290 = vmatprep.subr.bf16.mxu0 0
        %10291 = vmatpush1.bf16.msra.mxu0 %v8723
        %10292 = vmatprep.subr.bf16.mxu0 0
        %10293 = vmatpush1.bf16.msra.mxu0 %v8724
        %10294 = vmatprep.subr.bf16.mxu0 0
        %10295 = vmatpush1.bf16.msra.mxu0 %v8725
        %10296 = vmatprep.subr.bf16.mxu0 0
        %10297 = vmatpush1.bf16.msra.mxu0 %v8726
        %10298 = vmatprep.subr.bf16.mxu0 0
        %10299 = vmatpush1.bf16.msra.mxu0 %v8727
        %10300 = vmatprep.subr.bf16.mxu0 0
        %10301 = vmatpush1.bf16.msra.mxu0 %v8728
        %10302 = vmatprep.subr.bf16.mxu0 0
        %10303 = vmatpush1.bf16.msra.mxu0 %v8729
        %10304 = vmatprep.subr.bf16.mxu0 0
        %10305 = vmatpush1.bf16.msra.mxu0 %v8730
        %10306 = vmatprep.subr.bf16.mxu0 0
        %10307 = vmatpush1.bf16.msra.mxu0 %v8731
        %10308 = vmatprep.mubr.bf16.mxu0 %v7144
        %10309 = vmatmul.mubr.bf16.gmra.mrb[0].mxu0 %v7080
        %v10310 = vpop.f32.mrb[0].mxu0
        %v10311 = vadd.f32 %v10150, %v10310
        %v10312 = vpop.f32.mrb[0].mxu0
        %v10313 = vpop.f32.mrb[0].mxu0
        %v10314 = vadd.f32 %v10153, %v10313
        %v10315 = vpop.f32.mrb[0].mxu0
        %10316 = vmatprep.mubr.bf16.mxu0 %v7145
        %10317 = vmatmul.mubr.bf16.gmra.mrb[0].mxu0 %v7081
        %v10318 = vpop.f32.mrb[0].mxu0
        %v10319 = vadd.f32 %v10158, %v10318
        %v10320 = vpop.f32.mrb[0].mxu0
        %v10321 = vpop.f32.mrb[0].mxu0
        %v10322 = vadd.f32 %v10161, %v10321
        %v10323 = vpop.f32.mrb[0].mxu0
        %10324 = vmatprep.mubr.bf16.mxu0 %v7146
        %10325 = vmatmul.mubr.bf16.gmra.mrb[0].mxu0 %v7082
        %v10326 = vpop.f32.mrb[0].mxu0
        %v10327 = vadd.f32 %v10166, %v10326
        %v10328 = vpop.f32.mrb[0].mxu0
        %v10329 = vpop.f32.mrb[0].mxu0
        %v10330 = vadd.f32 %v10169, %v10329
        %v10331 = vpop.f32.mrb[0].mxu0
        %10332 = vmatprep.mubr.bf16.mxu0 %v7147
        %10333 = vmatmul.mubr.bf16.gmra.mrb[0].mxu0 %v7083
        %v10334 = vpop.f32.mrb[0].mxu0
        %v10335 = vadd.f32 %v10174, %v10334
        %v10336 = vpop.f32.mrb[0].mxu0
        %v10337 = vpop.f32.mrb[0].mxu0
        %v10338 = vadd.f32 %v10177, %v10337
        %v10339 = vpop.f32.mrb[0].mxu0
        %10340 = vmatprep.mubr.bf16.mxu0 %v7148
        %10341 = vmatmul.mubr.bf16.gmra.mrb[0].mxu0 %v7084
        %v10342 = vpop.f32.mrb[0].mxu0
        %v10343 = vadd.f32 %v10182, %v10342
        %v10344 = vpop.f32.mrb[0].mxu0
        %v10345 = vpop.f32.mrb[0].mxu0
        %v10346 = vadd.f32 %v10185, %v10345
        %v10347 = vpop.f32.mrb[0].mxu0
        %10348 = vmatprep.mubr.bf16.mxu0 %v7149
        %10349 = vmatmul.mubr.bf16.gmra.mrb[0].mxu0 %v7085
        %v10350 = vpop.f32.mrb[0].mxu0
        %v10351 = vadd.f32 %v10190, %v10350
        %v10352 = vpop.f32.mrb[0].mxu0
        %v10353 = vpop.f32.mrb[0].mxu0
        %v10354 = vadd.f32 %v10193, %v10353
        %v10355 = vpop.f32.mrb[0].mxu0
        %10356 = vmatprep.mubr.bf16.mxu0 %v7150
        %10357 = vmatmul.mubr.bf16.gmra.mrb[0].mxu0 %v7086
        %v10358 = vpop.f32.mrb[0].mxu0
        %v10359 = vadd.f32 %v10198, %v10358
        %v10360 = vpop.f32.mrb[0].mxu0
        %v10361 = vpop.f32.mrb[0].mxu0
        %v10362 = vadd.f32 %v10201, %v10361
        %v10363 = vpop.f32.mrb[0].mxu0
        %10364 = vmatprep.mubr.bf16.mxu0 %v7151
        %10365 = vmatmul.mubr.bf16.gmra.mrb[0].mxu0 %v7087
        %v10366 = vpop.f32.mrb[0].mxu0
        %v10367 = vadd.f32 %v10206, %v10366
        %v10368 = vpop.f32.mrb[0].mxu0
        %v10369 = vpop.f32.mrb[0].mxu0
        %v10370 = vadd.f32 %v10209, %v10369
        %v10371 = vpop.f32.mrb[0].mxu0
        %10372 = vmatprep.mubr.bf16.mxu0 %v7152
        %10373 = vmatmul.mubr.bf16.gmra.mrb[0].mxu0 %v7088
        %v10374 = vpop.f32.mrb[0].mxu0
        %v10375 = vadd.f32 %v10214, %v10374
        %v10376 = vpop.f32.mrb[0].mxu0
        %v10377 = vpop.f32.mrb[0].mxu0
        %v10378 = vadd.f32 %v10217, %v10377
        %v10379 = vpop.f32.mrb[0].mxu0
        %10380 = vmatprep.mubr.bf16.mxu0 %v7153
        %10381 = vmatmul.mubr.bf16.gmra.mrb[0].mxu0 %v7089
        %v10382 = vpop.f32.mrb[0].mxu0
        %v10383 = vadd.f32 %v10222, %v10382
        %v10384 = vpop.f32.mrb[0].mxu0
        %v10385 = vpop.f32.mrb[0].mxu0
        %v10386 = vadd.f32 %v10225, %v10385
        %v10387 = vpop.f32.mrb[0].mxu0
        %10388 = vmatprep.mubr.bf16.mxu0 %v7154
        %10389 = vmatmul.mubr.bf16.gmra.mrb[0].mxu0 %v7090
        %v10390 = vpop.f32.mrb[0].mxu0
        %v10391 = vadd.f32 %v10230, %v10390
        %v10392 = vpop.f32.mrb[0].mxu0
        %v10393 = vpop.f32.mrb[0].mxu0
        %v10394 = vadd.f32 %v10233, %v10393
        %v10395 = vpop.f32.mrb[0].mxu0
        %10396 = vmatprep.mubr.bf16.mxu0 %v7155
        %10397 = vmatmul.mubr.bf16.gmra.mrb[0].mxu0 %v7091
        %v10398 = vpop.f32.mrb[0].mxu0
        %v10399 = vadd.f32 %v10238, %v10398
        %v10400 = vpop.f32.mrb[0].mxu0
        %v10401 = vpop.f32.mrb[0].mxu0
        %v10402 = vadd.f32 %v10241, %v10401
        %v10403 = vpop.f32.mrb[0].mxu0
        %10404 = vmatprep.mubr.bf16.mxu0 %v7156
        %10405 = vmatmul.mubr.bf16.gmra.mrb[0].mxu0 %v7092
        %v10406 = vpop.f32.mrb[0].mxu0
        %v10407 = vadd.f32 %v10246, %v10406
        %v10408 = vpop.f32.mrb[0].mxu0
        %v10409 = vpop.f32.mrb[0].mxu0
        %v10410 = vadd.f32 %v10249, %v10409
        %v10411 = vpop.f32.mrb[0].mxu0
        %10412 = vmatprep.mubr.bf16.mxu0 %v7311
        %10413 = vmatmul.mubr.bf16.gmra.mrb[0].mxu0 %v7307
        %v10414 = vpop.f32.mrb[0].mxu0
        %v10415 = vadd.f32 %v10254, %v10414
        %v10416 = vpop.f32.mrb[0].mxu0
        %v10417 = vpop.f32.mrb[0].mxu0
        %v10418 = vadd.f32 %v10257, %v10417
        %v10419 = vpop.f32.mrb[0].mxu0
        %10420 = vmatprep.mubr.bf16.mxu0 %v7331
        %10421 = vmatmul.mubr.bf16.gmra.mrb[0].mxu0 %v7327
        %v10422 = vpop.f32.mrb[0].mxu0
        %v10423 = vadd.f32 %v10262, %v10422
        %v10424 = vpop.f32.mrb[0].mxu0
        %v10425 = vpop.f32.mrb[0].mxu0
        %v10426 = vadd.f32 %v10265, %v10425
        %v10427 = vpop.f32.mrb[0].mxu0
        %10428 = vmatprep.mubr.bf16.mxu0 %v7351
        %10429 = vmatmul.mubr.bf16.gmra.mrb[0].mxu0 %v7347
        %v10430 = vpop.f32.mrb[0].mxu0
        %v10431 = vadd.f32 %v10270, %v10430
        %v10432 = vpop.f32.mrb[0].mxu0
        %v10433 = vpop.f32.mrb[0].mxu0
        %v10434 = vadd.f32 %v10273, %v10433
        %v10435 = vpop.f32.mrb[0].mxu0
        %10436 = vdwg.mxu0
        %10437 = vmatprep.subr.bf16.mxu0 0
        %10438 = vmatpush1.bf16.msra.mxu0 %v8732
        %10439 = vmatprep.subr.bf16.mxu0 0
        %10440 = vmatpush1.bf16.msra.mxu0 %v8733
        %10441 = vmatprep.subr.bf16.mxu0 0
        %10442 = vmatpush1.bf16.msra.mxu0 %v8734
        %10443 = vmatprep.subr.bf16.mxu0 0
        %10444 = vmatpush1.bf16.msra.mxu0 %v8735
        %10445 = vmatprep.subr.bf16.mxu0 0
        %10446 = vmatpush1.bf16.msra.mxu0 %v8736
        %10447 = vmatprep.subr.bf16.mxu0 0
        %10448 = vmatpush1.bf16.msra.mxu0 %v8737
        %10449 = vmatprep.subr.bf16.mxu0 0
        %10450 = vmatpush1.bf16.msra.mxu0 %v8738
        %10451 = vmatprep.subr.bf16.mxu0 0
        %10452 = vmatpush1.bf16.msra.mxu0 %v8739
        %10453 = vmatprep.subr.bf16.mxu0 0
        %10454 = vmatpush1.bf16.msra.mxu0 %v8740
        %10455 = vmatprep.subr.bf16.mxu0 0
        %10456 = vmatpush1.bf16.msra.mxu0 %v8741
        %10457 = vmatprep.subr.bf16.mxu0 0
        %10458 = vmatpush1.bf16.msra.mxu0 %v8742
        %10459 = vmatprep.subr.bf16.mxu0 0
        %10460 = vmatpush1.bf16.msra.mxu0 %v8743
        %10461 = vmatprep.subr.bf16.mxu0 0
        %10462 = vmatpush1.bf16.msra.mxu0 %v8744
        %10463 = vmatprep.subr.bf16.mxu0 0
        %10464 = vmatpush1.bf16.msra.mxu0 %v8745
        %10465 = vmatprep.subr.bf16.mxu0 0
        %10466 = vmatpush1.bf16.msra.mxu0 %v8746
        %10467 = vmatprep.subr.bf16.mxu0 0
        %10468 = vmatpush1.bf16.msra.mxu0 %v8747
        %10469 = vmatprep.mubr.bf16.mxu0 %v7272
        %10470 = vmatmul.mubr.bf16.gmra.mrb[0].mxu0 %v7208
        %v10471 = vpop.f32.mrb[0].mxu0
        %v10472 = vadd.f32 %v10311, %v10471
        %v10473 = vpop.f32.mrb[0].mxu0
        %v10474 = vpop.f32.mrb[0].mxu0
        %v10475 = vadd.f32 %v10314, %v10474
        %v10476 = vpop.f32.mrb[0].mxu0
        %10477 = vmatprep.mubr.bf16.mxu0 %v7273
        %10478 = vmatmul.mubr.bf16.gmra.mrb[0].mxu0 %v7209
        %v10479 = vpop.f32.mrb[0].mxu0
        %v10480 = vadd.f32 %v10319, %v10479
        %v10481 = vpop.f32.mrb[0].mxu0
        %v10482 = vpop.f32.mrb[0].mxu0
        %v10483 = vadd.f32 %v10322, %v10482
        %v10484 = vpop.f32.mrb[0].mxu0
        %10485 = vmatprep.mubr.bf16.mxu0 %v7274
        %10486 = vmatmul.mubr.bf16.gmra.mrb[0].mxu0 %v7210
        %v10487 = vpop.f32.mrb[0].mxu0
        %v10488 = vadd.f32 %v10327, %v10487
        %v10489 = vpop.f32.mrb[0].mxu0
        %v10490 = vpop.f32.mrb[0].mxu0
        %v10491 = vadd.f32 %v10330, %v10490
        %v10492 = vpop.f32.mrb[0].mxu0
        %10493 = vmatprep.mubr.bf16.mxu0 %v7275
        %10494 = vmatmul.mubr.bf16.gmra.mrb[0].mxu0 %v7211
        %v10495 = vpop.f32.mrb[0].mxu0
        %v10496 = vadd.f32 %v10335, %v10495
        %v10497 = vpop.f32.mrb[0].mxu0
        %v10498 = vpop.f32.mrb[0].mxu0
        %v10499 = vadd.f32 %v10338, %v10498
        %v10500 = vpop.f32.mrb[0].mxu0
        %10501 = vmatprep.mubr.bf16.mxu0 %v7276
        %10502 = vmatmul.mubr.bf16.gmra.mrb[0].mxu0 %v7212
        %v10503 = vpop.f32.mrb[0].mxu0
        %v10504 = vadd.f32 %v10343, %v10503
        %v10505 = vpop.f32.mrb[0].mxu0
        %v10506 = vpop.f32.mrb[0].mxu0
        %v10507 = vadd.f32 %v10346, %v10506
        %v10508 = vpop.f32.mrb[0].mxu0
        %10509 = vmatprep.mubr.bf16.mxu0 %v7277
        %10510 = vmatmul.mubr.bf16.gmra.mrb[0].mxu0 %v7213
        %v10511 = vpop.f32.mrb[0].mxu0
        %v10512 = vadd.f32 %v10351, %v10511
        %v10513 = vpop.f32.mrb[0].mxu0
        %v10514 = vpop.f32.mrb[0].mxu0
        %v10515 = vadd.f32 %v10354, %v10514
        %v10516 = vpop.f32.mrb[0].mxu0
        %10517 = vmatprep.mubr.bf16.mxu0 %v7278
        %10518 = vmatmul.mubr.bf16.gmra.mrb[0].mxu0 %v7214
        %v10519 = vpop.f32.mrb[0].mxu0
        %v10520 = vadd.f32 %v10359, %v10519
        %v10521 = vpop.f32.mrb[0].mxu0
        %v10522 = vpop.f32.mrb[0].mxu0
        %v10523 = vadd.f32 %v10362, %v10522
        %v10524 = vpop.f32.mrb[0].mxu0
        %10525 = vmatprep.mubr.bf16.mxu0 %v7279
        %10526 = vmatmul.mubr.bf16.gmra.mrb[0].mxu0 %v7215
        %v10527 = vpop.f32.mrb[0].mxu0
        %v10528 = vadd.f32 %v10367, %v10527
        %v10529 = vpop.f32.mrb[0].mxu0
        %v10530 = vpop.f32.mrb[0].mxu0
        %v10531 = vadd.f32 %v10370, %v10530
        %v10532 = vpop.f32.mrb[0].mxu0
        %10533 = vmatprep.mubr.bf16.mxu0 %v7280
        %10534 = vmatmul.mubr.bf16.gmra.mrb[0].mxu0 %v7216
        %v10535 = vpop.f32.mrb[0].mxu0
        %v10536 = vadd.f32 %v10375, %v10535
        %v10537 = vpop.f32.mrb[0].mxu0
        %v10538 = vpop.f32.mrb[0].mxu0
        %v10539 = vadd.f32 %v10378, %v10538
        %v10540 = vpop.f32.mrb[0].mxu0
        %10541 = vmatprep.mubr.bf16.mxu0 %v7281
        %10542 = vmatmul.mubr.bf16.gmra.mrb[0].mxu0 %v7217
        %v10543 = vpop.f32.mrb[0].mxu0
        %v10544 = vadd.f32 %v10383, %v10543
        %v10545 = vpop.f32.mrb[0].mxu0
        %v10546 = vpop.f32.mrb[0].mxu0
        %v10547 = vadd.f32 %v10386, %v10546
        %v10548 = vpop.f32.mrb[0].mxu0
        %10549 = vmatprep.mubr.bf16.mxu0 %v7282
        %10550 = vmatmul.mubr.bf16.gmra.mrb[0].mxu0 %v7218
        %v10551 = vpop.f32.mrb[0].mxu0
        %v10552 = vadd.f32 %v10391, %v10551
        %v10553 = vpop.f32.mrb[0].mxu0
        %v10554 = vpop.f32.mrb[0].mxu0
        %v10555 = vadd.f32 %v10394, %v10554
        %v10556 = vpop.f32.mrb[0].mxu0
        %10557 = vmatprep.mubr.bf16.mxu0 %v7283
        %10558 = vmatmul.mubr.bf16.gmra.mrb[0].mxu0 %v7219
        %v10559 = vpop.f32.mrb[0].mxu0
        %v10560 = vadd.f32 %v10399, %v10559
        %v10561 = vpop.f32.mrb[0].mxu0
        %v10562 = vpop.f32.mrb[0].mxu0
        %v10563 = vadd.f32 %v10402, %v10562
        %v10564 = vpop.f32.mrb[0].mxu0
        %10565 = vmatprep.mubr.bf16.mxu0 %v7284
        %10566 = vmatmul.mubr.bf16.gmra.mrb[0].mxu0 %v7220
        %v10567 = vpop.f32.mrb[0].mxu0
        %v10568 = vadd.f32 %v10407, %v10567
        %v10569 = vpop.f32.mrb[0].mxu0
        %v10570 = vpop.f32.mrb[0].mxu0
        %v10571 = vadd.f32 %v10410, %v10570
        %v10572 = vpop.f32.mrb[0].mxu0
        %10573 = vmatprep.mubr.bf16.mxu0 %v7319
        %10574 = vmatmul.mubr.bf16.gmra.mrb[0].mxu0 %v7315
        %v10575 = vpop.f32.mrb[0].mxu0
        %v10576 = vadd.f32 %v10415, %v10575
        %v10577 = vpop.f32.mrb[0].mxu0
        %v10578 = vpop.f32.mrb[0].mxu0
        %v10579 = vadd.f32 %v10418, %v10578
        %v10580 = vpop.f32.mrb[0].mxu0
        %10581 = vmatprep.mubr.bf16.mxu0 %v7339
        %10582 = vmatmul.mubr.bf16.gmra.mrb[0].mxu0 %v7335
        %v10583 = vpop.f32.mrb[0].mxu0
        %v10584 = vadd.f32 %v10423, %v10583
        %v10585 = vpop.f32.mrb[0].mxu0
        %v10586 = vpop.f32.mrb[0].mxu0
        %v10587 = vadd.f32 %v10426, %v10586
        %v10588 = vpop.f32.mrb[0].mxu0
        %10589 = vmatprep.mubr.bf16.mxu0 %v7359
        %10590 = vmatmul.mubr.bf16.gmra.mrb[0].mxu0 %v7355
        %v10591 = vpop.f32.mrb[0].mxu0
        %v10592 = vadd.f32 %v10431, %v10591
        %v10593 = vpop.f32.mrb[0].mxu0
        %v10594 = vpop.f32.mrb[0].mxu0
        %v10595 = vadd.f32 %v10434, %v10594
        %v10596 = vpop.f32.mrb[0].mxu0
        %10597 = vdwg.mxu0
        %10598 = vmatprep.subr.bf16.mxu0 0
        %10599 = vmatpush1.bf16.msra.mxu0 %v8748
        %10600 = vmatprep.subr.bf16.mxu0 0
        %10601 = vmatpush1.bf16.msra.mxu0 %v8749
        %10602 = vmatprep.subr.bf16.mxu0 0
        %10603 = vmatpush1.bf16.msra.mxu0 %v8750
        %10604 = vmatprep.subr.bf16.mxu0 0
        %10605 = vmatpush1.bf16.msra.mxu0 %v8751
        %10606 = vmatprep.subr.bf16.mxu0 0
        %10607 = vmatpush1.bf16.msra.mxu0 %v8752
        %10608 = vmatprep.subr.bf16.mxu0 0
        %10609 = vmatpush1.bf16.msra.mxu0 %v8753
        %10610 = vmatprep.subr.bf16.mxu0 0
        %10611 = vmatpush1.bf16.msra.mxu0 %v8754
        %10612 = vmatprep.subr.bf16.mxu0 0
        %10613 = vmatpush1.bf16.msra.mxu0 %v8755
        %10614 = vmatprep.subr.bf16.mxu0 0
        %10615 = vmatpush1.bf16.msra.mxu0 %v8756
        %10616 = vmatprep.subr.bf16.mxu0 0
        %10617 = vmatpush1.bf16.msra.mxu0 %v8757
        %10618 = vmatprep.subr.bf16.mxu0 0
        %10619 = vmatpush1.bf16.msra.mxu0 %v8758
        %10620 = vmatprep.subr.bf16.mxu0 0
        %10621 = vmatpush1.bf16.msra.mxu0 %v8759
        %10622 = vmatprep.subr.bf16.mxu0 0
        %10623 = vmatpush1.bf16.msra.mxu0 %v8760
        %10624 = vmatprep.subr.bf16.mxu0 0
        %10625 = vmatpush1.bf16.msra.mxu0 %v8761
        %10626 = vmatprep.subr.bf16.mxu0 0
        %10627 = vmatpush1.bf16.msra.mxu0 %v8762
        %10628 = vmatprep.subr.bf16.mxu0 0
        %10629 = vmatpush1.bf16.msra.mxu0 %v8763
        %10630 = vmatprep.mubr.bf16.mxu0 %v7081
        %10631 = vmatmul.mubr.bf16.gmra.mrb[0].mxu0 %v7017
        %v10632 = vpop.f32.mrb[0].mxu0
        %v10633 = vadd.f32 %v10472, %v10632
        %v10634 = vpop.f32.mrb[0].mxu0
        %v10635 = vpop.f32.mrb[0].mxu0
        %v10636 = vadd.f32 %v10475, %v10635
        %v10637 = vpop.f32.mrb[0].mxu0
        %10638 = vmatprep.mubr.bf16.mxu0 %v7082
        %10639 = vmatmul.mubr.bf16.gmra.mrb[0].mxu0 %v7018
        %v10640 = vpop.f32.mrb[0].mxu0
        %v10641 = vadd.f32 %v10480, %v10640
        %v10642 = vpop.f32.mrb[0].mxu0
        %v10643 = vpop.f32.mrb[0].mxu0
        %v10644 = vadd.f32 %v10483, %v10643
        %v10645 = vpop.f32.mrb[0].mxu0
        %10646 = vmatprep.mubr.bf16.mxu0 %v7083
        %10647 = vmatmul.mubr.bf16.gmra.mrb[0].mxu0 %v7019
        %v10648 = vpop.f32.mrb[0].mxu0
        %v10649 = vadd.f32 %v10488, %v10648
        %v10650 = vpop.f32.mrb[0].mxu0
        %v10651 = vpop.f32.mrb[0].mxu0
        %v10652 = vadd.f32 %v10491, %v10651
        %v10653 = vpop.f32.mrb[0].mxu0
        %10654 = vmatprep.mubr.bf16.mxu0 %v7084
        %10655 = vmatmul.mubr.bf16.gmra.mrb[0].mxu0 %v7020
        %v10656 = vpop.f32.mrb[0].mxu0
        %v10657 = vadd.f32 %v10496, %v10656
        %v10658 = vpop.f32.mrb[0].mxu0
        %v10659 = vpop.f32.mrb[0].mxu0
        %v10660 = vadd.f32 %v10499, %v10659
        %v10661 = vpop.f32.mrb[0].mxu0
        %10662 = vmatprep.mubr.bf16.mxu0 %v7085
        %10663 = vmatmul.mubr.bf16.gmra.mrb[0].mxu0 %v7021
        %v10664 = vpop.f32.mrb[0].mxu0
        %v10665 = vadd.f32 %v10504, %v10664
        %v10666 = vpop.f32.mrb[0].mxu0
        %v10667 = vpop.f32.mrb[0].mxu0
        %v10668 = vadd.f32 %v10507, %v10667
        %v10669 = vpop.f32.mrb[0].mxu0
        %10670 = vmatprep.mubr.bf16.mxu0 %v7086
        %10671 = vmatmul.mubr.bf16.gmra.mrb[0].mxu0 %v7022
        %v10672 = vpop.f32.mrb[0].mxu0
        %v10673 = vadd.f32 %v10512, %v10672
        %v10674 = vpop.f32.mrb[0].mxu0
        %v10675 = vpop.f32.mrb[0].mxu0
        %v10676 = vadd.f32 %v10515, %v10675
        %v10677 = vpop.f32.mrb[0].mxu0
        %10678 = vmatprep.mubr.bf16.mxu0 %v7087
        %10679 = vmatmul.mubr.bf16.gmra.mrb[0].mxu0 %v7023
        %v10680 = vpop.f32.mrb[0].mxu0
        %v10681 = vadd.f32 %v10520, %v10680
        %v10682 = vpop.f32.mrb[0].mxu0
        %v10683 = vpop.f32.mrb[0].mxu0
        %v10684 = vadd.f32 %v10523, %v10683
        %v10685 = vpop.f32.mrb[0].mxu0
        %10686 = vmatprep.mubr.bf16.mxu0 %v7088
        %10687 = vmatmul.mubr.bf16.gmra.mrb[0].mxu0 %v7024
        %v10688 = vpop.f32.mrb[0].mxu0
        %v10689 = vadd.f32 %v10528, %v10688
        %v10690 = vpop.f32.mrb[0].mxu0
        %v10691 = vpop.f32.mrb[0].mxu0
        %v10692 = vadd.f32 %v10531, %v10691
        %v10693 = vpop.f32.mrb[0].mxu0
        %10694 = vmatprep.mubr.bf16.mxu0 %v7089
        %10695 = vmatmul.mubr.bf16.gmra.mrb[0].mxu0 %v7025
        %v10696 = vpop.f32.mrb[0].mxu0
        %v10697 = vadd.f32 %v10536, %v10696
        %v10698 = vpop.f32.mrb[0].mxu0
        %v10699 = vpop.f32.mrb[0].mxu0
        %v10700 = vadd.f32 %v10539, %v10699
        %v10701 = vpop.f32.mrb[0].mxu0
        %10702 = vmatprep.mubr.bf16.mxu0 %v7090
        %10703 = vmatmul.mubr.bf16.gmra.mrb[0].mxu0 %v7026
        %v10704 = vpop.f32.mrb[0].mxu0
        %v10705 = vadd.f32 %v10544, %v10704
        %v10706 = vpop.f32.mrb[0].mxu0
        %v10707 = vpop.f32.mrb[0].mxu0
        %v10708 = vadd.f32 %v10547, %v10707
        %v10709 = vpop.f32.mrb[0].mxu0
        %10710 = vmatprep.mubr.bf16.mxu0 %v7091
        %10711 = vmatmul.mubr.bf16.gmra.mrb[0].mxu0 %v7027
        %v10712 = vpop.f32.mrb[0].mxu0
        %v10713 = vadd.f32 %v10552, %v10712
        %v10714 = vpop.f32.mrb[0].mxu0
        %v10715 = vpop.f32.mrb[0].mxu0
        %v10716 = vadd.f32 %v10555, %v10715
        %v10717 = vpop.f32.mrb[0].mxu0
        %10718 = vmatprep.mubr.bf16.mxu0 %v7092
        %10719 = vmatmul.mubr.bf16.gmra.mrb[0].mxu0 %v7028
        %v10720 = vpop.f32.mrb[0].mxu0
        %v10721 = vadd.f32 %v10560, %v10720
        %v10722 = vpop.f32.mrb[0].mxu0
        %v10723 = vpop.f32.mrb[0].mxu0
        %v10724 = vadd.f32 %v10563, %v10723
        %v10725 = vpop.f32.mrb[0].mxu0
        %10726 = vmatprep.mubr.bf16.mxu0 %v7307
        %10727 = vmatmul.mubr.bf16.gmra.mrb[0].mxu0 %v7303
        %v10728 = vpop.f32.mrb[0].mxu0
        %v10729 = vadd.f32 %v10568, %v10728
        %v10730 = vpop.f32.mrb[0].mxu0
        %v10731 = vpop.f32.mrb[0].mxu0
        %v10732 = vadd.f32 %v10571, %v10731
        %v10733 = vpop.f32.mrb[0].mxu0
        %10734 = vmatprep.mubr.bf16.mxu0 %v7327
        %10735 = vmatmul.mubr.bf16.gmra.mrb[0].mxu0 %v7323
        %v10736 = vpop.f32.mrb[0].mxu0
        %v10737 = vadd.f32 %v10576, %v10736
        %v10738 = vpop.f32.mrb[0].mxu0
        %v10739 = vpop.f32.mrb[0].mxu0
        %v10740 = vadd.f32 %v10579, %v10739
        %v10741 = vpop.f32.mrb[0].mxu0
        %10742 = vmatprep.mubr.bf16.mxu0 %v7347
        %10743 = vmatmul.mubr.bf16.gmra.mrb[0].mxu0 %v7343
        %v10744 = vpop.f32.mrb[0].mxu0
        %v10745 = vadd.f32 %v10584, %v10744
        %v10746 = vpop.f32.mrb[0].mxu0
        %v10747 = vpop.f32.mrb[0].mxu0
        %v10748 = vadd.f32 %v10587, %v10747
        %v10749 = vpop.f32.mrb[0].mxu0
        %10750 = vmatprep.mubr.bf16.mxu0 %v7367
        %10751 = vmatmul.mubr.bf16.gmra.mrb[0].mxu0 %v7363
        %v10752 = vpop.f32.mrb[0].mxu0
        %v10753 = vadd.f32 %v10592, %v10752
        %v10754 = vpop.f32.mrb[0].mxu0
        %v10755 = vpop.f32.mrb[0].mxu0
        %v10756 = vadd.f32 %v10595, %v10755
        %v10757 = vpop.f32.mrb[0].mxu0
        %10758 = vdwg.mxu0
        %10759 = vmatprep.subr.bf16.mxu0 0
        %10760 = vmatpush1.bf16.msra.mxu0 %v8764
        %10761 = vmatprep.subr.bf16.mxu0 0
        %10762 = vmatpush1.bf16.msra.mxu0 %v8765
        %10763 = vmatprep.subr.bf16.mxu0 0
        %10764 = vmatpush1.bf16.msra.mxu0 %v8766
        %10765 = vmatprep.subr.bf16.mxu0 0
        %10766 = vmatpush1.bf16.msra.mxu0 %v8767
        %10767 = vmatprep.subr.bf16.mxu0 0
        %10768 = vmatpush1.bf16.msra.mxu0 %v8768
        %10769 = vmatprep.subr.bf16.mxu0 0
        %10770 = vmatpush1.bf16.msra.mxu0 %v8769
        %10771 = vmatprep.subr.bf16.mxu0 0
        %10772 = vmatpush1.bf16.msra.mxu0 %v8770
        %10773 = vmatprep.subr.bf16.mxu0 0
        %10774 = vmatpush1.bf16.msra.mxu0 %v8771
        %10775 = vmatprep.subr.bf16.mxu0 0
        %10776 = vmatpush1.bf16.msra.mxu0 %v8772
        %10777 = vmatprep.subr.bf16.mxu0 0
        %10778 = vmatpush1.bf16.msra.mxu0 %v8773
        %10779 = vmatprep.subr.bf16.mxu0 0
        %10780 = vmatpush1.bf16.msra.mxu0 %v8774
        %10781 = vmatprep.subr.bf16.mxu0 0
        %10782 = vmatpush1.bf16.msra.mxu0 %v8775
        %10783 = vmatprep.subr.bf16.mxu0 0
        %10784 = vmatpush1.bf16.msra.mxu0 %v8776
        %10785 = vmatprep.subr.bf16.mxu0 0
        %10786 = vmatpush1.bf16.msra.mxu0 %v8777
        %10787 = vmatprep.subr.bf16.mxu0 0
        %10788 = vmatpush1.bf16.msra.mxu0 %v8778
        %10789 = vmatprep.subr.bf16.mxu0 0
        %10790 = vmatpush1.bf16.msra.mxu0 %v8779
        %10791 = vmatprep.mubr.bf16.mxu0 %v7209
        %10792 = vmatmul.mubr.bf16.gmra.mrb[0].mxu0 %v7145
        %v10793 = vpop.f32.mrb[0].mxu0
        %v10794 = vadd.f32 %v10633, %v10793
        %v10795 = vpop.f32.mrb[0].mxu0
        %v10796 = vpop.f32.mrb[0].mxu0
        %v10797 = vadd.f32 %v10636, %v10796
        %v10798 = vpop.f32.mrb[0].mxu0
        %10799 = vmatprep.mubr.bf16.mxu0 %v7210
        %10800 = vmatmul.mubr.bf16.gmra.mrb[0].mxu0 %v7146
        %v10801 = vpop.f32.mrb[0].mxu0
        %v10802 = vadd.f32 %v10641, %v10801
        %v10803 = vpop.f32.mrb[0].mxu0
        %v10804 = vpop.f32.mrb[0].mxu0
        %v10805 = vadd.f32 %v10644, %v10804
        %v10806 = vpop.f32.mrb[0].mxu0
        %10807 = vmatprep.mubr.bf16.mxu0 %v7211
        %10808 = vmatmul.mubr.bf16.gmra.mrb[0].mxu0 %v7147
        %v10809 = vpop.f32.mrb[0].mxu0
        %v10810 = vadd.f32 %v10649, %v10809
        %v10811 = vpop.f32.mrb[0].mxu0
        %v10812 = vpop.f32.mrb[0].mxu0
        %v10813 = vadd.f32 %v10652, %v10812
        %v10814 = vpop.f32.mrb[0].mxu0
        %10815 = vmatprep.mubr.bf16.mxu0 %v7212
        %10816 = vmatmul.mubr.bf16.gmra.mrb[0].mxu0 %v7148
        %v10817 = vpop.f32.mrb[0].mxu0
        %v10818 = vadd.f32 %v10657, %v10817
        %v10819 = vpop.f32.mrb[0].mxu0
        %v10820 = vpop.f32.mrb[0].mxu0
        %v10821 = vadd.f32 %v10660, %v10820
        %v10822 = vpop.f32.mrb[0].mxu0
        %10823 = vmatprep.mubr.bf16.mxu0 %v7213
        %10824 = vmatmul.mubr.bf16.gmra.mrb[0].mxu0 %v7149
        %v10825 = vpop.f32.mrb[0].mxu0
        %v10826 = vadd.f32 %v10665, %v10825
        %v10827 = vpop.f32.mrb[0].mxu0
        %v10828 = vpop.f32.mrb[0].mxu0
        %v10829 = vadd.f32 %v10668, %v10828
        %v10830 = vpop.f32.mrb[0].mxu0
        %10831 = vmatprep.mubr.bf16.mxu0 %v7214
        %10832 = vmatmul.mubr.bf16.gmra.mrb[0].mxu0 %v7150
        %v10833 = vpop.f32.mrb[0].mxu0
        %v10834 = vadd.f32 %v10673, %v10833
        %v10835 = vpop.f32.mrb[0].mxu0
        %v10836 = vpop.f32.mrb[0].mxu0
        %v10837 = vadd.f32 %v10676, %v10836
        %v10838 = vpop.f32.mrb[0].mxu0
        %10839 = vmatprep.mubr.bf16.mxu0 %v7215
        %10840 = vmatmul.mubr.bf16.gmra.mrb[0].mxu0 %v7151
        %v10841 = vpop.f32.mrb[0].mxu0
        %v10842 = vadd.f32 %v10681, %v10841
        %v10843 = vpop.f32.mrb[0].mxu0
        %v10844 = vpop.f32.mrb[0].mxu0
        %v10845 = vadd.f32 %v10684, %v10844
        %v10846 = vpop.f32.mrb[0].mxu0
        %10847 = vmatprep.mubr.bf16.mxu0 %v7216
        %10848 = vmatmul.mubr.bf16.gmra.mrb[0].mxu0 %v7152
        %v10849 = vpop.f32.mrb[0].mxu0
        %v10850 = vadd.f32 %v10689, %v10849
        %v10851 = vpop.f32.mrb[0].mxu0
        %v10852 = vpop.f32.mrb[0].mxu0
        %v10853 = vadd.f32 %v10692, %v10852
        %v10854 = vpop.f32.mrb[0].mxu0
        %10855 = vmatprep.mubr.bf16.mxu0 %v7217
        %10856 = vmatmul.mubr.bf16.gmra.mrb[0].mxu0 %v7153
        %v10857 = vpop.f32.mrb[0].mxu0
        %v10858 = vadd.f32 %v10697, %v10857
        %v10859 = vpop.f32.mrb[0].mxu0
        %v10860 = vpop.f32.mrb[0].mxu0
        %v10861 = vadd.f32 %v10700, %v10860
        %v10862 = vpop.f32.mrb[0].mxu0
        %10863 = vmatprep.mubr.bf16.mxu0 %v7218
        %10864 = vmatmul.mubr.bf16.gmra.mrb[0].mxu0 %v7154
        %v10865 = vpop.f32.mrb[0].mxu0
        %v10866 = vadd.f32 %v10705, %v10865
        %v10867 = vpop.f32.mrb[0].mxu0
        %v10868 = vpop.f32.mrb[0].mxu0
        %v10869 = vadd.f32 %v10708, %v10868
        %v10870 = vpop.f32.mrb[0].mxu0
        %10871 = vmatprep.mubr.bf16.mxu0 %v7219
        %10872 = vmatmul.mubr.bf16.gmra.mrb[0].mxu0 %v7155
        %v10873 = vpop.f32.mrb[0].mxu0
        %v10874 = vadd.f32 %v10713, %v10873
        %v10875 = vpop.f32.mrb[0].mxu0
        %v10876 = vpop.f32.mrb[0].mxu0
        %v10877 = vadd.f32 %v10716, %v10876
        %v10878 = vpop.f32.mrb[0].mxu0
        %10879 = vmatprep.mubr.bf16.mxu0 %v7220
        %10880 = vmatmul.mubr.bf16.gmra.mrb[0].mxu0 %v7156
        %v10881 = vpop.f32.mrb[0].mxu0
        %v10882 = vadd.f32 %v10721, %v10881
        %v10883 = vpop.f32.mrb[0].mxu0
        %v10884 = vpop.f32.mrb[0].mxu0
        %v10885 = vadd.f32 %v10724, %v10884
        %v10886 = vpop.f32.mrb[0].mxu0
        %10887 = vmatprep.mubr.bf16.mxu0 %v7315
        %10888 = vmatmul.mubr.bf16.gmra.mrb[0].mxu0 %v7311
        %v10889 = vpop.f32.mrb[0].mxu0
        %v10890 = vadd.f32 %v10729, %v10889
        %v10891 = vpop.f32.mrb[0].mxu0
        %v10892 = vpop.f32.mrb[0].mxu0
        %v10893 = vadd.f32 %v10732, %v10892
        %v10894 = vpop.f32.mrb[0].mxu0
        %10895 = vmatprep.mubr.bf16.mxu0 %v7335
        %10896 = vmatmul.mubr.bf16.gmra.mrb[0].mxu0 %v7331
        %v10897 = vpop.f32.mrb[0].mxu0
        %v10898 = vadd.f32 %v10737, %v10897
        %v10899 = vpop.f32.mrb[0].mxu0
        %v10900 = vpop.f32.mrb[0].mxu0
        %v10901 = vadd.f32 %v10740, %v10900
        %v10902 = vpop.f32.mrb[0].mxu0
        %10903 = vmatprep.mubr.bf16.mxu0 %v7355
        %10904 = vmatmul.mubr.bf16.gmra.mrb[0].mxu0 %v7351
        %v10905 = vpop.f32.mrb[0].mxu0
        %v10906 = vadd.f32 %v10745, %v10905
        %v10907 = vpop.f32.mrb[0].mxu0
        %v10908 = vpop.f32.mrb[0].mxu0
        %v10909 = vadd.f32 %v10748, %v10908
        %v10910 = vpop.f32.mrb[0].mxu0
        %10911 = vmatprep.mubr.bf16.mxu0 %v7375
        %10912 = vmatmul.mubr.bf16.gmra.mrb[0].mxu0 %v7371
        %v10913 = vpop.f32.mrb[0].mxu0
        %v10914 = vadd.f32 %v10753, %v10913
        %v10915 = vpop.f32.mrb[0].mxu0
        %v10916 = vpop.f32.mrb[0].mxu0
        %v10917 = vadd.f32 %v10756, %v10916
        %v10918 = vpop.f32.mrb[0].mxu0
        %10919 = vdwg.mxu0
        %10920 = vmatprep.subr.bf16.mxu0 0
        %10921 = vmatpush1.bf16.msra.mxu0 %v8780
        %10922 = vmatprep.subr.bf16.mxu0 0
        %10923 = vmatpush1.bf16.msra.mxu0 %v8781
        %10924 = vmatprep.subr.bf16.mxu0 0
        %10925 = vmatpush1.bf16.msra.mxu0 %v8782
        %10926 = vmatprep.subr.bf16.mxu0 0
        %10927 = vmatpush1.bf16.msra.mxu0 %v8783
        %10928 = vmatprep.subr.bf16.mxu0 0
        %10929 = vmatpush1.bf16.msra.mxu0 %v8784
        %10930 = vmatprep.subr.bf16.mxu0 0
        %10931 = vmatpush1.bf16.msra.mxu0 %v8785
        %10932 = vmatprep.subr.bf16.mxu0 0
        %10933 = vmatpush1.bf16.msra.mxu0 %v8786
        %10934 = vmatprep.subr.bf16.mxu0 0
        %10935 = vmatpush1.bf16.msra.mxu0 %v8787
        %10936 = vmatprep.subr.bf16.mxu0 0
        %10937 = vmatpush1.bf16.msra.mxu0 0
        %10938 = vmatprep.subr.bf16.mxu0 0
        %10939 = vmatpush1.bf16.msra.mxu0 0
        %10940 = vmatprep.subr.bf16.mxu0 0
        %10941 = vmatpush1.bf16.msra.mxu0 0
        %10942 = vmatprep.subr.bf16.mxu0 0
        %10943 = vmatpush1.bf16.msra.mxu0 0
        %10944 = vmatprep.subr.bf16.mxu0 0
        %10945 = vmatpush1.bf16.msra.mxu0 0
        %10946 = vmatprep.subr.bf16.mxu0 0
        %10947 = vmatpush1.bf16.msra.mxu0 0
        %10948 = vmatprep.subr.bf16.mxu0 0
        %10949 = vmatpush1.bf16.msra.mxu0 0
        %10950 = vmatprep.subr.bf16.mxu0 0
        %10951 = vmatpush1.bf16.msra.mxu0 0
        %10952 = vmatprep.mubr.bf16.mxu0 0
        %10953 = vmatmul.mubr.bf16.gmra.mrb[0].mxu0 %v7273
        %v10954 = vpop.f32.mrb[0].mxu0
        %v10955 = vadd.f32 %v10794, %v10954
        %v10956 = vpop.f32.mrb[0].mxu0
        %v10957 = vpop.f32.mrb[0].mxu0
        %v10958 = vadd.f32 %v10797, %v10957
        %v10959 = vpop.f32.mrb[0].mxu0
        %10960 = vmatprep.mubr.bf16.mxu0 0
        %10961 = vmatmul.mubr.bf16.gmra.mrb[0].mxu0 %v7274
        %v10962 = vpop.f32.mrb[0].mxu0
        %v10963 = vadd.f32 %v10802, %v10962
        %v10964 = vpop.f32.mrb[0].mxu0
        %v10965 = vpop.f32.mrb[0].mxu0
        %v10966 = vadd.f32 %v10805, %v10965
        %v10967 = vpop.f32.mrb[0].mxu0
        %10968 = vmatprep.mubr.bf16.mxu0 0
        %10969 = vmatmul.mubr.bf16.gmra.mrb[0].mxu0 %v7275
        %v10970 = vpop.f32.mrb[0].mxu0
        %v10971 = vadd.f32 %v10810, %v10970
        %v10972 = vpop.f32.mrb[0].mxu0
        %v10973 = vpop.f32.mrb[0].mxu0
        %v10974 = vadd.f32 %v10813, %v10973
        %v10975 = vpop.f32.mrb[0].mxu0
        %10976 = vmatprep.mubr.bf16.mxu0 0
        %10977 = vmatmul.mubr.bf16.gmra.mrb[0].mxu0 %v7276
        %v10978 = vpop.f32.mrb[0].mxu0
        %v10979 = vadd.f32 %v10818, %v10978
        %v10980 = vpop.f32.mrb[0].mxu0
        %v10981 = vpop.f32.mrb[0].mxu0
        %v10982 = vadd.f32 %v10821, %v10981
        %v10983 = vpop.f32.mrb[0].mxu0
        %10984 = vmatprep.mubr.bf16.mxu0 0
        %10985 = vmatmul.mubr.bf16.gmra.mrb[0].mxu0 %v7277
        %v10986 = vpop.f32.mrb[0].mxu0
        %v10987 = vadd.f32 %v10826, %v10986
        %v10988 = vpop.f32.mrb[0].mxu0
        %v10989 = vpop.f32.mrb[0].mxu0
        %v10990 = vadd.f32 %v10829, %v10989
        %v10991 = vpop.f32.mrb[0].mxu0
        %10992 = vmatprep.mubr.bf16.mxu0 0
        %10993 = vmatmul.mubr.bf16.gmra.mrb[0].mxu0 %v7278
        %v10994 = vpop.f32.mrb[0].mxu0
        %v10995 = vadd.f32 %v10834, %v10994
        %v10996 = vpop.f32.mrb[0].mxu0
        %v10997 = vpop.f32.mrb[0].mxu0
        %v10998 = vadd.f32 %v10837, %v10997
        %v10999 = vpop.f32.mrb[0].mxu0
        %11000 = vmatprep.mubr.bf16.mxu0 0
        %11001 = vmatmul.mubr.bf16.gmra.mrb[0].mxu0 %v7279
        %v11002 = vpop.f32.mrb[0].mxu0
        %v11003 = vadd.f32 %v10842, %v11002
        %v11004 = vpop.f32.mrb[0].mxu0
        %v11005 = vpop.f32.mrb[0].mxu0
        %v11006 = vadd.f32 %v10845, %v11005
        %v11007 = vpop.f32.mrb[0].mxu0
        %11008 = vmatprep.mubr.bf16.mxu0 0
        %11009 = vmatmul.mubr.bf16.gmra.mrb[0].mxu0 %v7280
        %v11010 = vpop.f32.mrb[0].mxu0
        %v11011 = vadd.f32 %v10850, %v11010
        %v11012 = vpop.f32.mrb[0].mxu0
        %v11013 = vpop.f32.mrb[0].mxu0
        %v11014 = vadd.f32 %v10853, %v11013
        %v11015 = vpop.f32.mrb[0].mxu0
        %11016 = vmatprep.mubr.bf16.mxu0 0
        %11017 = vmatmul.mubr.bf16.gmra.mrb[0].mxu0 %v7281
        %v11018 = vpop.f32.mrb[0].mxu0
        %v11019 = vadd.f32 %v10858, %v11018
        %v11020 = vpop.f32.mrb[0].mxu0
        %v11021 = vpop.f32.mrb[0].mxu0
        %v11022 = vadd.f32 %v10861, %v11021
        %v11023 = vpop.f32.mrb[0].mxu0
        %11024 = vmatprep.mubr.bf16.mxu0 0
        %11025 = vmatmul.mubr.bf16.gmra.mrb[0].mxu0 %v7282
        %v11026 = vpop.f32.mrb[0].mxu0
        %v11027 = vadd.f32 %v10866, %v11026
        %v11028 = vpop.f32.mrb[0].mxu0
        %v11029 = vpop.f32.mrb[0].mxu0
        %v11030 = vadd.f32 %v10869, %v11029
        %v11031 = vpop.f32.mrb[0].mxu0
        %11032 = vmatprep.mubr.bf16.mxu0 0
        %11033 = vmatmul.mubr.bf16.gmra.mrb[0].mxu0 %v7283
        %v11034 = vpop.f32.mrb[0].mxu0
        %v11035 = vadd.f32 %v10874, %v11034
        %v11036 = vpop.f32.mrb[0].mxu0
        %v11037 = vpop.f32.mrb[0].mxu0
        %v11038 = vadd.f32 %v10877, %v11037
        %v11039 = vpop.f32.mrb[0].mxu0
        %11040 = vmatprep.mubr.bf16.mxu0 0
        %11041 = vmatmul.mubr.bf16.gmra.mrb[0].mxu0 %v7284
        %v11042 = vpop.f32.mrb[0].mxu0
        %v11043 = vadd.f32 %v10882, %v11042
        %v11044 = vpop.f32.mrb[0].mxu0
        %v11045 = vpop.f32.mrb[0].mxu0
        %v11046 = vadd.f32 %v10885, %v11045
        %v11047 = vpop.f32.mrb[0].mxu0
        %11048 = vmatprep.mubr.bf16.mxu0 0
        %11049 = vmatmul.mubr.bf16.gmra.mrb[0].mxu0 %v7319
        %v11050 = vpop.f32.mrb[0].mxu0
        %v11051 = vadd.f32 %v10890, %v11050
        %v11052 = vpop.f32.mrb[0].mxu0
        %v11053 = vpop.f32.mrb[0].mxu0
        %v11054 = vadd.f32 %v10893, %v11053
        %v11055 = vpop.f32.mrb[0].mxu0
        %11056 = vmatprep.mubr.bf16.mxu0 0
        %11057 = vmatmul.mubr.bf16.gmra.mrb[0].mxu0 %v7339
        %v11058 = vpop.f32.mrb[0].mxu0
        %v11059 = vadd.f32 %v10898, %v11058
        %v11060 = vpop.f32.mrb[0].mxu0
        %v11061 = vpop.f32.mrb[0].mxu0
        %v11062 = vadd.f32 %v10901, %v11061
        %v11063 = vpop.f32.mrb[0].mxu0
        %11064 = vmatprep.mubr.bf16.mxu0 0
        %11065 = vmatmul.mubr.bf16.gmra.mrb[0].mxu0 %v7359
        %v11066 = vpop.f32.mrb[0].mxu0
        %v11067 = vadd.f32 %v10906, %v11066
        %v11068 = vpop.f32.mrb[0].mxu0
        %v11069 = vpop.f32.mrb[0].mxu0
        %v11070 = vadd.f32 %v10909, %v11069
        %v11071 = vpop.f32.mrb[0].mxu0
        %11072 = vmatprep.mubr.bf16.mxu0 0
        %11073 = vmatmul.mubr.bf16.gmra.mrb[0].mxu0 %v7379
        %v11074 = vpop.f32.mrb[0].mxu0
        %v11075 = vadd.f32 %v10914, %v11074
        %v11076 = vpop.f32.mrb[0].mxu0
        %v11077 = vpop.f32.mrb[0].mxu0
        %v11078 = vadd.f32 %v10917, %v11077
        %v11079 = vpop.f32.mrb[0].mxu0
        %11080 = vdwg.mxu0
        %v11081 = vmax.f32 %v10955, 0.0
        %v11082 = vmax.f32 %v10958, 0.0
        %v11083 = vmax.f32 %v10963, 0.0
        %v11084 = vmax.f32 %v10966, 0.0
        %v11085 = vmax.f32 %v10971, 0.0
        %v11086 = vmax.f32 %v10974, 0.0
        %v11087 = vmax.f32 %v10979, 0.0
        %v11088 = vmax.f32 %v10982, 0.0
        %v11089 = vmax.f32 %v10987, 0.0
        %v11090 = vmax.f32 %v10990, 0.0
        %v11091 = vmax.f32 %v10995, 0.0
        %v11092 = vmax.f32 %v10998, 0.0
        %v11093 = vmax.f32 %v11003, 0.0
        %v11094 = vmax.f32 %v11006, 0.0
        %v11095 = vmax.f32 %v11011, 0.0
        %v11096 = vmax.f32 %v11014, 0.0
        %v11097 = vmax.f32 %v11019, 0.0
        %v11098 = vmax.f32 %v11022, 0.0
        %v11099 = vmax.f32 %v11027, 0.0
        %v11100 = vmax.f32 %v11030, 0.0
        %v11101 = vmax.f32 %v11035, 0.0
        %v11102 = vmax.f32 %v11038, 0.0
        %v11103 = vmax.f32 %v11043, 0.0
        %v11104 = vmax.f32 %v11046, 0.0
        %v11105 = vmax.f32 %v11051, 0.0
        %v11106 = vmax.f32 %v11054, 0.0
        %v11107 = vmax.f32 %v11059, 0.0
        %v11108 = vmax.f32 %v11062, 0.0
        %v11109 = vmax.f32 %v11067, 0.0
        %v11110 = vmax.f32 %v11070, 0.0
        %v11111 = vmax.f32 %v11075, 0.0
        %v11112 = vmax.f32 %v11078, 0.0
        %v11113 = vadd.f32 %v924, %v5444
        %v11114 = vadd.f32 %v927, %v5445
        %v11115 = vadd.f32 %v930, %v5446
        %v11116 = vadd.f32 %v933, %v5447
        %v11117 = vadd.f32 %v936, %v5448
        %v11118 = vadd.f32 %v939, %v5449
        %v11119 = vadd.f32 %v942, %v5450
        %v11120 = vadd.f32 %v945, %v5451
        %v11121 = vadd.f32 %v948, %v5452
        %v11122 = vadd.f32 %v951, %v5453
        %v11123 = vadd.f32 %v954, %v5454
        %v11124 = vadd.f32 %v957, %v5455
        %v11125 = vadd.f32 %v960, %v5456
        %v11126 = vadd.f32 %v963, %v5457
        %v11127 = vadd.f32 %v966, %v5458
        %v11128 = vadd.f32 %v969, %v5459
        %v11129 = vadd.f32 %v972, %v5460
        %v11130 = vadd.f32 %v975, %v5461
        %v11131 = vadd.f32 %v978, %v5462
        %v11132 = vadd.f32 %v981, %v5463
        %v11133 = vadd.f32 %v984, %v5464
        %v11134 = vadd.f32 %v987, %v5465
        %v11135 = vadd.f32 %v990, %v5466
        %v11136 = vadd.f32 %v993, %v5467
        %v11137 = vadd.f32 %v996, %v5468
        %v11138 = vadd.f32 %v999, %v5469
        %v11139 = vadd.f32 %v1002, %v5470
        %v11140 = vadd.f32 %v1005, %v5471
        %v11141 = vadd.f32 %v1008, %v5472
        %v11142 = vadd.f32 %v1011, %v5473
        %v11143 = vadd.f32 %v1014, %v5474
        %v11144 = vadd.f32 %v1017, %v5475
        %v11145 = vadd.f32 %v11113, %v11081
        %v11146 = vadd.f32 %v11114, %v11082
        %v11147 = vadd.f32 %v11115, %v11083
        %v11148 = vadd.f32 %v11116, %v11084
        %v11149 = vadd.f32 %v11117, %v11085
        %v11150 = vadd.f32 %v11118, %v11086
        %v11151 = vadd.f32 %v11119, %v11087
        %v11152 = vadd.f32 %v11120, %v11088
        %v11153 = vadd.f32 %v11121, %v11089
        %v11154 = vadd.f32 %v11122, %v11090
        %v11155 = vadd.f32 %v11123, %v11091
        %v11156 = vadd.f32 %v11124, %v11092
        %v11157 = vadd.f32 %v11125, %v11093
        %v11158 = vadd.f32 %v11126, %v11094
        %v11159 = vadd.f32 %v11127, %v11095
        %v11160 = vadd.f32 %v11128, %v11096
        %v11161 = vadd.f32 %v11129, %v11097
        %v11162 = vadd.f32 %v11130, %v11098
        %v11163 = vadd.f32 %v11131, %v11099
        %v11164 = vadd.f32 %v11132, %v11100
        %v11165 = vadd.f32 %v11133, %v11101
        %v11166 = vadd.f32 %v11134, %v11102
        %v11167 = vadd.f32 %v11135, %v11103
        %v11168 = vadd.f32 %v11136, %v11104
        %v11169 = vadd.f32 %v11137, %v11105
        %v11170 = vadd.f32 %v11138, %v11106
        %v11171 = vadd.f32 %v11139, %v11107
        %v11172 = vadd.f32 %v11140, %v11108
        %v11173 = vadd.f32 %v11141, %v11109
        %v11174 = vadd.f32 %v11142, %v11110
        %v11175 = vadd.f32 %v11143, %v11111
        %v11176 = vadd.f32 %v11144, %v11112
        %v11177 = vadd.f32 %v11145, %v2561
        %v11178 = vadd.f32 %v11146, %v2562
        %v11179 = vadd.f32 %v11147, %v2563
        %v11180 = vadd.f32 %v11148, %v2564
        %v11181 = vadd.f32 %v11149, %v2565
        %v11182 = vadd.f32 %v11150, %v2566
        %v11183 = vadd.f32 %v11151, %v2567
        %v11184 = vadd.f32 %v11152, %v2568
        %v11185 = vadd.f32 %v11153, %v2569
        %v11186 = vadd.f32 %v11154, %v2570
        %v11187 = vadd.f32 %v11155, %v2571
        %v11188 = vadd.f32 %v11156, %v2572
        %v11189 = vadd.f32 %v11157, %v2573
        %v11190 = vadd.f32 %v11158, %v2574
        %v11191 = vadd.f32 %v11159, %v2575
        %v11192 = vadd.f32 %v11160, %v2576
        %v11193 = vadd.f32 %v11161, %v2577
        %v11194 = vadd.f32 %v11162, %v2578
        %v11195 = vadd.f32 %v11163, %v2579
        %v11196 = vadd.f32 %v11164, %v2580
        %v11197 = vadd.f32 %v11165, %v2581
        %v11198 = vadd.f32 %v11166, %v2582
        %v11199 = vadd.f32 %v11167, %v2583
        %v11200 = vadd.f32 %v11168, %v2584
        %v11201 = vadd.f32 %v11169, %v2585
        %v11202 = vadd.f32 %v11170, %v2586
        %v11203 = vadd.f32 %v11171, %v2587
        %v11204 = vadd.f32 %v11172, %v2588
        %v11205 = vadd.f32 %v11173, %v2589
        %v11206 = vadd.f32 %v11174, %v2590
        %v11207 = vadd.f32 %v11175, %v2591
        %v11208 = vadd.f32 %v11176, %v2592
        %v11209 = vpack.c.bf16 %v11178, %v11177
        %v11210 = vpack.c.bf16 %v11180, %v11179
        %v11211 = vpack.c.bf16 %v11182, %v11181
        %v11212 = vpack.c.bf16 %v11184, %v11183
        %v11213 = vpack.c.bf16 %v11186, %v11185
        %v11214 = vpack.c.bf16 %v11188, %v11187
        %v11215 = vpack.c.bf16 %v11190, %v11189
        %v11216 = vpack.c.bf16 %v11192, %v11191
        %v11217 = vpack.c.bf16 %v11194, %v11193
        %v11218 = vpack.c.bf16 %v11196, %v11195
        %v11219 = vpack.c.bf16 %v11198, %v11197
        %v11220 = vpack.c.bf16 %v11200, %v11199
        %v11221 = vpack.c.bf16 %v11202, %v11201
        %v11222 = vpack.c.bf16 %v11204, %v11203
        %v11223 = vpack.c.bf16 %v11206, %v11205
        %v11224 = vpack.c.bf16 %v11208, %v11207
        %v11241 = vunpack.c.l.b16 %v11209
        %v11242 = vunpack.c.h.b16 %v11209
        %v11243 = vunpack.c.l.b16 %v11210
        %v11244 = vunpack.c.h.b16 %v11210
        %v11245 = vunpack.c.l.b16 %v11211
        %v11246 = vunpack.c.h.b16 %v11211
        %v11247 = vunpack.c.l.b16 %v11212
        %v11248 = vunpack.c.h.b16 %v11212
        %v11249 = vunpack.c.l.b16 %v11213
        %v11250 = vunpack.c.h.b16 %v11213
        %v11251 = vunpack.c.l.b16 %v11214
        %v11252 = vunpack.c.h.b16 %v11214
        %v11253 = vunpack.c.l.b16 %v11215
        %v11254 = vunpack.c.h.b16 %v11215
        %v11255 = vunpack.c.l.b16 %v11216
        %v11256 = vunpack.c.h.b16 %v11216
        %v11257 = vunpack.c.l.b16 %v11217
        %v11258 = vunpack.c.h.b16 %v11217
        %v11259 = vunpack.c.l.b16 %v11218
        %v11260 = vunpack.c.h.b16 %v11218
        %v11261 = vunpack.c.l.b16 %v11219
        %v11262 = vunpack.c.h.b16 %v11219
        %v11263 = vunpack.c.l.b16 %v11220
        %v11264 = vunpack.c.h.b16 %v11220
        %v11265 = vunpack.c.l.b16 %v11221
        %v11266 = vunpack.c.h.b16 %v11221
        %v11267 = vunpack.c.l.b16 %v11222
        %v11268 = vunpack.c.h.b16 %v11222
        %v11269 = vunpack.c.l.b16 %v11223
        %v11270 = vunpack.c.h.b16 %v11223
        %v11271 = vunpack.c.l.b16 %v11224
        %v11272 = vunpack.c.h.b16 %v11224
        %v11273 = vpack.c.b16 %v11241, %v11241
        %v11274 = vpack.c.b16 %v11242, %v11242
        %v11275 = vpack.c.b16 %v11243, %v11243
        %v11276 = vpack.c.b16 %v11244, %v11244
        %v11277 = vpack.c.b16 %v11245, %v11245
        %v11278 = vpack.c.b16 %v11246, %v11246
        %v11279 = vpack.c.b16 %v11247, %v11247
        %v11280 = vpack.c.b16 %v11248, %v11248
        %v11281 = vpack.c.b16 %v11249, %v11249
        %v11282 = vpack.c.b16 %v11250, %v11250
        %v11283 = vpack.c.b16 %v11251, %v11251
        %v11284 = vpack.c.b16 %v11252, %v11252
        %v11285 = vpack.c.b16 %v11253, %v11253
        %v11286 = vpack.c.b16 %v11254, %v11254
        %v11287 = vpack.c.b16 %v11255, %v11255
        %v11288 = vpack.c.b16 %v11256, %v11256
        %v11289 = vpack.c.b16 %v11257, %v11257
        %v11290 = vpack.c.b16 %v11258, %v11258
        %v11291 = vpack.c.b16 %v11259, %v11259
        %v11292 = vpack.c.b16 %v11260, %v11260
        %v11293 = vpack.c.b16 %v11261, %v11261
        %v11294 = vpack.c.b16 %v11262, %v11262
        %v11295 = vpack.c.b16 %v11263, %v11263
        %v11296 = vpack.c.b16 %v11264, %v11264
        %v11297 = vpack.c.b16 %v11265, %v11265
        %v11298 = vpack.c.b16 %v11266, %v11266
        %v11299 = vpack.c.b16 %v11267, %v11267
        %v11300 = vpack.c.b16 %v11268, %v11268
        %v11301 = vpack.c.b16 %v11269, %v11269
        %v11302 = vpack.c.b16 %v11270, %v11270
        %v11303 = vpack.c.b16 %v11271, %v11271
        %v11304 = vpack.c.b16 %v11272, %v11272
        %11337 = vst [vmem:[%s362] sm:$0xf] %v11273
        %11338 = vst [vmem:[%s362 + $0x4] sm:$0xf] %v11274
        %11339 = vst [vmem:[%s362 + $0x8] sm:$0xf] %v11275
        %11340 = vst [vmem:[%s362 + $0xc] sm:$0xf] %v11276
        %11341 = vst [vmem:[%s362 + $0x10] sm:$0xf] %v11277
        %11342 = vst [vmem:[%s362 + $0x14] sm:$0xf] %v11278
        %11343 = vst [vmem:[%s362 + $0x18] sm:$0xf] %v11279
        %11344 = vst [vmem:[%s362 + $0x1c] sm:$0xf] %v11280
        %11345 = vst [vmem:[%s362 + $0x20] sm:$0xf] %v11281
        %11346 = vst [vmem:[%s362 + $0x24] sm:$0xf] %v11282
        %11347 = vst [vmem:[%s362 + $0x28] sm:$0xf] %v11283
        %11348 = vst [vmem:[%s362 + $0x2c] sm:$0xf] %v11284
        %11349 = vst [vmem:[%s362 + $0x30] sm:$0xf] %v11285
        %11350 = vst [vmem:[%s362 + $0x34] sm:$0xf] %v11286
        %11351 = vst [vmem:[%s362 + $0x38] sm:$0xf] %v11287
        %11352 = vst [vmem:[%s362 + $0x3c] sm:$0xf] %v11288
        %11353 = vst [vmem:[%s362 + $0x40] sm:$0xf] %v11289
        %11354 = vst [vmem:[%s362 + $0x44] sm:$0xf] %v11290
        %11355 = vst [vmem:[%s362 + $0x48] sm:$0xf] %v11291
        %11356 = vst [vmem:[%s362 + $0x4c] sm:$0xf] %v11292
        %11357 = vst [vmem:[%s362 + $0x50] sm:$0xf] %v11293
        %11358 = vst [vmem:[%s362 + $0x54] sm:$0xf] %v11294
        %11359 = vst [vmem:[%s362 + $0x58] sm:$0xf] %v11295
        %11360 = vst [vmem:[%s362 + $0x5c] sm:$0xf] %v11296
        %11361 = vst [vmem:[%s362 + $0x60] sm:$0xf] %v11297
        %11362 = vst [vmem:[%s362 + $0x64] sm:$0xf] %v11298
        %11363 = vst [vmem:[%s362 + $0x68] sm:$0xf] %v11299
        %11364 = vst [vmem:[%s362 + $0x6c] sm:$0xf] %v11300
        %11365 = vst [vmem:[%s362 + $0x70] sm:$0xf] %v11301
        %11366 = vst [vmem:[%s362 + $0x74] sm:$0xf] %v11302
        %11367 = vst [vmem:[%s362 + $0x78] sm:$0xf] %v11303
        %11368 = vst [vmem:[%s362 + $0x7c] sm:$0xf] %v11304
        %p11369 = scmp.lt.s32.totalorder %s22, 1
        %s11370 = scalar_select %p11369, %s22, 1
        %s11371 = smul.addr %s11370, 32
        %s11372 = smul.addr %s11371, 4
        %s11373 = scalar_lea.vmem %s9, %s11372
        // Predicated region
        $region65: #{inception_forward.1} parent=55 // pred_check
          %p11374 = pneg %p234
        $region66: #{inception_forward.1} parent=55 // pred_check_branch
          %11376 = sbr.rel (%p11374) target = $region68
        $region67: #{inception_forward.1} parent=55 // pred_region
          _
        $region68: #{inception_forward.1} parent=55 // pred_fallthru
          _
      $region56: #{inception_forward.1} parent=5 // pred_fallthru
        _
      %p11377 = scmp.le.s32.totalorder 2, %s17
      // Predicated region
      $region69: #{inception_forward.1} parent=5 // pred_check
        %p11378 = pneg %p11377
      $region70: #{inception_forward.1} parent=5 // pred_check_branch
        %11380 = sbr.rel (%p11378) target = $region72
      $region71: #{inception_forward.1} parent=5 // pred_region
        %s11381 = ssub.s32 %s17, 2
        // Predicated region
        $region73: #{inception_forward.1} parent=71 // pred_check
          %p11382 = pneg %p240
        $region74: #{inception_forward.1} parent=71 // pred_check_branch
          %11384 = sbr.rel (%p11382) target = $region76
        $region75: #{inception_forward.1} parent=71 // pred_region
          %p11385 = scmp.lt.s32.totalorder %s23, 1
          %s11386 = scalar_select %p11385, %s23, 1
          %s11387 = smul.addr %s11386, 32
          %s11388 = smul.addr %s11387, 4
          %s11389 = scalar_lea.vmem %s9, %s11388
        $region76: #{inception_forward.1} parent=71 // pred_fallthru
          _
      $region72: #{inception_forward.1} parent=5 // pred_fallthru
        _
    $region6: #{inception_forward.1} parent=1 // loop_footer
      %s21 = sadd.s32 1, %s17
    $region7: #{inception_forward.1} parent=1 // loop_footer_branch
      %16 = sbr.rel target = $region3
    $region8: #{inception_forward.1} parent=1 // loop_exit
      _
    %11390 = vsyncpa [#allocation6], 1
    %s11391 = scalar_lea.sflag [#allocation6], 1
    %11392 = vsyncpa %s11391, 1
    %11393 = vsyncpa [#allocation8], 1

</llo_original>
